<compile_context>
chip_gen: v6e
topology: v6e:2x2x1
jax: 0.10.0
libtpu: 0.0.40
codegen_flags: <defaults>
</compile_context>

<pallas_src>
import jax
import jax.numpy as jnp
from jax.experimental import pallas as pl
from jax.experimental.pallas import tpu as pltpu

BN_EPS = 1e-5

CONV_CHANNELS = ((3, 4), (4, 6), (6, 8), (8, 8))
# Layers 1,2: Conv -> ReLU -> BatchNorm ; Layers 3,4: Conv -> BatchNorm -> ReLU
CONV_RELU_BEFORE_BN = (True, True, False, False)
FC_RELU = (True, True, False)


# --------------------------------------------------------------------------
# Conv layer kernels: (Cout, 9*Cin) @ (9*Cin, TM) -> lane-dense (Cout, TM)
# --------------------------------------------------------------------------
def _conv_kernel_relu_bn(x_ref, w_ref, b_ref, s_ref, t_ref, o_ref):
    # Conv -> bias -> ReLU -> BatchNorm (layers 1, 2)
    y = jnp.dot(w_ref[...], x_ref[...], preferred_element_type=jnp.float32)
    y = jnp.maximum(y + b_ref[...], 0.0)
    o_ref[...] = y * s_ref[...] + t_ref[...]


def _conv_kernel_folded(x_ref, w_ref, b_ref, o_ref):
    # Conv -> BatchNorm -> ReLU with BN folded into (w, b) wrapper-side (layers 3, 4)
    y = jnp.dot(w_ref[...], x_ref[...], preferred_element_type=jnp.float32)
    o_ref[...] = jnp.maximum(y + b_ref[...], 0.0)


def conv3x3_bn_relu(x_cbhw, w, b, scale, shift, relu_before_bn):
    """ReflectionPad(1) + Conv2d(3x3) + bias + BN(affine) + ReLU on (C,B,H,W)."""
    C, B, H, W = x_cbhw.shape
    Cout = w.shape[-1]
    K = 9 * C
    M = B * H * W

    # Wrapper-side layout plumbing: reflection pad + im2col, laid out K-major
    # so the kernel output tile is lane-dense (Cout, TM).
    xp = jnp.pad(x_cbhw, ((0, 0), (0, 0), (1, 1), (1, 1)), mode="reflect")
    taps = jnp.stack([xp[:, :, dy:dy + H, dx:dx + W]
                      for dy in range(3) for dx in range(3)], axis=0)  # (9,C,B,H,W)
    cols_t = taps.reshape(K, M)                 # row index = tap*Cin + cin
    w2t = w.reshape(K, Cout).T                  # (Cout, 9*Cin)

    if relu_before_bn:
        kernel = _conv_kernel_relu_bn
        w_eff = w2t
        b_eff = b.reshape(Cout, 1)
        extra = (scale.reshape(Cout, 1), shift.reshape(Cout, 1))
    else:
        # Fold eval-mode BN into the conv operands (exact: ReLU comes after BN).
        kernel = _conv_kernel_folded
        w_eff = w2t * scale[:, None]
        b_eff = (b * scale + shift).reshape(Cout, 1)
        extra = ()

    TM = 512 if M >= 512 else M                 # lane dim of the output tile
    grid = (pl.cdiv(M, TM),)                    # ragged last tile handled by Pallas

    param_specs = [pl.BlockSpec((Cout, 1), lambda i: (0, 0))
                   for _ in range(1 + len(extra))]

    cost = pl.CostEstimate(
        flops=2 * M * K * Cout, transcendentals=0,
        bytes_accessed=4 * (M * K + K * Cout + M * Cout + (1 + len(extra)) * Cout))

    out = pl.pallas_call(
        kernel,
        out_shape=jax.ShapeDtypeStruct((Cout, M), jnp.float32),
        grid=grid,
        in_specs=[pl.BlockSpec((K, TM), lambda i: (0, i)),
                  pl.BlockSpec((Cout, K), lambda i: (0, 0))] + param_specs,
        out_specs=pl.BlockSpec((Cout, TM), lambda i: (0, i)),
        compiler_params=pltpu.CompilerParams(
            dimension_semantics=("parallel",)),
        cost_estimate=cost,
    )(cols_t, w_eff, b_eff, *extra)
    return out.reshape(Cout, B, H, W)


# --------------------------------------------------------------------------
# Linear kernel: (N,K)-tiled bf16 matmul, f32 VMEM accumulator, fused bias/ReLU
# --------------------------------------------------------------------------
def _make_linear_kernel(apply_relu):
    def kernel(x_ref, w_ref, b_ref, o_ref, acc_ref):
        k = pl.program_id(1)

        @pl.when(k == 0)
        def _():
            acc_ref[...] = jnp.zeros_like(acc_ref)

        acc_ref[...] += jnp.dot(x_ref[...], w_ref[...],
                                preferred_element_type=jnp.float32)

        @pl.when(k == pl.num_programs(1) - 1)
        def _():
            y = acc_ref[...] + b_ref[...]
            if apply_relu:
                y = jnp.maximum(y, 0.0)
            o_ref[...] = y
    return kernel


# Lane-aligned (multiple-of-128) K-tile candidates; covers the real K=80000
# (-> 3200) and the demo K=2048.  Budget keeps double-buffered bf16 weight
# tiles comfortably inside v7x's 64 MiB (32 MiB scoped) VMEM.
_TK_CANDIDATES = (16384, 8192, 4096, 3200, 2048, 1024, 640, 512, 256, 128)
_WEIGHT_TILE_BUDGET = 12 * 1024 * 1024


def linear(x, w, b, apply_relu):
    M, K = x.shape
    N = w.shape[-1]

    # Lane-dense N: pad 500 -> 512 (unmasked stores) and tile N so both v7x
    # TensorCores participate; tiny heads (N < 128) stay unpadded/untiled.
    if N >= 128:
        n_pad = ((N + 127) // 128) * 128
        TN = 256 if n_pad % 256 == 0 else 128
    else:
        n_pad, TN = N, N
    if n_pad != N:
        w = jnp.pad(w, ((0, 0), (0, n_pad - N)))
        b = jnp.pad(b, (0, n_pad - N))

    TK = K
    for cand in _TK_CANDIDATES:
        if K % cand == 0 and 2 * cand * n_pad * 2 <= _WEIGHT_TILE_BUDGET:
            TK = cand
            break

    # Stream operands as bf16 (native MXU input on all generations); the
    # accumulator, bias and ReLU stay f32.
    xb = x.astype(jnp.bfloat16)
    wb = w.astype(jnp.bfloat16)
    b2 = b.reshape(1, n_pad).astype(jnp.float32)

    grid = (n_pad // TN, K // TK)

    # Explicit, generation-aware VMEM cap (double-buffered inputs/outputs + acc).
    need = 2 * (M * TK * 2 + TK * TN * 2 + TN * 4 + M * TN * 4) + M * TN * 4
    vmem_limit = int(min(32 * 1024 * 1024, max(16 * 1024 * 1024, 2 * need)))

    cost = pl.CostEstimate(
        flops=2 * M * K * n_pad, transcendentals=0,
        bytes_accessed=2 * (M * K + K * n_pad) + 4 * (M * n_pad + n_pad))

    out = pl.pallas_call(
        _make_linear_kernel(apply_relu),
        out_shape=jax.ShapeDtypeStruct((M, n_pad), jnp.float32),
        grid=grid,
        in_specs=[
            pl.BlockSpec((M, TK), lambda n, k: (0, k)),
            pl.BlockSpec((TK, TN), lambda n, k: (k, n)),
            pl.BlockSpec((1, TN), lambda n, k: (0, n)),
        ],
        out_specs=pl.BlockSpec((M, TN), lambda n, k: (0, n)),
        scratch_shapes=[pltpu.VMEM((M, TN), jnp.float32)],
        compiler_params=pltpu.CompilerParams(
            dimension_semantics=("parallel", "arbitrary"),
            vmem_limit_bytes=vmem_limit),
        cost_estimate=cost,
    )(xb, wb, b2)
    return out[:, :N] if n_pad != N else out


# --------------------------------------------------------------------------
# Full SiameseNet forward
# --------------------------------------------------------------------------
def forward_once(x_nchw, params):
    B = x_nchw.shape[0]
    # Carry activations as (C, B, H, W): the conv kernels emit channel-major
    # output directly, so no transposes are needed between conv layers.
    x = jnp.transpose(x_nchw, (1, 0, 2, 3)).astype(jnp.float32)
    for layer, relu_first in zip(params["conv"], CONV_RELU_BEFORE_BN):
        x = conv3x3_bn_relu(x, layer["w"], layer["b"], layer["scale"],
                            layer["shift"], relu_first)
    # Match torch's .view(B, -1) flatten order on an NCHW tensor.
    h = jnp.transpose(x, (1, 0, 2, 3)).reshape(B, -1)
    for layer, relu in zip(params["fc"], FC_RELU):
        h = linear(h, layer["w"], layer["b"], relu)
    return h


def siamese_forward(params, input1, input2):
    # Stack the two towers: one pass over (2B, C, H, W) -> every weight is
    # streamed once and the number of pallas_call launches is halved.
    B = input1.shape[0]
    stacked = jnp.concatenate([input1, input2], axis=0)
    out = forward_once(stacked, params)
    return out[:B], out[B:]


# --------------------------------------------------------------------------
# Parameters and pure-JAX reference
# --------------------------------------------------------------------------
def init_params(key, spatial):
    params = {"conv": [], "fc": []}
    for cin, cout in CONV_CHANNELS:
        key, kw, kb, kg, kbe, km, kv = jax.random.split(key, 7)
        w = jax.random.normal(kw, (3, 3, cin, cout), jnp.float32) / jnp.sqrt(9.0 * cin)
        b = 0.1 * jax.random.normal(kb, (cout,), jnp.float32)
        gamma = 1.0 + 0.1 * jax.random.normal(kg, (cout,), jnp.float32)
        beta = 0.1 * jax.random.normal(kbe, (cout,), jnp.float32)
        mean = 0.1 * jax.random.normal(km, (cout,), jnp.float32)
        var = 0.5 + jnp.abs(jax.random.normal(kv, (cout,), jnp.float32))
        scale = gamma / jnp.sqrt(var + BN_EPS)
        shift = beta - mean * scale
        params["conv"].append(dict(w=w, b=b, scale=scale, shift=shift))
    fc_dims = ((8 * spatial * spatial, 500), (500, 500), (500, 5))
    for fin, fout in fc_dims:
        key, kw, kb = jax.random.split(key, 3)
        w = jax.random.normal(kw, (fin, fout), jnp.float32) / jnp.sqrt(float(fin))
        b = 0.1 * jax.random.normal(kb, (fout,), jnp.float32)
        params["fc"].append(dict(w=w, b=b))
    return params


def _ref_forward_once(x_nchw, params):
    x = jnp.transpose(x_nchw, (0, 2, 3, 1)).astype(jnp.float32)
    for layer, relu_first in zip(params["conv"], CONV_RELU_BEFORE_BN):
        B, H, W, Cin = x.shape
        xp = jnp.pad(x, ((0, 0), (1, 1), (1, 1), (0, 0)), mode="reflect")
        cols = jnp.concatenate(
            [xp[:, dy:dy + H, dx:dx + W, :] for dy in range(3) for dx in range(3)],
            axis=-1)
        w2 = layer["w"].reshape(9 * Cin, -1)
        y = jnp.einsum("bhwk,kc->bhwc", cols, w2,
                       precision=jax.lax.Precision.HIGHEST) + layer["b"]
        if relu_first:
            y = jnp.maximum(y, 0.0)
            y = y * layer["scale"] + layer["shift"]
        else:
            y = y * layer["scale"] + layer["shift"]
            y = jnp.maximum(y, 0.0)
        x = y
    B = x.shape[0]
    h = jnp.transpose(x, (0, 3, 1, 2)).reshape(B, -1)
    for layer, relu in zip(params["fc"], FC_RELU):
        h = jnp.dot(h, layer["w"], precision=jax.lax.Precision.HIGHEST) + layer["b"]
        if relu:
            h = jnp.maximum(h, 0.0)
    return h


if __name__ == "__main__":
    B, C, SPATIAL = 2, 3, 16   # module hard-codes 100x100; use 16x16 for a small demo
    key = jax.random.PRNGKey(0)
    kp, k1, k2 = jax.random.split(key, 3)
    params = init_params(kp, SPATIAL)
    input1 = jax.random.normal(k1, (B, C, SPATIAL, SPATIAL), jnp.float32)
    input2 = jax.random.normal(k2, (B, C, SPATIAL, SPATIAL), jnp.float32)

    fwd = jax.jit(siamese_forward)
    out1, out2 = fwd(params, input1, input2)
    jax.block_until_ready((out1, out2))

    ref1 = _ref_forward_once(input1, params)
    ref2 = _ref_forward_once(input2, params)

    assert out1.shape == (B, 5) and out2.shape == (B, 5), (out1.shape, out2.shape)
    # bf16 streaming of the FC weights/activations is a deliberate perf/numerics
    # tradeoff; 2e-2 tolerance covers the accumulated rounding comfortably.
    assert jnp.allclose(out1, ref1, rtol=2e-2, atol=2e-2), (out1, ref1)
    assert jnp.allclose(out2, ref2, rtol=2e-2, atol=2e-2), (out2, ref2)

    print("KERNEL_OK")
</pallas_src>

<mosaic_0001>
module attributes {stable_mosaic.version = 11 : i64} {
  func.func @_conv_kernel_relu_bn(%arg0: i32, %arg1: memref<27x512xf32, #tpu.memory_space<vmem>>, %arg2: memref<4x27xf32, #tpu.memory_space<vmem>>, %arg3: memref<4x1xf32, #tpu.memory_space<vmem>>, %arg4: memref<4x1xf32, #tpu.memory_space<vmem>>, %arg5: memref<4x1xf32, #tpu.memory_space<vmem>>, %arg6: memref<4x512xf32, #tpu.memory_space<vmem>>) attributes {dimension_semantics = [#tpu.dimension_semantics<parallel>], iteration_bounds = array<i64: 2>, scalar_prefetch = 0 : i64, scratch_operands = 0 : i64, tpu.core_type = #tpu.core_type<tc>, window_params = [{transform_indices = @transform_0, window_bounds = array<i64: 27, 512>}, {pipeline_mode = #tpu.pipeline_mode<synchronous>, transform_indices = @transform_1, window_bounds = array<i64: 4, 27>}, {pipeline_mode = #tpu.pipeline_mode<synchronous>, transform_indices = @transform_2, window_bounds = array<i64: 4, 1>}, {pipeline_mode = #tpu.pipeline_mode<synchronous>, transform_indices = @transform_3, window_bounds = array<i64: 4, 1>}, {pipeline_mode = #tpu.pipeline_mode<synchronous>, transform_indices = @transform_4, window_bounds = array<i64: 4, 1>}, {transform_indices = @transform_5, window_bounds = array<i64: 4, 512>}]} {
    %c0 = arith.constant 0 : index
    %c0_0 = arith.constant 0 : index
    %0 = vector.load %arg2[%c0, %c0_0] : memref<4x27xf32, #tpu.memory_space<vmem>>, vector<4x27xf32>
    %c0_1 = arith.constant 0 : index
    %c0_2 = arith.constant 0 : index
    %1 = vector.load %arg1[%c0_1, %c0_2] : memref<27x512xf32, #tpu.memory_space<vmem>>, vector<27x512xf32>
    %cst = arith.constant dense<0.000000e+00> : vector<4x512xf32>
    %2 = tpu.matmul %0, %1, %cst {dimension_numbers = #tpu.dot_dimension_numbers<[1], [0], [0], [1], [0, 0, 1, 1], [], []>} : vector<4x27xf32>, vector<27x512xf32>, vector<4x512xf32> -> vector<4x512xf32>
    %c0_3 = arith.constant 0 : index
    %c0_4 = arith.constant 0 : index
    %3 = vector.load %arg3[%c0_3, %c0_4] : memref<4x1xf32, #tpu.memory_space<vmem>>, vector<4x1xf32>
    %4 = vector.broadcast %3 : vector<4x1xf32> to vector<4x512xf32>
    %5 = arith.addf %2, %4 : vector<4x512xf32>
    %cst_5 = arith.constant 0.000000e+00 : f32
    %6 = vector.broadcast %cst_5 : f32 to vector<4x512xf32>
    %7 = arith.maximumf %5, %6 : vector<4x512xf32>
    %c0_6 = arith.constant 0 : index
    %c0_7 = arith.constant 0 : index
    %8 = vector.load %arg4[%c0_6, %c0_7] : memref<4x1xf32, #tpu.memory_space<vmem>>, vector<4x1xf32>
    %9 = vector.broadcast %8 : vector<4x1xf32> to vector<4x512xf32>
    %10 = arith.mulf %7, %9 : vector<4x512xf32>
    %c0_8 = arith.constant 0 : index
    %c0_9 = arith.constant 0 : index
    %11 = vector.load %arg5[%c0_8, %c0_9] : memref<4x1xf32, #tpu.memory_space<vmem>>, vector<4x1xf32>
    %12 = vector.broadcast %11 : vector<4x1xf32> to vector<4x512xf32>
    %13 = arith.addf %10, %12 : vector<4x512xf32>
    %c0_10 = arith.constant 0 : index
    %c0_11 = arith.constant 0 : index
    %14 = vector.load %arg6[%c0_10, %c0_11] : memref<4x512xf32, #tpu.memory_space<vmem>>, vector<4x512xf32>
    tpu.vector_store %arg6[%c0_10, %c0_11], %13 {strides = array<i32>} : memref<4x512xf32, #tpu.memory_space<vmem>>, vector<4x512xf32>,
    return
  }
  func.func @transform_0(%arg0: i32) -> (i32, i32) {
    %c0_i32 = arith.constant 0 : i32
    %c0_i32_0 = arith.constant 0 : i32
    return %c0_i32, %arg0 : i32, i32
  }
  func.func @transform_1(%arg0: i32) -> (i32, i32) {
    %c0_i32 = arith.constant 0 : i32
    %c0_i32_0 = arith.constant 0 : i32
    %c0_i32_1 = arith.constant 0 : i32
    return %c0_i32, %c0_i32_0 : i32, i32
  }
  func.func @transform_2(%arg0: i32) -> (i32, i32) {
    %c0_i32 = arith.constant 0 : i32
    %c0_i32_0 = arith.constant 0 : i32
    %c0_i32_1 = arith.constant 0 : i32
    return %c0_i32, %c0_i32_0 : i32, i32
  }
  func.func @transform_3(%arg0: i32) -> (i32, i32) {
    %c0_i32 = arith.constant 0 : i32
    %c0_i32_0 = arith.constant 0 : i32
    %c0_i32_1 = arith.constant 0 : i32
    return %c0_i32, %c0_i32_0 : i32, i32
  }
  func.func @transform_4(%arg0: i32) -> (i32, i32) {
    %c0_i32 = arith.constant 0 : i32
    %c0_i32_0 = arith.constant 0 : i32
    %c0_i32_1 = arith.constant 0 : i32
    return %c0_i32, %c0_i32_0 : i32, i32
  }
  func.func @transform_5(%arg0: i32) -> (i32, i32) {
    %c0_i32 = arith.constant 0 : i32
    %c0_i32_0 = arith.constant 0 : i32
    return %c0_i32, %arg0 : i32, i32
  }
}

module attributes {stable_mosaic.version = 11 : i64} {
  func.func @_conv_kernel_relu_bn(%arg0: i32, %arg1: memref<36x512xf32, #tpu.memory_space<vmem>>, %arg2: memref<6x36xf32, #tpu.memory_space<vmem>>, %arg3: memref<6x1xf32, #tpu.memory_space<vmem>>, %arg4: memref<6x1xf32, #tpu.memory_space<vmem>>, %arg5: memref<6x1xf32, #tpu.memory_space<vmem>>, %arg6: memref<6x512xf32, #tpu.memory_space<vmem>>) attributes {dimension_semantics = [#tpu.dimension_semantics<parallel>], iteration_bounds = array<i64: 2>, scalar_prefetch = 0 : i64, scratch_operands = 0 : i64, tpu.core_type = #tpu.core_type<tc>, window_params = [{transform_indices = @transform_0, window_bounds = array<i64: 36, 512>}, {pipeline_mode = #tpu.pipeline_mode<synchronous>, transform_indices = @transform_1, window_bounds = array<i64: 6, 36>}, {pipeline_mode = #tpu.pipeline_mode<synchronous>, transform_indices = @transform_2, window_bounds = array<i64: 6, 1>}, {pipeline_mode = #tpu.pipeline_mode<synchronous>, transform_indices = @transform_3, window_bounds = array<i64: 6, 1>}, {pipeline_mode = #tpu.pipeline_mode<synchronous>, transform_indices = @transform_4, window_bounds = array<i64: 6, 1>}, {transform_indices = @transform_5, window_bounds = array<i64: 6, 512>}]} {
    %c0 = arith.constant 0 : index
    %c0_0 = arith.constant 0 : index
    %0 = vector.load %arg2[%c0, %c0_0] : memref<6x36xf32, #tpu.memory_space<vmem>>, vector<6x36xf32>
    %c0_1 = arith.constant 0 : index
    %c0_2 = arith.constant 0 : index
    %1 = vector.load %arg1[%c0_1, %c0_2] : memref<36x512xf32, #tpu.memory_space<vmem>>, vector<36x512xf32>
    %cst = arith.constant dense<0.000000e+00> : vector<6x512xf32>
    %2 = tpu.matmul %0, %1, %cst {dimension_numbers = #tpu.dot_dimension_numbers<[1], [0], [0], [1], [0, 0, 1, 1], [], []>} : vector<6x36xf32>, vector<36x512xf32>, vector<6x512xf32> -> vector<6x512xf32>
    %c0_3 = arith.constant 0 : index
    %c0_4 = arith.constant 0 : index
    %3 = vector.load %arg3[%c0_3, %c0_4] : memref<6x1xf32, #tpu.memory_space<vmem>>, vector<6x1xf32>
    %4 = vector.broadcast %3 : vector<6x1xf32> to vector<6x512xf32>
    %5 = arith.addf %2, %4 : vector<6x512xf32>
    %cst_5 = arith.constant 0.000000e+00 : f32
    %6 = vector.broadcast %cst_5 : f32 to vector<6x512xf32>
    %7 = arith.maximumf %5, %6 : vector<6x512xf32>
    %c0_6 = arith.constant 0 : index
    %c0_7 = arith.constant 0 : index
    %8 = vector.load %arg4[%c0_6, %c0_7] : memref<6x1xf32, #tpu.memory_space<vmem>>, vector<6x1xf32>
    %9 = vector.broadcast %8 : vector<6x1xf32> to vector<6x512xf32>
    %10 = arith.mulf %7, %9 : vector<6x512xf32>
    %c0_8 = arith.constant 0 : index
    %c0_9 = arith.constant 0 : index
    %11 = vector.load %arg5[%c0_8, %c0_9] : memref<6x1xf32, #tpu.memory_space<vmem>>, vector<6x1xf32>
    %12 = vector.broadcast %11 : vector<6x1xf32> to vector<6x512xf32>
    %13 = arith.addf %10, %12 : vector<6x512xf32>
    %c0_10 = arith.constant 0 : index
    %c0_11 = arith.constant 0 : index
    %14 = vector.load %arg6[%c0_10, %c0_11] : memref<6x512xf32, #tpu.memory_space<vmem>>, vector<6x512xf32>
    tpu.vector_store %arg6[%c0_10, %c0_11], %13 {strides = array<i32>} : memref<6x512xf32, #tpu.memory_space<vmem>>, vector<6x512xf32>,
    return
  }
  func.func @transform_0(%arg0: i32) -> (i32, i32) {
    %c0_i32 = arith.constant 0 : i32
    %c0_i32_0 = arith.constant 0 : i32
    return %c0_i32, %arg0 : i32, i32
  }
  func.func @transform_1(%arg0: i32) -> (i32, i32) {
    %c0_i32 = arith.constant 0 : i32
    %c0_i32_0 = arith.constant 0 : i32
    %c0_i32_1 = arith.constant 0 : i32
    return %c0_i32, %c0_i32_0 : i32, i32
  }
  func.func @transform_2(%arg0: i32) -> (i32, i32) {
    %c0_i32 = arith.constant 0 : i32
    %c0_i32_0 = arith.constant 0 : i32
    %c0_i32_1 = arith.constant 0 : i32
    return %c0_i32, %c0_i32_0 : i32, i32
  }
  func.func @transform_3(%arg0: i32) -> (i32, i32) {
    %c0_i32 = arith.constant 0 : i32
    %c0_i32_0 = arith.constant 0 : i32
    %c0_i32_1 = arith.constant 0 : i32
    return %c0_i32, %c0_i32_0 : i32, i32
  }
  func.func @transform_4(%arg0: i32) -> (i32, i32) {
    %c0_i32 = arith.constant 0 : i32
    %c0_i32_0 = arith.constant 0 : i32
    %c0_i32_1 = arith.constant 0 : i32
    return %c0_i32, %c0_i32_0 : i32, i32
  }
  func.func @transform_5(%arg0: i32) -> (i32, i32) {
    %c0_i32 = arith.constant 0 : i32
    %c0_i32_0 = arith.constant 0 : i32
    return %c0_i32, %arg0 : i32, i32
  }
}

module attributes {stable_mosaic.version = 11 : i64} {
  func.func @_conv_kernel_folded(%arg0: i32, %arg1: memref<54x512xf32, #tpu.memory_space<vmem>>, %arg2: memref<8x54xf32, #tpu.memory_space<vmem>>, %arg3: memref<8x1xf32, #tpu.memory_space<vmem>>, %arg4: memref<8x512xf32, #tpu.memory_space<vmem>>) attributes {dimension_semantics = [#tpu.dimension_semantics<parallel>], iteration_bounds = array<i64: 2>, scalar_prefetch = 0 : i64, scratch_operands = 0 : i64, tpu.core_type = #tpu.core_type<tc>, window_params = [{transform_indices = @transform_0, window_bounds = array<i64: 54, 512>}, {pipeline_mode = #tpu.pipeline_mode<synchronous>, transform_indices = @transform_1, window_bounds = array<i64: 8, 54>}, {pipeline_mode = #tpu.pipeline_mode<synchronous>, transform_indices = @transform_2, window_bounds = array<i64: 8, 1>}, {transform_indices = @transform_3, window_bounds = array<i64: 8, 512>}]} {
    %c0 = arith.constant 0 : index
    %c0_0 = arith.constant 0 : index
    %0 = vector.load %arg2[%c0, %c0_0] : memref<8x54xf32, #tpu.memory_space<vmem>>, vector<8x54xf32>
    %c0_1 = arith.constant 0 : index
    %c0_2 = arith.constant 0 : index
    %1 = vector.load %arg1[%c0_1, %c0_2] : memref<54x512xf32, #tpu.memory_space<vmem>>, vector<54x512xf32>
    %cst = arith.constant dense<0.000000e+00> : vector<8x512xf32>
    %2 = tpu.matmul %0, %1, %cst {dimension_numbers = #tpu.dot_dimension_numbers<[1], [0], [0], [1], [0, 0, 1, 1], [], []>} : vector<8x54xf32>, vector<54x512xf32>, vector<8x512xf32> -> vector<8x512xf32>
    %c0_3 = arith.constant 0 : index
    %c0_4 = arith.constant 0 : index
    %3 = vector.load %arg3[%c0_3, %c0_4] : memref<8x1xf32, #tpu.memory_space<vmem>>, vector<8x1xf32>
    %4 = vector.broadcast %3 : vector<8x1xf32> to vector<8x512xf32>
    %5 = arith.addf %2, %4 : vector<8x512xf32>
    %cst_5 = arith.constant 0.000000e+00 : f32
    %6 = vector.broadcast %cst_5 : f32 to vector<8x512xf32>
    %7 = arith.maximumf %5, %6 : vector<8x512xf32>
    %c0_6 = arith.constant 0 : index
    %c0_7 = arith.constant 0 : index
    %8 = vector.load %arg4[%c0_6, %c0_7] : memref<8x512xf32, #tpu.memory_space<vmem>>, vector<8x512xf32>
    tpu.vector_store %arg4[%c0_6, %c0_7], %7 {strides = array<i32>} : memref<8x512xf32, #tpu.memory_space<vmem>>, vector<8x512xf32>,
    return
  }
  func.func @transform_0(%arg0: i32) -> (i32, i32) {
    %c0_i32 = arith.constant 0 : i32
    %c0_i32_0 = arith.constant 0 : i32
    return %c0_i32, %arg0 : i32, i32
  }
  func.func @transform_1(%arg0: i32) -> (i32, i32) {
    %c0_i32 = arith.constant 0 : i32
    %c0_i32_0 = arith.constant 0 : i32
    %c0_i32_1 = arith.constant 0 : i32
    return %c0_i32, %c0_i32_0 : i32, i32
  }
  func.func @transform_2(%arg0: i32) -> (i32, i32) {
    %c0_i32 = arith.constant 0 : i32
    %c0_i32_0 = arith.constant 0 : i32
    %c0_i32_1 = arith.constant 0 : i32
    return %c0_i32, %c0_i32_0 : i32, i32
  }
  func.func @transform_3(%arg0: i32) -> (i32, i32) {
    %c0_i32 = arith.constant 0 : i32
    %c0_i32_0 = arith.constant 0 : i32
    return %c0_i32, %arg0 : i32, i32
  }
}

module attributes {stable_mosaic.version = 11 : i64} {
  func.func @_conv_kernel_folded(%arg0: i32, %arg1: memref<72x512xf32, #tpu.memory_space<vmem>>, %arg2: memref<8x72xf32, #tpu.memory_space<vmem>>, %arg3: memref<8x1xf32, #tpu.memory_space<vmem>>, %arg4: memref<8x512xf32, #tpu.memory_space<vmem>>) attributes {dimension_semantics = [#tpu.dimension_semantics<parallel>], iteration_bounds = array<i64: 2>, scalar_prefetch = 0 : i64, scratch_operands = 0 : i64, tpu.core_type = #tpu.core_type<tc>, window_params = [{transform_indices = @transform_0, window_bounds = array<i64: 72, 512>}, {pipeline_mode = #tpu.pipeline_mode<synchronous>, transform_indices = @transform_1, window_bounds = array<i64: 8, 72>}, {pipeline_mode = #tpu.pipeline_mode<synchronous>, transform_indices = @transform_2, window_bounds = array<i64: 8, 1>}, {transform_indices = @transform_3, window_bounds = array<i64: 8, 512>}]} {
    %c0 = arith.constant 0 : index
    %c0_0 = arith.constant 0 : index
    %0 = vector.load %arg2[%c0, %c0_0] : memref<8x72xf32, #tpu.memory_space<vmem>>, vector<8x72xf32>
    %c0_1 = arith.constant 0 : index
    %c0_2 = arith.constant 0 : index
    %1 = vector.load %arg1[%c0_1, %c0_2] : memref<72x512xf32, #tpu.memory_space<vmem>>, vector<72x512xf32>
    %cst = arith.constant dense<0.000000e+00> : vector<8x512xf32>
    %2 = tpu.matmul %0, %1, %cst {dimension_numbers = #tpu.dot_dimension_numbers<[1], [0], [0], [1], [0, 0, 1, 1], [], []>} : vector<8x72xf32>, vector<72x512xf32>, vector<8x512xf32> -> vector<8x512xf32>
    %c0_3 = arith.constant 0 : index
    %c0_4 = arith.constant 0 : index
    %3 = vector.load %arg3[%c0_3, %c0_4] : memref<8x1xf32, #tpu.memory_space<vmem>>, vector<8x1xf32>
    %4 = vector.broadcast %3 : vector<8x1xf32> to vector<8x512xf32>
    %5 = arith.addf %2, %4 : vector<8x512xf32>
    %cst_5 = arith.constant 0.000000e+00 : f32
    %6 = vector.broadcast %cst_5 : f32 to vector<8x512xf32>
    %7 = arith.maximumf %5, %6 : vector<8x512xf32>
    %c0_6 = arith.constant 0 : index
    %c0_7 = arith.constant 0 : index
    %8 = vector.load %arg4[%c0_6, %c0_7] : memref<8x512xf32, #tpu.memory_space<vmem>>, vector<8x512xf32>
    tpu.vector_store %arg4[%c0_6, %c0_7], %7 {strides = array<i32>} : memref<8x512xf32, #tpu.memory_space<vmem>>, vector<8x512xf32>,
    return
  }
  func.func @transform_0(%arg0: i32) -> (i32, i32) {
    %c0_i32 = arith.constant 0 : i32
    %c0_i32_0 = arith.constant 0 : i32
    return %c0_i32, %arg0 : i32, i32
  }
  func.func @transform_1(%arg0: i32) -> (i32, i32) {
    %c0_i32 = arith.constant 0 : i32
    %c0_i32_0 = arith.constant 0 : i32
    %c0_i32_1 = arith.constant 0 : i32
    return %c0_i32, %c0_i32_0 : i32, i32
  }
  func.func @transform_2(%arg0: i32) -> (i32, i32) {
    %c0_i32 = arith.constant 0 : i32
    %c0_i32_0 = arith.constant 0 : i32
    %c0_i32_1 = arith.constant 0 : i32
    return %c0_i32, %c0_i32_0 : i32, i32
  }
  func.func @transform_3(%arg0: i32) -> (i32, i32) {
    %c0_i32 = arith.constant 0 : i32
    %c0_i32_0 = arith.constant 0 : i32
    return %c0_i32, %arg0 : i32, i32
  }
}

module attributes {stable_mosaic.version = 11 : i64} {
  func.func @kernel(%arg0: i32, %arg1: i32, %arg2: memref<4x2048xbf16, #tpu.memory_space<vmem>>, %arg3: memref<2048x256xbf16, #tpu.memory_space<vmem>>, %arg4: memref<1x256xf32, #tpu.memory_space<vmem>>, %arg5: memref<4x256xf32, #tpu.memory_space<vmem>>, %arg6: memref<4x256xf32, #tpu.memory_space<vmem>>) attributes {dimension_semantics = [#tpu.dimension_semantics<parallel>, #tpu.dimension_semantics<arbitrary>], iteration_bounds = array<i64: 2, 1>, scalar_prefetch = 0 : i64, scratch_operands = 1 : i64, tpu.core_type = #tpu.core_type<tc>, window_params = [{transform_indices = @transform_0, window_bounds = array<i64: 4, 2048>}, {transform_indices = @transform_1, window_bounds = array<i64: 2048, 256>}, {transform_indices = @transform_2, window_bounds = array<i64: 1, 256>}, {transform_indices = @transform_3, window_bounds = array<i64: 4, 256>}]} {
    %c0_i32 = arith.constant 0 : i32
    %0 = arith.cmpi eq, %arg1, %c0_i32 : i32
    %1 = arith.extui %0 : i1 to i32
    %c0_i32_0 = arith.constant 0 : i32
    %2 = arith.cmpi ne, %1, %c0_i32_0 : i32
    scf.if %2 {
      %cst_10 = arith.constant 0.000000e+00 : f32
      %12 = vector.broadcast %cst_10 : f32 to vector<4x256xf32>
      %c0_11 = arith.constant 0 : index
      %c0_12 = arith.constant 0 : index
      %13 = vector.load %arg6[%c0_11, %c0_12] : memref<4x256xf32, #tpu.memory_space<vmem>>, vector<4x256xf32>
      tpu.vector_store %arg6[%c0_11, %c0_12], %12 {strides = array<i32>} : memref<4x256xf32, #tpu.memory_space<vmem>>, vector<4x256xf32>,
    } else {
    }
    %c0 = arith.constant 0 : index
    %c0_1 = arith.constant 0 : index
    %3 = vector.load %arg6[%c0, %c0_1] : memref<4x256xf32, #tpu.memory_space<vmem>>, vector<4x256xf32>
    %c0_2 = arith.constant 0 : index
    %c0_3 = arith.constant 0 : index
    %4 = vector.load %arg2[%c0_2, %c0_3] : memref<4x2048xbf16, #tpu.memory_space<vmem>>, vector<4x2048xbf16>
    %c0_4 = arith.constant 0 : index
    %c0_5 = arith.constant 0 : index
    %5 = vector.load %arg3[%c0_4, %c0_5] : memref<2048x256xbf16, #tpu.memory_space<vmem>>, vector<2048x256xbf16>
    %cst = arith.constant dense<0.000000e+00> : vector<4x256xf32>
    %6 = tpu.matmul %4, %5, %cst {dimension_numbers = #tpu.dot_dimension_numbers<[1], [0], [0], [1], [0, 0, 1, 1], [], []>} : vector<4x2048xbf16>, vector<2048x256xbf16>, vector<4x256xf32> -> vector<4x256xf32>
    %7 = arith.addf %3, %6 : vector<4x256xf32>
    %c0_6 = arith.constant 0 : index
    %c0_7 = arith.constant 0 : index
    %8 = vector.load %arg6[%c0_6, %c0_7] : memref<4x256xf32, #tpu.memory_space<vmem>>, vector<4x256xf32>
    tpu.vector_store %arg6[%c0_6, %c0_7], %7 {strides = array<i32>} : memref<4x256xf32, #tpu.memory_space<vmem>>, vector<4x256xf32>,
    %c0_i32_8 = arith.constant 0 : i32
    %9 = arith.cmpi eq, %arg1, %c0_i32_8 : i32
    %10 = arith.extui %9 : i1 to i32
    %c0_i32_9 = arith.constant 0 : i32
    %11 = arith.cmpi ne, %10, %c0_i32_9 : i32
    scf.if %11 {
      %c0_10 = arith.constant 0 : index
      %c0_11 = arith.constant 0 : index
      %12 = vector.load %arg6[%c0_10, %c0_11] : memref<4x256xf32, #tpu.memory_space<vmem>>, vector<4x256xf32>
      %c0_12 = arith.constant 0 : index
      %c0_13 = arith.constant 0 : index
      %13 = vector.load %arg4[%c0_12, %c0_13] : memref<1x256xf32, #tpu.memory_space<vmem>>, vector<1x256xf32>
      %14 = vector.broadcast %13 : vector<1x256xf32> to vector<4x256xf32>
      %15 = arith.addf %12, %14 : vector<4x256xf32>
      %cst_14 = arith.constant 0.000000e+00 : f32
      %16 = vector.broadcast %cst_14 : f32 to vector<4x256xf32>
      %17 = arith.maximumf %15, %16 : vector<4x256xf32>
      %c0_15 = arith.constant 0 : index
      %c0_16 = arith.constant 0 : index
      %18 = vector.load %arg5[%c0_15, %c0_16] : memref<4x256xf32, #tpu.memory_space<vmem>>, vector<4x256xf32>
      tpu.vector_store %arg5[%c0_15, %c0_16], %17 {strides = array<i32>} : memref<4x256xf32, #tpu.memory_space<vmem>>, vector<4x256xf32>,
    } else {
    }
    return
  }
  func.func @transform_0(%arg0: i32, %arg1: i32) -> (i32, i32) {
    %c0_i32 = arith.constant 0 : i32
    %c0_i32_0 = arith.constant 0 : i32
    return %c0_i32, %arg1 : i32, i32
  }
  func.func @transform_1(%arg0: i32, %arg1: i32) -> (i32, i32) {
    %c0_i32 = arith.constant 0 : i32
    return %arg1, %arg0 : i32, i32
  }
  func.func @transform_2(%arg0: i32, %arg1: i32) -> (i32, i32) {
    %c0_i32 = arith.constant 0 : i32
    %c0_i32_0 = arith.constant 0 : i32
    return %c0_i32, %arg0 : i32, i32
  }
  func.func @transform_3(%arg0: i32, %arg1: i32) -> (i32, i32) {
    %c0_i32 = arith.constant 0 : i32
    %c0_i32_0 = arith.constant 0 : i32
    return %c0_i32, %arg0 : i32, i32
  }
}

module attributes {stable_mosaic.version = 11 : i64} {
  func.func @kernel(%arg0: i32, %arg1: i32, %arg2: memref<4x500xbf16, #tpu.memory_space<vmem>>, %arg3: memref<500x256xbf16, #tpu.memory_space<vmem>>, %arg4: memref<1x256xf32, #tpu.memory_space<vmem>>, %arg5: memref<4x256xf32, #tpu.memory_space<vmem>>, %arg6: memref<4x256xf32, #tpu.memory_space<vmem>>) attributes {dimension_semantics = [#tpu.dimension_semantics<parallel>, #tpu.dimension_semantics<arbitrary>], iteration_bounds = array<i64: 2, 1>, scalar_prefetch = 0 : i64, scratch_operands = 1 : i64, tpu.core_type = #tpu.core_type<tc>, window_params = [{transform_indices = @transform_0, window_bounds = array<i64: 4, 500>}, {transform_indices = @transform_1, window_bounds = array<i64: 500, 256>}, {transform_indices = @transform_2, window_bounds = array<i64: 1, 256>}, {transform_indices = @transform_3, window_bounds = array<i64: 4, 256>}]} {
    %c0_i32 = arith.constant 0 : i32
    %0 = arith.cmpi eq, %arg1, %c0_i32 : i32
    %1 = arith.extui %0 : i1 to i32
    %c0_i32_0 = arith.constant 0 : i32
    %2 = arith.cmpi ne, %1, %c0_i32_0 : i32
    scf.if %2 {
      %cst_10 = arith.constant 0.000000e+00 : f32
      %12 = vector.broadcast %cst_10 : f32 to vector<4x256xf32>
      %c0_11 = arith.constant 0 : index
      %c0_12 = arith.constant 0 : index
      %13 = vector.load %arg6[%c0_11, %c0_12] : memref<4x256xf32, #tpu.memory_space<vmem>>, vector<4x256xf32>
      tpu.vector_store %arg6[%c0_11, %c0_12], %12 {strides = array<i32>} : memref<4x256xf32, #tpu.memory_space<vmem>>, vector<4x256xf32>,
    } else {
    }
    %c0 = arith.constant 0 : index
    %c0_1 = arith.constant 0 : index
    %3 = vector.load %arg6[%c0, %c0_1] : memref<4x256xf32, #tpu.memory_space<vmem>>, vector<4x256xf32>
    %c0_2 = arith.constant 0 : index
    %c0_3 = arith.constant 0 : index
    %4 = vector.load %arg2[%c0_2, %c0_3] : memref<4x500xbf16, #tpu.memory_space<vmem>>, vector<4x500xbf16>
    %c0_4 = arith.constant 0 : index
    %c0_5 = arith.constant 0 : index
    %5 = vector.load %arg3[%c0_4, %c0_5] : memref<500x256xbf16, #tpu.memory_space<vmem>>, vector<500x256xbf16>
    %cst = arith.constant dense<0.000000e+00> : vector<4x256xf32>
    %6 = tpu.matmul %4, %5, %cst {dimension_numbers = #tpu.dot_dimension_numbers<[1], [0], [0], [1], [0, 0, 1, 1], [], []>} : vector<4x500xbf16>, vector<500x256xbf16>, vector<4x256xf32> -> vector<4x256xf32>
    %7 = arith.addf %3, %6 : vector<4x256xf32>
    %c0_6 = arith.constant 0 : index
    %c0_7 = arith.constant 0 : index
    %8 = vector.load %arg6[%c0_6, %c0_7] : memref<4x256xf32, #tpu.memory_space<vmem>>, vector<4x256xf32>
    tpu.vector_store %arg6[%c0_6, %c0_7], %7 {strides = array<i32>} : memref<4x256xf32, #tpu.memory_space<vmem>>, vector<4x256xf32>,
    %c0_i32_8 = arith.constant 0 : i32
    %9 = arith.cmpi eq, %arg1, %c0_i32_8 : i32
    %10 = arith.extui %9 : i1 to i32
    %c0_i32_9 = arith.constant 0 : i32
    %11 = arith.cmpi ne, %10, %c0_i32_9 : i32
    scf.if %11 {
      %c0_10 = arith.constant 0 : index
      %c0_11 = arith.constant 0 : index
      %12 = vector.load %arg6[%c0_10, %c0_11] : memref<4x256xf32, #tpu.memory_space<vmem>>, vector<4x256xf32>
      %c0_12 = arith.constant 0 : index
      %c0_13 = arith.constant 0 : index
      %13 = vector.load %arg4[%c0_12, %c0_13] : memref<1x256xf32, #tpu.memory_space<vmem>>, vector<1x256xf32>
      %14 = vector.broadcast %13 : vector<1x256xf32> to vector<4x256xf32>
      %15 = arith.addf %12, %14 : vector<4x256xf32>
      %cst_14 = arith.constant 0.000000e+00 : f32
      %16 = vector.broadcast %cst_14 : f32 to vector<4x256xf32>
      %17 = arith.maximumf %15, %16 : vector<4x256xf32>
      %c0_15 = arith.constant 0 : index
      %c0_16 = arith.constant 0 : index
      %18 = vector.load %arg5[%c0_15, %c0_16] : memref<4x256xf32, #tpu.memory_space<vmem>>, vector<4x256xf32>
      tpu.vector_store %arg5[%c0_15, %c0_16], %17 {strides = array<i32>} : memref<4x256xf32, #tpu.memory_space<vmem>>, vector<4x256xf32>,
    } else {
    }
    return
  }
  func.func @transform_0(%arg0: i32, %arg1: i32) -> (i32, i32) {
    %c0_i32 = arith.constant 0 : i32
    %c0_i32_0 = arith.constant 0 : i32
    return %c0_i32, %arg1 : i32, i32
  }
  func.func @transform_1(%arg0: i32, %arg1: i32) -> (i32, i32) {
    %c0_i32 = arith.constant 0 : i32
    return %arg1, %arg0 : i32, i32
  }
  func.func @transform_2(%arg0: i32, %arg1: i32) -> (i32, i32) {
    %c0_i32 = arith.constant 0 : i32
    %c0_i32_0 = arith.constant 0 : i32
    return %c0_i32, %arg0 : i32, i32
  }
  func.func @transform_3(%arg0: i32, %arg1: i32) -> (i32, i32) {
    %c0_i32 = arith.constant 0 : i32
    %c0_i32_0 = arith.constant 0 : i32
    return %c0_i32, %arg0 : i32, i32
  }
}

module attributes {stable_mosaic.version = 11 : i64} {
  func.func @kernel(%arg0: i32, %arg1: i32, %arg2: memref<4x500xbf16, #tpu.memory_space<vmem>>, %arg3: memref<500x5xbf16, #tpu.memory_space<vmem>>, %arg4: memref<1x5xf32, #tpu.memory_space<vmem>>, %arg5: memref<4x5xf32, #tpu.memory_space<vmem>>, %arg6: memref<4x5xf32, #tpu.memory_space<vmem>>) attributes {dimension_semantics = [#tpu.dimension_semantics<parallel>, #tpu.dimension_semantics<arbitrary>], iteration_bounds = array<i64: 1, 1>, scalar_prefetch = 0 : i64, scratch_operands = 1 : i64, tpu.core_type = #tpu.core_type<tc>, window_params = [{transform_indices = @transform_0, window_bounds = array<i64: 4, 500>}, {transform_indices = @transform_1, window_bounds = array<i64: 500, 5>}, {transform_indices = @transform_2, window_bounds = array<i64: 1, 5>}, {transform_indices = @transform_3, window_bounds = array<i64: 4, 5>}]} {
    %c0_i32 = arith.constant 0 : i32
    %0 = arith.cmpi eq, %arg1, %c0_i32 : i32
    %1 = arith.extui %0 : i1 to i32
    %c0_i32_0 = arith.constant 0 : i32
    %2 = arith.cmpi ne, %1, %c0_i32_0 : i32
    scf.if %2 {
      %cst_10 = arith.constant 0.000000e+00 : f32
      %12 = vector.broadcast %cst_10 : f32 to vector<4x5xf32>
      %c0_11 = arith.constant 0 : index
      %c0_12 = arith.constant 0 : index
      %13 = vector.load %arg6[%c0_11, %c0_12] : memref<4x5xf32, #tpu.memory_space<vmem>>, vector<4x5xf32>
      tpu.vector_store %arg6[%c0_11, %c0_12], %12 {strides = array<i32>} : memref<4x5xf32, #tpu.memory_space<vmem>>, vector<4x5xf32>,
    } else {
    }
    %c0 = arith.constant 0 : index
    %c0_1 = arith.constant 0 : index
    %3 = vector.load %arg6[%c0, %c0_1] : memref<4x5xf32, #tpu.memory_space<vmem>>, vector<4x5xf32>
    %c0_2 = arith.constant 0 : index
    %c0_3 = arith.constant 0 : index
    %4 = vector.load %arg2[%c0_2, %c0_3] : memref<4x500xbf16, #tpu.memory_space<vmem>>, vector<4x500xbf16>
    %c0_4 = arith.constant 0 : index
    %c0_5 = arith.constant 0 : index
    %5 = vector.load %arg3[%c0_4, %c0_5] : memref<500x5xbf16, #tpu.memory_space<vmem>>, vector<500x5xbf16>
    %cst = arith.constant dense<0.000000e+00> : vector<4x5xf32>
    %6 = tpu.matmul %4, %5, %cst {dimension_numbers = #tpu.dot_dimension_numbers<[1], [0], [0], [1], [0, 0, 1, 1], [], []>} : vector<4x500xbf16>, vector<500x5xbf16>, vector<4x5xf32> -> vector<4x5xf32>
    %7 = arith.addf %3, %6 : vector<4x5xf32>
    %c0_6 = arith.constant 0 : index
    %c0_7 = arith.constant 0 : index
    %8 = vector.load %arg6[%c0_6, %c0_7] : memref<4x5xf32, #tpu.memory_space<vmem>>, vector<4x5xf32>
    tpu.vector_store %arg6[%c0_6, %c0_7], %7 {strides = array<i32>} : memref<4x5xf32, #tpu.memory_space<vmem>>, vector<4x5xf32>,
    %c0_i32_8 = arith.constant 0 : i32
    %9 = arith.cmpi eq, %arg1, %c0_i32_8 : i32
    %10 = arith.extui %9 : i1 to i32
    %c0_i32_9 = arith.constant 0 : i32
    %11 = arith.cmpi ne, %10, %c0_i32_9 : i32
    scf.if %11 {
      %c0_10 = arith.constant 0 : index
      %c0_11 = arith.constant 0 : index
      %12 = vector.load %arg6[%c0_10, %c0_11] : memref<4x5xf32, #tpu.memory_space<vmem>>, vector<4x5xf32>
      %c0_12 = arith.constant 0 : index
      %c0_13 = arith.constant 0 : index
      %13 = vector.load %arg4[%c0_12, %c0_13] : memref<1x5xf32, #tpu.memory_space<vmem>>, vector<1x5xf32>
      %14 = vector.broadcast %13 : vector<1x5xf32> to vector<4x5xf32>
      %15 = arith.addf %12, %14 : vector<4x5xf32>
      %c0_14 = arith.constant 0 : index
      %c0_15 = arith.constant 0 : index
      %16 = vector.load %arg5[%c0_14, %c0_15] : memref<4x5xf32, #tpu.memory_space<vmem>>, vector<4x5xf32>
      tpu.vector_store %arg5[%c0_14, %c0_15], %15 {strides = array<i32>} : memref<4x5xf32, #tpu.memory_space<vmem>>, vector<4x5xf32>,
    } else {
    }
    return
  }
  func.func @transform_0(%arg0: i32, %arg1: i32) -> (i32, i32) {
    %c0_i32 = arith.constant 0 : i32
    %c0_i32_0 = arith.constant 0 : i32
    return %c0_i32, %arg1 : i32, i32
  }
  func.func @transform_1(%arg0: i32, %arg1: i32) -> (i32, i32) {
    %c0_i32 = arith.constant 0 : i32
    return %arg1, %arg0 : i32, i32
  }
  func.func @transform_2(%arg0: i32, %arg1: i32) -> (i32, i32) {
    %c0_i32 = arith.constant 0 : i32
    %c0_i32_0 = arith.constant 0 : i32
    return %c0_i32, %arg0 : i32, i32
  }
  func.func @transform_3(%arg0: i32, %arg1: i32) -> (i32, i32) {
    %c0_i32 = arith.constant 0 : i32
    %c0_i32_0 = arith.constant 0 : i32
    return %c0_i32, %arg0 : i32, i32
  }
}

</mosaic_0001>

<llo_original>
// kernel: siamese_forward.7
$region0: #{siamese_forward.7}
  #allocation0 [shape = 'u32[]', space=smem, size = 0x4, offset = 0x4, fixed_abs, tag = 'smem constant byte address 0x4 - core index']
  #allocation1 [shape = 'u32[144,128]{1,0:T(1,128)}', space=vmem, size = 0x12000, scoped, tag = 'internal scratch']
  %s0 = inlined_call_operand.vmem [shape: f32[27,1024], index: 0, kind: input, shape index: {}]
  %s1 = inlined_call_operand.vmem [shape: f32[4,27], index: 1, kind: input, shape index: {}]
  %s2 = inlined_call_operand.vmem [shape: f32[4,1], index: 2, kind: input, shape index: {}]
  %s3 = inlined_call_operand.vmem [shape: f32[4,1], index: 3, kind: input, shape index: {}]
  %s4 = inlined_call_operand.vmem [shape: f32[4,1], index: 4, kind: input, shape index: {}]
  %s5 = inlined_call_operand.vmem [shape: f32[4,1024], index: 5, kind: output, shape index: {}]
  %s6 = sld [smem:[#allocation0]]
  $region76: #{siamese_forward.7} parent=0
    _
  %s8 = ssub.s32 1, %s6
  %s9 = scalar_select 0, %s8, %s6
  $region1: #{siamese_forward.7} parent=0
    #allocation2 [shape = 'u8[131072]{0}', space=vmem, size = 0x20000, scoped, tag = 'input window, operand 0']
    loop: start=0, step=1, limit=4
    $region2: #{siamese_forward.7} parent=1 // loop_pre_header
      _
    $region3: #{siamese_forward.7} parent=1 // loop_header
      %s11 = sphi 0, %s15
      %p12 = scmp.ge.s32.totalorder %s11, 4
      %s21 = sphi 0, %s23
      %s24 = sphi 0, %s21
      %s25 = sphi 0, %s24
      %s41 = sphi 0, %s25
      %s45 = sphi 0, %s45
      %s47 = sphi 0, %s45
      %s48 = sphi 0, %s47
      %s62 = sphi 0, %s48
      %s66 = sphi 0, %s66
      %s68 = sphi 0, %s66
      %s69 = sphi 0, %s68
      %s83 = sphi 0, %s69
      %s87 = sphi 0, %s87
      %s89 = sphi 0, %s87
      %s90 = sphi 0, %s89
      %s104 = sphi 0, %s90
      %s108 = sphi 0, %s108
      %s110 = sphi 0, %s108
      %s111 = sphi 0, %s110
      %s125 = sphi 0, %s111
      %s131 = sphi 0, %s133
      %s134 = sphi 0, %s131
      %s135 = sphi 0, %s134
      %s151 = sphi 0, %s135
    $region4: #{siamese_forward.7} parent=1 // loop_header_branch
      %14 = sbr.rel (%p12) target = $region8
    $region5: #{siamese_forward.7} parent=1 // loop_body
      %s16 = ssub.s32 %s11, 1
      %s17 = ssub.s32 %s11, 2
      %s18 = sadd.s32 %s11, 1
      %s19 = ssub.s32 %s11, %s18
      %p20 = scmp.eq.s32.totalorder %s19, 0
      %s22 = sadd.s32 %s21, 1
      %s23 = scalar_select %p20, %s21, %s22
      %p26 = pneg %p20
      %p27 = scmp.eq.s32.totalorder %s11, 1
      %p28 = por %p26, %p27
      %p29 = scmp.ne.s32.totalorder %s21, %s24
      %p30 = scmp.eq.s32.totalorder %s11, 0
      %p31 = por %p29, %p30
      %p32 = scmp.ne.s32.totalorder %s21, %s24
      %p33 = scmp.eq.s32.totalorder %s16, 1
      %p34 = por %p32, %p33
      %p35 = scmp.ne.s32.totalorder %s24, %s25
      %p36 = scmp.eq.s32.totalorder %s16, 0
      %p37 = por %p35, %p36
      %p38 = scmp.ne.s32.totalorder %s24, %s25
      %p39 = scmp.eq.s32.totalorder %s17, 1
      %p40 = por %p38, %p39
      %p42 = scmp.ne.s32.totalorder %s25, %s41
      %p43 = scmp.eq.s32.totalorder %s17, 0
      %p44 = por %p42, %p43
      %s46 = sadd.s32 %s45, 1
      %p49 = scmp.eq.s32.totalorder %s11, 1
      %p50 = scmp.ne.s32.totalorder %s45, %s47
      %p51 = scmp.eq.s32.totalorder %s11, 0
      %p52 = por %p50, %p51
      %p53 = scmp.ne.s32.totalorder %s45, %s47
      %p54 = scmp.eq.s32.totalorder %s16, 1
      %p55 = por %p53, %p54
      %p56 = scmp.ne.s32.totalorder %s47, %s48
      %p57 = scmp.eq.s32.totalorder %s16, 0
      %p58 = por %p56, %p57
      %p59 = scmp.ne.s32.totalorder %s47, %s48
      %p60 = scmp.eq.s32.totalorder %s17, 1
      %p61 = por %p59, %p60
      %p63 = scmp.ne.s32.totalorder %s48, %s62
      %p64 = scmp.eq.s32.totalorder %s17, 0
      %p65 = por %p63, %p64
      %s67 = sadd.s32 %s66, 1
      %p70 = scmp.eq.s32.totalorder %s11, 1
      %p71 = scmp.ne.s32.totalorder %s66, %s68
      %p72 = scmp.eq.s32.totalorder %s11, 0
      %p73 = por %p71, %p72
      %p74 = scmp.ne.s32.totalorder %s66, %s68
      %p75 = scmp.eq.s32.totalorder %s16, 1
      %p76 = por %p74, %p75
      %p77 = scmp.ne.s32.totalorder %s68, %s69
      %p78 = scmp.eq.s32.totalorder %s16, 0
      %p79 = por %p77, %p78
      %p80 = scmp.ne.s32.totalorder %s68, %s69
      %p81 = scmp.eq.s32.totalorder %s17, 1
      %p82 = por %p80, %p81
      %p84 = scmp.ne.s32.totalorder %s69, %s83
      %p85 = scmp.eq.s32.totalorder %s17, 0
      %p86 = por %p84, %p85
      %s88 = sadd.s32 %s87, 1
      %p91 = scmp.eq.s32.totalorder %s11, 1
      %p92 = scmp.ne.s32.totalorder %s87, %s89
      %p93 = scmp.eq.s32.totalorder %s11, 0
      %p94 = por %p92, %p93
      %p95 = scmp.ne.s32.totalorder %s87, %s89
      %p96 = scmp.eq.s32.totalorder %s16, 1
      %p97 = por %p95, %p96
      %p98 = scmp.ne.s32.totalorder %s89, %s90
      %p99 = scmp.eq.s32.totalorder %s16, 0
      %p100 = por %p98, %p99
      %p101 = scmp.ne.s32.totalorder %s89, %s90
      %p102 = scmp.eq.s32.totalorder %s17, 1
      %p103 = por %p101, %p102
      %p105 = scmp.ne.s32.totalorder %s90, %s104
      %p106 = scmp.eq.s32.totalorder %s17, 0
      %p107 = por %p105, %p106
      %s109 = sadd.s32 %s108, 1
      %p112 = scmp.eq.s32.totalorder %s11, 1
      %p113 = scmp.ne.s32.totalorder %s108, %s110
      %p114 = scmp.eq.s32.totalorder %s11, 0
      %p115 = por %p113, %p114
      %p116 = scmp.ne.s32.totalorder %s108, %s110
      %p117 = scmp.eq.s32.totalorder %s16, 1
      %p118 = por %p116, %p117
      %p119 = scmp.ne.s32.totalorder %s110, %s111
      %p120 = scmp.eq.s32.totalorder %s16, 0
      %p121 = por %p119, %p120
      %p122 = scmp.ne.s32.totalorder %s110, %s111
      %p123 = scmp.eq.s32.totalorder %s17, 1
      %p124 = por %p122, %p123
      %p126 = scmp.ne.s32.totalorder %s111, %s125
      %p127 = scmp.eq.s32.totalorder %s17, 0
      %p128 = por %p126, %p127
      %s129 = ssub.s32 %s11, %s18
      %p130 = scmp.eq.s32.totalorder %s129, 0
      %s132 = sadd.s32 %s131, 1
      %s133 = scalar_select %p130, %s131, %s132
      %p136 = pneg %p130
      %p137 = scmp.eq.s32.totalorder %s11, 1
      %p138 = por %p136, %p137
      %p139 = scmp.ne.s32.totalorder %s131, %s134
      %p140 = scmp.eq.s32.totalorder %s11, 0
      %p141 = por %p139, %p140
      %p142 = scmp.ne.s32.totalorder %s131, %s134
      %p143 = scmp.eq.s32.totalorder %s16, 1
      %p144 = por %p142, %p143
      %p145 = scmp.ne.s32.totalorder %s134, %s135
      %p146 = scmp.eq.s32.totalorder %s16, 0
      %p147 = por %p145, %p146
      %p148 = scmp.ne.s32.totalorder %s134, %s135
      %p149 = scmp.eq.s32.totalorder %s17, 1
      %p150 = por %p148, %p149
      %p152 = scmp.ne.s32.totalorder %s135, %s151
      %p153 = scmp.eq.s32.totalorder %s17, 0
      %p154 = por %p152, %p153
      %p155 = scmp.le.s32.totalorder 1, %s11
      %p156 = scmp.lt.s32.totalorder %s11, 3
      %p157 = pnand %p155, %p156
      %p158 = pneg %p157
      // Predicated region
      $region9: #{siamese_forward.7} parent=5 // pred_check
        _
      $region10: #{siamese_forward.7} parent=5 // pred_check_branch
        %160 = sbr.rel (%p157) target = $region12
      $region11: #{siamese_forward.7} parent=5 // pred_region
        %s161 = ssub.s32 %s11, 1
        // Predicated region
        $region13: #{siamese_forward.7} parent=11 // pred_check
          %p162 = pneg %p58
        $region14: #{siamese_forward.7} parent=11 // pred_check_branch
          %164 = sbr.rel (%p162) target = $region16
        $region15: #{siamese_forward.7} parent=11 // pred_region
          _
        $region16: #{siamese_forward.7} parent=11 // pred_fallthru
          _
        // Predicated region
        $region17: #{siamese_forward.7} parent=11 // pred_check
          %p165 = pneg %p79
        $region18: #{siamese_forward.7} parent=11 // pred_check_branch
          %167 = sbr.rel (%p165) target = $region20
        $region19: #{siamese_forward.7} parent=11 // pred_region
          _
        $region20: #{siamese_forward.7} parent=11 // pred_fallthru
          _
        // Predicated region
        $region21: #{siamese_forward.7} parent=11 // pred_check
          %p168 = pneg %p100
        $region22: #{siamese_forward.7} parent=11 // pred_check_branch
          %170 = sbr.rel (%p168) target = $region24
        $region23: #{siamese_forward.7} parent=11 // pred_region
          _
        $region24: #{siamese_forward.7} parent=11 // pred_fallthru
          _
        // Predicated region
        $region25: #{siamese_forward.7} parent=11 // pred_check
          %p171 = pneg %p121
        $region26: #{siamese_forward.7} parent=11 // pred_check_branch
          %173 = sbr.rel (%p171) target = $region28
        $region27: #{siamese_forward.7} parent=11 // pred_region
          _
        $region28: #{siamese_forward.7} parent=11 // pred_fallthru
          _
      $region12: #{siamese_forward.7} parent=5 // pred_fallthru
        _
      %p174 = scmp.lt.s32.totalorder %s11, 2
      // Predicated region
      $region29: #{siamese_forward.7} parent=5 // pred_check
        %p175 = pneg %p174
      $region30: #{siamese_forward.7} parent=5 // pred_check_branch
        %177 = sbr.rel (%p175) target = $region32
      $region31: #{siamese_forward.7} parent=5 // pred_region
        // Predicated region
        $region33: #{siamese_forward.7} parent=31 // pred_check
          %p178 = pneg %p31
        $region34: #{siamese_forward.7} parent=31 // pred_check_branch
          %180 = sbr.rel (%p178) target = $region36
        $region35: #{siamese_forward.7} parent=31 // pred_region
          %s181 = sand.u32 %s21, 1
          %s182 = sand.u32 %s21, 1
          %s183 = smul.addr %s182, 128
          %s184 = scalar_lea.vmem [#allocation2], %s183
          %s185 = smul.u32 4, %s11
          %s186 = smul.addr %s185, 8
          %s187 = scalar_lea.vmem %s0, %s186
          // Predicated region
          $region37: #{siamese_forward.7} parent=35 // pred_check
            _
          $region38: #{siamese_forward.7} parent=35 // pred_check_branch
            %189 = sbr.rel (0) target = $region40
          $region39: #{siamese_forward.7} parent=35 // pred_region
            // Predicated region
            $region41: #{siamese_forward.7} parent=39 // pred_check
              _
            $region42: #{siamese_forward.7} parent=39 // pred_check_branch
              %191 = sbr.rel (0) target = $region44
            $region43: #{siamese_forward.7} parent=39 // pred_region
              loop: start=0, step=1, limit=1
              $region45: #{siamese_forward.7} parent=43 // loop_pre_header
                _
              $region46: #{siamese_forward.7} parent=43 // loop_header
                %s193 = sphi 0, %s197
                %p194 = scmp.ge.s32.totalorder %s193, 1
                %s198 = sphi %s187, %s187
                %s199 = sphi %s184, %s184
              $region47: #{siamese_forward.7} parent=43 // loop_header_branch
                %196 = sbr.rel (%p194) target = $region51
              $region48: #{siamese_forward.7} parent=43 // loop_body
                %v200 = vld [vmem:[%s198] sm:$0xff]
                %201 = vst [vmem:[%s199] sm:$0xff] %v200
                %v202 = vld [vmem:[%s198 + $0x8] sm:$0xff]
                %203 = vst [vmem:[%s199 + $0x8] sm:$0xff] %v202
                %v204 = vld [vmem:[%s198 + $0x10] sm:$0xff]
                %205 = vst [vmem:[%s199 + $0x10] sm:$0xff] %v204
                %v206 = vld [vmem:[%s198 + $0x18] sm:$0xff]
                %207 = vst [vmem:[%s199 + $0x18] sm:$0xff] %v206
                %v208 = vld [vmem:[%s198 + $0x40] sm:$0xff]
                %209 = vst [vmem:[%s199 + $0x20] sm:$0xff] %v208
                %v210 = vld [vmem:[%s198 + $0x48] sm:$0xff]
                %211 = vst [vmem:[%s199 + $0x28] sm:$0xff] %v210
                %v212 = vld [vmem:[%s198 + $0x50] sm:$0xff]
                %213 = vst [vmem:[%s199 + $0x30] sm:$0xff] %v212
                %v214 = vld [vmem:[%s198 + $0x58] sm:$0xff]
                %215 = vst [vmem:[%s199 + $0x38] sm:$0xff] %v214
                %v216 = vld [vmem:[%s198 + $0x80] sm:$0xff]
                %217 = vst [vmem:[%s199 + $0x40] sm:$0xff] %v216
                %v218 = vld [vmem:[%s198 + $0x88] sm:$0xff]
                %219 = vst [vmem:[%s199 + $0x48] sm:$0xff] %v218
                %v220 = vld [vmem:[%s198 + $0x90] sm:$0xff]
                %221 = vst [vmem:[%s199 + $0x50] sm:$0xff] %v220
                %v222 = vld [vmem:[%s198 + $0x98] sm:$0xff]
                %223 = vst [vmem:[%s199 + $0x58] sm:$0xff] %v222
                %v224 = vld [vmem:[%s198 + $0xc0] sm:$0xff]
                %225 = vst [vmem:[%s199 + $0x60] sm:$0xff] %v224
                %v226 = vld [vmem:[%s198 + $0xc8] sm:$0xff]
                %227 = vst [vmem:[%s199 + $0x68] sm:$0xff] %v226
                %v228 = vld [vmem:[%s198 + $0xd0] sm:$0xff]
                %229 = vst [vmem:[%s199 + $0x70] sm:$0xff] %v228
                %v230 = vld [vmem:[%s198 + $0xd8] sm:$0xff]
                %231 = vst [vmem:[%s199 + $0x78] sm:$0xff] %v230
              $region49: #{siamese_forward.7} parent=43 // loop_footer
                %s197 = sadd.s32 1, %s193
              $region50: #{siamese_forward.7} parent=43 // loop_footer_branch
                %192 = sbr.rel target = $region46
              $region51: #{siamese_forward.7} parent=43 // loop_exit
                _
            $region44: #{siamese_forward.7} parent=39 // pred_fallthru
              _
            // Predicated region
            $region52: #{siamese_forward.7} parent=39 // pred_check
              _
            $region53: #{siamese_forward.7} parent=39 // pred_check_branch
              %233 = sbr.rel target = $region55
            $region54: #{siamese_forward.7} parent=39 // pred_region
              _
            $region55: #{siamese_forward.7} parent=39 // pred_fallthru
              _
          $region40: #{siamese_forward.7} parent=35 // pred_fallthru
            _
          %234 = vnop
        $region36: #{siamese_forward.7} parent=31 // pred_fallthru
          _
      $region32: #{siamese_forward.7} parent=5 // pred_fallthru
        _
      %p235 = scmp.le.s32.totalorder 1, %s11
      %p236 = scmp.lt.s32.totalorder %s11, 3
      %p237 = pnand %p235, %p236
      %p238 = pneg %p237
      // Predicated region
      $region56: #{siamese_forward.7} parent=5 // pred_check
        _
      $region57: #{siamese_forward.7} parent=5 // pred_check_branch
        %240 = sbr.rel (%p237) target = $region59
      $region58: #{siamese_forward.7} parent=5 // pred_region
        %s241 = ssub.s32 %s11, 1
        %s242 = sand.u32 %s24, 1
        %s243 = sand.u32 %s24, 1
        %s244 = smul.addr %s243, 128
        %s245 = scalar_lea.vmem [#allocation2], %s244
        // Predicated region
        $region60: #{siamese_forward.7} parent=58 // pred_check
          %p246 = pneg %p37
        $region61: #{siamese_forward.7} parent=58 // pred_check_branch
          %248 = sbr.rel (%p246) target = $region63
        $region62: #{siamese_forward.7} parent=58 // pred_region
          _
        $region63: #{siamese_forward.7} parent=58 // pred_fallthru
          _
        %s249 = sand.u32 %s24, 1
        %s250 = sand.u32 %s24, 1
        %s251 = smul.addr %s250, 128
        %s252 = scalar_lea.vmem [#allocation2], %s251
        %p253 = pneg %p37
        %p254 = pneg %p34
        %p255 = pneg %p58
        %p256 = pneg %p55
        %p257 = pneg %p79
        %p258 = pneg %p76
        %p259 = pneg %p100
        %p260 = pneg %p97
        %p261 = pneg %p121
        %p262 = pneg %p118
        %p263 = pneg %p147
        %p264 = pneg %p144
        %s265 = smul.u32 4, %s16
        %p266 = scmp.lt.s32.totalorder %s265, 7
        %s267 = scalar_select %p266, %s265, 7
        %s268 = smul.addr %s267, 4
        %s269 = scalar_lea.vmem %s5, %s268
        %s270 = smul.u32 4, %s16
        %s271 = smul.u32 4, %s16
        %p272 = scmp.lt.s32.totalorder %s271, 7
        %s273 = scalar_select %p272, %s271, 7
        %s274 = smul.addr %s273, 4
        %s275 = scalar_lea.vmem %s5, %s274
        %s276 = smul.u32 4, %s16
        %v277 = vld [vmem:[%s1] sm:$0xf]
        %v278 = vld [vmem:[%s245] sm:$0xff]
        %v279 = vld [vmem:[%s245 + $0x8] sm:$0xff]
        %v280 = vld [vmem:[%s245 + $0x10] sm:$0xff]
        %v281 = vld [vmem:[%s245 + $0x18] sm:$0xff]
        %v282 = vld [vmem:[%s245 + $0x20] sm:$0xff]
        %v283 = vld [vmem:[%s245 + $0x28] sm:$0xff]
        %v284 = vld [vmem:[%s245 + $0x30] sm:$0xff]
        %v285 = vld [vmem:[%s245 + $0x38] sm:$0xff]
        %v286 = vld [vmem:[%s245 + $0x40] sm:$0xff]
        %v287 = vld [vmem:[%s245 + $0x48] sm:$0xff]
        %v288 = vld [vmem:[%s245 + $0x50] sm:$0xff]
        %v289 = vld [vmem:[%s245 + $0x58] sm:$0xff]
        %v290 = vld [vmem:[%s245 + $0x60] sm:$0x7]
        %v291 = vld [vmem:[%s245 + $0x68] sm:$0x7]
        %v292 = vld [vmem:[%s245 + $0x70] sm:$0x7]
        %v293 = vld [vmem:[%s245 + $0x78] sm:$0x7]
        %v294 = vld [vmem:[%s2] sm:$0xf]
        %296 = vset.pattern.permute.xlu0 0
        %297 = vperm.xlu0 %296, %v294
        %v298 = vpop.permute.xlu0 %297
        %vm300 = vcmask 220160
        %v302 = vsel %vm300, %v277, 0
        %vm304 = vcmask 1042432
        %v306 = vsel %vm304, %v290, 0
        %v309 = vsel %vm304, %v291, 0
        %v312 = vsel %vm304, %v292, 0
        %v315 = vsel %vm304, %v293, 0
        %317 = vmatprep.subr.mxu0 0.0
        %318 = vmatpush1.msra.mxu0 0.0
        %319 = vmatprep.subr.mxu0 0.0
        %320 = vmatpush1.msra.mxu0 0.0
        %321 = vmatprep.subr.mxu0 0.0
        %322 = vmatpush1.msra.mxu0 0.0
        %323 = vmatprep.subr.mxu0 0.0
        %324 = vmatpush1.msra.mxu0 0.0
        %325 = vmatprep.subr.mxu0 0.0
        %326 = vmatpush1.msra.mxu0 0.0
        %327 = vmatprep.subr.mxu0 0.0
        %328 = vmatpush1.msra.mxu0 0.0
        %329 = vmatprep.subr.mxu0 0.0
        %330 = vmatpush1.msra.mxu0 0.0
        %331 = vmatprep.subr.mxu0 0.0
        %332 = vmatpush1.msra.mxu0 0.0
        %333 = vmatprep.subr.mxu0 0.0
        %334 = vmatpush1.msra.mxu0 0.0
        %335 = vmatprep.subr.mxu0 0.0
        %336 = vmatpush1.msra.mxu0 0.0
        %337 = vmatprep.subr.mxu0 0.0
        %338 = vmatpush1.msra.mxu0 0.0
        %339 = vmatprep.subr.mxu0 0.0
        %340 = vmatpush1.msra.mxu0 0.0
        %341 = vmatprep.subr.mxu0 %v309
        %342 = vmatpush1.msra.mxu0 %v306
        %343 = vmatprep.subr.mxu0 %v287
        %344 = vmatpush1.msra.mxu0 %v286
        %345 = vmatprep.subr.mxu0 %v283
        %346 = vmatpush1.msra.mxu0 %v282
        %347 = vmatprep.subr.mxu0 %v279
        %348 = vmatpush1.msra.mxu0 %v278
        %349 = vmatprep.subr.mxu0 0.0
        %350 = vmatpush2.msra.mxu0 0.0
        %351 = vmatprep.subr.mxu0 0.0
        %352 = vmatpush2.msra.mxu0 0.0
        %353 = vmatprep.subr.mxu0 0.0
        %354 = vmatpush2.msra.mxu0 0.0
        %355 = vmatprep.subr.mxu0 0.0
        %356 = vmatpush2.msra.mxu0 0.0
        %357 = vmatprep.subr.mxu0 0.0
        %358 = vmatpush2.msra.mxu0 0.0
        %359 = vmatprep.subr.mxu0 0.0
        %360 = vmatpush2.msra.mxu0 0.0
        %361 = vmatprep.subr.mxu0 0.0
        %362 = vmatpush2.msra.mxu0 0.0
        %363 = vmatprep.subr.mxu0 0.0
        %364 = vmatpush2.msra.mxu0 0.0
        %365 = vmatprep.subr.mxu0 0.0
        %366 = vmatpush2.msra.mxu0 0.0
        %367 = vmatprep.subr.mxu0 0.0
        %368 = vmatpush2.msra.mxu0 0.0
        %369 = vmatprep.subr.mxu0 0.0
        %370 = vmatpush2.msra.mxu0 0.0
        %371 = vmatprep.subr.mxu0 0.0
        %372 = vmatpush2.msra.mxu0 0.0
        %373 = vmatprep.subr.mxu0 0.0
        %374 = vmatpush2.msra.mxu0 0.0
        %375 = vmatprep.subr.mxu0 0.0
        %376 = vmatpush2.msra.mxu0 0.0
        %377 = vmatprep.subr.mxu0 0.0
        %378 = vmatpush2.msra.mxu0 0.0
        %379 = vmatprep.subr.mxu0 0.0
        %380 = vmatpush2.msra.mxu0 0.0
        %381 = vmatprep.mubr.f32.mxu0 0.0
        %382 = vmatmul.mubr.f32.gmra.mxu0 %v302
        %v383 = vpop.f32.mrf.mxu0
        %v384 = vadd.f32 %v298, %v383
        %v385 = vpop.f32.mrf.mxu0
        %v386 = vadd.f32 %v298, %v385
        %387 = vdwg.mxu0
        %388 = vmatprep.subr.mxu0 0.0
        %389 = vmatpush1.msra.mxu0 0.0
        %390 = vmatprep.subr.mxu0 0.0
        %391 = vmatpush1.msra.mxu0 0.0
        %392 = vmatprep.subr.mxu0 0.0
        %393 = vmatpush1.msra.mxu0 0.0
        %394 = vmatprep.subr.mxu0 0.0
        %395 = vmatpush1.msra.mxu0 0.0
        %396 = vmatprep.subr.mxu0 0.0
        %397 = vmatpush1.msra.mxu0 0.0
        %398 = vmatprep.subr.mxu0 0.0
        %399 = vmatpush1.msra.mxu0 0.0
        %400 = vmatprep.subr.mxu0 0.0
        %401 = vmatpush1.msra.mxu0 0.0
        %402 = vmatprep.subr.mxu0 0.0
        %403 = vmatpush1.msra.mxu0 0.0
        %404 = vmatprep.subr.mxu0 0.0
        %405 = vmatpush1.msra.mxu0 0.0
        %406 = vmatprep.subr.mxu0 0.0
        %407 = vmatpush1.msra.mxu0 0.0
        %408 = vmatprep.subr.mxu0 0.0
        %409 = vmatpush1.msra.mxu0 0.0
        %410 = vmatprep.subr.mxu0 0.0
        %411 = vmatpush1.msra.mxu0 0.0
        %412 = vmatprep.subr.mxu0 %v315
        %413 = vmatpush1.msra.mxu0 %v312
        %414 = vmatprep.subr.mxu0 %v289
        %415 = vmatpush1.msra.mxu0 %v288
        %416 = vmatprep.subr.mxu0 %v285
        %417 = vmatpush1.msra.mxu0 %v284
        %418 = vmatprep.subr.mxu0 %v281
        %419 = vmatpush1.msra.mxu0 %v280
        %420 = vmatprep.subr.mxu0 0.0
        %421 = vmatpush2.msra.mxu0 0.0
        %422 = vmatprep.subr.mxu0 0.0
        %423 = vmatpush2.msra.mxu0 0.0
        %424 = vmatprep.subr.mxu0 0.0
        %425 = vmatpush2.msra.mxu0 0.0
        %426 = vmatprep.subr.mxu0 0.0
        %427 = vmatpush2.msra.mxu0 0.0
        %428 = vmatprep.subr.mxu0 0.0
        %429 = vmatpush2.msra.mxu0 0.0
        %430 = vmatprep.subr.mxu0 0.0
        %431 = vmatpush2.msra.mxu0 0.0
        %432 = vmatprep.subr.mxu0 0.0
        %433 = vmatpush2.msra.mxu0 0.0
        %434 = vmatprep.subr.mxu0 0.0
        %435 = vmatpush2.msra.mxu0 0.0
        %436 = vmatprep.subr.mxu0 0.0
        %437 = vmatpush2.msra.mxu0 0.0
        %438 = vmatprep.subr.mxu0 0.0
        %439 = vmatpush2.msra.mxu0 0.0
        %440 = vmatprep.subr.mxu0 0.0
        %441 = vmatpush2.msra.mxu0 0.0
        %442 = vmatprep.subr.mxu0 0.0
        %443 = vmatpush2.msra.mxu0 0.0
        %444 = vmatprep.subr.mxu0 0.0
        %445 = vmatpush2.msra.mxu0 0.0
        %446 = vmatprep.subr.mxu0 0.0
        %447 = vmatpush2.msra.mxu0 0.0
        %448 = vmatprep.subr.mxu0 0.0
        %449 = vmatpush2.msra.mxu0 0.0
        %450 = vmatprep.subr.mxu0 0.0
        %451 = vmatpush2.msra.mxu0 0.0
        %452 = vmatprep.mubr.f32.mxu0 0.0
        %453 = vmatmul.mubr.f32.gmra.mxu0 %v302
        %v454 = vpop.f32.mrf.mxu0
        %v455 = vadd.f32 %v298, %v454
        %v456 = vpop.f32.mrf.mxu0
        %v457 = vadd.f32 %v298, %v456
        %458 = vdwg.mxu0
        %v459 = vmax.f32 %v384, 0.0
        %v460 = vmax.f32 %v386, 0.0
        %v461 = vmax.f32 %v455, 0.0
        %v462 = vmax.f32 %v457, 0.0
        %v463 = vld [vmem:[%s3] sm:$0xf]
        %465 = vset.pattern.permute.xlu0 0
        %466 = vperm.xlu0 %465, %v463
        %v467 = vpop.permute.xlu0 %466
        %v469 = vmul.f32 %v459, %v467
        %v470 = vmul.f32 %v460, %v467
        %v471 = vmul.f32 %v461, %v467
        %v472 = vmul.f32 %v462, %v467
        %v473 = vld [vmem:[%s4] sm:$0xf]
        %475 = vset.pattern.permute.xlu0 0
        %476 = vperm.xlu0 %475, %v473
        %v477 = vpop.permute.xlu0 %476
        %v479 = vadd.f32 %v469, %v477
        %v480 = vadd.f32 %v470, %v477
        %v481 = vadd.f32 %v471, %v477
        %v482 = vadd.f32 %v472, %v477
        %v487 = vcombine.low %v479, %v480
        %v488 = vcombine.low %v481, %v482
        %491 = vst [vmem:[%s275] sm:$0xff] %v487
        %492 = vst [vmem:[%s275 + $0x8] sm:$0xff] %v488
        %s493 = smul.u32 4, %s16
        %p494 = scmp.lt.s32.totalorder %s493, 7
        %s495 = scalar_select %p494, %s493, 7
        %s496 = smul.addr %s495, 4
        %s497 = scalar_lea.vmem %s5, %s496
        // Predicated region
        $region64: #{siamese_forward.7} parent=58 // pred_check
          %p498 = pneg %p144
        $region65: #{siamese_forward.7} parent=58 // pred_check_branch
          %500 = sbr.rel (%p498) target = $region67
        $region66: #{siamese_forward.7} parent=58 // pred_region
          %s501 = smul.u32 4, %s16
        $region67: #{siamese_forward.7} parent=58 // pred_fallthru
          _
      $region59: #{siamese_forward.7} parent=5 // pred_fallthru
        _
      %p502 = scmp.le.s32.totalorder 2, %s11
      // Predicated region
      $region68: #{siamese_forward.7} parent=5 // pred_check
        %p503 = pneg %p502
      $region69: #{siamese_forward.7} parent=5 // pred_check_branch
        %505 = sbr.rel (%p503) target = $region71
      $region70: #{siamese_forward.7} parent=5 // pred_region
        %s506 = ssub.s32 %s11, 2
        // Predicated region
        $region72: #{siamese_forward.7} parent=70 // pred_check
          %p507 = pneg %p150
        $region73: #{siamese_forward.7} parent=70 // pred_check_branch
          %509 = sbr.rel (%p507) target = $region75
        $region74: #{siamese_forward.7} parent=70 // pred_region
          %s510 = smul.u32 4, %s17
          %p511 = scmp.lt.s32.totalorder %s510, 7
          %s512 = scalar_select %p511, %s510, 7
          %s513 = smul.addr %s512, 4
          %s514 = scalar_lea.vmem %s5, %s513
        $region75: #{siamese_forward.7} parent=70 // pred_fallthru
          _
      $region71: #{siamese_forward.7} parent=5 // pred_fallthru
        _
    $region6: #{siamese_forward.7} parent=1 // loop_footer
      %s15 = sadd.s32 1, %s11
    $region7: #{siamese_forward.7} parent=1 // loop_footer_branch
      %10 = sbr.rel target = $region3
    $region8: #{siamese_forward.7} parent=1 // loop_exit
      _

// kernel: siamese_forward.8
$region0: #{siamese_forward.8}
  #allocation0 [shape = 'u32[]', space=smem, size = 0x4, offset = 0x4, fixed_abs, tag = 'smem constant byte address 0x4 - core index']
  #allocation1 [shape = 'u32[144,128]{1,0:T(1,128)}', space=vmem, size = 0x12000, scoped, tag = 'internal scratch']
  %s0 = inlined_call_operand.vmem [shape: f32[36,1024], index: 0, kind: input, shape index: {}]
  %s1 = inlined_call_operand.vmem [shape: f32[6,36], index: 1, kind: input, shape index: {}]
  %s2 = inlined_call_operand.vmem [shape: f32[6,1], index: 2, kind: input, shape index: {}]
  %s3 = inlined_call_operand.vmem [shape: f32[6,1], index: 3, kind: input, shape index: {}]
  %s4 = inlined_call_operand.vmem [shape: f32[6,1], index: 4, kind: input, shape index: {}]
  %s5 = inlined_call_operand.vmem [shape: f32[6,1024], index: 5, kind: output, shape index: {}]
  %s6 = sld [smem:[#allocation0]]
  $region76: #{siamese_forward.8} parent=0
    _
  %s8 = ssub.s32 1, %s6
  %s9 = scalar_select 0, %s8, %s6
  $region1: #{siamese_forward.8} parent=0
    #allocation2 [shape = 'u8[163840]{0}', space=vmem, size = 0x28000, scoped, tag = 'input window, operand 0']
    loop: start=0, step=1, limit=4
    $region2: #{siamese_forward.8} parent=1 // loop_pre_header
      _
    $region3: #{siamese_forward.8} parent=1 // loop_header
      %s11 = sphi 0, %s15
      %p12 = scmp.ge.s32.totalorder %s11, 4
      %s21 = sphi 0, %s23
      %s24 = sphi 0, %s21
      %s25 = sphi 0, %s24
      %s41 = sphi 0, %s25
      %s45 = sphi 0, %s45
      %s47 = sphi 0, %s45
      %s48 = sphi 0, %s47
      %s62 = sphi 0, %s48
      %s66 = sphi 0, %s66
      %s68 = sphi 0, %s66
      %s69 = sphi 0, %s68
      %s83 = sphi 0, %s69
      %s87 = sphi 0, %s87
      %s89 = sphi 0, %s87
      %s90 = sphi 0, %s89
      %s104 = sphi 0, %s90
      %s108 = sphi 0, %s108
      %s110 = sphi 0, %s108
      %s111 = sphi 0, %s110
      %s125 = sphi 0, %s111
      %s131 = sphi 0, %s133
      %s134 = sphi 0, %s131
      %s135 = sphi 0, %s134
      %s151 = sphi 0, %s135
    $region4: #{siamese_forward.8} parent=1 // loop_header_branch
      %14 = sbr.rel (%p12) target = $region8
    $region5: #{siamese_forward.8} parent=1 // loop_body
      %s16 = ssub.s32 %s11, 1
      %s17 = ssub.s32 %s11, 2
      %s18 = sadd.s32 %s11, 1
      %s19 = ssub.s32 %s11, %s18
      %p20 = scmp.eq.s32.totalorder %s19, 0
      %s22 = sadd.s32 %s21, 1
      %s23 = scalar_select %p20, %s21, %s22
      %p26 = pneg %p20
      %p27 = scmp.eq.s32.totalorder %s11, 1
      %p28 = por %p26, %p27
      %p29 = scmp.ne.s32.totalorder %s21, %s24
      %p30 = scmp.eq.s32.totalorder %s11, 0
      %p31 = por %p29, %p30
      %p32 = scmp.ne.s32.totalorder %s21, %s24
      %p33 = scmp.eq.s32.totalorder %s16, 1
      %p34 = por %p32, %p33
      %p35 = scmp.ne.s32.totalorder %s24, %s25
      %p36 = scmp.eq.s32.totalorder %s16, 0
      %p37 = por %p35, %p36
      %p38 = scmp.ne.s32.totalorder %s24, %s25
      %p39 = scmp.eq.s32.totalorder %s17, 1
      %p40 = por %p38, %p39
      %p42 = scmp.ne.s32.totalorder %s25, %s41
      %p43 = scmp.eq.s32.totalorder %s17, 0
      %p44 = por %p42, %p43
      %s46 = sadd.s32 %s45, 1
      %p49 = scmp.eq.s32.totalorder %s11, 1
      %p50 = scmp.ne.s32.totalorder %s45, %s47
      %p51 = scmp.eq.s32.totalorder %s11, 0
      %p52 = por %p50, %p51
      %p53 = scmp.ne.s32.totalorder %s45, %s47
      %p54 = scmp.eq.s32.totalorder %s16, 1
      %p55 = por %p53, %p54
      %p56 = scmp.ne.s32.totalorder %s47, %s48
      %p57 = scmp.eq.s32.totalorder %s16, 0
      %p58 = por %p56, %p57
      %p59 = scmp.ne.s32.totalorder %s47, %s48
      %p60 = scmp.eq.s32.totalorder %s17, 1
      %p61 = por %p59, %p60
      %p63 = scmp.ne.s32.totalorder %s48, %s62
      %p64 = scmp.eq.s32.totalorder %s17, 0
      %p65 = por %p63, %p64
      %s67 = sadd.s32 %s66, 1
      %p70 = scmp.eq.s32.totalorder %s11, 1
      %p71 = scmp.ne.s32.totalorder %s66, %s68
      %p72 = scmp.eq.s32.totalorder %s11, 0
      %p73 = por %p71, %p72
      %p74 = scmp.ne.s32.totalorder %s66, %s68
      %p75 = scmp.eq.s32.totalorder %s16, 1
      %p76 = por %p74, %p75
      %p77 = scmp.ne.s32.totalorder %s68, %s69
      %p78 = scmp.eq.s32.totalorder %s16, 0
      %p79 = por %p77, %p78
      %p80 = scmp.ne.s32.totalorder %s68, %s69
      %p81 = scmp.eq.s32.totalorder %s17, 1
      %p82 = por %p80, %p81
      %p84 = scmp.ne.s32.totalorder %s69, %s83
      %p85 = scmp.eq.s32.totalorder %s17, 0
      %p86 = por %p84, %p85
      %s88 = sadd.s32 %s87, 1
      %p91 = scmp.eq.s32.totalorder %s11, 1
      %p92 = scmp.ne.s32.totalorder %s87, %s89
      %p93 = scmp.eq.s32.totalorder %s11, 0
      %p94 = por %p92, %p93
      %p95 = scmp.ne.s32.totalorder %s87, %s89
      %p96 = scmp.eq.s32.totalorder %s16, 1
      %p97 = por %p95, %p96
      %p98 = scmp.ne.s32.totalorder %s89, %s90
      %p99 = scmp.eq.s32.totalorder %s16, 0
      %p100 = por %p98, %p99
      %p101 = scmp.ne.s32.totalorder %s89, %s90
      %p102 = scmp.eq.s32.totalorder %s17, 1
      %p103 = por %p101, %p102
      %p105 = scmp.ne.s32.totalorder %s90, %s104
      %p106 = scmp.eq.s32.totalorder %s17, 0
      %p107 = por %p105, %p106
      %s109 = sadd.s32 %s108, 1
      %p112 = scmp.eq.s32.totalorder %s11, 1
      %p113 = scmp.ne.s32.totalorder %s108, %s110
      %p114 = scmp.eq.s32.totalorder %s11, 0
      %p115 = por %p113, %p114
      %p116 = scmp.ne.s32.totalorder %s108, %s110
      %p117 = scmp.eq.s32.totalorder %s16, 1
      %p118 = por %p116, %p117
      %p119 = scmp.ne.s32.totalorder %s110, %s111
      %p120 = scmp.eq.s32.totalorder %s16, 0
      %p121 = por %p119, %p120
      %p122 = scmp.ne.s32.totalorder %s110, %s111
      %p123 = scmp.eq.s32.totalorder %s17, 1
      %p124 = por %p122, %p123
      %p126 = scmp.ne.s32.totalorder %s111, %s125
      %p127 = scmp.eq.s32.totalorder %s17, 0
      %p128 = por %p126, %p127
      %s129 = ssub.s32 %s11, %s18
      %p130 = scmp.eq.s32.totalorder %s129, 0
      %s132 = sadd.s32 %s131, 1
      %s133 = scalar_select %p130, %s131, %s132
      %p136 = pneg %p130
      %p137 = scmp.eq.s32.totalorder %s11, 1
      %p138 = por %p136, %p137
      %p139 = scmp.ne.s32.totalorder %s131, %s134
      %p140 = scmp.eq.s32.totalorder %s11, 0
      %p141 = por %p139, %p140
      %p142 = scmp.ne.s32.totalorder %s131, %s134
      %p143 = scmp.eq.s32.totalorder %s16, 1
      %p144 = por %p142, %p143
      %p145 = scmp.ne.s32.totalorder %s134, %s135
      %p146 = scmp.eq.s32.totalorder %s16, 0
      %p147 = por %p145, %p146
      %p148 = scmp.ne.s32.totalorder %s134, %s135
      %p149 = scmp.eq.s32.totalorder %s17, 1
      %p150 = por %p148, %p149
      %p152 = scmp.ne.s32.totalorder %s135, %s151
      %p153 = scmp.eq.s32.totalorder %s17, 0
      %p154 = por %p152, %p153
      %p155 = scmp.le.s32.totalorder 1, %s11
      %p156 = scmp.lt.s32.totalorder %s11, 3
      %p157 = pnand %p155, %p156
      %p158 = pneg %p157
      // Predicated region
      $region9: #{siamese_forward.8} parent=5 // pred_check
        _
      $region10: #{siamese_forward.8} parent=5 // pred_check_branch
        %160 = sbr.rel (%p157) target = $region12
      $region11: #{siamese_forward.8} parent=5 // pred_region
        %s161 = ssub.s32 %s11, 1
        // Predicated region
        $region13: #{siamese_forward.8} parent=11 // pred_check
          %p162 = pneg %p58
        $region14: #{siamese_forward.8} parent=11 // pred_check_branch
          %164 = sbr.rel (%p162) target = $region16
        $region15: #{siamese_forward.8} parent=11 // pred_region
          _
        $region16: #{siamese_forward.8} parent=11 // pred_fallthru
          _
        // Predicated region
        $region17: #{siamese_forward.8} parent=11 // pred_check
          %p165 = pneg %p79
        $region18: #{siamese_forward.8} parent=11 // pred_check_branch
          %167 = sbr.rel (%p165) target = $region20
        $region19: #{siamese_forward.8} parent=11 // pred_region
          _
        $region20: #{siamese_forward.8} parent=11 // pred_fallthru
          _
        // Predicated region
        $region21: #{siamese_forward.8} parent=11 // pred_check
          %p168 = pneg %p100
        $region22: #{siamese_forward.8} parent=11 // pred_check_branch
          %170 = sbr.rel (%p168) target = $region24
        $region23: #{siamese_forward.8} parent=11 // pred_region
          _
        $region24: #{siamese_forward.8} parent=11 // pred_fallthru
          _
        // Predicated region
        $region25: #{siamese_forward.8} parent=11 // pred_check
          %p171 = pneg %p121
        $region26: #{siamese_forward.8} parent=11 // pred_check_branch
          %173 = sbr.rel (%p171) target = $region28
        $region27: #{siamese_forward.8} parent=11 // pred_region
          _
        $region28: #{siamese_forward.8} parent=11 // pred_fallthru
          _
      $region12: #{siamese_forward.8} parent=5 // pred_fallthru
        _
      %p174 = scmp.lt.s32.totalorder %s11, 2
      // Predicated region
      $region29: #{siamese_forward.8} parent=5 // pred_check
        %p175 = pneg %p174
      $region30: #{siamese_forward.8} parent=5 // pred_check_branch
        %177 = sbr.rel (%p175) target = $region32
      $region31: #{siamese_forward.8} parent=5 // pred_region
        // Predicated region
        $region33: #{siamese_forward.8} parent=31 // pred_check
          %p178 = pneg %p31
        $region34: #{siamese_forward.8} parent=31 // pred_check_branch
          %180 = sbr.rel (%p178) target = $region36
        $region35: #{siamese_forward.8} parent=31 // pred_region
          %s181 = sand.u32 %s21, 1
          %s182 = sand.u32 %s21, 1
          %s183 = smul.addr %s182, 160
          %s184 = scalar_lea.vmem [#allocation2], %s183
          %s185 = smul.u32 4, %s11
          %s186 = smul.addr %s185, 8
          %s187 = scalar_lea.vmem %s0, %s186
          // Predicated region
          $region37: #{siamese_forward.8} parent=35 // pred_check
            _
          $region38: #{siamese_forward.8} parent=35 // pred_check_branch
            %189 = sbr.rel (0) target = $region40
          $region39: #{siamese_forward.8} parent=35 // pred_region
            // Predicated region
            $region41: #{siamese_forward.8} parent=39 // pred_check
              _
            $region42: #{siamese_forward.8} parent=39 // pred_check_branch
              %191 = sbr.rel (0) target = $region44
            $region43: #{siamese_forward.8} parent=39 // pred_region
              loop: start=0, step=1, limit=1
              $region45: #{siamese_forward.8} parent=43 // loop_pre_header
                _
              $region46: #{siamese_forward.8} parent=43 // loop_header
                %s193 = sphi 0, %s197
                %p194 = scmp.ge.s32.totalorder %s193, 1
                %s198 = sphi %s187, %s187
                %s199 = sphi %s184, %s184
              $region47: #{siamese_forward.8} parent=43 // loop_header_branch
                %196 = sbr.rel (%p194) target = $region51
              $region48: #{siamese_forward.8} parent=43 // loop_body
                %v200 = vld [vmem:[%s198] sm:$0xff]
                %201 = vst [vmem:[%s199] sm:$0xff] %v200
                %v202 = vld [vmem:[%s198 + $0x8] sm:$0xff]
                %203 = vst [vmem:[%s199 + $0x8] sm:$0xff] %v202
                %v204 = vld [vmem:[%s198 + $0x10] sm:$0xff]
                %205 = vst [vmem:[%s199 + $0x10] sm:$0xff] %v204
                %v206 = vld [vmem:[%s198 + $0x18] sm:$0xff]
                %207 = vst [vmem:[%s199 + $0x18] sm:$0xff] %v206
                %v208 = vld [vmem:[%s198 + $0x40] sm:$0xff]
                %209 = vst [vmem:[%s199 + $0x20] sm:$0xff] %v208
                %v210 = vld [vmem:[%s198 + $0x48] sm:$0xff]
                %211 = vst [vmem:[%s199 + $0x28] sm:$0xff] %v210
                %v212 = vld [vmem:[%s198 + $0x50] sm:$0xff]
                %213 = vst [vmem:[%s199 + $0x30] sm:$0xff] %v212
                %v214 = vld [vmem:[%s198 + $0x58] sm:$0xff]
                %215 = vst [vmem:[%s199 + $0x38] sm:$0xff] %v214
                %v216 = vld [vmem:[%s198 + $0x80] sm:$0xff]
                %217 = vst [vmem:[%s199 + $0x40] sm:$0xff] %v216
                %v218 = vld [vmem:[%s198 + $0x88] sm:$0xff]
                %219 = vst [vmem:[%s199 + $0x48] sm:$0xff] %v218
                %v220 = vld [vmem:[%s198 + $0x90] sm:$0xff]
                %221 = vst [vmem:[%s199 + $0x50] sm:$0xff] %v220
                %v222 = vld [vmem:[%s198 + $0x98] sm:$0xff]
                %223 = vst [vmem:[%s199 + $0x58] sm:$0xff] %v222
                %v224 = vld [vmem:[%s198 + $0xc0] sm:$0xff]
                %225 = vst [vmem:[%s199 + $0x60] sm:$0xff] %v224
                %v226 = vld [vmem:[%s198 + $0xc8] sm:$0xff]
                %227 = vst [vmem:[%s199 + $0x68] sm:$0xff] %v226
                %v228 = vld [vmem:[%s198 + $0xd0] sm:$0xff]
                %229 = vst [vmem:[%s199 + $0x70] sm:$0xff] %v228
                %v230 = vld [vmem:[%s198 + $0xd8] sm:$0xff]
                %231 = vst [vmem:[%s199 + $0x78] sm:$0xff] %v230
                %v232 = vld [vmem:[%s198 + $0x100] sm:$0xff]
                %233 = vst [vmem:[%s199 + $0x80] sm:$0xff] %v232
                %v234 = vld [vmem:[%s198 + $0x108] sm:$0xff]
                %235 = vst [vmem:[%s199 + $0x88] sm:$0xff] %v234
                %v236 = vld [vmem:[%s198 + $0x110] sm:$0xff]
                %237 = vst [vmem:[%s199 + $0x90] sm:$0xff] %v236
                %v238 = vld [vmem:[%s198 + $0x118] sm:$0xff]
                %239 = vst [vmem:[%s199 + $0x98] sm:$0xff] %v238
              $region49: #{siamese_forward.8} parent=43 // loop_footer
                %s197 = sadd.s32 1, %s193
              $region50: #{siamese_forward.8} parent=43 // loop_footer_branch
                %192 = sbr.rel target = $region46
              $region51: #{siamese_forward.8} parent=43 // loop_exit
                _
            $region44: #{siamese_forward.8} parent=39 // pred_fallthru
              _
            // Predicated region
            $region52: #{siamese_forward.8} parent=39 // pred_check
              _
            $region53: #{siamese_forward.8} parent=39 // pred_check_branch
              %241 = sbr.rel target = $region55
            $region54: #{siamese_forward.8} parent=39 // pred_region
              _
            $region55: #{siamese_forward.8} parent=39 // pred_fallthru
              _
          $region40: #{siamese_forward.8} parent=35 // pred_fallthru
            _
          %242 = vnop
        $region36: #{siamese_forward.8} parent=31 // pred_fallthru
          _
      $region32: #{siamese_forward.8} parent=5 // pred_fallthru
        _
      %p243 = scmp.le.s32.totalorder 1, %s11
      %p244 = scmp.lt.s32.totalorder %s11, 3
      %p245 = pnand %p243, %p244
      %p246 = pneg %p245
      // Predicated region
      $region56: #{siamese_forward.8} parent=5 // pred_check
        _
      $region57: #{siamese_forward.8} parent=5 // pred_check_branch
        %248 = sbr.rel (%p245) target = $region59
      $region58: #{siamese_forward.8} parent=5 // pred_region
        %s249 = ssub.s32 %s11, 1
        %s250 = sand.u32 %s24, 1
        %s251 = sand.u32 %s24, 1
        %s252 = smul.addr %s251, 160
        %s253 = scalar_lea.vmem [#allocation2], %s252
        // Predicated region
        $region60: #{siamese_forward.8} parent=58 // pred_check
          %p254 = pneg %p37
        $region61: #{siamese_forward.8} parent=58 // pred_check_branch
          %256 = sbr.rel (%p254) target = $region63
        $region62: #{siamese_forward.8} parent=58 // pred_region
          _
        $region63: #{siamese_forward.8} parent=58 // pred_fallthru
          _
        %s257 = sand.u32 %s24, 1
        %s258 = sand.u32 %s24, 1
        %s259 = smul.addr %s258, 160
        %s260 = scalar_lea.vmem [#allocation2], %s259
        %p261 = pneg %p37
        %p262 = pneg %p34
        %p263 = pneg %p58
        %p264 = pneg %p55
        %p265 = pneg %p79
        %p266 = pneg %p76
        %p267 = pneg %p100
        %p268 = pneg %p97
        %p269 = pneg %p121
        %p270 = pneg %p118
        %p271 = pneg %p147
        %p272 = pneg %p144
        %s273 = smul.u32 4, %s16
        %p274 = scmp.lt.s32.totalorder %s273, 7
        %s275 = scalar_select %p274, %s273, 7
        %s276 = smul.addr %s275, 8
        %s277 = scalar_lea.vmem %s5, %s276
        %s278 = smul.u32 4, %s16
        %s279 = smul.u32 4, %s16
        %p280 = scmp.lt.s32.totalorder %s279, 7
        %s281 = scalar_select %p280, %s279, 7
        %s282 = smul.addr %s281, 8
        %s283 = scalar_lea.vmem %s5, %s282
        %s284 = smul.u32 4, %s16
        %v285 = vld [vmem:[%s1] sm:$0x3f]
        %v286 = vld [vmem:[%s253] sm:$0xff]
        %v287 = vld [vmem:[%s253 + $0x8] sm:$0xff]
        %v288 = vld [vmem:[%s253 + $0x10] sm:$0xff]
        %v289 = vld [vmem:[%s253 + $0x18] sm:$0xff]
        %v290 = vld [vmem:[%s253 + $0x20] sm:$0xff]
        %v291 = vld [vmem:[%s253 + $0x28] sm:$0xff]
        %v292 = vld [vmem:[%s253 + $0x30] sm:$0xff]
        %v293 = vld [vmem:[%s253 + $0x38] sm:$0xff]
        %v294 = vld [vmem:[%s253 + $0x40] sm:$0xff]
        %v295 = vld [vmem:[%s253 + $0x48] sm:$0xff]
        %v296 = vld [vmem:[%s253 + $0x50] sm:$0xff]
        %v297 = vld [vmem:[%s253 + $0x58] sm:$0xff]
        %v298 = vld [vmem:[%s253 + $0x60] sm:$0xff]
        %v299 = vld [vmem:[%s253 + $0x68] sm:$0xff]
        %v300 = vld [vmem:[%s253 + $0x70] sm:$0xff]
        %v301 = vld [vmem:[%s253 + $0x78] sm:$0xff]
        %v302 = vld [vmem:[%s253 + $0x80] sm:$0xf]
        %v303 = vld [vmem:[%s253 + $0x88] sm:$0xf]
        %v304 = vld [vmem:[%s253 + $0x90] sm:$0xf]
        %v305 = vld [vmem:[%s253 + $0x98] sm:$0xf]
        %v306 = vld [vmem:[%s2] sm:$0x3f]
        %308 = vset.pattern.permute.xlu0 0
        %309 = vperm.xlu0 %308, %v306
        %v310 = vpop.permute.xlu0 %309
        %vm312 = vcmask 293888
        %v314 = vsel %vm312, %v285, 0
        %vm316 = vcmask 1043456
        %v318 = vsel %vm316, %v302, 0
        %v321 = vsel %vm316, %v303, 0
        %v324 = vsel %vm316, %v304, 0
        %v327 = vsel %vm316, %v305, 0
        %329 = vmatprep.subr.mxu0 0.0
        %330 = vmatpush1.msra.mxu0 0.0
        %331 = vmatprep.subr.mxu0 0.0
        %332 = vmatpush1.msra.mxu0 0.0
        %333 = vmatprep.subr.mxu0 0.0
        %334 = vmatpush1.msra.mxu0 0.0
        %335 = vmatprep.subr.mxu0 0.0
        %336 = vmatpush1.msra.mxu0 0.0
        %337 = vmatprep.subr.mxu0 0.0
        %338 = vmatpush1.msra.mxu0 0.0
        %339 = vmatprep.subr.mxu0 0.0
        %340 = vmatpush1.msra.mxu0 0.0
        %341 = vmatprep.subr.mxu0 0.0
        %342 = vmatpush1.msra.mxu0 0.0
        %343 = vmatprep.subr.mxu0 0.0
        %344 = vmatpush1.msra.mxu0 0.0
        %345 = vmatprep.subr.mxu0 0.0
        %346 = vmatpush1.msra.mxu0 0.0
        %347 = vmatprep.subr.mxu0 0.0
        %348 = vmatpush1.msra.mxu0 0.0
        %349 = vmatprep.subr.mxu0 0.0
        %350 = vmatpush1.msra.mxu0 0.0
        %351 = vmatprep.subr.mxu0 %v321
        %352 = vmatpush1.msra.mxu0 %v318
        %353 = vmatprep.subr.mxu0 %v299
        %354 = vmatpush1.msra.mxu0 %v298
        %355 = vmatprep.subr.mxu0 %v295
        %356 = vmatpush1.msra.mxu0 %v294
        %357 = vmatprep.subr.mxu0 %v291
        %358 = vmatpush1.msra.mxu0 %v290
        %359 = vmatprep.subr.mxu0 %v287
        %360 = vmatpush1.msra.mxu0 %v286
        %361 = vmatprep.subr.mxu0 0.0
        %362 = vmatpush2.msra.mxu0 0.0
        %363 = vmatprep.subr.mxu0 0.0
        %364 = vmatpush2.msra.mxu0 0.0
        %365 = vmatprep.subr.mxu0 0.0
        %366 = vmatpush2.msra.mxu0 0.0
        %367 = vmatprep.subr.mxu0 0.0
        %368 = vmatpush2.msra.mxu0 0.0
        %369 = vmatprep.subr.mxu0 0.0
        %370 = vmatpush2.msra.mxu0 0.0
        %371 = vmatprep.subr.mxu0 0.0
        %372 = vmatpush2.msra.mxu0 0.0
        %373 = vmatprep.subr.mxu0 0.0
        %374 = vmatpush2.msra.mxu0 0.0
        %375 = vmatprep.subr.mxu0 0.0
        %376 = vmatpush2.msra.mxu0 0.0
        %377 = vmatprep.subr.mxu0 0.0
        %378 = vmatpush2.msra.mxu0 0.0
        %379 = vmatprep.subr.mxu0 0.0
        %380 = vmatpush2.msra.mxu0 0.0
        %381 = vmatprep.subr.mxu0 0.0
        %382 = vmatpush2.msra.mxu0 0.0
        %383 = vmatprep.subr.mxu0 0.0
        %384 = vmatpush2.msra.mxu0 0.0
        %385 = vmatprep.subr.mxu0 0.0
        %386 = vmatpush2.msra.mxu0 0.0
        %387 = vmatprep.subr.mxu0 0.0
        %388 = vmatpush2.msra.mxu0 0.0
        %389 = vmatprep.subr.mxu0 0.0
        %390 = vmatpush2.msra.mxu0 0.0
        %391 = vmatprep.subr.mxu0 0.0
        %392 = vmatpush2.msra.mxu0 0.0
        %393 = vmatprep.mubr.f32.mxu0 0.0
        %394 = vmatmul.mubr.f32.gmra.mxu0 %v314
        %v395 = vpop.f32.mrf.mxu0
        %v396 = vadd.f32 %v310, %v395
        %v397 = vpop.f32.mrf.mxu0
        %v398 = vadd.f32 %v310, %v397
        %399 = vdwg.mxu0
        %400 = vmatprep.subr.mxu0 0.0
        %401 = vmatpush1.msra.mxu0 0.0
        %402 = vmatprep.subr.mxu0 0.0
        %403 = vmatpush1.msra.mxu0 0.0
        %404 = vmatprep.subr.mxu0 0.0
        %405 = vmatpush1.msra.mxu0 0.0
        %406 = vmatprep.subr.mxu0 0.0
        %407 = vmatpush1.msra.mxu0 0.0
        %408 = vmatprep.subr.mxu0 0.0
        %409 = vmatpush1.msra.mxu0 0.0
        %410 = vmatprep.subr.mxu0 0.0
        %411 = vmatpush1.msra.mxu0 0.0
        %412 = vmatprep.subr.mxu0 0.0
        %413 = vmatpush1.msra.mxu0 0.0
        %414 = vmatprep.subr.mxu0 0.0
        %415 = vmatpush1.msra.mxu0 0.0
        %416 = vmatprep.subr.mxu0 0.0
        %417 = vmatpush1.msra.mxu0 0.0
        %418 = vmatprep.subr.mxu0 0.0
        %419 = vmatpush1.msra.mxu0 0.0
        %420 = vmatprep.subr.mxu0 0.0
        %421 = vmatpush1.msra.mxu0 0.0
        %422 = vmatprep.subr.mxu0 %v327
        %423 = vmatpush1.msra.mxu0 %v324
        %424 = vmatprep.subr.mxu0 %v301
        %425 = vmatpush1.msra.mxu0 %v300
        %426 = vmatprep.subr.mxu0 %v297
        %427 = vmatpush1.msra.mxu0 %v296
        %428 = vmatprep.subr.mxu0 %v293
        %429 = vmatpush1.msra.mxu0 %v292
        %430 = vmatprep.subr.mxu0 %v289
        %431 = vmatpush1.msra.mxu0 %v288
        %432 = vmatprep.subr.mxu0 0.0
        %433 = vmatpush2.msra.mxu0 0.0
        %434 = vmatprep.subr.mxu0 0.0
        %435 = vmatpush2.msra.mxu0 0.0
        %436 = vmatprep.subr.mxu0 0.0
        %437 = vmatpush2.msra.mxu0 0.0
        %438 = vmatprep.subr.mxu0 0.0
        %439 = vmatpush2.msra.mxu0 0.0
        %440 = vmatprep.subr.mxu0 0.0
        %441 = vmatpush2.msra.mxu0 0.0
        %442 = vmatprep.subr.mxu0 0.0
        %443 = vmatpush2.msra.mxu0 0.0
        %444 = vmatprep.subr.mxu0 0.0
        %445 = vmatpush2.msra.mxu0 0.0
        %446 = vmatprep.subr.mxu0 0.0
        %447 = vmatpush2.msra.mxu0 0.0
        %448 = vmatprep.subr.mxu0 0.0
        %449 = vmatpush2.msra.mxu0 0.0
        %450 = vmatprep.subr.mxu0 0.0
        %451 = vmatpush2.msra.mxu0 0.0
        %452 = vmatprep.subr.mxu0 0.0
        %453 = vmatpush2.msra.mxu0 0.0
        %454 = vmatprep.subr.mxu0 0.0
        %455 = vmatpush2.msra.mxu0 0.0
        %456 = vmatprep.subr.mxu0 0.0
        %457 = vmatpush2.msra.mxu0 0.0
        %458 = vmatprep.subr.mxu0 0.0
        %459 = vmatpush2.msra.mxu0 0.0
        %460 = vmatprep.subr.mxu0 0.0
        %461 = vmatpush2.msra.mxu0 0.0
        %462 = vmatprep.subr.mxu0 0.0
        %463 = vmatpush2.msra.mxu0 0.0
        %464 = vmatprep.mubr.f32.mxu0 0.0
        %465 = vmatmul.mubr.f32.gmra.mxu0 %v314
        %v466 = vpop.f32.mrf.mxu0
        %v467 = vadd.f32 %v310, %v466
        %v468 = vpop.f32.mrf.mxu0
        %v469 = vadd.f32 %v310, %v468
        %470 = vdwg.mxu0
        %v471 = vmax.f32 %v396, 0.0
        %v472 = vmax.f32 %v398, 0.0
        %v473 = vmax.f32 %v467, 0.0
        %v474 = vmax.f32 %v469, 0.0
        %v475 = vld [vmem:[%s3] sm:$0x3f]
        %477 = vset.pattern.permute.xlu0 0
        %478 = vperm.xlu0 %477, %v475
        %v479 = vpop.permute.xlu0 %478
        %v481 = vmul.f32 %v471, %v479
        %v482 = vmul.f32 %v472, %v479
        %v483 = vmul.f32 %v473, %v479
        %v484 = vmul.f32 %v474, %v479
        %v485 = vld [vmem:[%s4] sm:$0x3f]
        %487 = vset.pattern.permute.xlu0 0
        %488 = vperm.xlu0 %487, %v485
        %v489 = vpop.permute.xlu0 %488
        %v491 = vadd.f32 %v481, %v489
        %v492 = vadd.f32 %v482, %v489
        %v493 = vadd.f32 %v483, %v489
        %v494 = vadd.f32 %v484, %v489
        %495 = vst [vmem:[%s283] sm:$0x3f] %v491
        %496 = vst [vmem:[%s283 + $0x8] sm:$0x3f] %v492
        %497 = vst [vmem:[%s283 + $0x10] sm:$0x3f] %v493
        %498 = vst [vmem:[%s283 + $0x18] sm:$0x3f] %v494
        %s499 = smul.u32 4, %s16
        %p500 = scmp.lt.s32.totalorder %s499, 7
        %s501 = scalar_select %p500, %s499, 7
        %s502 = smul.addr %s501, 8
        %s503 = scalar_lea.vmem %s5, %s502
        // Predicated region
        $region64: #{siamese_forward.8} parent=58 // pred_check
          %p504 = pneg %p144
        $region65: #{siamese_forward.8} parent=58 // pred_check_branch
          %506 = sbr.rel (%p504) target = $region67
        $region66: #{siamese_forward.8} parent=58 // pred_region
          %s507 = smul.u32 4, %s16
        $region67: #{siamese_forward.8} parent=58 // pred_fallthru
          _
      $region59: #{siamese_forward.8} parent=5 // pred_fallthru
        _
      %p508 = scmp.le.s32.totalorder 2, %s11
      // Predicated region
      $region68: #{siamese_forward.8} parent=5 // pred_check
        %p509 = pneg %p508
      $region69: #{siamese_forward.8} parent=5 // pred_check_branch
        %511 = sbr.rel (%p509) target = $region71
      $region70: #{siamese_forward.8} parent=5 // pred_region
        %s512 = ssub.s32 %s11, 2
        // Predicated region
        $region72: #{siamese_forward.8} parent=70 // pred_check
          %p513 = pneg %p150
        $region73: #{siamese_forward.8} parent=70 // pred_check_branch
          %515 = sbr.rel (%p513) target = $region75
        $region74: #{siamese_forward.8} parent=70 // pred_region
          %s516 = smul.u32 4, %s17
          %p517 = scmp.lt.s32.totalorder %s516, 7
          %s518 = scalar_select %p517, %s516, 7
          %s519 = smul.addr %s518, 8
          %s520 = scalar_lea.vmem %s5, %s519
        $region75: #{siamese_forward.8} parent=70 // pred_fallthru
          _
      $region71: #{siamese_forward.8} parent=5 // pred_fallthru
        _
    $region6: #{siamese_forward.8} parent=1 // loop_footer
      %s15 = sadd.s32 1, %s11
    $region7: #{siamese_forward.8} parent=1 // loop_footer_branch
      %10 = sbr.rel target = $region3
    $region8: #{siamese_forward.8} parent=1 // loop_exit
      _

// kernel: siamese_forward.9
$region0: #{siamese_forward.9}
  #allocation0 [shape = 'u32[]', space=smem, size = 0x4, offset = 0x4, fixed_abs, tag = 'smem constant byte address 0x4 - core index']
  #allocation1 [shape = 'u32[144,128]{1,0:T(1,128)}', space=vmem, size = 0x12000, scoped, tag = 'internal scratch']
  %s0 = inlined_call_operand.vmem [shape: f32[54,1024], index: 0, kind: input, shape index: {}]
  %s1 = inlined_call_operand.vmem [shape: f32[8,54], index: 1, kind: input, shape index: {}]
  %s2 = inlined_call_operand.vmem [shape: f32[8,1], index: 2, kind: input, shape index: {}]
  %s3 = inlined_call_operand.vmem [shape: f32[8,1024], index: 3, kind: output, shape index: {}]
  %s4 = sld [smem:[#allocation0]]
  $region68: #{siamese_forward.9} parent=0
    _
  %s6 = ssub.s32 1, %s4
  %s7 = scalar_select 0, %s6, %s4
  $region1: #{siamese_forward.9} parent=0
    #allocation2 [shape = 'u8[229376]{0}', space=vmem, size = 0x38000, scoped, tag = 'input window, operand 0']
    loop: start=0, step=1, limit=4
    $region2: #{siamese_forward.9} parent=1 // loop_pre_header
      _
    $region3: #{siamese_forward.9} parent=1 // loop_header
      %s9 = sphi 0, %s13
      %p10 = scmp.ge.s32.totalorder %s9, 4
      %s19 = sphi 0, %s21
      %s22 = sphi 0, %s19
      %s23 = sphi 0, %s22
      %s39 = sphi 0, %s23
      %s43 = sphi 0, %s43
      %s45 = sphi 0, %s43
      %s46 = sphi 0, %s45
      %s60 = sphi 0, %s46
      %s64 = sphi 0, %s64
      %s66 = sphi 0, %s64
      %s67 = sphi 0, %s66
      %s81 = sphi 0, %s67
      %s87 = sphi 0, %s89
      %s90 = sphi 0, %s87
      %s91 = sphi 0, %s90
      %s107 = sphi 0, %s91
    $region4: #{siamese_forward.9} parent=1 // loop_header_branch
      %12 = sbr.rel (%p10) target = $region8
    $region5: #{siamese_forward.9} parent=1 // loop_body
      %s14 = ssub.s32 %s9, 1
      %s15 = ssub.s32 %s9, 2
      %s16 = sadd.s32 %s9, 1
      %s17 = ssub.s32 %s9, %s16
      %p18 = scmp.eq.s32.totalorder %s17, 0
      %s20 = sadd.s32 %s19, 1
      %s21 = scalar_select %p18, %s19, %s20
      %p24 = pneg %p18
      %p25 = scmp.eq.s32.totalorder %s9, 1
      %p26 = por %p24, %p25
      %p27 = scmp.ne.s32.totalorder %s19, %s22
      %p28 = scmp.eq.s32.totalorder %s9, 0
      %p29 = por %p27, %p28
      %p30 = scmp.ne.s32.totalorder %s19, %s22
      %p31 = scmp.eq.s32.totalorder %s14, 1
      %p32 = por %p30, %p31
      %p33 = scmp.ne.s32.totalorder %s22, %s23
      %p34 = scmp.eq.s32.totalorder %s14, 0
      %p35 = por %p33, %p34
      %p36 = scmp.ne.s32.totalorder %s22, %s23
      %p37 = scmp.eq.s32.totalorder %s15, 1
      %p38 = por %p36, %p37
      %p40 = scmp.ne.s32.totalorder %s23, %s39
      %p41 = scmp.eq.s32.totalorder %s15, 0
      %p42 = por %p40, %p41
      %s44 = sadd.s32 %s43, 1
      %p47 = scmp.eq.s32.totalorder %s9, 1
      %p48 = scmp.ne.s32.totalorder %s43, %s45
      %p49 = scmp.eq.s32.totalorder %s9, 0
      %p50 = por %p48, %p49
      %p51 = scmp.ne.s32.totalorder %s43, %s45
      %p52 = scmp.eq.s32.totalorder %s14, 1
      %p53 = por %p51, %p52
      %p54 = scmp.ne.s32.totalorder %s45, %s46
      %p55 = scmp.eq.s32.totalorder %s14, 0
      %p56 = por %p54, %p55
      %p57 = scmp.ne.s32.totalorder %s45, %s46
      %p58 = scmp.eq.s32.totalorder %s15, 1
      %p59 = por %p57, %p58
      %p61 = scmp.ne.s32.totalorder %s46, %s60
      %p62 = scmp.eq.s32.totalorder %s15, 0
      %p63 = por %p61, %p62
      %s65 = sadd.s32 %s64, 1
      %p68 = scmp.eq.s32.totalorder %s9, 1
      %p69 = scmp.ne.s32.totalorder %s64, %s66
      %p70 = scmp.eq.s32.totalorder %s9, 0
      %p71 = por %p69, %p70
      %p72 = scmp.ne.s32.totalorder %s64, %s66
      %p73 = scmp.eq.s32.totalorder %s14, 1
      %p74 = por %p72, %p73
      %p75 = scmp.ne.s32.totalorder %s66, %s67
      %p76 = scmp.eq.s32.totalorder %s14, 0
      %p77 = por %p75, %p76
      %p78 = scmp.ne.s32.totalorder %s66, %s67
      %p79 = scmp.eq.s32.totalorder %s15, 1
      %p80 = por %p78, %p79
      %p82 = scmp.ne.s32.totalorder %s67, %s81
      %p83 = scmp.eq.s32.totalorder %s15, 0
      %p84 = por %p82, %p83
      %s85 = ssub.s32 %s9, %s16
      %p86 = scmp.eq.s32.totalorder %s85, 0
      %s88 = sadd.s32 %s87, 1
      %s89 = scalar_select %p86, %s87, %s88
      %p92 = pneg %p86
      %p93 = scmp.eq.s32.totalorder %s9, 1
      %p94 = por %p92, %p93
      %p95 = scmp.ne.s32.totalorder %s87, %s90
      %p96 = scmp.eq.s32.totalorder %s9, 0
      %p97 = por %p95, %p96
      %p98 = scmp.ne.s32.totalorder %s87, %s90
      %p99 = scmp.eq.s32.totalorder %s14, 1
      %p100 = por %p98, %p99
      %p101 = scmp.ne.s32.totalorder %s90, %s91
      %p102 = scmp.eq.s32.totalorder %s14, 0
      %p103 = por %p101, %p102
      %p104 = scmp.ne.s32.totalorder %s90, %s91
      %p105 = scmp.eq.s32.totalorder %s15, 1
      %p106 = por %p104, %p105
      %p108 = scmp.ne.s32.totalorder %s91, %s107
      %p109 = scmp.eq.s32.totalorder %s15, 0
      %p110 = por %p108, %p109
      %p111 = scmp.le.s32.totalorder 1, %s9
      %p112 = scmp.lt.s32.totalorder %s9, 3
      %p113 = pnand %p111, %p112
      %p114 = pneg %p113
      // Predicated region
      $region9: #{siamese_forward.9} parent=5 // pred_check
        _
      $region10: #{siamese_forward.9} parent=5 // pred_check_branch
        %116 = sbr.rel (%p113) target = $region12
      $region11: #{siamese_forward.9} parent=5 // pred_region
        %s117 = ssub.s32 %s9, 1
        // Predicated region
        $region13: #{siamese_forward.9} parent=11 // pred_check
          %p118 = pneg %p56
        $region14: #{siamese_forward.9} parent=11 // pred_check_branch
          %120 = sbr.rel (%p118) target = $region16
        $region15: #{siamese_forward.9} parent=11 // pred_region
          _
        $region16: #{siamese_forward.9} parent=11 // pred_fallthru
          _
        // Predicated region
        $region17: #{siamese_forward.9} parent=11 // pred_check
          %p121 = pneg %p77
        $region18: #{siamese_forward.9} parent=11 // pred_check_branch
          %123 = sbr.rel (%p121) target = $region20
        $region19: #{siamese_forward.9} parent=11 // pred_region
          _
        $region20: #{siamese_forward.9} parent=11 // pred_fallthru
          _
      $region12: #{siamese_forward.9} parent=5 // pred_fallthru
        _
      %p124 = scmp.lt.s32.totalorder %s9, 2
      // Predicated region
      $region21: #{siamese_forward.9} parent=5 // pred_check
        %p125 = pneg %p124
      $region22: #{siamese_forward.9} parent=5 // pred_check_branch
        %127 = sbr.rel (%p125) target = $region24
      $region23: #{siamese_forward.9} parent=5 // pred_region
        // Predicated region
        $region25: #{siamese_forward.9} parent=23 // pred_check
          %p128 = pneg %p29
        $region26: #{siamese_forward.9} parent=23 // pred_check_branch
          %130 = sbr.rel (%p128) target = $region28
        $region27: #{siamese_forward.9} parent=23 // pred_region
          %s131 = sand.u32 %s19, 1
          %s132 = sand.u32 %s19, 1
          %s133 = smul.addr %s132, 224
          %s134 = scalar_lea.vmem [#allocation2], %s133
          %s135 = smul.u32 4, %s9
          %s136 = smul.addr %s135, 8
          %s137 = scalar_lea.vmem %s0, %s136
          // Predicated region
          $region29: #{siamese_forward.9} parent=27 // pred_check
            _
          $region30: #{siamese_forward.9} parent=27 // pred_check_branch
            %139 = sbr.rel (0) target = $region32
          $region31: #{siamese_forward.9} parent=27 // pred_region
            // Predicated region
            $region33: #{siamese_forward.9} parent=31 // pred_check
              _
            $region34: #{siamese_forward.9} parent=31 // pred_check_branch
              %141 = sbr.rel (0) target = $region36
            $region35: #{siamese_forward.9} parent=31 // pred_region
              loop: start=0, step=1, limit=1
              $region37: #{siamese_forward.9} parent=35 // loop_pre_header
                _
              $region38: #{siamese_forward.9} parent=35 // loop_header
                %s143 = sphi 0, %s147
                %p144 = scmp.ge.s32.totalorder %s143, 1
                %s148 = sphi %s137, %s137
                %s149 = sphi %s134, %s134
              $region39: #{siamese_forward.9} parent=35 // loop_header_branch
                %146 = sbr.rel (%p144) target = $region43
              $region40: #{siamese_forward.9} parent=35 // loop_body
                %v150 = vld [vmem:[%s148] sm:$0xff]
                %151 = vst [vmem:[%s149] sm:$0xff] %v150
                %v152 = vld [vmem:[%s148 + $0x8] sm:$0xff]
                %153 = vst [vmem:[%s149 + $0x8] sm:$0xff] %v152
                %v154 = vld [vmem:[%s148 + $0x10] sm:$0xff]
                %155 = vst [vmem:[%s149 + $0x10] sm:$0xff] %v154
                %v156 = vld [vmem:[%s148 + $0x18] sm:$0xff]
                %157 = vst [vmem:[%s149 + $0x18] sm:$0xff] %v156
                %v158 = vld [vmem:[%s148 + $0x40] sm:$0xff]
                %159 = vst [vmem:[%s149 + $0x20] sm:$0xff] %v158
                %v160 = vld [vmem:[%s148 + $0x48] sm:$0xff]
                %161 = vst [vmem:[%s149 + $0x28] sm:$0xff] %v160
                %v162 = vld [vmem:[%s148 + $0x50] sm:$0xff]
                %163 = vst [vmem:[%s149 + $0x30] sm:$0xff] %v162
                %v164 = vld [vmem:[%s148 + $0x58] sm:$0xff]
                %165 = vst [vmem:[%s149 + $0x38] sm:$0xff] %v164
                %v166 = vld [vmem:[%s148 + $0x80] sm:$0xff]
                %167 = vst [vmem:[%s149 + $0x40] sm:$0xff] %v166
                %v168 = vld [vmem:[%s148 + $0x88] sm:$0xff]
                %169 = vst [vmem:[%s149 + $0x48] sm:$0xff] %v168
                %v170 = vld [vmem:[%s148 + $0x90] sm:$0xff]
                %171 = vst [vmem:[%s149 + $0x50] sm:$0xff] %v170
                %v172 = vld [vmem:[%s148 + $0x98] sm:$0xff]
                %173 = vst [vmem:[%s149 + $0x58] sm:$0xff] %v172
                %v174 = vld [vmem:[%s148 + $0xc0] sm:$0xff]
                %175 = vst [vmem:[%s149 + $0x60] sm:$0xff] %v174
                %v176 = vld [vmem:[%s148 + $0xc8] sm:$0xff]
                %177 = vst [vmem:[%s149 + $0x68] sm:$0xff] %v176
                %v178 = vld [vmem:[%s148 + $0xd0] sm:$0xff]
                %179 = vst [vmem:[%s149 + $0x70] sm:$0xff] %v178
                %v180 = vld [vmem:[%s148 + $0xd8] sm:$0xff]
                %181 = vst [vmem:[%s149 + $0x78] sm:$0xff] %v180
                %v182 = vld [vmem:[%s148 + $0x100] sm:$0xff]
                %183 = vst [vmem:[%s149 + $0x80] sm:$0xff] %v182
                %v184 = vld [vmem:[%s148 + $0x108] sm:$0xff]
                %185 = vst [vmem:[%s149 + $0x88] sm:$0xff] %v184
                %v186 = vld [vmem:[%s148 + $0x110] sm:$0xff]
                %187 = vst [vmem:[%s149 + $0x90] sm:$0xff] %v186
                %v188 = vld [vmem:[%s148 + $0x118] sm:$0xff]
                %189 = vst [vmem:[%s149 + $0x98] sm:$0xff] %v188
                %v190 = vld [vmem:[%s148 + $0x140] sm:$0xff]
                %191 = vst [vmem:[%s149 + $0xa0] sm:$0xff] %v190
                %v192 = vld [vmem:[%s148 + $0x148] sm:$0xff]
                %193 = vst [vmem:[%s149 + $0xa8] sm:$0xff] %v192
                %v194 = vld [vmem:[%s148 + $0x150] sm:$0xff]
                %195 = vst [vmem:[%s149 + $0xb0] sm:$0xff] %v194
                %v196 = vld [vmem:[%s148 + $0x158] sm:$0xff]
                %197 = vst [vmem:[%s149 + $0xb8] sm:$0xff] %v196
                %v198 = vld [vmem:[%s148 + $0x180] sm:$0xff]
                %199 = vst [vmem:[%s149 + $0xc0] sm:$0xff] %v198
                %v200 = vld [vmem:[%s148 + $0x188] sm:$0xff]
                %201 = vst [vmem:[%s149 + $0xc8] sm:$0xff] %v200
                %v202 = vld [vmem:[%s148 + $0x190] sm:$0xff]
                %203 = vst [vmem:[%s149 + $0xd0] sm:$0xff] %v202
                %v204 = vld [vmem:[%s148 + $0x198] sm:$0xff]
                %205 = vst [vmem:[%s149 + $0xd8] sm:$0xff] %v204
              $region41: #{siamese_forward.9} parent=35 // loop_footer
                %s147 = sadd.s32 1, %s143
              $region42: #{siamese_forward.9} parent=35 // loop_footer_branch
                %142 = sbr.rel target = $region38
              $region43: #{siamese_forward.9} parent=35 // loop_exit
                _
            $region36: #{siamese_forward.9} parent=31 // pred_fallthru
              _
            // Predicated region
            $region44: #{siamese_forward.9} parent=31 // pred_check
              _
            $region45: #{siamese_forward.9} parent=31 // pred_check_branch
              %207 = sbr.rel target = $region47
            $region46: #{siamese_forward.9} parent=31 // pred_region
              _
            $region47: #{siamese_forward.9} parent=31 // pred_fallthru
              _
          $region32: #{siamese_forward.9} parent=27 // pred_fallthru
            _
          %208 = vnop
        $region28: #{siamese_forward.9} parent=23 // pred_fallthru
          _
      $region24: #{siamese_forward.9} parent=5 // pred_fallthru
        _
      %p209 = scmp.le.s32.totalorder 1, %s9
      %p210 = scmp.lt.s32.totalorder %s9, 3
      %p211 = pnand %p209, %p210
      %p212 = pneg %p211
      // Predicated region
      $region48: #{siamese_forward.9} parent=5 // pred_check
        _
      $region49: #{siamese_forward.9} parent=5 // pred_check_branch
        %214 = sbr.rel (%p211) target = $region51
      $region50: #{siamese_forward.9} parent=5 // pred_region
        %s215 = ssub.s32 %s9, 1
        %s216 = sand.u32 %s22, 1
        %s217 = sand.u32 %s22, 1
        %s218 = smul.addr %s217, 224
        %s219 = scalar_lea.vmem [#allocation2], %s218
        // Predicated region
        $region52: #{siamese_forward.9} parent=50 // pred_check
          %p220 = pneg %p35
        $region53: #{siamese_forward.9} parent=50 // pred_check_branch
          %222 = sbr.rel (%p220) target = $region55
        $region54: #{siamese_forward.9} parent=50 // pred_region
          _
        $region55: #{siamese_forward.9} parent=50 // pred_fallthru
          _
        %s223 = sand.u32 %s22, 1
        %s224 = sand.u32 %s22, 1
        %s225 = smul.addr %s224, 224
        %s226 = scalar_lea.vmem [#allocation2], %s225
        %p227 = pneg %p35
        %p228 = pneg %p32
        %p229 = pneg %p56
        %p230 = pneg %p53
        %p231 = pneg %p77
        %p232 = pneg %p74
        %p233 = pneg %p103
        %p234 = pneg %p100
        %s235 = smul.u32 4, %s14
        %p236 = scmp.lt.s32.totalorder %s235, 7
        %s237 = scalar_select %p236, %s235, 7
        %s238 = smul.addr %s237, 8
        %s239 = scalar_lea.vmem %s3, %s238
        %s240 = smul.u32 4, %s14
        %s241 = smul.u32 4, %s14
        %p242 = scmp.lt.s32.totalorder %s241, 7
        %s243 = scalar_select %p242, %s241, 7
        %s244 = smul.addr %s243, 8
        %s245 = scalar_lea.vmem %s3, %s244
        %s246 = smul.u32 4, %s14
        %v247 = vld [vmem:[%s1] sm:$0xff]
        %v248 = vld [vmem:[%s219] sm:$0xff]
        %v249 = vld [vmem:[%s219 + $0x8] sm:$0xff]
        %v250 = vld [vmem:[%s219 + $0x10] sm:$0xff]
        %v251 = vld [vmem:[%s219 + $0x18] sm:$0xff]
        %v252 = vld [vmem:[%s219 + $0x20] sm:$0xff]
        %v253 = vld [vmem:[%s219 + $0x28] sm:$0xff]
        %v254 = vld [vmem:[%s219 + $0x30] sm:$0xff]
        %v255 = vld [vmem:[%s219 + $0x38] sm:$0xff]
        %v256 = vld [vmem:[%s219 + $0x40] sm:$0xff]
        %v257 = vld [vmem:[%s219 + $0x48] sm:$0xff]
        %v258 = vld [vmem:[%s219 + $0x50] sm:$0xff]
        %v259 = vld [vmem:[%s219 + $0x58] sm:$0xff]
        %v260 = vld [vmem:[%s219 + $0x60] sm:$0xff]
        %v261 = vld [vmem:[%s219 + $0x68] sm:$0xff]
        %v262 = vld [vmem:[%s219 + $0x70] sm:$0xff]
        %v263 = vld [vmem:[%s219 + $0x78] sm:$0xff]
        %v264 = vld [vmem:[%s219 + $0x80] sm:$0xff]
        %v265 = vld [vmem:[%s219 + $0x88] sm:$0xff]
        %v266 = vld [vmem:[%s219 + $0x90] sm:$0xff]
        %v267 = vld [vmem:[%s219 + $0x98] sm:$0xff]
        %v268 = vld [vmem:[%s219 + $0xa0] sm:$0xff]
        %v269 = vld [vmem:[%s219 + $0xa8] sm:$0xff]
        %v270 = vld [vmem:[%s219 + $0xb0] sm:$0xff]
        %v271 = vld [vmem:[%s219 + $0xb8] sm:$0xff]
        %v272 = vld [vmem:[%s219 + $0xc0] sm:$0x3f]
        %v273 = vld [vmem:[%s219 + $0xc8] sm:$0x3f]
        %v274 = vld [vmem:[%s219 + $0xd0] sm:$0x3f]
        %v275 = vld [vmem:[%s219 + $0xd8] sm:$0x3f]
        %v276 = vld [vmem:[%s2] sm:$0xff]
        %278 = vset.pattern.permute.xlu0 0
        %279 = vperm.xlu0 %278, %v276
        %v280 = vpop.permute.xlu0 %279
        %vm282 = vcmask 441344
        %v284 = vsel %vm282, %v247, 0
        %vm286 = vcmask 1045504
        %v288 = vsel %vm286, %v272, 0
        %v291 = vsel %vm286, %v273, 0
        %v294 = vsel %vm286, %v274, 0
        %v297 = vsel %vm286, %v275, 0
        %299 = vmatprep.subr.mxu0 0.0
        %300 = vmatpush1.msra.mxu0 0.0
        %301 = vmatprep.subr.mxu0 0.0
        %302 = vmatpush1.msra.mxu0 0.0
        %303 = vmatprep.subr.mxu0 0.0
        %304 = vmatpush1.msra.mxu0 0.0
        %305 = vmatprep.subr.mxu0 0.0
        %306 = vmatpush1.msra.mxu0 0.0
        %307 = vmatprep.subr.mxu0 0.0
        %308 = vmatpush1.msra.mxu0 0.0
        %309 = vmatprep.subr.mxu0 0.0
        %310 = vmatpush1.msra.mxu0 0.0
        %311 = vmatprep.subr.mxu0 0.0
        %312 = vmatpush1.msra.mxu0 0.0
        %313 = vmatprep.subr.mxu0 0.0
        %314 = vmatpush1.msra.mxu0 0.0
        %315 = vmatprep.subr.mxu0 0.0
        %316 = vmatpush1.msra.mxu0 0.0
        %317 = vmatprep.subr.mxu0 %v291
        %318 = vmatpush1.msra.mxu0 %v288
        %319 = vmatprep.subr.mxu0 %v269
        %320 = vmatpush1.msra.mxu0 %v268
        %321 = vmatprep.subr.mxu0 %v265
        %322 = vmatpush1.msra.mxu0 %v264
        %323 = vmatprep.subr.mxu0 %v261
        %324 = vmatpush1.msra.mxu0 %v260
        %325 = vmatprep.subr.mxu0 %v257
        %326 = vmatpush1.msra.mxu0 %v256
        %327 = vmatprep.subr.mxu0 %v253
        %328 = vmatpush1.msra.mxu0 %v252
        %329 = vmatprep.subr.mxu0 %v249
        %330 = vmatpush1.msra.mxu0 %v248
        %331 = vmatprep.subr.mxu0 0.0
        %332 = vmatpush2.msra.mxu0 0.0
        %333 = vmatprep.subr.mxu0 0.0
        %334 = vmatpush2.msra.mxu0 0.0
        %335 = vmatprep.subr.mxu0 0.0
        %336 = vmatpush2.msra.mxu0 0.0
        %337 = vmatprep.subr.mxu0 0.0
        %338 = vmatpush2.msra.mxu0 0.0
        %339 = vmatprep.subr.mxu0 0.0
        %340 = vmatpush2.msra.mxu0 0.0
        %341 = vmatprep.subr.mxu0 0.0
        %342 = vmatpush2.msra.mxu0 0.0
        %343 = vmatprep.subr.mxu0 0.0
        %344 = vmatpush2.msra.mxu0 0.0
        %345 = vmatprep.subr.mxu0 0.0
        %346 = vmatpush2.msra.mxu0 0.0
        %347 = vmatprep.subr.mxu0 0.0
        %348 = vmatpush2.msra.mxu0 0.0
        %349 = vmatprep.subr.mxu0 0.0
        %350 = vmatpush2.msra.mxu0 0.0
        %351 = vmatprep.subr.mxu0 0.0
        %352 = vmatpush2.msra.mxu0 0.0
        %353 = vmatprep.subr.mxu0 0.0
        %354 = vmatpush2.msra.mxu0 0.0
        %355 = vmatprep.subr.mxu0 0.0
        %356 = vmatpush2.msra.mxu0 0.0
        %357 = vmatprep.subr.mxu0 0.0
        %358 = vmatpush2.msra.mxu0 0.0
        %359 = vmatprep.subr.mxu0 0.0
        %360 = vmatpush2.msra.mxu0 0.0
        %361 = vmatprep.subr.mxu0 0.0
        %362 = vmatpush2.msra.mxu0 0.0
        %363 = vmatprep.mubr.f32.mxu0 0.0
        %364 = vmatmul.mubr.f32.gmra.mxu0 %v284
        %v365 = vpop.f32.mrf.mxu0
        %v366 = vadd.f32 %v280, %v365
        %v367 = vpop.f32.mrf.mxu0
        %v368 = vadd.f32 %v280, %v367
        %369 = vdwg.mxu0
        %370 = vmatprep.subr.mxu0 0.0
        %371 = vmatpush1.msra.mxu0 0.0
        %372 = vmatprep.subr.mxu0 0.0
        %373 = vmatpush1.msra.mxu0 0.0
        %374 = vmatprep.subr.mxu0 0.0
        %375 = vmatpush1.msra.mxu0 0.0
        %376 = vmatprep.subr.mxu0 0.0
        %377 = vmatpush1.msra.mxu0 0.0
        %378 = vmatprep.subr.mxu0 0.0
        %379 = vmatpush1.msra.mxu0 0.0
        %380 = vmatprep.subr.mxu0 0.0
        %381 = vmatpush1.msra.mxu0 0.0
        %382 = vmatprep.subr.mxu0 0.0
        %383 = vmatpush1.msra.mxu0 0.0
        %384 = vmatprep.subr.mxu0 0.0
        %385 = vmatpush1.msra.mxu0 0.0
        %386 = vmatprep.subr.mxu0 0.0
        %387 = vmatpush1.msra.mxu0 0.0
        %388 = vmatprep.subr.mxu0 %v297
        %389 = vmatpush1.msra.mxu0 %v294
        %390 = vmatprep.subr.mxu0 %v271
        %391 = vmatpush1.msra.mxu0 %v270
        %392 = vmatprep.subr.mxu0 %v267
        %393 = vmatpush1.msra.mxu0 %v266
        %394 = vmatprep.subr.mxu0 %v263
        %395 = vmatpush1.msra.mxu0 %v262
        %396 = vmatprep.subr.mxu0 %v259
        %397 = vmatpush1.msra.mxu0 %v258
        %398 = vmatprep.subr.mxu0 %v255
        %399 = vmatpush1.msra.mxu0 %v254
        %400 = vmatprep.subr.mxu0 %v251
        %401 = vmatpush1.msra.mxu0 %v250
        %402 = vmatprep.subr.mxu0 0.0
        %403 = vmatpush2.msra.mxu0 0.0
        %404 = vmatprep.subr.mxu0 0.0
        %405 = vmatpush2.msra.mxu0 0.0
        %406 = vmatprep.subr.mxu0 0.0
        %407 = vmatpush2.msra.mxu0 0.0
        %408 = vmatprep.subr.mxu0 0.0
        %409 = vmatpush2.msra.mxu0 0.0
        %410 = vmatprep.subr.mxu0 0.0
        %411 = vmatpush2.msra.mxu0 0.0
        %412 = vmatprep.subr.mxu0 0.0
        %413 = vmatpush2.msra.mxu0 0.0
        %414 = vmatprep.subr.mxu0 0.0
        %415 = vmatpush2.msra.mxu0 0.0
        %416 = vmatprep.subr.mxu0 0.0
        %417 = vmatpush2.msra.mxu0 0.0
        %418 = vmatprep.subr.mxu0 0.0
        %419 = vmatpush2.msra.mxu0 0.0
        %420 = vmatprep.subr.mxu0 0.0
        %421 = vmatpush2.msra.mxu0 0.0
        %422 = vmatprep.subr.mxu0 0.0
        %423 = vmatpush2.msra.mxu0 0.0
        %424 = vmatprep.subr.mxu0 0.0
        %425 = vmatpush2.msra.mxu0 0.0
        %426 = vmatprep.subr.mxu0 0.0
        %427 = vmatpush2.msra.mxu0 0.0
        %428 = vmatprep.subr.mxu0 0.0
        %429 = vmatpush2.msra.mxu0 0.0
        %430 = vmatprep.subr.mxu0 0.0
        %431 = vmatpush2.msra.mxu0 0.0
        %432 = vmatprep.subr.mxu0 0.0
        %433 = vmatpush2.msra.mxu0 0.0
        %434 = vmatprep.mubr.f32.mxu0 0.0
        %435 = vmatmul.mubr.f32.gmra.mxu0 %v284
        %v436 = vpop.f32.mrf.mxu0
        %v437 = vadd.f32 %v280, %v436
        %v438 = vpop.f32.mrf.mxu0
        %v439 = vadd.f32 %v280, %v438
        %440 = vdwg.mxu0
        %v441 = vmax.f32 %v366, 0.0
        %v442 = vmax.f32 %v368, 0.0
        %v443 = vmax.f32 %v437, 0.0
        %v444 = vmax.f32 %v439, 0.0
        %445 = vst [vmem:[%s245] sm:$0xff] %v441
        %446 = vst [vmem:[%s245 + $0x8] sm:$0xff] %v442
        %447 = vst [vmem:[%s245 + $0x10] sm:$0xff] %v443
        %448 = vst [vmem:[%s245 + $0x18] sm:$0xff] %v444
        %s449 = smul.u32 4, %s14
        %p450 = scmp.lt.s32.totalorder %s449, 7
        %s451 = scalar_select %p450, %s449, 7
        %s452 = smul.addr %s451, 8
        %s453 = scalar_lea.vmem %s3, %s452
        // Predicated region
        $region56: #{siamese_forward.9} parent=50 // pred_check
          %p454 = pneg %p100
        $region57: #{siamese_forward.9} parent=50 // pred_check_branch
          %456 = sbr.rel (%p454) target = $region59
        $region58: #{siamese_forward.9} parent=50 // pred_region
          %s457 = smul.u32 4, %s14
        $region59: #{siamese_forward.9} parent=50 // pred_fallthru
          _
      $region51: #{siamese_forward.9} parent=5 // pred_fallthru
        _
      %p458 = scmp.le.s32.totalorder 2, %s9
      // Predicated region
      $region60: #{siamese_forward.9} parent=5 // pred_check
        %p459 = pneg %p458
      $region61: #{siamese_forward.9} parent=5 // pred_check_branch
        %461 = sbr.rel (%p459) target = $region63
      $region62: #{siamese_forward.9} parent=5 // pred_region
        %s462 = ssub.s32 %s9, 2
        // Predicated region
        $region64: #{siamese_forward.9} parent=62 // pred_check
          %p463 = pneg %p106
        $region65: #{siamese_forward.9} parent=62 // pred_check_branch
          %465 = sbr.rel (%p463) target = $region67
        $region66: #{siamese_forward.9} parent=62 // pred_region
          %s466 = smul.u32 4, %s15
          %p467 = scmp.lt.s32.totalorder %s466, 7
          %s468 = scalar_select %p467, %s466, 7
          %s469 = smul.addr %s468, 8
          %s470 = scalar_lea.vmem %s3, %s469
        $region67: #{siamese_forward.9} parent=62 // pred_fallthru
          _
      $region63: #{siamese_forward.9} parent=5 // pred_fallthru
        _
    $region6: #{siamese_forward.9} parent=1 // loop_footer
      %s13 = sadd.s32 1, %s9
    $region7: #{siamese_forward.9} parent=1 // loop_footer_branch
      %8 = sbr.rel target = $region3
    $region8: #{siamese_forward.9} parent=1 // loop_exit
      _

// kernel: siamese_forward.10
$region0: #{siamese_forward.10}
  #allocation0 [shape = 'u32[]', space=smem, size = 0x4, offset = 0x4, fixed_abs, tag = 'smem constant byte address 0x4 - core index']
  #allocation1 [shape = 'u32[144,128]{1,0:T(1,128)}', space=vmem, size = 0x12000, scoped, tag = 'internal scratch']
  %s0 = inlined_call_operand.vmem [shape: f32[72,1024], index: 0, kind: input, shape index: {}]
  %s1 = inlined_call_operand.vmem [shape: f32[8,72], index: 1, kind: input, shape index: {}]
  %s2 = inlined_call_operand.vmem [shape: f32[8,1], index: 2, kind: input, shape index: {}]
  %s3 = inlined_call_operand.vmem [shape: f32[8,1024], index: 3, kind: output, shape index: {}]
  %s4 = sld [smem:[#allocation0]]
  $region68: #{siamese_forward.10} parent=0
    _
  %s6 = ssub.s32 1, %s4
  %s7 = scalar_select 0, %s6, %s4
  $region1: #{siamese_forward.10} parent=0
    #allocation2 [shape = 'u8[294912]{0}', space=vmem, size = 0x48000, scoped, tag = 'input window, operand 0']
    loop: start=0, step=1, limit=4
    $region2: #{siamese_forward.10} parent=1 // loop_pre_header
      _
    $region3: #{siamese_forward.10} parent=1 // loop_header
      %s9 = sphi 0, %s13
      %p10 = scmp.ge.s32.totalorder %s9, 4
      %s19 = sphi 0, %s21
      %s22 = sphi 0, %s19
      %s23 = sphi 0, %s22
      %s39 = sphi 0, %s23
      %s43 = sphi 0, %s43
      %s45 = sphi 0, %s43
      %s46 = sphi 0, %s45
      %s60 = sphi 0, %s46
      %s64 = sphi 0, %s64
      %s66 = sphi 0, %s64
      %s67 = sphi 0, %s66
      %s81 = sphi 0, %s67
      %s87 = sphi 0, %s89
      %s90 = sphi 0, %s87
      %s91 = sphi 0, %s90
      %s107 = sphi 0, %s91
    $region4: #{siamese_forward.10} parent=1 // loop_header_branch
      %12 = sbr.rel (%p10) target = $region8
    $region5: #{siamese_forward.10} parent=1 // loop_body
      %s14 = ssub.s32 %s9, 1
      %s15 = ssub.s32 %s9, 2
      %s16 = sadd.s32 %s9, 1
      %s17 = ssub.s32 %s9, %s16
      %p18 = scmp.eq.s32.totalorder %s17, 0
      %s20 = sadd.s32 %s19, 1
      %s21 = scalar_select %p18, %s19, %s20
      %p24 = pneg %p18
      %p25 = scmp.eq.s32.totalorder %s9, 1
      %p26 = por %p24, %p25
      %p27 = scmp.ne.s32.totalorder %s19, %s22
      %p28 = scmp.eq.s32.totalorder %s9, 0
      %p29 = por %p27, %p28
      %p30 = scmp.ne.s32.totalorder %s19, %s22
      %p31 = scmp.eq.s32.totalorder %s14, 1
      %p32 = por %p30, %p31
      %p33 = scmp.ne.s32.totalorder %s22, %s23
      %p34 = scmp.eq.s32.totalorder %s14, 0
      %p35 = por %p33, %p34
      %p36 = scmp.ne.s32.totalorder %s22, %s23
      %p37 = scmp.eq.s32.totalorder %s15, 1
      %p38 = por %p36, %p37
      %p40 = scmp.ne.s32.totalorder %s23, %s39
      %p41 = scmp.eq.s32.totalorder %s15, 0
      %p42 = por %p40, %p41
      %s44 = sadd.s32 %s43, 1
      %p47 = scmp.eq.s32.totalorder %s9, 1
      %p48 = scmp.ne.s32.totalorder %s43, %s45
      %p49 = scmp.eq.s32.totalorder %s9, 0
      %p50 = por %p48, %p49
      %p51 = scmp.ne.s32.totalorder %s43, %s45
      %p52 = scmp.eq.s32.totalorder %s14, 1
      %p53 = por %p51, %p52
      %p54 = scmp.ne.s32.totalorder %s45, %s46
      %p55 = scmp.eq.s32.totalorder %s14, 0
      %p56 = por %p54, %p55
      %p57 = scmp.ne.s32.totalorder %s45, %s46
      %p58 = scmp.eq.s32.totalorder %s15, 1
      %p59 = por %p57, %p58
      %p61 = scmp.ne.s32.totalorder %s46, %s60
      %p62 = scmp.eq.s32.totalorder %s15, 0
      %p63 = por %p61, %p62
      %s65 = sadd.s32 %s64, 1
      %p68 = scmp.eq.s32.totalorder %s9, 1
      %p69 = scmp.ne.s32.totalorder %s64, %s66
      %p70 = scmp.eq.s32.totalorder %s9, 0
      %p71 = por %p69, %p70
      %p72 = scmp.ne.s32.totalorder %s64, %s66
      %p73 = scmp.eq.s32.totalorder %s14, 1
      %p74 = por %p72, %p73
      %p75 = scmp.ne.s32.totalorder %s66, %s67
      %p76 = scmp.eq.s32.totalorder %s14, 0
      %p77 = por %p75, %p76
      %p78 = scmp.ne.s32.totalorder %s66, %s67
      %p79 = scmp.eq.s32.totalorder %s15, 1
      %p80 = por %p78, %p79
      %p82 = scmp.ne.s32.totalorder %s67, %s81
      %p83 = scmp.eq.s32.totalorder %s15, 0
      %p84 = por %p82, %p83
      %s85 = ssub.s32 %s9, %s16
      %p86 = scmp.eq.s32.totalorder %s85, 0
      %s88 = sadd.s32 %s87, 1
      %s89 = scalar_select %p86, %s87, %s88
      %p92 = pneg %p86
      %p93 = scmp.eq.s32.totalorder %s9, 1
      %p94 = por %p92, %p93
      %p95 = scmp.ne.s32.totalorder %s87, %s90
      %p96 = scmp.eq.s32.totalorder %s9, 0
      %p97 = por %p95, %p96
      %p98 = scmp.ne.s32.totalorder %s87, %s90
      %p99 = scmp.eq.s32.totalorder %s14, 1
      %p100 = por %p98, %p99
      %p101 = scmp.ne.s32.totalorder %s90, %s91
      %p102 = scmp.eq.s32.totalorder %s14, 0
      %p103 = por %p101, %p102
      %p104 = scmp.ne.s32.totalorder %s90, %s91
      %p105 = scmp.eq.s32.totalorder %s15, 1
      %p106 = por %p104, %p105
      %p108 = scmp.ne.s32.totalorder %s91, %s107
      %p109 = scmp.eq.s32.totalorder %s15, 0
      %p110 = por %p108, %p109
      %p111 = scmp.le.s32.totalorder 1, %s9
      %p112 = scmp.lt.s32.totalorder %s9, 3
      %p113 = pnand %p111, %p112
      %p114 = pneg %p113
      // Predicated region
      $region9: #{siamese_forward.10} parent=5 // pred_check
        _
      $region10: #{siamese_forward.10} parent=5 // pred_check_branch
        %116 = sbr.rel (%p113) target = $region12
      $region11: #{siamese_forward.10} parent=5 // pred_region
        %s117 = ssub.s32 %s9, 1
        // Predicated region
        $region13: #{siamese_forward.10} parent=11 // pred_check
          %p118 = pneg %p56
        $region14: #{siamese_forward.10} parent=11 // pred_check_branch
          %120 = sbr.rel (%p118) target = $region16
        $region15: #{siamese_forward.10} parent=11 // pred_region
          _
        $region16: #{siamese_forward.10} parent=11 // pred_fallthru
          _
        // Predicated region
        $region17: #{siamese_forward.10} parent=11 // pred_check
          %p121 = pneg %p77
        $region18: #{siamese_forward.10} parent=11 // pred_check_branch
          %123 = sbr.rel (%p121) target = $region20
        $region19: #{siamese_forward.10} parent=11 // pred_region
          _
        $region20: #{siamese_forward.10} parent=11 // pred_fallthru
          _
      $region12: #{siamese_forward.10} parent=5 // pred_fallthru
        _
      %p124 = scmp.lt.s32.totalorder %s9, 2
      // Predicated region
      $region21: #{siamese_forward.10} parent=5 // pred_check
        %p125 = pneg %p124
      $region22: #{siamese_forward.10} parent=5 // pred_check_branch
        %127 = sbr.rel (%p125) target = $region24
      $region23: #{siamese_forward.10} parent=5 // pred_region
        // Predicated region
        $region25: #{siamese_forward.10} parent=23 // pred_check
          %p128 = pneg %p29
        $region26: #{siamese_forward.10} parent=23 // pred_check_branch
          %130 = sbr.rel (%p128) target = $region28
        $region27: #{siamese_forward.10} parent=23 // pred_region
          %s131 = sand.u32 %s19, 1
          %s132 = sand.u32 %s19, 1
          %s133 = smul.addr %s132, 288
          %s134 = scalar_lea.vmem [#allocation2], %s133
          %s135 = smul.u32 4, %s9
          %s136 = smul.addr %s135, 8
          %s137 = scalar_lea.vmem %s0, %s136
          // Predicated region
          $region29: #{siamese_forward.10} parent=27 // pred_check
            _
          $region30: #{siamese_forward.10} parent=27 // pred_check_branch
            %139 = sbr.rel (0) target = $region32
          $region31: #{siamese_forward.10} parent=27 // pred_region
            // Predicated region
            $region33: #{siamese_forward.10} parent=31 // pred_check
              _
            $region34: #{siamese_forward.10} parent=31 // pred_check_branch
              %141 = sbr.rel (0) target = $region36
            $region35: #{siamese_forward.10} parent=31 // pred_region
              loop: start=0, step=1, limit=1
              $region37: #{siamese_forward.10} parent=35 // loop_pre_header
                _
              $region38: #{siamese_forward.10} parent=35 // loop_header
                %s143 = sphi 0, %s147
                %p144 = scmp.ge.s32.totalorder %s143, 1
                %s148 = sphi %s137, %s137
                %s149 = sphi %s134, %s134
              $region39: #{siamese_forward.10} parent=35 // loop_header_branch
                %146 = sbr.rel (%p144) target = $region43
              $region40: #{siamese_forward.10} parent=35 // loop_body
                %v150 = vld [vmem:[%s148] sm:$0xff]
                %151 = vst [vmem:[%s149] sm:$0xff] %v150
                %v152 = vld [vmem:[%s148 + $0x8] sm:$0xff]
                %153 = vst [vmem:[%s149 + $0x8] sm:$0xff] %v152
                %v154 = vld [vmem:[%s148 + $0x10] sm:$0xff]
                %155 = vst [vmem:[%s149 + $0x10] sm:$0xff] %v154
                %v156 = vld [vmem:[%s148 + $0x18] sm:$0xff]
                %157 = vst [vmem:[%s149 + $0x18] sm:$0xff] %v156
                %v158 = vld [vmem:[%s148 + $0x40] sm:$0xff]
                %159 = vst [vmem:[%s149 + $0x20] sm:$0xff] %v158
                %v160 = vld [vmem:[%s148 + $0x48] sm:$0xff]
                %161 = vst [vmem:[%s149 + $0x28] sm:$0xff] %v160
                %v162 = vld [vmem:[%s148 + $0x50] sm:$0xff]
                %163 = vst [vmem:[%s149 + $0x30] sm:$0xff] %v162
                %v164 = vld [vmem:[%s148 + $0x58] sm:$0xff]
                %165 = vst [vmem:[%s149 + $0x38] sm:$0xff] %v164
                %v166 = vld [vmem:[%s148 + $0x80] sm:$0xff]
                %167 = vst [vmem:[%s149 + $0x40] sm:$0xff] %v166
                %v168 = vld [vmem:[%s148 + $0x88] sm:$0xff]
                %169 = vst [vmem:[%s149 + $0x48] sm:$0xff] %v168
                %v170 = vld [vmem:[%s148 + $0x90] sm:$0xff]
                %171 = vst [vmem:[%s149 + $0x50] sm:$0xff] %v170
                %v172 = vld [vmem:[%s148 + $0x98] sm:$0xff]
                %173 = vst [vmem:[%s149 + $0x58] sm:$0xff] %v172
                %v174 = vld [vmem:[%s148 + $0xc0] sm:$0xff]
                %175 = vst [vmem:[%s149 + $0x60] sm:$0xff] %v174
                %v176 = vld [vmem:[%s148 + $0xc8] sm:$0xff]
                %177 = vst [vmem:[%s149 + $0x68] sm:$0xff] %v176
                %v178 = vld [vmem:[%s148 + $0xd0] sm:$0xff]
                %179 = vst [vmem:[%s149 + $0x70] sm:$0xff] %v178
                %v180 = vld [vmem:[%s148 + $0xd8] sm:$0xff]
                %181 = vst [vmem:[%s149 + $0x78] sm:$0xff] %v180
                %v182 = vld [vmem:[%s148 + $0x100] sm:$0xff]
                %183 = vst [vmem:[%s149 + $0x80] sm:$0xff] %v182
                %v184 = vld [vmem:[%s148 + $0x108] sm:$0xff]
                %185 = vst [vmem:[%s149 + $0x88] sm:$0xff] %v184
                %v186 = vld [vmem:[%s148 + $0x110] sm:$0xff]
                %187 = vst [vmem:[%s149 + $0x90] sm:$0xff] %v186
                %v188 = vld [vmem:[%s148 + $0x118] sm:$0xff]
                %189 = vst [vmem:[%s149 + $0x98] sm:$0xff] %v188
                %v190 = vld [vmem:[%s148 + $0x140] sm:$0xff]
                %191 = vst [vmem:[%s149 + $0xa0] sm:$0xff] %v190
                %v192 = vld [vmem:[%s148 + $0x148] sm:$0xff]
                %193 = vst [vmem:[%s149 + $0xa8] sm:$0xff] %v192
                %v194 = vld [vmem:[%s148 + $0x150] sm:$0xff]
                %195 = vst [vmem:[%s149 + $0xb0] sm:$0xff] %v194
                %v196 = vld [vmem:[%s148 + $0x158] sm:$0xff]
                %197 = vst [vmem:[%s149 + $0xb8] sm:$0xff] %v196
                %v198 = vld [vmem:[%s148 + $0x180] sm:$0xff]
                %199 = vst [vmem:[%s149 + $0xc0] sm:$0xff] %v198
                %v200 = vld [vmem:[%s148 + $0x188] sm:$0xff]
                %201 = vst [vmem:[%s149 + $0xc8] sm:$0xff] %v200
                %v202 = vld [vmem:[%s148 + $0x190] sm:$0xff]
                %203 = vst [vmem:[%s149 + $0xd0] sm:$0xff] %v202
                %v204 = vld [vmem:[%s148 + $0x198] sm:$0xff]
                %205 = vst [vmem:[%s149 + $0xd8] sm:$0xff] %v204
                %v206 = vld [vmem:[%s148 + $0x1c0] sm:$0xff]
                %207 = vst [vmem:[%s149 + $0xe0] sm:$0xff] %v206
                %v208 = vld [vmem:[%s148 + $0x1c8] sm:$0xff]
                %209 = vst [vmem:[%s149 + $0xe8] sm:$0xff] %v208
                %v210 = vld [vmem:[%s148 + $0x1d0] sm:$0xff]
                %211 = vst [vmem:[%s149 + $0xf0] sm:$0xff] %v210
                %v212 = vld [vmem:[%s148 + $0x1d8] sm:$0xff]
                %213 = vst [vmem:[%s149 + $0xf8] sm:$0xff] %v212
                %v214 = vld [vmem:[%s148 + $0x200] sm:$0xff]
                %215 = vst [vmem:[%s149 + $0x100] sm:$0xff] %v214
                %v216 = vld [vmem:[%s148 + $0x208] sm:$0xff]
                %217 = vst [vmem:[%s149 + $0x108] sm:$0xff] %v216
                %v218 = vld [vmem:[%s148 + $0x210] sm:$0xff]
                %219 = vst [vmem:[%s149 + $0x110] sm:$0xff] %v218
                %v220 = vld [vmem:[%s148 + $0x218] sm:$0xff]
                %221 = vst [vmem:[%s149 + $0x118] sm:$0xff] %v220
              $region41: #{siamese_forward.10} parent=35 // loop_footer
                %s147 = sadd.s32 1, %s143
              $region42: #{siamese_forward.10} parent=35 // loop_footer_branch
                %142 = sbr.rel target = $region38
              $region43: #{siamese_forward.10} parent=35 // loop_exit
                _
            $region36: #{siamese_forward.10} parent=31 // pred_fallthru
              _
            // Predicated region
            $region44: #{siamese_forward.10} parent=31 // pred_check
              _
            $region45: #{siamese_forward.10} parent=31 // pred_check_branch
              %223 = sbr.rel target = $region47
            $region46: #{siamese_forward.10} parent=31 // pred_region
              _
            $region47: #{siamese_forward.10} parent=31 // pred_fallthru
              _
          $region32: #{siamese_forward.10} parent=27 // pred_fallthru
            _
          %224 = vnop
        $region28: #{siamese_forward.10} parent=23 // pred_fallthru
          _
      $region24: #{siamese_forward.10} parent=5 // pred_fallthru
        _
      %p225 = scmp.le.s32.totalorder 1, %s9
      %p226 = scmp.lt.s32.totalorder %s9, 3
      %p227 = pnand %p225, %p226
      %p228 = pneg %p227
      // Predicated region
      $region48: #{siamese_forward.10} parent=5 // pred_check
        _
      $region49: #{siamese_forward.10} parent=5 // pred_check_branch
        %230 = sbr.rel (%p227) target = $region51
      $region50: #{siamese_forward.10} parent=5 // pred_region
        %s231 = ssub.s32 %s9, 1
        %s232 = sand.u32 %s22, 1
        %s233 = sand.u32 %s22, 1
        %s234 = smul.addr %s233, 288
        %s235 = scalar_lea.vmem [#allocation2], %s234
        // Predicated region
        $region52: #{siamese_forward.10} parent=50 // pred_check
          %p236 = pneg %p35
        $region53: #{siamese_forward.10} parent=50 // pred_check_branch
          %238 = sbr.rel (%p236) target = $region55
        $region54: #{siamese_forward.10} parent=50 // pred_region
          _
        $region55: #{siamese_forward.10} parent=50 // pred_fallthru
          _
        %s239 = sand.u32 %s22, 1
        %s240 = sand.u32 %s22, 1
        %s241 = smul.addr %s240, 288
        %s242 = scalar_lea.vmem [#allocation2], %s241
        %p243 = pneg %p35
        %p244 = pneg %p32
        %p245 = pneg %p56
        %p246 = pneg %p53
        %p247 = pneg %p77
        %p248 = pneg %p74
        %p249 = pneg %p103
        %p250 = pneg %p100
        %s251 = smul.u32 4, %s14
        %p252 = scmp.lt.s32.totalorder %s251, 7
        %s253 = scalar_select %p252, %s251, 7
        %s254 = smul.addr %s253, 8
        %s255 = scalar_lea.vmem %s3, %s254
        %s256 = smul.u32 4, %s14
        %s257 = smul.u32 4, %s14
        %p258 = scmp.lt.s32.totalorder %s257, 7
        %s259 = scalar_select %p258, %s257, 7
        %s260 = smul.addr %s259, 8
        %s261 = scalar_lea.vmem %s3, %s260
        %s262 = smul.u32 4, %s14
        %v263 = vld [vmem:[%s1] sm:$0xff]
        %v264 = vld [vmem:[%s235] sm:$0xff]
        %v265 = vld [vmem:[%s235 + $0x8] sm:$0xff]
        %v266 = vld [vmem:[%s235 + $0x10] sm:$0xff]
        %v267 = vld [vmem:[%s235 + $0x18] sm:$0xff]
        %v268 = vld [vmem:[%s235 + $0x20] sm:$0xff]
        %v269 = vld [vmem:[%s235 + $0x28] sm:$0xff]
        %v270 = vld [vmem:[%s235 + $0x30] sm:$0xff]
        %v271 = vld [vmem:[%s235 + $0x38] sm:$0xff]
        %v272 = vld [vmem:[%s235 + $0x40] sm:$0xff]
        %v273 = vld [vmem:[%s235 + $0x48] sm:$0xff]
        %v274 = vld [vmem:[%s235 + $0x50] sm:$0xff]
        %v275 = vld [vmem:[%s235 + $0x58] sm:$0xff]
        %v276 = vld [vmem:[%s235 + $0x60] sm:$0xff]
        %v277 = vld [vmem:[%s235 + $0x68] sm:$0xff]
        %v278 = vld [vmem:[%s235 + $0x70] sm:$0xff]
        %v279 = vld [vmem:[%s235 + $0x78] sm:$0xff]
        %v280 = vld [vmem:[%s235 + $0x80] sm:$0xff]
        %v281 = vld [vmem:[%s235 + $0x88] sm:$0xff]
        %v282 = vld [vmem:[%s235 + $0x90] sm:$0xff]
        %v283 = vld [vmem:[%s235 + $0x98] sm:$0xff]
        %v284 = vld [vmem:[%s235 + $0xa0] sm:$0xff]
        %v285 = vld [vmem:[%s235 + $0xa8] sm:$0xff]
        %v286 = vld [vmem:[%s235 + $0xb0] sm:$0xff]
        %v287 = vld [vmem:[%s235 + $0xb8] sm:$0xff]
        %v288 = vld [vmem:[%s235 + $0xc0] sm:$0xff]
        %v289 = vld [vmem:[%s235 + $0xc8] sm:$0xff]
        %v290 = vld [vmem:[%s235 + $0xd0] sm:$0xff]
        %v291 = vld [vmem:[%s235 + $0xd8] sm:$0xff]
        %v292 = vld [vmem:[%s235 + $0xe0] sm:$0xff]
        %v293 = vld [vmem:[%s235 + $0xe8] sm:$0xff]
        %v294 = vld [vmem:[%s235 + $0xf0] sm:$0xff]
        %v295 = vld [vmem:[%s235 + $0xf8] sm:$0xff]
        %v296 = vld [vmem:[%s235 + $0x100] sm:$0xff]
        %v297 = vld [vmem:[%s235 + $0x108] sm:$0xff]
        %v298 = vld [vmem:[%s235 + $0x110] sm:$0xff]
        %v299 = vld [vmem:[%s235 + $0x118] sm:$0xff]
        %v300 = vld [vmem:[%s2] sm:$0xff]
        %302 = vset.pattern.permute.xlu0 0
        %303 = vperm.xlu0 %302, %v300
        %v304 = vpop.permute.xlu0 %303
        %vm306 = vcmask 588800
        %v308 = vsel %vm306, %v263, 0
        %310 = vmatprep.subr.mxu0 0.0
        %311 = vmatpush1.msra.mxu0 0.0
        %312 = vmatprep.subr.mxu0 0.0
        %313 = vmatpush1.msra.mxu0 0.0
        %314 = vmatprep.subr.mxu0 0.0
        %315 = vmatpush1.msra.mxu0 0.0
        %316 = vmatprep.subr.mxu0 0.0
        %317 = vmatpush1.msra.mxu0 0.0
        %318 = vmatprep.subr.mxu0 0.0
        %319 = vmatpush1.msra.mxu0 0.0
        %320 = vmatprep.subr.mxu0 0.0
        %321 = vmatpush1.msra.mxu0 0.0
        %322 = vmatprep.subr.mxu0 0.0
        %323 = vmatpush1.msra.mxu0 0.0
        %324 = vmatprep.subr.mxu0 %v297
        %325 = vmatpush1.msra.mxu0 %v296
        %326 = vmatprep.subr.mxu0 %v293
        %327 = vmatpush1.msra.mxu0 %v292
        %328 = vmatprep.subr.mxu0 %v289
        %329 = vmatpush1.msra.mxu0 %v288
        %330 = vmatprep.subr.mxu0 %v285
        %331 = vmatpush1.msra.mxu0 %v284
        %332 = vmatprep.subr.mxu0 %v281
        %333 = vmatpush1.msra.mxu0 %v280
        %334 = vmatprep.subr.mxu0 %v277
        %335 = vmatpush1.msra.mxu0 %v276
        %336 = vmatprep.subr.mxu0 %v273
        %337 = vmatpush1.msra.mxu0 %v272
        %338 = vmatprep.subr.mxu0 %v269
        %339 = vmatpush1.msra.mxu0 %v268
        %340 = vmatprep.subr.mxu0 %v265
        %341 = vmatpush1.msra.mxu0 %v264
        %342 = vmatprep.subr.mxu0 0.0
        %343 = vmatpush2.msra.mxu0 0.0
        %344 = vmatprep.subr.mxu0 0.0
        %345 = vmatpush2.msra.mxu0 0.0
        %346 = vmatprep.subr.mxu0 0.0
        %347 = vmatpush2.msra.mxu0 0.0
        %348 = vmatprep.subr.mxu0 0.0
        %349 = vmatpush2.msra.mxu0 0.0
        %350 = vmatprep.subr.mxu0 0.0
        %351 = vmatpush2.msra.mxu0 0.0
        %352 = vmatprep.subr.mxu0 0.0
        %353 = vmatpush2.msra.mxu0 0.0
        %354 = vmatprep.subr.mxu0 0.0
        %355 = vmatpush2.msra.mxu0 0.0
        %356 = vmatprep.subr.mxu0 0.0
        %357 = vmatpush2.msra.mxu0 0.0
        %358 = vmatprep.subr.mxu0 0.0
        %359 = vmatpush2.msra.mxu0 0.0
        %360 = vmatprep.subr.mxu0 0.0
        %361 = vmatpush2.msra.mxu0 0.0
        %362 = vmatprep.subr.mxu0 0.0
        %363 = vmatpush2.msra.mxu0 0.0
        %364 = vmatprep.subr.mxu0 0.0
        %365 = vmatpush2.msra.mxu0 0.0
        %366 = vmatprep.subr.mxu0 0.0
        %367 = vmatpush2.msra.mxu0 0.0
        %368 = vmatprep.subr.mxu0 0.0
        %369 = vmatpush2.msra.mxu0 0.0
        %370 = vmatprep.subr.mxu0 0.0
        %371 = vmatpush2.msra.mxu0 0.0
        %372 = vmatprep.subr.mxu0 0.0
        %373 = vmatpush2.msra.mxu0 0.0
        %374 = vmatprep.mubr.f32.mxu0 0.0
        %375 = vmatmul.mubr.f32.gmra.mxu0 %v308
        %v376 = vpop.f32.mrf.mxu0
        %v377 = vadd.f32 %v304, %v376
        %v378 = vpop.f32.mrf.mxu0
        %v379 = vadd.f32 %v304, %v378
        %380 = vdwg.mxu0
        %381 = vmatprep.subr.mxu0 0.0
        %382 = vmatpush1.msra.mxu0 0.0
        %383 = vmatprep.subr.mxu0 0.0
        %384 = vmatpush1.msra.mxu0 0.0
        %385 = vmatprep.subr.mxu0 0.0
        %386 = vmatpush1.msra.mxu0 0.0
        %387 = vmatprep.subr.mxu0 0.0
        %388 = vmatpush1.msra.mxu0 0.0
        %389 = vmatprep.subr.mxu0 0.0
        %390 = vmatpush1.msra.mxu0 0.0
        %391 = vmatprep.subr.mxu0 0.0
        %392 = vmatpush1.msra.mxu0 0.0
        %393 = vmatprep.subr.mxu0 0.0
        %394 = vmatpush1.msra.mxu0 0.0
        %395 = vmatprep.subr.mxu0 %v299
        %396 = vmatpush1.msra.mxu0 %v298
        %397 = vmatprep.subr.mxu0 %v295
        %398 = vmatpush1.msra.mxu0 %v294
        %399 = vmatprep.subr.mxu0 %v291
        %400 = vmatpush1.msra.mxu0 %v290
        %401 = vmatprep.subr.mxu0 %v287
        %402 = vmatpush1.msra.mxu0 %v286
        %403 = vmatprep.subr.mxu0 %v283
        %404 = vmatpush1.msra.mxu0 %v282
        %405 = vmatprep.subr.mxu0 %v279
        %406 = vmatpush1.msra.mxu0 %v278
        %407 = vmatprep.subr.mxu0 %v275
        %408 = vmatpush1.msra.mxu0 %v274
        %409 = vmatprep.subr.mxu0 %v271
        %410 = vmatpush1.msra.mxu0 %v270
        %411 = vmatprep.subr.mxu0 %v267
        %412 = vmatpush1.msra.mxu0 %v266
        %413 = vmatprep.subr.mxu0 0.0
        %414 = vmatpush2.msra.mxu0 0.0
        %415 = vmatprep.subr.mxu0 0.0
        %416 = vmatpush2.msra.mxu0 0.0
        %417 = vmatprep.subr.mxu0 0.0
        %418 = vmatpush2.msra.mxu0 0.0
        %419 = vmatprep.subr.mxu0 0.0
        %420 = vmatpush2.msra.mxu0 0.0
        %421 = vmatprep.subr.mxu0 0.0
        %422 = vmatpush2.msra.mxu0 0.0
        %423 = vmatprep.subr.mxu0 0.0
        %424 = vmatpush2.msra.mxu0 0.0
        %425 = vmatprep.subr.mxu0 0.0
        %426 = vmatpush2.msra.mxu0 0.0
        %427 = vmatprep.subr.mxu0 0.0
        %428 = vmatpush2.msra.mxu0 0.0
        %429 = vmatprep.subr.mxu0 0.0
        %430 = vmatpush2.msra.mxu0 0.0
        %431 = vmatprep.subr.mxu0 0.0
        %432 = vmatpush2.msra.mxu0 0.0
        %433 = vmatprep.subr.mxu0 0.0
        %434 = vmatpush2.msra.mxu0 0.0
        %435 = vmatprep.subr.mxu0 0.0
        %436 = vmatpush2.msra.mxu0 0.0
        %437 = vmatprep.subr.mxu0 0.0
        %438 = vmatpush2.msra.mxu0 0.0
        %439 = vmatprep.subr.mxu0 0.0
        %440 = vmatpush2.msra.mxu0 0.0
        %441 = vmatprep.subr.mxu0 0.0
        %442 = vmatpush2.msra.mxu0 0.0
        %443 = vmatprep.subr.mxu0 0.0
        %444 = vmatpush2.msra.mxu0 0.0
        %445 = vmatprep.mubr.f32.mxu0 0.0
        %446 = vmatmul.mubr.f32.gmra.mxu0 %v308
        %v447 = vpop.f32.mrf.mxu0
        %v448 = vadd.f32 %v304, %v447
        %v449 = vpop.f32.mrf.mxu0
        %v450 = vadd.f32 %v304, %v449
        %451 = vdwg.mxu0
        %v452 = vmax.f32 %v377, 0.0
        %v453 = vmax.f32 %v379, 0.0
        %v454 = vmax.f32 %v448, 0.0
        %v455 = vmax.f32 %v450, 0.0
        %456 = vst [vmem:[%s261] sm:$0xff] %v452
        %457 = vst [vmem:[%s261 + $0x8] sm:$0xff] %v453
        %458 = vst [vmem:[%s261 + $0x10] sm:$0xff] %v454
        %459 = vst [vmem:[%s261 + $0x18] sm:$0xff] %v455
        %s460 = smul.u32 4, %s14
        %p461 = scmp.lt.s32.totalorder %s460, 7
        %s462 = scalar_select %p461, %s460, 7
        %s463 = smul.addr %s462, 8
        %s464 = scalar_lea.vmem %s3, %s463
        // Predicated region
        $region56: #{siamese_forward.10} parent=50 // pred_check
          %p465 = pneg %p100
        $region57: #{siamese_forward.10} parent=50 // pred_check_branch
          %467 = sbr.rel (%p465) target = $region59
        $region58: #{siamese_forward.10} parent=50 // pred_region
          %s468 = smul.u32 4, %s14
        $region59: #{siamese_forward.10} parent=50 // pred_fallthru
          _
      $region51: #{siamese_forward.10} parent=5 // pred_fallthru
        _
      %p469 = scmp.le.s32.totalorder 2, %s9
      // Predicated region
      $region60: #{siamese_forward.10} parent=5 // pred_check
        %p470 = pneg %p469
      $region61: #{siamese_forward.10} parent=5 // pred_check_branch
        %472 = sbr.rel (%p470) target = $region63
      $region62: #{siamese_forward.10} parent=5 // pred_region
        %s473 = ssub.s32 %s9, 2
        // Predicated region
        $region64: #{siamese_forward.10} parent=62 // pred_check
          %p474 = pneg %p106
        $region65: #{siamese_forward.10} parent=62 // pred_check_branch
          %476 = sbr.rel (%p474) target = $region67
        $region66: #{siamese_forward.10} parent=62 // pred_region
          %s477 = smul.u32 4, %s15
          %p478 = scmp.lt.s32.totalorder %s477, 7
          %s479 = scalar_select %p478, %s477, 7
          %s480 = smul.addr %s479, 8
          %s481 = scalar_lea.vmem %s3, %s480
        $region67: #{siamese_forward.10} parent=62 // pred_fallthru
          _
      $region63: #{siamese_forward.10} parent=5 // pred_fallthru
        _
    $region6: #{siamese_forward.10} parent=1 // loop_footer
      %s13 = sadd.s32 1, %s9
    $region7: #{siamese_forward.10} parent=1 // loop_footer_branch
      %8 = sbr.rel target = $region3
    $region8: #{siamese_forward.10} parent=1 // loop_exit
      _

// kernel: siamese_forward.11
$region0: #{siamese_forward.11}
  #allocation0 [shape = 'u32[]', space=smem, size = 0x4, offset = 0x4, fixed_abs, tag = 'smem constant byte address 0x4 - core index']
  #allocation1 [shape = 'u32[144,128]{1,0:T(1,128)}', space=vmem, size = 0x12000, scoped, tag = 'internal scratch']
  #allocation2 [shape = 'f32[4,256]{1,0:T(4,128)}', space=vmem, size = 0x1000, scoped, tag = 'scratch operand']
  %s0 = inlined_call_operand.vmem [shape: bf16[4,2048], index: 0, kind: input, shape index: {}]
  %s1 = inlined_call_operand.vmem [shape: bf16[2048,512], index: 1, kind: input, shape index: {}]
  %s2 = inlined_call_operand.vmem [shape: f32[1,512], index: 2, kind: input, shape index: {}]
  %s3 = inlined_call_operand.vmem [shape: f32[4,512], index: 3, kind: output, shape index: {}]
  %s4 = sld [smem:[#allocation0]]
  $region91: #{siamese_forward.11} parent=0
    _
  %s6 = ssub.s32 1, %s4
  %s7 = scalar_select 0, %s6, %s4
  $region1: #{siamese_forward.11} parent=0
    #allocation3 [shape = 'u8[2097152]{0}', space=vmem, size = 0x200000, scoped, tag = 'input window, operand 1']
    loop: start=0, step=1, limit=4
    $region2: #{siamese_forward.11} parent=1 // loop_pre_header
      _
    $region3: #{siamese_forward.11} parent=1 // loop_header
      %s9 = sphi 0, %s13
      %p10 = scmp.ge.s32.totalorder %s9, 4
      %s16 = sphi 0, %s28
      %s17 = sphi 0, %s24
      %s18 = sphi 0, %s16
      %s19 = sphi 0, %s17
      %s20 = sphi 0, %s18
      %s21 = sphi 0, %s19
      %s31 = sphi 0, %s33
      %s34 = sphi 0, %s31
      %s35 = sphi 0, %s34
      %s51 = sphi 0, %s35
      %s59 = sphi 0, %s61
      %s62 = sphi 0, %s59
      %s63 = sphi 0, %s62
      %s79 = sphi 0, %s63
      %s85 = sphi 0, %s87
      %s88 = sphi 0, %s85
      %s89 = sphi 0, %s88
      %s105 = sphi 0, %s89
      %s111 = sphi 0, %s113
      %s114 = sphi 0, %s111
      %s115 = sphi 0, %s114
      %s131 = sphi 0, %s115
    $region4: #{siamese_forward.11} parent=1 // loop_header_branch
      %12 = sbr.rel (%p10) target = $region8
    $region5: #{siamese_forward.11} parent=1 // loop_body
      %s14 = ssub.s32 %s9, 1
      %s15 = ssub.s32 %s9, 2
      %s22 = sadd.s32 1, %s17
      %p23 = scmp.ge.s32.totalorder %s22, 1
      %s24 = scalar_select %p23, 0, %s22
      %s25 = sadd.s32 1, %s16
      %s26 = scalar_select %p23, %s25, %s16
      %p27 = scmp.ge.s32.totalorder %s26, 2
      %s28 = scalar_select %p27, 0, %s26
      %s29 = ssub.s32 %s17, %s24
      %p30 = scmp.eq.s32.totalorder %s29, 0
      %s32 = sadd.s32 %s31, 1
      %s33 = scalar_select %p30, %s31, %s32
      %p36 = pneg %p30
      %p37 = scmp.eq.s32.totalorder %s9, 1
      %p38 = por %p36, %p37
      %p39 = scmp.ne.s32.totalorder %s31, %s34
      %p40 = scmp.eq.s32.totalorder %s9, 0
      %p41 = por %p39, %p40
      %p42 = scmp.ne.s32.totalorder %s31, %s34
      %p43 = scmp.eq.s32.totalorder %s14, 1
      %p44 = por %p42, %p43
      %p45 = scmp.ne.s32.totalorder %s34, %s35
      %p46 = scmp.eq.s32.totalorder %s14, 0
      %p47 = por %p45, %p46
      %p48 = scmp.ne.s32.totalorder %s34, %s35
      %p49 = scmp.eq.s32.totalorder %s15, 1
      %p50 = por %p48, %p49
      %p52 = scmp.ne.s32.totalorder %s35, %s51
      %p53 = scmp.eq.s32.totalorder %s15, 0
      %p54 = por %p52, %p53
      %s55 = ssub.s32 %s17, %s24
      %s56 = ssub.s32 %s16, %s28
      %s57 = sor.u32 %s55, %s56
      %p58 = scmp.eq.s32.totalorder %s57, 0
      %s60 = sadd.s32 %s59, 1
      %s61 = scalar_select %p58, %s59, %s60
      %p64 = pneg %p58
      %p65 = scmp.eq.s32.totalorder %s9, 1
      %p66 = por %p64, %p65
      %p67 = scmp.ne.s32.totalorder %s59, %s62
      %p68 = scmp.eq.s32.totalorder %s9, 0
      %p69 = por %p67, %p68
      %p70 = scmp.ne.s32.totalorder %s59, %s62
      %p71 = scmp.eq.s32.totalorder %s14, 1
      %p72 = por %p70, %p71
      %p73 = scmp.ne.s32.totalorder %s62, %s63
      %p74 = scmp.eq.s32.totalorder %s14, 0
      %p75 = por %p73, %p74
      %p76 = scmp.ne.s32.totalorder %s62, %s63
      %p77 = scmp.eq.s32.totalorder %s15, 1
      %p78 = por %p76, %p77
      %p80 = scmp.ne.s32.totalorder %s63, %s79
      %p81 = scmp.eq.s32.totalorder %s15, 0
      %p82 = por %p80, %p81
      %s83 = ssub.s32 %s16, %s28
      %p84 = scmp.eq.s32.totalorder %s83, 0
      %s86 = sadd.s32 %s85, 1
      %s87 = scalar_select %p84, %s85, %s86
      %p90 = pneg %p84
      %p91 = scmp.eq.s32.totalorder %s9, 1
      %p92 = por %p90, %p91
      %p93 = scmp.ne.s32.totalorder %s85, %s88
      %p94 = scmp.eq.s32.totalorder %s9, 0
      %p95 = por %p93, %p94
      %p96 = scmp.ne.s32.totalorder %s85, %s88
      %p97 = scmp.eq.s32.totalorder %s14, 1
      %p98 = por %p96, %p97
      %p99 = scmp.ne.s32.totalorder %s88, %s89
      %p100 = scmp.eq.s32.totalorder %s14, 0
      %p101 = por %p99, %p100
      %p102 = scmp.ne.s32.totalorder %s88, %s89
      %p103 = scmp.eq.s32.totalorder %s15, 1
      %p104 = por %p102, %p103
      %p106 = scmp.ne.s32.totalorder %s89, %s105
      %p107 = scmp.eq.s32.totalorder %s15, 0
      %p108 = por %p106, %p107
      %s109 = ssub.s32 %s16, %s28
      %p110 = scmp.eq.s32.totalorder %s109, 0
      %s112 = sadd.s32 %s111, 1
      %s113 = scalar_select %p110, %s111, %s112
      %p116 = pneg %p110
      %p117 = scmp.eq.s32.totalorder %s9, 1
      %p118 = por %p116, %p117
      %p119 = scmp.ne.s32.totalorder %s111, %s114
      %p120 = scmp.eq.s32.totalorder %s9, 0
      %p121 = por %p119, %p120
      %p122 = scmp.ne.s32.totalorder %s111, %s114
      %p123 = scmp.eq.s32.totalorder %s14, 1
      %p124 = por %p122, %p123
      %p125 = scmp.ne.s32.totalorder %s114, %s115
      %p126 = scmp.eq.s32.totalorder %s14, 0
      %p127 = por %p125, %p126
      %p128 = scmp.ne.s32.totalorder %s114, %s115
      %p129 = scmp.eq.s32.totalorder %s15, 1
      %p130 = por %p128, %p129
      %p132 = scmp.ne.s32.totalorder %s115, %s131
      %p133 = scmp.eq.s32.totalorder %s15, 0
      %p134 = por %p132, %p133
      %p135 = scmp.le.s32.totalorder 1, %s9
      %p136 = scmp.lt.s32.totalorder %s9, 3
      %p137 = pnand %p135, %p136
      %p138 = pneg %p137
      // Predicated region
      $region9: #{siamese_forward.11} parent=5 // pred_check
        _
      $region10: #{siamese_forward.11} parent=5 // pred_check_branch
        %140 = sbr.rel (%p137) target = $region12
      $region11: #{siamese_forward.11} parent=5 // pred_region
        %s141 = ssub.s32 %s9, 1
        // Predicated region
        $region13: #{siamese_forward.11} parent=11 // pred_check
          %p142 = pneg %p47
        $region14: #{siamese_forward.11} parent=11 // pred_check_branch
          %144 = sbr.rel (%p142) target = $region16
        $region15: #{siamese_forward.11} parent=11 // pred_region
          %s145 = smul.u32 16, %s19
          %p146 = scmp.lt.s32.totalorder %s145, 15
          %s147 = scalar_select %p146, %s145, 15
          %s148 = smul.addr %s147, 2
          %s149 = scalar_lea.vmem %s0, %s148
          %s150 = smul.u32 16, %s19
        $region16: #{siamese_forward.11} parent=11 // pred_fallthru
          _
      $region12: #{siamese_forward.11} parent=5 // pred_fallthru
        _
      %p151 = scmp.lt.s32.totalorder %s9, 2
      // Predicated region
      $region17: #{siamese_forward.11} parent=5 // pred_check
        %p152 = pneg %p151
      $region18: #{siamese_forward.11} parent=5 // pred_check_branch
        %154 = sbr.rel (%p152) target = $region20
      $region19: #{siamese_forward.11} parent=5 // pred_region
        // Predicated region
        $region21: #{siamese_forward.11} parent=19 // pred_check
          %p155 = pneg %p69
        $region22: #{siamese_forward.11} parent=19 // pred_check_branch
          %157 = sbr.rel (%p155) target = $region24
        $region23: #{siamese_forward.11} parent=19 // pred_region
          %s158 = sand.u32 %s59, 1
          %s159 = sand.u32 %s59, 1
          %s160 = smul.addr %s159, 2048
          %s161 = scalar_lea.vmem [#allocation3], %s160
          %s162 = smul.u32 256, %s17
          %s163 = smul.u32 2, %s16
          %s164 = smul.addr %s162, 4
          %s165 = sadd.s32 %s163, %s164
          %s166 = smul.addr %s165, 4
          %s167 = scalar_lea.vmem %s1, %s166
          // Predicated region
          $region25: #{siamese_forward.11} parent=23 // pred_check
            _
          $region26: #{siamese_forward.11} parent=23 // pred_check_branch
            %169 = sbr.rel (0) target = $region28
          $region27: #{siamese_forward.11} parent=23 // pred_region
            // Predicated region
            $region29: #{siamese_forward.11} parent=27 // pred_check
              _
            $region30: #{siamese_forward.11} parent=27 // pred_check_branch
              %171 = sbr.rel (0) target = $region32
            $region31: #{siamese_forward.11} parent=27 // pred_region
              // Predicated region
              $region44: #{siamese_forward.11} parent=31 // pred_check
                _
              $region45: #{siamese_forward.11} parent=31 // pred_check_branch
                %697 = sbr.rel (0) target = $region47
              $region46: #{siamese_forward.11} parent=31 // pred_region
                loop: start=0, step=1, limit=1
                $region48: #{siamese_forward.11} parent=46 // loop_pre_header
                  _
                $region49: #{siamese_forward.11} parent=46 // loop_header
                  %s699 = sphi 0, %s703
                  %p700 = scmp.ge.s32.totalorder %s699, 1
                  %s704 = sphi %s167, %s167
                  %s705 = sphi %s161, %s161
                $region50: #{siamese_forward.11} parent=46 // loop_header_branch
                  %702 = sbr.rel (%p700) target = $region54
                $region51: #{siamese_forward.11} parent=46 // loop_body
                  %v706 = vld [vmem:[%s704] sm:$0xff]
                  %707 = vst [vmem:[%s705] sm:$0xff] %v706
                  %v708 = vld [vmem:[%s704 + $0x10] sm:$0xff]
                  %709 = vst [vmem:[%s705 + $0x8] sm:$0xff] %v708
                  %v710 = vld [vmem:[%s704 + $0x20] sm:$0xff]
                  %711 = vst [vmem:[%s705 + $0x10] sm:$0xff] %v710
                  %v712 = vld [vmem:[%s704 + $0x30] sm:$0xff]
                  %713 = vst [vmem:[%s705 + $0x18] sm:$0xff] %v712
                  %v714 = vld [vmem:[%s704 + $0x40] sm:$0xff]
                  %715 = vst [vmem:[%s705 + $0x20] sm:$0xff] %v714
                  %v716 = vld [vmem:[%s704 + $0x50] sm:$0xff]
                  %717 = vst [vmem:[%s705 + $0x28] sm:$0xff] %v716
                  %v718 = vld [vmem:[%s704 + $0x60] sm:$0xff]
                  %719 = vst [vmem:[%s705 + $0x30] sm:$0xff] %v718
                  %v720 = vld [vmem:[%s704 + $0x70] sm:$0xff]
                  %721 = vst [vmem:[%s705 + $0x38] sm:$0xff] %v720
                  %v722 = vld [vmem:[%s704 + $0x80] sm:$0xff]
                  %723 = vst [vmem:[%s705 + $0x40] sm:$0xff] %v722
                  %v724 = vld [vmem:[%s704 + $0x90] sm:$0xff]
                  %725 = vst [vmem:[%s705 + $0x48] sm:$0xff] %v724
                  %v726 = vld [vmem:[%s704 + $0xa0] sm:$0xff]
                  %727 = vst [vmem:[%s705 + $0x50] sm:$0xff] %v726
                  %v728 = vld [vmem:[%s704 + $0xb0] sm:$0xff]
                  %729 = vst [vmem:[%s705 + $0x58] sm:$0xff] %v728
                  %v730 = vld [vmem:[%s704 + $0xc0] sm:$0xff]
                  %731 = vst [vmem:[%s705 + $0x60] sm:$0xff] %v730
                  %v732 = vld [vmem:[%s704 + $0xd0] sm:$0xff]
                  %733 = vst [vmem:[%s705 + $0x68] sm:$0xff] %v732
                  %v734 = vld [vmem:[%s704 + $0xe0] sm:$0xff]
                  %735 = vst [vmem:[%s705 + $0x70] sm:$0xff] %v734
                  %v736 = vld [vmem:[%s704 + $0xf0] sm:$0xff]
                  %737 = vst [vmem:[%s705 + $0x78] sm:$0xff] %v736
                  %v738 = vld [vmem:[%s704 + $0x100] sm:$0xff]
                  %739 = vst [vmem:[%s705 + $0x80] sm:$0xff] %v738
                  %v740 = vld [vmem:[%s704 + $0x110] sm:$0xff]
                  %741 = vst [vmem:[%s705 + $0x88] sm:$0xff] %v740
                  %v742 = vld [vmem:[%s704 + $0x120] sm:$0xff]
                  %743 = vst [vmem:[%s705 + $0x90] sm:$0xff] %v742
                  %v744 = vld [vmem:[%s704 + $0x130] sm:$0xff]
                  %745 = vst [vmem:[%s705 + $0x98] sm:$0xff] %v744
                  %v746 = vld [vmem:[%s704 + $0x140] sm:$0xff]
                  %747 = vst [vmem:[%s705 + $0xa0] sm:$0xff] %v746
                  %v748 = vld [vmem:[%s704 + $0x150] sm:$0xff]
                  %749 = vst [vmem:[%s705 + $0xa8] sm:$0xff] %v748
                  %v750 = vld [vmem:[%s704 + $0x160] sm:$0xff]
                  %751 = vst [vmem:[%s705 + $0xb0] sm:$0xff] %v750
                  %v752 = vld [vmem:[%s704 + $0x170] sm:$0xff]
                  %753 = vst [vmem:[%s705 + $0xb8] sm:$0xff] %v752
                  %v754 = vld [vmem:[%s704 + $0x180] sm:$0xff]
                  %755 = vst [vmem:[%s705 + $0xc0] sm:$0xff] %v754
                  %v756 = vld [vmem:[%s704 + $0x190] sm:$0xff]
                  %757 = vst [vmem:[%s705 + $0xc8] sm:$0xff] %v756
                  %v758 = vld [vmem:[%s704 + $0x1a0] sm:$0xff]
                  %759 = vst [vmem:[%s705 + $0xd0] sm:$0xff] %v758
                  %v760 = vld [vmem:[%s704 + $0x1b0] sm:$0xff]
                  %761 = vst [vmem:[%s705 + $0xd8] sm:$0xff] %v760
                  %v762 = vld [vmem:[%s704 + $0x1c0] sm:$0xff]
                  %763 = vst [vmem:[%s705 + $0xe0] sm:$0xff] %v762
                  %v764 = vld [vmem:[%s704 + $0x1d0] sm:$0xff]
                  %765 = vst [vmem:[%s705 + $0xe8] sm:$0xff] %v764
                  %v766 = vld [vmem:[%s704 + $0x1e0] sm:$0xff]
                  %767 = vst [vmem:[%s705 + $0xf0] sm:$0xff] %v766
                  %v768 = vld [vmem:[%s704 + $0x1f0] sm:$0xff]
                  %769 = vst [vmem:[%s705 + $0xf8] sm:$0xff] %v768
                  %v770 = vld [vmem:[%s704 + $0x200] sm:$0xff]
                  %771 = vst [vmem:[%s705 + $0x100] sm:$0xff] %v770
                  %v772 = vld [vmem:[%s704 + $0x210] sm:$0xff]
                  %773 = vst [vmem:[%s705 + $0x108] sm:$0xff] %v772
                  %v774 = vld [vmem:[%s704 + $0x220] sm:$0xff]
                  %775 = vst [vmem:[%s705 + $0x110] sm:$0xff] %v774
                  %v776 = vld [vmem:[%s704 + $0x230] sm:$0xff]
                  %777 = vst [vmem:[%s705 + $0x118] sm:$0xff] %v776
                  %v778 = vld [vmem:[%s704 + $0x240] sm:$0xff]
                  %779 = vst [vmem:[%s705 + $0x120] sm:$0xff] %v778
                  %v780 = vld [vmem:[%s704 + $0x250] sm:$0xff]
                  %781 = vst [vmem:[%s705 + $0x128] sm:$0xff] %v780
                  %v782 = vld [vmem:[%s704 + $0x260] sm:$0xff]
                  %783 = vst [vmem:[%s705 + $0x130] sm:$0xff] %v782
                  %v784 = vld [vmem:[%s704 + $0x270] sm:$0xff]
                  %785 = vst [vmem:[%s705 + $0x138] sm:$0xff] %v784
                  %v786 = vld [vmem:[%s704 + $0x280] sm:$0xff]
                  %787 = vst [vmem:[%s705 + $0x140] sm:$0xff] %v786
                  %v788 = vld [vmem:[%s704 + $0x290] sm:$0xff]
                  %789 = vst [vmem:[%s705 + $0x148] sm:$0xff] %v788
                  %v790 = vld [vmem:[%s704 + $0x2a0] sm:$0xff]
                  %791 = vst [vmem:[%s705 + $0x150] sm:$0xff] %v790
                  %v792 = vld [vmem:[%s704 + $0x2b0] sm:$0xff]
                  %793 = vst [vmem:[%s705 + $0x158] sm:$0xff] %v792
                  %v794 = vld [vmem:[%s704 + $0x2c0] sm:$0xff]
                  %795 = vst [vmem:[%s705 + $0x160] sm:$0xff] %v794
                  %v796 = vld [vmem:[%s704 + $0x2d0] sm:$0xff]
                  %797 = vst [vmem:[%s705 + $0x168] sm:$0xff] %v796
                  %v798 = vld [vmem:[%s704 + $0x2e0] sm:$0xff]
                  %799 = vst [vmem:[%s705 + $0x170] sm:$0xff] %v798
                  %v800 = vld [vmem:[%s704 + $0x2f0] sm:$0xff]
                  %801 = vst [vmem:[%s705 + $0x178] sm:$0xff] %v800
                  %v802 = vld [vmem:[%s704 + $0x300] sm:$0xff]
                  %803 = vst [vmem:[%s705 + $0x180] sm:$0xff] %v802
                  %v804 = vld [vmem:[%s704 + $0x310] sm:$0xff]
                  %805 = vst [vmem:[%s705 + $0x188] sm:$0xff] %v804
                  %v806 = vld [vmem:[%s704 + $0x320] sm:$0xff]
                  %807 = vst [vmem:[%s705 + $0x190] sm:$0xff] %v806
                  %v808 = vld [vmem:[%s704 + $0x330] sm:$0xff]
                  %809 = vst [vmem:[%s705 + $0x198] sm:$0xff] %v808
                  %v810 = vld [vmem:[%s704 + $0x340] sm:$0xff]
                  %811 = vst [vmem:[%s705 + $0x1a0] sm:$0xff] %v810
                  %v812 = vld [vmem:[%s704 + $0x350] sm:$0xff]
                  %813 = vst [vmem:[%s705 + $0x1a8] sm:$0xff] %v812
                  %v814 = vld [vmem:[%s704 + $0x360] sm:$0xff]
                  %815 = vst [vmem:[%s705 + $0x1b0] sm:$0xff] %v814
                  %v816 = vld [vmem:[%s704 + $0x370] sm:$0xff]
                  %817 = vst [vmem:[%s705 + $0x1b8] sm:$0xff] %v816
                  %v818 = vld [vmem:[%s704 + $0x380] sm:$0xff]
                  %819 = vst [vmem:[%s705 + $0x1c0] sm:$0xff] %v818
                  %v820 = vld [vmem:[%s704 + $0x390] sm:$0xff]
                  %821 = vst [vmem:[%s705 + $0x1c8] sm:$0xff] %v820
                  %v822 = vld [vmem:[%s704 + $0x3a0] sm:$0xff]
                  %823 = vst [vmem:[%s705 + $0x1d0] sm:$0xff] %v822
                  %v824 = vld [vmem:[%s704 + $0x3b0] sm:$0xff]
                  %825 = vst [vmem:[%s705 + $0x1d8] sm:$0xff] %v824
                  %v826 = vld [vmem:[%s704 + $0x3c0] sm:$0xff]
                  %827 = vst [vmem:[%s705 + $0x1e0] sm:$0xff] %v826
                  %v828 = vld [vmem:[%s704 + $0x3d0] sm:$0xff]
                  %829 = vst [vmem:[%s705 + $0x1e8] sm:$0xff] %v828
                  %v830 = vld [vmem:[%s704 + $0x3e0] sm:$0xff]
                  %831 = vst [vmem:[%s705 + $0x1f0] sm:$0xff] %v830
                  %v832 = vld [vmem:[%s704 + $0x3f0] sm:$0xff]
                  %833 = vst [vmem:[%s705 + $0x1f8] sm:$0xff] %v832
                  %v834 = vld [vmem:[%s704 + $0x400] sm:$0xff]
                  %835 = vst [vmem:[%s705 + $0x200] sm:$0xff] %v834
                  %v836 = vld [vmem:[%s704 + $0x410] sm:$0xff]
                  %837 = vst [vmem:[%s705 + $0x208] sm:$0xff] %v836
                  %v838 = vld [vmem:[%s704 + $0x420] sm:$0xff]
                  %839 = vst [vmem:[%s705 + $0x210] sm:$0xff] %v838
                  %v840 = vld [vmem:[%s704 + $0x430] sm:$0xff]
                  %841 = vst [vmem:[%s705 + $0x218] sm:$0xff] %v840
                  %v842 = vld [vmem:[%s704 + $0x440] sm:$0xff]
                  %843 = vst [vmem:[%s705 + $0x220] sm:$0xff] %v842
                  %v844 = vld [vmem:[%s704 + $0x450] sm:$0xff]
                  %845 = vst [vmem:[%s705 + $0x228] sm:$0xff] %v844
                  %v846 = vld [vmem:[%s704 + $0x460] sm:$0xff]
                  %847 = vst [vmem:[%s705 + $0x230] sm:$0xff] %v846
                  %v848 = vld [vmem:[%s704 + $0x470] sm:$0xff]
                  %849 = vst [vmem:[%s705 + $0x238] sm:$0xff] %v848
                  %v850 = vld [vmem:[%s704 + $0x480] sm:$0xff]
                  %851 = vst [vmem:[%s705 + $0x240] sm:$0xff] %v850
                  %v852 = vld [vmem:[%s704 + $0x490] sm:$0xff]
                  %853 = vst [vmem:[%s705 + $0x248] sm:$0xff] %v852
                  %v854 = vld [vmem:[%s704 + $0x4a0] sm:$0xff]
                  %855 = vst [vmem:[%s705 + $0x250] sm:$0xff] %v854
                  %v856 = vld [vmem:[%s704 + $0x4b0] sm:$0xff]
                  %857 = vst [vmem:[%s705 + $0x258] sm:$0xff] %v856
                  %v858 = vld [vmem:[%s704 + $0x4c0] sm:$0xff]
                  %859 = vst [vmem:[%s705 + $0x260] sm:$0xff] %v858
                  %v860 = vld [vmem:[%s704 + $0x4d0] sm:$0xff]
                  %861 = vst [vmem:[%s705 + $0x268] sm:$0xff] %v860
                  %v862 = vld [vmem:[%s704 + $0x4e0] sm:$0xff]
                  %863 = vst [vmem:[%s705 + $0x270] sm:$0xff] %v862
                  %v864 = vld [vmem:[%s704 + $0x4f0] sm:$0xff]
                  %865 = vst [vmem:[%s705 + $0x278] sm:$0xff] %v864
                  %v866 = vld [vmem:[%s704 + $0x500] sm:$0xff]
                  %867 = vst [vmem:[%s705 + $0x280] sm:$0xff] %v866
                  %v868 = vld [vmem:[%s704 + $0x510] sm:$0xff]
                  %869 = vst [vmem:[%s705 + $0x288] sm:$0xff] %v868
                  %v870 = vld [vmem:[%s704 + $0x520] sm:$0xff]
                  %871 = vst [vmem:[%s705 + $0x290] sm:$0xff] %v870
                  %v872 = vld [vmem:[%s704 + $0x530] sm:$0xff]
                  %873 = vst [vmem:[%s705 + $0x298] sm:$0xff] %v872
                  %v874 = vld [vmem:[%s704 + $0x540] sm:$0xff]
                  %875 = vst [vmem:[%s705 + $0x2a0] sm:$0xff] %v874
                  %v876 = vld [vmem:[%s704 + $0x550] sm:$0xff]
                  %877 = vst [vmem:[%s705 + $0x2a8] sm:$0xff] %v876
                  %v878 = vld [vmem:[%s704 + $0x560] sm:$0xff]
                  %879 = vst [vmem:[%s705 + $0x2b0] sm:$0xff] %v878
                  %v880 = vld [vmem:[%s704 + $0x570] sm:$0xff]
                  %881 = vst [vmem:[%s705 + $0x2b8] sm:$0xff] %v880
                  %v882 = vld [vmem:[%s704 + $0x580] sm:$0xff]
                  %883 = vst [vmem:[%s705 + $0x2c0] sm:$0xff] %v882
                  %v884 = vld [vmem:[%s704 + $0x590] sm:$0xff]
                  %885 = vst [vmem:[%s705 + $0x2c8] sm:$0xff] %v884
                  %v886 = vld [vmem:[%s704 + $0x5a0] sm:$0xff]
                  %887 = vst [vmem:[%s705 + $0x2d0] sm:$0xff] %v886
                  %v888 = vld [vmem:[%s704 + $0x5b0] sm:$0xff]
                  %889 = vst [vmem:[%s705 + $0x2d8] sm:$0xff] %v888
                  %v890 = vld [vmem:[%s704 + $0x5c0] sm:$0xff]
                  %891 = vst [vmem:[%s705 + $0x2e0] sm:$0xff] %v890
                  %v892 = vld [vmem:[%s704 + $0x5d0] sm:$0xff]
                  %893 = vst [vmem:[%s705 + $0x2e8] sm:$0xff] %v892
                  %v894 = vld [vmem:[%s704 + $0x5e0] sm:$0xff]
                  %895 = vst [vmem:[%s705 + $0x2f0] sm:$0xff] %v894
                  %v896 = vld [vmem:[%s704 + $0x5f0] sm:$0xff]
                  %897 = vst [vmem:[%s705 + $0x2f8] sm:$0xff] %v896
                  %v898 = vld [vmem:[%s704 + $0x600] sm:$0xff]
                  %899 = vst [vmem:[%s705 + $0x300] sm:$0xff] %v898
                  %v900 = vld [vmem:[%s704 + $0x610] sm:$0xff]
                  %901 = vst [vmem:[%s705 + $0x308] sm:$0xff] %v900
                  %v902 = vld [vmem:[%s704 + $0x620] sm:$0xff]
                  %903 = vst [vmem:[%s705 + $0x310] sm:$0xff] %v902
                  %v904 = vld [vmem:[%s704 + $0x630] sm:$0xff]
                  %905 = vst [vmem:[%s705 + $0x318] sm:$0xff] %v904
                  %v906 = vld [vmem:[%s704 + $0x640] sm:$0xff]
                  %907 = vst [vmem:[%s705 + $0x320] sm:$0xff] %v906
                  %v908 = vld [vmem:[%s704 + $0x650] sm:$0xff]
                  %909 = vst [vmem:[%s705 + $0x328] sm:$0xff] %v908
                  %v910 = vld [vmem:[%s704 + $0x660] sm:$0xff]
                  %911 = vst [vmem:[%s705 + $0x330] sm:$0xff] %v910
                  %v912 = vld [vmem:[%s704 + $0x670] sm:$0xff]
                  %913 = vst [vmem:[%s705 + $0x338] sm:$0xff] %v912
                  %v914 = vld [vmem:[%s704 + $0x680] sm:$0xff]
                  %915 = vst [vmem:[%s705 + $0x340] sm:$0xff] %v914
                  %v916 = vld [vmem:[%s704 + $0x690] sm:$0xff]
                  %917 = vst [vmem:[%s705 + $0x348] sm:$0xff] %v916
                  %v918 = vld [vmem:[%s704 + $0x6a0] sm:$0xff]
                  %919 = vst [vmem:[%s705 + $0x350] sm:$0xff] %v918
                  %v920 = vld [vmem:[%s704 + $0x6b0] sm:$0xff]
                  %921 = vst [vmem:[%s705 + $0x358] sm:$0xff] %v920
                  %v922 = vld [vmem:[%s704 + $0x6c0] sm:$0xff]
                  %923 = vst [vmem:[%s705 + $0x360] sm:$0xff] %v922
                  %v924 = vld [vmem:[%s704 + $0x6d0] sm:$0xff]
                  %925 = vst [vmem:[%s705 + $0x368] sm:$0xff] %v924
                  %v926 = vld [vmem:[%s704 + $0x6e0] sm:$0xff]
                  %927 = vst [vmem:[%s705 + $0x370] sm:$0xff] %v926
                  %v928 = vld [vmem:[%s704 + $0x6f0] sm:$0xff]
                  %929 = vst [vmem:[%s705 + $0x378] sm:$0xff] %v928
                  %v930 = vld [vmem:[%s704 + $0x700] sm:$0xff]
                  %931 = vst [vmem:[%s705 + $0x380] sm:$0xff] %v930
                  %v932 = vld [vmem:[%s704 + $0x710] sm:$0xff]
                  %933 = vst [vmem:[%s705 + $0x388] sm:$0xff] %v932
                  %v934 = vld [vmem:[%s704 + $0x720] sm:$0xff]
                  %935 = vst [vmem:[%s705 + $0x390] sm:$0xff] %v934
                  %v936 = vld [vmem:[%s704 + $0x730] sm:$0xff]
                  %937 = vst [vmem:[%s705 + $0x398] sm:$0xff] %v936
                  %v938 = vld [vmem:[%s704 + $0x740] sm:$0xff]
                  %939 = vst [vmem:[%s705 + $0x3a0] sm:$0xff] %v938
                  %v940 = vld [vmem:[%s704 + $0x750] sm:$0xff]
                  %941 = vst [vmem:[%s705 + $0x3a8] sm:$0xff] %v940
                  %v942 = vld [vmem:[%s704 + $0x760] sm:$0xff]
                  %943 = vst [vmem:[%s705 + $0x3b0] sm:$0xff] %v942
                  %v944 = vld [vmem:[%s704 + $0x770] sm:$0xff]
                  %945 = vst [vmem:[%s705 + $0x3b8] sm:$0xff] %v944
                  %v946 = vld [vmem:[%s704 + $0x780] sm:$0xff]
                  %947 = vst [vmem:[%s705 + $0x3c0] sm:$0xff] %v946
                  %v948 = vld [vmem:[%s704 + $0x790] sm:$0xff]
                  %949 = vst [vmem:[%s705 + $0x3c8] sm:$0xff] %v948
                  %v950 = vld [vmem:[%s704 + $0x7a0] sm:$0xff]
                  %951 = vst [vmem:[%s705 + $0x3d0] sm:$0xff] %v950
                  %v952 = vld [vmem:[%s704 + $0x7b0] sm:$0xff]
                  %953 = vst [vmem:[%s705 + $0x3d8] sm:$0xff] %v952
                  %v954 = vld [vmem:[%s704 + $0x7c0] sm:$0xff]
                  %955 = vst [vmem:[%s705 + $0x3e0] sm:$0xff] %v954
                  %v956 = vld [vmem:[%s704 + $0x7d0] sm:$0xff]
                  %957 = vst [vmem:[%s705 + $0x3e8] sm:$0xff] %v956
                  %v958 = vld [vmem:[%s704 + $0x7e0] sm:$0xff]
                  %959 = vst [vmem:[%s705 + $0x3f0] sm:$0xff] %v958
                  %v960 = vld [vmem:[%s704 + $0x7f0] sm:$0xff]
                  %961 = vst [vmem:[%s705 + $0x3f8] sm:$0xff] %v960
                  %v962 = vld [vmem:[%s704 + $0x800] sm:$0xff]
                  %963 = vst [vmem:[%s705 + $0x400] sm:$0xff] %v962
                  %v964 = vld [vmem:[%s704 + $0x810] sm:$0xff]
                  %965 = vst [vmem:[%s705 + $0x408] sm:$0xff] %v964
                  %v966 = vld [vmem:[%s704 + $0x820] sm:$0xff]
                  %967 = vst [vmem:[%s705 + $0x410] sm:$0xff] %v966
                  %v968 = vld [vmem:[%s704 + $0x830] sm:$0xff]
                  %969 = vst [vmem:[%s705 + $0x418] sm:$0xff] %v968
                  %v970 = vld [vmem:[%s704 + $0x840] sm:$0xff]
                  %971 = vst [vmem:[%s705 + $0x420] sm:$0xff] %v970
                  %v972 = vld [vmem:[%s704 + $0x850] sm:$0xff]
                  %973 = vst [vmem:[%s705 + $0x428] sm:$0xff] %v972
                  %v974 = vld [vmem:[%s704 + $0x860] sm:$0xff]
                  %975 = vst [vmem:[%s705 + $0x430] sm:$0xff] %v974
                  %v976 = vld [vmem:[%s704 + $0x870] sm:$0xff]
                  %977 = vst [vmem:[%s705 + $0x438] sm:$0xff] %v976
                  %v978 = vld [vmem:[%s704 + $0x880] sm:$0xff]
                  %979 = vst [vmem:[%s705 + $0x440] sm:$0xff] %v978
                  %v980 = vld [vmem:[%s704 + $0x890] sm:$0xff]
                  %981 = vst [vmem:[%s705 + $0x448] sm:$0xff] %v980
                  %v982 = vld [vmem:[%s704 + $0x8a0] sm:$0xff]
                  %983 = vst [vmem:[%s705 + $0x450] sm:$0xff] %v982
                  %v984 = vld [vmem:[%s704 + $0x8b0] sm:$0xff]
                  %985 = vst [vmem:[%s705 + $0x458] sm:$0xff] %v984
                  %v986 = vld [vmem:[%s704 + $0x8c0] sm:$0xff]
                  %987 = vst [vmem:[%s705 + $0x460] sm:$0xff] %v986
                  %v988 = vld [vmem:[%s704 + $0x8d0] sm:$0xff]
                  %989 = vst [vmem:[%s705 + $0x468] sm:$0xff] %v988
                  %v990 = vld [vmem:[%s704 + $0x8e0] sm:$0xff]
                  %991 = vst [vmem:[%s705 + $0x470] sm:$0xff] %v990
                  %v992 = vld [vmem:[%s704 + $0x8f0] sm:$0xff]
                  %993 = vst [vmem:[%s705 + $0x478] sm:$0xff] %v992
                  %v994 = vld [vmem:[%s704 + $0x900] sm:$0xff]
                  %995 = vst [vmem:[%s705 + $0x480] sm:$0xff] %v994
                  %v996 = vld [vmem:[%s704 + $0x910] sm:$0xff]
                  %997 = vst [vmem:[%s705 + $0x488] sm:$0xff] %v996
                  %v998 = vld [vmem:[%s704 + $0x920] sm:$0xff]
                  %999 = vst [vmem:[%s705 + $0x490] sm:$0xff] %v998
                  %v1000 = vld [vmem:[%s704 + $0x930] sm:$0xff]
                  %1001 = vst [vmem:[%s705 + $0x498] sm:$0xff] %v1000
                  %v1002 = vld [vmem:[%s704 + $0x940] sm:$0xff]
                  %1003 = vst [vmem:[%s705 + $0x4a0] sm:$0xff] %v1002
                  %v1004 = vld [vmem:[%s704 + $0x950] sm:$0xff]
                  %1005 = vst [vmem:[%s705 + $0x4a8] sm:$0xff] %v1004
                  %v1006 = vld [vmem:[%s704 + $0x960] sm:$0xff]
                  %1007 = vst [vmem:[%s705 + $0x4b0] sm:$0xff] %v1006
                  %v1008 = vld [vmem:[%s704 + $0x970] sm:$0xff]
                  %1009 = vst [vmem:[%s705 + $0x4b8] sm:$0xff] %v1008
                  %v1010 = vld [vmem:[%s704 + $0x980] sm:$0xff]
                  %1011 = vst [vmem:[%s705 + $0x4c0] sm:$0xff] %v1010
                  %v1012 = vld [vmem:[%s704 + $0x990] sm:$0xff]
                  %1013 = vst [vmem:[%s705 + $0x4c8] sm:$0xff] %v1012
                  %v1014 = vld [vmem:[%s704 + $0x9a0] sm:$0xff]
                  %1015 = vst [vmem:[%s705 + $0x4d0] sm:$0xff] %v1014
                  %v1016 = vld [vmem:[%s704 + $0x9b0] sm:$0xff]
                  %1017 = vst [vmem:[%s705 + $0x4d8] sm:$0xff] %v1016
                  %v1018 = vld [vmem:[%s704 + $0x9c0] sm:$0xff]
                  %1019 = vst [vmem:[%s705 + $0x4e0] sm:$0xff] %v1018
                  %v1020 = vld [vmem:[%s704 + $0x9d0] sm:$0xff]
                  %1021 = vst [vmem:[%s705 + $0x4e8] sm:$0xff] %v1020
                  %v1022 = vld [vmem:[%s704 + $0x9e0] sm:$0xff]
                  %1023 = vst [vmem:[%s705 + $0x4f0] sm:$0xff] %v1022
                  %v1024 = vld [vmem:[%s704 + $0x9f0] sm:$0xff]
                  %1025 = vst [vmem:[%s705 + $0x4f8] sm:$0xff] %v1024
                  %v1026 = vld [vmem:[%s704 + $0xa00] sm:$0xff]
                  %1027 = vst [vmem:[%s705 + $0x500] sm:$0xff] %v1026
                  %v1028 = vld [vmem:[%s704 + $0xa10] sm:$0xff]
                  %1029 = vst [vmem:[%s705 + $0x508] sm:$0xff] %v1028
                  %v1030 = vld [vmem:[%s704 + $0xa20] sm:$0xff]
                  %1031 = vst [vmem:[%s705 + $0x510] sm:$0xff] %v1030
                  %v1032 = vld [vmem:[%s704 + $0xa30] sm:$0xff]
                  %1033 = vst [vmem:[%s705 + $0x518] sm:$0xff] %v1032
                  %v1034 = vld [vmem:[%s704 + $0xa40] sm:$0xff]
                  %1035 = vst [vmem:[%s705 + $0x520] sm:$0xff] %v1034
                  %v1036 = vld [vmem:[%s704 + $0xa50] sm:$0xff]
                  %1037 = vst [vmem:[%s705 + $0x528] sm:$0xff] %v1036
                  %v1038 = vld [vmem:[%s704 + $0xa60] sm:$0xff]
                  %1039 = vst [vmem:[%s705 + $0x530] sm:$0xff] %v1038
                  %v1040 = vld [vmem:[%s704 + $0xa70] sm:$0xff]
                  %1041 = vst [vmem:[%s705 + $0x538] sm:$0xff] %v1040
                  %v1042 = vld [vmem:[%s704 + $0xa80] sm:$0xff]
                  %1043 = vst [vmem:[%s705 + $0x540] sm:$0xff] %v1042
                  %v1044 = vld [vmem:[%s704 + $0xa90] sm:$0xff]
                  %1045 = vst [vmem:[%s705 + $0x548] sm:$0xff] %v1044
                  %v1046 = vld [vmem:[%s704 + $0xaa0] sm:$0xff]
                  %1047 = vst [vmem:[%s705 + $0x550] sm:$0xff] %v1046
                  %v1048 = vld [vmem:[%s704 + $0xab0] sm:$0xff]
                  %1049 = vst [vmem:[%s705 + $0x558] sm:$0xff] %v1048
                  %v1050 = vld [vmem:[%s704 + $0xac0] sm:$0xff]
                  %1051 = vst [vmem:[%s705 + $0x560] sm:$0xff] %v1050
                  %v1052 = vld [vmem:[%s704 + $0xad0] sm:$0xff]
                  %1053 = vst [vmem:[%s705 + $0x568] sm:$0xff] %v1052
                  %v1054 = vld [vmem:[%s704 + $0xae0] sm:$0xff]
                  %1055 = vst [vmem:[%s705 + $0x570] sm:$0xff] %v1054
                  %v1056 = vld [vmem:[%s704 + $0xaf0] sm:$0xff]
                  %1057 = vst [vmem:[%s705 + $0x578] sm:$0xff] %v1056
                  %v1058 = vld [vmem:[%s704 + $0xb00] sm:$0xff]
                  %1059 = vst [vmem:[%s705 + $0x580] sm:$0xff] %v1058
                  %v1060 = vld [vmem:[%s704 + $0xb10] sm:$0xff]
                  %1061 = vst [vmem:[%s705 + $0x588] sm:$0xff] %v1060
                  %v1062 = vld [vmem:[%s704 + $0xb20] sm:$0xff]
                  %1063 = vst [vmem:[%s705 + $0x590] sm:$0xff] %v1062
                  %v1064 = vld [vmem:[%s704 + $0xb30] sm:$0xff]
                  %1065 = vst [vmem:[%s705 + $0x598] sm:$0xff] %v1064
                  %v1066 = vld [vmem:[%s704 + $0xb40] sm:$0xff]
                  %1067 = vst [vmem:[%s705 + $0x5a0] sm:$0xff] %v1066
                  %v1068 = vld [vmem:[%s704 + $0xb50] sm:$0xff]
                  %1069 = vst [vmem:[%s705 + $0x5a8] sm:$0xff] %v1068
                  %v1070 = vld [vmem:[%s704 + $0xb60] sm:$0xff]
                  %1071 = vst [vmem:[%s705 + $0x5b0] sm:$0xff] %v1070
                  %v1072 = vld [vmem:[%s704 + $0xb70] sm:$0xff]
                  %1073 = vst [vmem:[%s705 + $0x5b8] sm:$0xff] %v1072
                  %v1074 = vld [vmem:[%s704 + $0xb80] sm:$0xff]
                  %1075 = vst [vmem:[%s705 + $0x5c0] sm:$0xff] %v1074
                  %v1076 = vld [vmem:[%s704 + $0xb90] sm:$0xff]
                  %1077 = vst [vmem:[%s705 + $0x5c8] sm:$0xff] %v1076
                  %v1078 = vld [vmem:[%s704 + $0xba0] sm:$0xff]
                  %1079 = vst [vmem:[%s705 + $0x5d0] sm:$0xff] %v1078
                  %v1080 = vld [vmem:[%s704 + $0xbb0] sm:$0xff]
                  %1081 = vst [vmem:[%s705 + $0x5d8] sm:$0xff] %v1080
                  %v1082 = vld [vmem:[%s704 + $0xbc0] sm:$0xff]
                  %1083 = vst [vmem:[%s705 + $0x5e0] sm:$0xff] %v1082
                  %v1084 = vld [vmem:[%s704 + $0xbd0] sm:$0xff]
                  %1085 = vst [vmem:[%s705 + $0x5e8] sm:$0xff] %v1084
                  %v1086 = vld [vmem:[%s704 + $0xbe0] sm:$0xff]
                  %1087 = vst [vmem:[%s705 + $0x5f0] sm:$0xff] %v1086
                  %v1088 = vld [vmem:[%s704 + $0xbf0] sm:$0xff]
                  %1089 = vst [vmem:[%s705 + $0x5f8] sm:$0xff] %v1088
                  %v1090 = vld [vmem:[%s704 + $0xc00] sm:$0xff]
                  %1091 = vst [vmem:[%s705 + $0x600] sm:$0xff] %v1090
                  %v1092 = vld [vmem:[%s704 + $0xc10] sm:$0xff]
                  %1093 = vst [vmem:[%s705 + $0x608] sm:$0xff] %v1092
                  %v1094 = vld [vmem:[%s704 + $0xc20] sm:$0xff]
                  %1095 = vst [vmem:[%s705 + $0x610] sm:$0xff] %v1094
                  %v1096 = vld [vmem:[%s704 + $0xc30] sm:$0xff]
                  %1097 = vst [vmem:[%s705 + $0x618] sm:$0xff] %v1096
                  %v1098 = vld [vmem:[%s704 + $0xc40] sm:$0xff]
                  %1099 = vst [vmem:[%s705 + $0x620] sm:$0xff] %v1098
                  %v1100 = vld [vmem:[%s704 + $0xc50] sm:$0xff]
                  %1101 = vst [vmem:[%s705 + $0x628] sm:$0xff] %v1100
                  %v1102 = vld [vmem:[%s704 + $0xc60] sm:$0xff]
                  %1103 = vst [vmem:[%s705 + $0x630] sm:$0xff] %v1102
                  %v1104 = vld [vmem:[%s704 + $0xc70] sm:$0xff]
                  %1105 = vst [vmem:[%s705 + $0x638] sm:$0xff] %v1104
                  %v1106 = vld [vmem:[%s704 + $0xc80] sm:$0xff]
                  %1107 = vst [vmem:[%s705 + $0x640] sm:$0xff] %v1106
                  %v1108 = vld [vmem:[%s704 + $0xc90] sm:$0xff]
                  %1109 = vst [vmem:[%s705 + $0x648] sm:$0xff] %v1108
                  %v1110 = vld [vmem:[%s704 + $0xca0] sm:$0xff]
                  %1111 = vst [vmem:[%s705 + $0x650] sm:$0xff] %v1110
                  %v1112 = vld [vmem:[%s704 + $0xcb0] sm:$0xff]
                  %1113 = vst [vmem:[%s705 + $0x658] sm:$0xff] %v1112
                  %v1114 = vld [vmem:[%s704 + $0xcc0] sm:$0xff]
                  %1115 = vst [vmem:[%s705 + $0x660] sm:$0xff] %v1114
                  %v1116 = vld [vmem:[%s704 + $0xcd0] sm:$0xff]
                  %1117 = vst [vmem:[%s705 + $0x668] sm:$0xff] %v1116
                  %v1118 = vld [vmem:[%s704 + $0xce0] sm:$0xff]
                  %1119 = vst [vmem:[%s705 + $0x670] sm:$0xff] %v1118
                  %v1120 = vld [vmem:[%s704 + $0xcf0] sm:$0xff]
                  %1121 = vst [vmem:[%s705 + $0x678] sm:$0xff] %v1120
                  %v1122 = vld [vmem:[%s704 + $0xd00] sm:$0xff]
                  %1123 = vst [vmem:[%s705 + $0x680] sm:$0xff] %v1122
                  %v1124 = vld [vmem:[%s704 + $0xd10] sm:$0xff]
                  %1125 = vst [vmem:[%s705 + $0x688] sm:$0xff] %v1124
                  %v1126 = vld [vmem:[%s704 + $0xd20] sm:$0xff]
                  %1127 = vst [vmem:[%s705 + $0x690] sm:$0xff] %v1126
                  %v1128 = vld [vmem:[%s704 + $0xd30] sm:$0xff]
                  %1129 = vst [vmem:[%s705 + $0x698] sm:$0xff] %v1128
                  %v1130 = vld [vmem:[%s704 + $0xd40] sm:$0xff]
                  %1131 = vst [vmem:[%s705 + $0x6a0] sm:$0xff] %v1130
                  %v1132 = vld [vmem:[%s704 + $0xd50] sm:$0xff]
                  %1133 = vst [vmem:[%s705 + $0x6a8] sm:$0xff] %v1132
                  %v1134 = vld [vmem:[%s704 + $0xd60] sm:$0xff]
                  %1135 = vst [vmem:[%s705 + $0x6b0] sm:$0xff] %v1134
                  %v1136 = vld [vmem:[%s704 + $0xd70] sm:$0xff]
                  %1137 = vst [vmem:[%s705 + $0x6b8] sm:$0xff] %v1136
                  %v1138 = vld [vmem:[%s704 + $0xd80] sm:$0xff]
                  %1139 = vst [vmem:[%s705 + $0x6c0] sm:$0xff] %v1138
                  %v1140 = vld [vmem:[%s704 + $0xd90] sm:$0xff]
                  %1141 = vst [vmem:[%s705 + $0x6c8] sm:$0xff] %v1140
                  %v1142 = vld [vmem:[%s704 + $0xda0] sm:$0xff]
                  %1143 = vst [vmem:[%s705 + $0x6d0] sm:$0xff] %v1142
                  %v1144 = vld [vmem:[%s704 + $0xdb0] sm:$0xff]
                  %1145 = vst [vmem:[%s705 + $0x6d8] sm:$0xff] %v1144
                  %v1146 = vld [vmem:[%s704 + $0xdc0] sm:$0xff]
                  %1147 = vst [vmem:[%s705 + $0x6e0] sm:$0xff] %v1146
                  %v1148 = vld [vmem:[%s704 + $0xdd0] sm:$0xff]
                  %1149 = vst [vmem:[%s705 + $0x6e8] sm:$0xff] %v1148
                  %v1150 = vld [vmem:[%s704 + $0xde0] sm:$0xff]
                  %1151 = vst [vmem:[%s705 + $0x6f0] sm:$0xff] %v1150
                  %v1152 = vld [vmem:[%s704 + $0xdf0] sm:$0xff]
                  %1153 = vst [vmem:[%s705 + $0x6f8] sm:$0xff] %v1152
                  %v1154 = vld [vmem:[%s704 + $0xe00] sm:$0xff]
                  %1155 = vst [vmem:[%s705 + $0x700] sm:$0xff] %v1154
                  %v1156 = vld [vmem:[%s704 + $0xe10] sm:$0xff]
                  %1157 = vst [vmem:[%s705 + $0x708] sm:$0xff] %v1156
                  %v1158 = vld [vmem:[%s704 + $0xe20] sm:$0xff]
                  %1159 = vst [vmem:[%s705 + $0x710] sm:$0xff] %v1158
                  %v1160 = vld [vmem:[%s704 + $0xe30] sm:$0xff]
                  %1161 = vst [vmem:[%s705 + $0x718] sm:$0xff] %v1160
                  %v1162 = vld [vmem:[%s704 + $0xe40] sm:$0xff]
                  %1163 = vst [vmem:[%s705 + $0x720] sm:$0xff] %v1162
                  %v1164 = vld [vmem:[%s704 + $0xe50] sm:$0xff]
                  %1165 = vst [vmem:[%s705 + $0x728] sm:$0xff] %v1164
                  %v1166 = vld [vmem:[%s704 + $0xe60] sm:$0xff]
                  %1167 = vst [vmem:[%s705 + $0x730] sm:$0xff] %v1166
                  %v1168 = vld [vmem:[%s704 + $0xe70] sm:$0xff]
                  %1169 = vst [vmem:[%s705 + $0x738] sm:$0xff] %v1168
                  %v1170 = vld [vmem:[%s704 + $0xe80] sm:$0xff]
                  %1171 = vst [vmem:[%s705 + $0x740] sm:$0xff] %v1170
                  %v1172 = vld [vmem:[%s704 + $0xe90] sm:$0xff]
                  %1173 = vst [vmem:[%s705 + $0x748] sm:$0xff] %v1172
                  %v1174 = vld [vmem:[%s704 + $0xea0] sm:$0xff]
                  %1175 = vst [vmem:[%s705 + $0x750] sm:$0xff] %v1174
                  %v1176 = vld [vmem:[%s704 + $0xeb0] sm:$0xff]
                  %1177 = vst [vmem:[%s705 + $0x758] sm:$0xff] %v1176
                  %v1178 = vld [vmem:[%s704 + $0xec0] sm:$0xff]
                  %1179 = vst [vmem:[%s705 + $0x760] sm:$0xff] %v1178
                  %v1180 = vld [vmem:[%s704 + $0xed0] sm:$0xff]
                  %1181 = vst [vmem:[%s705 + $0x768] sm:$0xff] %v1180
                  %v1182 = vld [vmem:[%s704 + $0xee0] sm:$0xff]
                  %1183 = vst [vmem:[%s705 + $0x770] sm:$0xff] %v1182
                  %v1184 = vld [vmem:[%s704 + $0xef0] sm:$0xff]
                  %1185 = vst [vmem:[%s705 + $0x778] sm:$0xff] %v1184
                  %v1186 = vld [vmem:[%s704 + $0xf00] sm:$0xff]
                  %1187 = vst [vmem:[%s705 + $0x780] sm:$0xff] %v1186
                  %v1188 = vld [vmem:[%s704 + $0xf10] sm:$0xff]
                  %1189 = vst [vmem:[%s705 + $0x788] sm:$0xff] %v1188
                  %v1190 = vld [vmem:[%s704 + $0xf20] sm:$0xff]
                  %1191 = vst [vmem:[%s705 + $0x790] sm:$0xff] %v1190
                  %v1192 = vld [vmem:[%s704 + $0xf30] sm:$0xff]
                  %1193 = vst [vmem:[%s705 + $0x798] sm:$0xff] %v1192
                  %v1194 = vld [vmem:[%s704 + $0xf40] sm:$0xff]
                  %1195 = vst [vmem:[%s705 + $0x7a0] sm:$0xff] %v1194
                  %v1196 = vld [vmem:[%s704 + $0xf50] sm:$0xff]
                  %1197 = vst [vmem:[%s705 + $0x7a8] sm:$0xff] %v1196
                  %v1198 = vld [vmem:[%s704 + $0xf60] sm:$0xff]
                  %1199 = vst [vmem:[%s705 + $0x7b0] sm:$0xff] %v1198
                  %v1200 = vld [vmem:[%s704 + $0xf70] sm:$0xff]
                  %1201 = vst [vmem:[%s705 + $0x7b8] sm:$0xff] %v1200
                  %v1202 = vld [vmem:[%s704 + $0xf80] sm:$0xff]
                  %1203 = vst [vmem:[%s705 + $0x7c0] sm:$0xff] %v1202
                  %v1204 = vld [vmem:[%s704 + $0xf90] sm:$0xff]
                  %1205 = vst [vmem:[%s705 + $0x7c8] sm:$0xff] %v1204
                  %v1206 = vld [vmem:[%s704 + $0xfa0] sm:$0xff]
                  %1207 = vst [vmem:[%s705 + $0x7d0] sm:$0xff] %v1206
                  %v1208 = vld [vmem:[%s704 + $0xfb0] sm:$0xff]
                  %1209 = vst [vmem:[%s705 + $0x7d8] sm:$0xff] %v1208
                  %v1210 = vld [vmem:[%s704 + $0xfc0] sm:$0xff]
                  %1211 = vst [vmem:[%s705 + $0x7e0] sm:$0xff] %v1210
                  %v1212 = vld [vmem:[%s704 + $0xfd0] sm:$0xff]
                  %1213 = vst [vmem:[%s705 + $0x7e8] sm:$0xff] %v1212
                  %v1214 = vld [vmem:[%s704 + $0xfe0] sm:$0xff]
                  %1215 = vst [vmem:[%s705 + $0x7f0] sm:$0xff] %v1214
                  %v1216 = vld [vmem:[%s704 + $0xff0] sm:$0xff]
                  %1217 = vst [vmem:[%s705 + $0x7f8] sm:$0xff] %v1216
                $region52: #{siamese_forward.11} parent=46 // loop_footer
                  %s703 = sadd.s32 1, %s699
                $region53: #{siamese_forward.11} parent=46 // loop_footer_branch
                  %698 = sbr.rel target = $region49
                $region54: #{siamese_forward.11} parent=46 // loop_exit
                  _
              $region47: #{siamese_forward.11} parent=31 // pred_fallthru
                _
              // Predicated region
              $region55: #{siamese_forward.11} parent=31 // pred_check
                _
              $region56: #{siamese_forward.11} parent=31 // pred_check_branch
                %1219 = sbr.rel target = $region58
              $region57: #{siamese_forward.11} parent=31 // pred_region
                _
              $region58: #{siamese_forward.11} parent=31 // pred_fallthru
                _
            $region32: #{siamese_forward.11} parent=27 // pred_fallthru
              _
            // Predicated region
            $region33: #{siamese_forward.11} parent=27 // pred_check
              _
            $region34: #{siamese_forward.11} parent=27 // pred_check_branch
              %173 = sbr.rel target = $region36
            $region35: #{siamese_forward.11} parent=27 // pred_region
              %s175 = ssub.s32 256, 1
              loop: start=0, step=1, limit=1
              $region37: #{siamese_forward.11} parent=35 // loop_pre_header
                _
              $region38: #{siamese_forward.11} parent=35 // loop_header
                %s177 = sphi 0, %s181
                %p178 = scmp.ge.s32.totalorder %s177, 1
                %s182 = sphi %s167, %s167
                %s183 = sphi %s161, %s161
              $region39: #{siamese_forward.11} parent=35 // loop_header_branch
                %180 = sbr.rel (%p178) target = $region43
              $region40: #{siamese_forward.11} parent=35 // loop_body
                %v184 = vld [vmem:[%s182] sm:%s175]
                %185 = vst [vmem:[%s183] sm:%s175] %v184
                %v186 = vld [vmem:[%s182 + $0x10] sm:%s175]
                %187 = vst [vmem:[%s183 + $0x8] sm:%s175] %v186
                %v188 = vld [vmem:[%s182 + $0x20] sm:%s175]
                %189 = vst [vmem:[%s183 + $0x10] sm:%s175] %v188
                %v190 = vld [vmem:[%s182 + $0x30] sm:%s175]
                %191 = vst [vmem:[%s183 + $0x18] sm:%s175] %v190
                %v192 = vld [vmem:[%s182 + $0x40] sm:%s175]
                %193 = vst [vmem:[%s183 + $0x20] sm:%s175] %v192
                %v194 = vld [vmem:[%s182 + $0x50] sm:%s175]
                %195 = vst [vmem:[%s183 + $0x28] sm:%s175] %v194
                %v196 = vld [vmem:[%s182 + $0x60] sm:%s175]
                %197 = vst [vmem:[%s183 + $0x30] sm:%s175] %v196
                %v198 = vld [vmem:[%s182 + $0x70] sm:%s175]
                %199 = vst [vmem:[%s183 + $0x38] sm:%s175] %v198
                %v200 = vld [vmem:[%s182 + $0x80] sm:%s175]
                %201 = vst [vmem:[%s183 + $0x40] sm:%s175] %v200
                %v202 = vld [vmem:[%s182 + $0x90] sm:%s175]
                %203 = vst [vmem:[%s183 + $0x48] sm:%s175] %v202
                %v204 = vld [vmem:[%s182 + $0xa0] sm:%s175]
                %205 = vst [vmem:[%s183 + $0x50] sm:%s175] %v204
                %v206 = vld [vmem:[%s182 + $0xb0] sm:%s175]
                %207 = vst [vmem:[%s183 + $0x58] sm:%s175] %v206
                %v208 = vld [vmem:[%s182 + $0xc0] sm:%s175]
                %209 = vst [vmem:[%s183 + $0x60] sm:%s175] %v208
                %v210 = vld [vmem:[%s182 + $0xd0] sm:%s175]
                %211 = vst [vmem:[%s183 + $0x68] sm:%s175] %v210
                %v212 = vld [vmem:[%s182 + $0xe0] sm:%s175]
                %213 = vst [vmem:[%s183 + $0x70] sm:%s175] %v212
                %v214 = vld [vmem:[%s182 + $0xf0] sm:%s175]
                %215 = vst [vmem:[%s183 + $0x78] sm:%s175] %v214
                %v216 = vld [vmem:[%s182 + $0x100] sm:%s175]
                %217 = vst [vmem:[%s183 + $0x80] sm:%s175] %v216
                %v218 = vld [vmem:[%s182 + $0x110] sm:%s175]
                %219 = vst [vmem:[%s183 + $0x88] sm:%s175] %v218
                %v220 = vld [vmem:[%s182 + $0x120] sm:%s175]
                %221 = vst [vmem:[%s183 + $0x90] sm:%s175] %v220
                %v222 = vld [vmem:[%s182 + $0x130] sm:%s175]
                %223 = vst [vmem:[%s183 + $0x98] sm:%s175] %v222
                %v224 = vld [vmem:[%s182 + $0x140] sm:%s175]
                %225 = vst [vmem:[%s183 + $0xa0] sm:%s175] %v224
                %v226 = vld [vmem:[%s182 + $0x150] sm:%s175]
                %227 = vst [vmem:[%s183 + $0xa8] sm:%s175] %v226
                %v228 = vld [vmem:[%s182 + $0x160] sm:%s175]
                %229 = vst [vmem:[%s183 + $0xb0] sm:%s175] %v228
                %v230 = vld [vmem:[%s182 + $0x170] sm:%s175]
                %231 = vst [vmem:[%s183 + $0xb8] sm:%s175] %v230
                %v232 = vld [vmem:[%s182 + $0x180] sm:%s175]
                %233 = vst [vmem:[%s183 + $0xc0] sm:%s175] %v232
                %v234 = vld [vmem:[%s182 + $0x190] sm:%s175]
                %235 = vst [vmem:[%s183 + $0xc8] sm:%s175] %v234
                %v236 = vld [vmem:[%s182 + $0x1a0] sm:%s175]
                %237 = vst [vmem:[%s183 + $0xd0] sm:%s175] %v236
                %v238 = vld [vmem:[%s182 + $0x1b0] sm:%s175]
                %239 = vst [vmem:[%s183 + $0xd8] sm:%s175] %v238
                %v240 = vld [vmem:[%s182 + $0x1c0] sm:%s175]
                %241 = vst [vmem:[%s183 + $0xe0] sm:%s175] %v240
                %v242 = vld [vmem:[%s182 + $0x1d0] sm:%s175]
                %243 = vst [vmem:[%s183 + $0xe8] sm:%s175] %v242
                %v244 = vld [vmem:[%s182 + $0x1e0] sm:%s175]
                %245 = vst [vmem:[%s183 + $0xf0] sm:%s175] %v244
                %v246 = vld [vmem:[%s182 + $0x1f0] sm:%s175]
                %247 = vst [vmem:[%s183 + $0xf8] sm:%s175] %v246
                %v248 = vld [vmem:[%s182 + $0x200] sm:%s175]
                %249 = vst [vmem:[%s183 + $0x100] sm:%s175] %v248
                %v250 = vld [vmem:[%s182 + $0x210] sm:%s175]
                %251 = vst [vmem:[%s183 + $0x108] sm:%s175] %v250
                %v252 = vld [vmem:[%s182 + $0x220] sm:%s175]
                %253 = vst [vmem:[%s183 + $0x110] sm:%s175] %v252
                %v254 = vld [vmem:[%s182 + $0x230] sm:%s175]
                %255 = vst [vmem:[%s183 + $0x118] sm:%s175] %v254
                %v256 = vld [vmem:[%s182 + $0x240] sm:%s175]
                %257 = vst [vmem:[%s183 + $0x120] sm:%s175] %v256
                %v258 = vld [vmem:[%s182 + $0x250] sm:%s175]
                %259 = vst [vmem:[%s183 + $0x128] sm:%s175] %v258
                %v260 = vld [vmem:[%s182 + $0x260] sm:%s175]
                %261 = vst [vmem:[%s183 + $0x130] sm:%s175] %v260
                %v262 = vld [vmem:[%s182 + $0x270] sm:%s175]
                %263 = vst [vmem:[%s183 + $0x138] sm:%s175] %v262
                %v264 = vld [vmem:[%s182 + $0x280] sm:%s175]
                %265 = vst [vmem:[%s183 + $0x140] sm:%s175] %v264
                %v266 = vld [vmem:[%s182 + $0x290] sm:%s175]
                %267 = vst [vmem:[%s183 + $0x148] sm:%s175] %v266
                %v268 = vld [vmem:[%s182 + $0x2a0] sm:%s175]
                %269 = vst [vmem:[%s183 + $0x150] sm:%s175] %v268
                %v270 = vld [vmem:[%s182 + $0x2b0] sm:%s175]
                %271 = vst [vmem:[%s183 + $0x158] sm:%s175] %v270
                %v272 = vld [vmem:[%s182 + $0x2c0] sm:%s175]
                %273 = vst [vmem:[%s183 + $0x160] sm:%s175] %v272
                %v274 = vld [vmem:[%s182 + $0x2d0] sm:%s175]
                %275 = vst [vmem:[%s183 + $0x168] sm:%s175] %v274
                %v276 = vld [vmem:[%s182 + $0x2e0] sm:%s175]
                %277 = vst [vmem:[%s183 + $0x170] sm:%s175] %v276
                %v278 = vld [vmem:[%s182 + $0x2f0] sm:%s175]
                %279 = vst [vmem:[%s183 + $0x178] sm:%s175] %v278
                %v280 = vld [vmem:[%s182 + $0x300] sm:%s175]
                %281 = vst [vmem:[%s183 + $0x180] sm:%s175] %v280
                %v282 = vld [vmem:[%s182 + $0x310] sm:%s175]
                %283 = vst [vmem:[%s183 + $0x188] sm:%s175] %v282
                %v284 = vld [vmem:[%s182 + $0x320] sm:%s175]
                %285 = vst [vmem:[%s183 + $0x190] sm:%s175] %v284
                %v286 = vld [vmem:[%s182 + $0x330] sm:%s175]
                %287 = vst [vmem:[%s183 + $0x198] sm:%s175] %v286
                %v288 = vld [vmem:[%s182 + $0x340] sm:%s175]
                %289 = vst [vmem:[%s183 + $0x1a0] sm:%s175] %v288
                %v290 = vld [vmem:[%s182 + $0x350] sm:%s175]
                %291 = vst [vmem:[%s183 + $0x1a8] sm:%s175] %v290
                %v292 = vld [vmem:[%s182 + $0x360] sm:%s175]
                %293 = vst [vmem:[%s183 + $0x1b0] sm:%s175] %v292
                %v294 = vld [vmem:[%s182 + $0x370] sm:%s175]
                %295 = vst [vmem:[%s183 + $0x1b8] sm:%s175] %v294
                %v296 = vld [vmem:[%s182 + $0x380] sm:%s175]
                %297 = vst [vmem:[%s183 + $0x1c0] sm:%s175] %v296
                %v298 = vld [vmem:[%s182 + $0x390] sm:%s175]
                %299 = vst [vmem:[%s183 + $0x1c8] sm:%s175] %v298
                %v300 = vld [vmem:[%s182 + $0x3a0] sm:%s175]
                %301 = vst [vmem:[%s183 + $0x1d0] sm:%s175] %v300
                %v302 = vld [vmem:[%s182 + $0x3b0] sm:%s175]
                %303 = vst [vmem:[%s183 + $0x1d8] sm:%s175] %v302
                %v304 = vld [vmem:[%s182 + $0x3c0] sm:%s175]
                %305 = vst [vmem:[%s183 + $0x1e0] sm:%s175] %v304
                %v306 = vld [vmem:[%s182 + $0x3d0] sm:%s175]
                %307 = vst [vmem:[%s183 + $0x1e8] sm:%s175] %v306
                %v308 = vld [vmem:[%s182 + $0x3e0] sm:%s175]
                %309 = vst [vmem:[%s183 + $0x1f0] sm:%s175] %v308
                %v310 = vld [vmem:[%s182 + $0x3f0] sm:%s175]
                %311 = vst [vmem:[%s183 + $0x1f8] sm:%s175] %v310
                %v312 = vld [vmem:[%s182 + $0x400] sm:%s175]
                %313 = vst [vmem:[%s183 + $0x200] sm:%s175] %v312
                %v314 = vld [vmem:[%s182 + $0x410] sm:%s175]
                %315 = vst [vmem:[%s183 + $0x208] sm:%s175] %v314
                %v316 = vld [vmem:[%s182 + $0x420] sm:%s175]
                %317 = vst [vmem:[%s183 + $0x210] sm:%s175] %v316
                %v318 = vld [vmem:[%s182 + $0x430] sm:%s175]
                %319 = vst [vmem:[%s183 + $0x218] sm:%s175] %v318
                %v320 = vld [vmem:[%s182 + $0x440] sm:%s175]
                %321 = vst [vmem:[%s183 + $0x220] sm:%s175] %v320
                %v322 = vld [vmem:[%s182 + $0x450] sm:%s175]
                %323 = vst [vmem:[%s183 + $0x228] sm:%s175] %v322
                %v324 = vld [vmem:[%s182 + $0x460] sm:%s175]
                %325 = vst [vmem:[%s183 + $0x230] sm:%s175] %v324
                %v326 = vld [vmem:[%s182 + $0x470] sm:%s175]
                %327 = vst [vmem:[%s183 + $0x238] sm:%s175] %v326
                %v328 = vld [vmem:[%s182 + $0x480] sm:%s175]
                %329 = vst [vmem:[%s183 + $0x240] sm:%s175] %v328
                %v330 = vld [vmem:[%s182 + $0x490] sm:%s175]
                %331 = vst [vmem:[%s183 + $0x248] sm:%s175] %v330
                %v332 = vld [vmem:[%s182 + $0x4a0] sm:%s175]
                %333 = vst [vmem:[%s183 + $0x250] sm:%s175] %v332
                %v334 = vld [vmem:[%s182 + $0x4b0] sm:%s175]
                %335 = vst [vmem:[%s183 + $0x258] sm:%s175] %v334
                %v336 = vld [vmem:[%s182 + $0x4c0] sm:%s175]
                %337 = vst [vmem:[%s183 + $0x260] sm:%s175] %v336
                %v338 = vld [vmem:[%s182 + $0x4d0] sm:%s175]
                %339 = vst [vmem:[%s183 + $0x268] sm:%s175] %v338
                %v340 = vld [vmem:[%s182 + $0x4e0] sm:%s175]
                %341 = vst [vmem:[%s183 + $0x270] sm:%s175] %v340
                %v342 = vld [vmem:[%s182 + $0x4f0] sm:%s175]
                %343 = vst [vmem:[%s183 + $0x278] sm:%s175] %v342
                %v344 = vld [vmem:[%s182 + $0x500] sm:%s175]
                %345 = vst [vmem:[%s183 + $0x280] sm:%s175] %v344
                %v346 = vld [vmem:[%s182 + $0x510] sm:%s175]
                %347 = vst [vmem:[%s183 + $0x288] sm:%s175] %v346
                %v348 = vld [vmem:[%s182 + $0x520] sm:%s175]
                %349 = vst [vmem:[%s183 + $0x290] sm:%s175] %v348
                %v350 = vld [vmem:[%s182 + $0x530] sm:%s175]
                %351 = vst [vmem:[%s183 + $0x298] sm:%s175] %v350
                %v352 = vld [vmem:[%s182 + $0x540] sm:%s175]
                %353 = vst [vmem:[%s183 + $0x2a0] sm:%s175] %v352
                %v354 = vld [vmem:[%s182 + $0x550] sm:%s175]
                %355 = vst [vmem:[%s183 + $0x2a8] sm:%s175] %v354
                %v356 = vld [vmem:[%s182 + $0x560] sm:%s175]
                %357 = vst [vmem:[%s183 + $0x2b0] sm:%s175] %v356
                %v358 = vld [vmem:[%s182 + $0x570] sm:%s175]
                %359 = vst [vmem:[%s183 + $0x2b8] sm:%s175] %v358
                %v360 = vld [vmem:[%s182 + $0x580] sm:%s175]
                %361 = vst [vmem:[%s183 + $0x2c0] sm:%s175] %v360
                %v362 = vld [vmem:[%s182 + $0x590] sm:%s175]
                %363 = vst [vmem:[%s183 + $0x2c8] sm:%s175] %v362
                %v364 = vld [vmem:[%s182 + $0x5a0] sm:%s175]
                %365 = vst [vmem:[%s183 + $0x2d0] sm:%s175] %v364
                %v366 = vld [vmem:[%s182 + $0x5b0] sm:%s175]
                %367 = vst [vmem:[%s183 + $0x2d8] sm:%s175] %v366
                %v368 = vld [vmem:[%s182 + $0x5c0] sm:%s175]
                %369 = vst [vmem:[%s183 + $0x2e0] sm:%s175] %v368
                %v370 = vld [vmem:[%s182 + $0x5d0] sm:%s175]
                %371 = vst [vmem:[%s183 + $0x2e8] sm:%s175] %v370
                %v372 = vld [vmem:[%s182 + $0x5e0] sm:%s175]
                %373 = vst [vmem:[%s183 + $0x2f0] sm:%s175] %v372
                %v374 = vld [vmem:[%s182 + $0x5f0] sm:%s175]
                %375 = vst [vmem:[%s183 + $0x2f8] sm:%s175] %v374
                %v376 = vld [vmem:[%s182 + $0x600] sm:%s175]
                %377 = vst [vmem:[%s183 + $0x300] sm:%s175] %v376
                %v378 = vld [vmem:[%s182 + $0x610] sm:%s175]
                %379 = vst [vmem:[%s183 + $0x308] sm:%s175] %v378
                %v380 = vld [vmem:[%s182 + $0x620] sm:%s175]
                %381 = vst [vmem:[%s183 + $0x310] sm:%s175] %v380
                %v382 = vld [vmem:[%s182 + $0x630] sm:%s175]
                %383 = vst [vmem:[%s183 + $0x318] sm:%s175] %v382
                %v384 = vld [vmem:[%s182 + $0x640] sm:%s175]
                %385 = vst [vmem:[%s183 + $0x320] sm:%s175] %v384
                %v386 = vld [vmem:[%s182 + $0x650] sm:%s175]
                %387 = vst [vmem:[%s183 + $0x328] sm:%s175] %v386
                %v388 = vld [vmem:[%s182 + $0x660] sm:%s175]
                %389 = vst [vmem:[%s183 + $0x330] sm:%s175] %v388
                %v390 = vld [vmem:[%s182 + $0x670] sm:%s175]
                %391 = vst [vmem:[%s183 + $0x338] sm:%s175] %v390
                %v392 = vld [vmem:[%s182 + $0x680] sm:%s175]
                %393 = vst [vmem:[%s183 + $0x340] sm:%s175] %v392
                %v394 = vld [vmem:[%s182 + $0x690] sm:%s175]
                %395 = vst [vmem:[%s183 + $0x348] sm:%s175] %v394
                %v396 = vld [vmem:[%s182 + $0x6a0] sm:%s175]
                %397 = vst [vmem:[%s183 + $0x350] sm:%s175] %v396
                %v398 = vld [vmem:[%s182 + $0x6b0] sm:%s175]
                %399 = vst [vmem:[%s183 + $0x358] sm:%s175] %v398
                %v400 = vld [vmem:[%s182 + $0x6c0] sm:%s175]
                %401 = vst [vmem:[%s183 + $0x360] sm:%s175] %v400
                %v402 = vld [vmem:[%s182 + $0x6d0] sm:%s175]
                %403 = vst [vmem:[%s183 + $0x368] sm:%s175] %v402
                %v404 = vld [vmem:[%s182 + $0x6e0] sm:%s175]
                %405 = vst [vmem:[%s183 + $0x370] sm:%s175] %v404
                %v406 = vld [vmem:[%s182 + $0x6f0] sm:%s175]
                %407 = vst [vmem:[%s183 + $0x378] sm:%s175] %v406
                %v408 = vld [vmem:[%s182 + $0x700] sm:%s175]
                %409 = vst [vmem:[%s183 + $0x380] sm:%s175] %v408
                %v410 = vld [vmem:[%s182 + $0x710] sm:%s175]
                %411 = vst [vmem:[%s183 + $0x388] sm:%s175] %v410
                %v412 = vld [vmem:[%s182 + $0x720] sm:%s175]
                %413 = vst [vmem:[%s183 + $0x390] sm:%s175] %v412
                %v414 = vld [vmem:[%s182 + $0x730] sm:%s175]
                %415 = vst [vmem:[%s183 + $0x398] sm:%s175] %v414
                %v416 = vld [vmem:[%s182 + $0x740] sm:%s175]
                %417 = vst [vmem:[%s183 + $0x3a0] sm:%s175] %v416
                %v418 = vld [vmem:[%s182 + $0x750] sm:%s175]
                %419 = vst [vmem:[%s183 + $0x3a8] sm:%s175] %v418
                %v420 = vld [vmem:[%s182 + $0x760] sm:%s175]
                %421 = vst [vmem:[%s183 + $0x3b0] sm:%s175] %v420
                %v422 = vld [vmem:[%s182 + $0x770] sm:%s175]
                %423 = vst [vmem:[%s183 + $0x3b8] sm:%s175] %v422
                %v424 = vld [vmem:[%s182 + $0x780] sm:%s175]
                %425 = vst [vmem:[%s183 + $0x3c0] sm:%s175] %v424
                %v426 = vld [vmem:[%s182 + $0x790] sm:%s175]
                %427 = vst [vmem:[%s183 + $0x3c8] sm:%s175] %v426
                %v428 = vld [vmem:[%s182 + $0x7a0] sm:%s175]
                %429 = vst [vmem:[%s183 + $0x3d0] sm:%s175] %v428
                %v430 = vld [vmem:[%s182 + $0x7b0] sm:%s175]
                %431 = vst [vmem:[%s183 + $0x3d8] sm:%s175] %v430
                %v432 = vld [vmem:[%s182 + $0x7c0] sm:%s175]
                %433 = vst [vmem:[%s183 + $0x3e0] sm:%s175] %v432
                %v434 = vld [vmem:[%s182 + $0x7d0] sm:%s175]
                %435 = vst [vmem:[%s183 + $0x3e8] sm:%s175] %v434
                %v436 = vld [vmem:[%s182 + $0x7e0] sm:%s175]
                %437 = vst [vmem:[%s183 + $0x3f0] sm:%s175] %v436
                %v438 = vld [vmem:[%s182 + $0x7f0] sm:%s175]
                %439 = vst [vmem:[%s183 + $0x3f8] sm:%s175] %v438
                %v440 = vld [vmem:[%s182 + $0x800] sm:%s175]
                %441 = vst [vmem:[%s183 + $0x400] sm:%s175] %v440
                %v442 = vld [vmem:[%s182 + $0x810] sm:%s175]
                %443 = vst [vmem:[%s183 + $0x408] sm:%s175] %v442
                %v444 = vld [vmem:[%s182 + $0x820] sm:%s175]
                %445 = vst [vmem:[%s183 + $0x410] sm:%s175] %v444
                %v446 = vld [vmem:[%s182 + $0x830] sm:%s175]
                %447 = vst [vmem:[%s183 + $0x418] sm:%s175] %v446
                %v448 = vld [vmem:[%s182 + $0x840] sm:%s175]
                %449 = vst [vmem:[%s183 + $0x420] sm:%s175] %v448
                %v450 = vld [vmem:[%s182 + $0x850] sm:%s175]
                %451 = vst [vmem:[%s183 + $0x428] sm:%s175] %v450
                %v452 = vld [vmem:[%s182 + $0x860] sm:%s175]
                %453 = vst [vmem:[%s183 + $0x430] sm:%s175] %v452
                %v454 = vld [vmem:[%s182 + $0x870] sm:%s175]
                %455 = vst [vmem:[%s183 + $0x438] sm:%s175] %v454
                %v456 = vld [vmem:[%s182 + $0x880] sm:%s175]
                %457 = vst [vmem:[%s183 + $0x440] sm:%s175] %v456
                %v458 = vld [vmem:[%s182 + $0x890] sm:%s175]
                %459 = vst [vmem:[%s183 + $0x448] sm:%s175] %v458
                %v460 = vld [vmem:[%s182 + $0x8a0] sm:%s175]
                %461 = vst [vmem:[%s183 + $0x450] sm:%s175] %v460
                %v462 = vld [vmem:[%s182 + $0x8b0] sm:%s175]
                %463 = vst [vmem:[%s183 + $0x458] sm:%s175] %v462
                %v464 = vld [vmem:[%s182 + $0x8c0] sm:%s175]
                %465 = vst [vmem:[%s183 + $0x460] sm:%s175] %v464
                %v466 = vld [vmem:[%s182 + $0x8d0] sm:%s175]
                %467 = vst [vmem:[%s183 + $0x468] sm:%s175] %v466
                %v468 = vld [vmem:[%s182 + $0x8e0] sm:%s175]
                %469 = vst [vmem:[%s183 + $0x470] sm:%s175] %v468
                %v470 = vld [vmem:[%s182 + $0x8f0] sm:%s175]
                %471 = vst [vmem:[%s183 + $0x478] sm:%s175] %v470
                %v472 = vld [vmem:[%s182 + $0x900] sm:%s175]
                %473 = vst [vmem:[%s183 + $0x480] sm:%s175] %v472
                %v474 = vld [vmem:[%s182 + $0x910] sm:%s175]
                %475 = vst [vmem:[%s183 + $0x488] sm:%s175] %v474
                %v476 = vld [vmem:[%s182 + $0x920] sm:%s175]
                %477 = vst [vmem:[%s183 + $0x490] sm:%s175] %v476
                %v478 = vld [vmem:[%s182 + $0x930] sm:%s175]
                %479 = vst [vmem:[%s183 + $0x498] sm:%s175] %v478
                %v480 = vld [vmem:[%s182 + $0x940] sm:%s175]
                %481 = vst [vmem:[%s183 + $0x4a0] sm:%s175] %v480
                %v482 = vld [vmem:[%s182 + $0x950] sm:%s175]
                %483 = vst [vmem:[%s183 + $0x4a8] sm:%s175] %v482
                %v484 = vld [vmem:[%s182 + $0x960] sm:%s175]
                %485 = vst [vmem:[%s183 + $0x4b0] sm:%s175] %v484
                %v486 = vld [vmem:[%s182 + $0x970] sm:%s175]
                %487 = vst [vmem:[%s183 + $0x4b8] sm:%s175] %v486
                %v488 = vld [vmem:[%s182 + $0x980] sm:%s175]
                %489 = vst [vmem:[%s183 + $0x4c0] sm:%s175] %v488
                %v490 = vld [vmem:[%s182 + $0x990] sm:%s175]
                %491 = vst [vmem:[%s183 + $0x4c8] sm:%s175] %v490
                %v492 = vld [vmem:[%s182 + $0x9a0] sm:%s175]
                %493 = vst [vmem:[%s183 + $0x4d0] sm:%s175] %v492
                %v494 = vld [vmem:[%s182 + $0x9b0] sm:%s175]
                %495 = vst [vmem:[%s183 + $0x4d8] sm:%s175] %v494
                %v496 = vld [vmem:[%s182 + $0x9c0] sm:%s175]
                %497 = vst [vmem:[%s183 + $0x4e0] sm:%s175] %v496
                %v498 = vld [vmem:[%s182 + $0x9d0] sm:%s175]
                %499 = vst [vmem:[%s183 + $0x4e8] sm:%s175] %v498
                %v500 = vld [vmem:[%s182 + $0x9e0] sm:%s175]
                %501 = vst [vmem:[%s183 + $0x4f0] sm:%s175] %v500
                %v502 = vld [vmem:[%s182 + $0x9f0] sm:%s175]
                %503 = vst [vmem:[%s183 + $0x4f8] sm:%s175] %v502
                %v504 = vld [vmem:[%s182 + $0xa00] sm:%s175]
                %505 = vst [vmem:[%s183 + $0x500] sm:%s175] %v504
                %v506 = vld [vmem:[%s182 + $0xa10] sm:%s175]
                %507 = vst [vmem:[%s183 + $0x508] sm:%s175] %v506
                %v508 = vld [vmem:[%s182 + $0xa20] sm:%s175]
                %509 = vst [vmem:[%s183 + $0x510] sm:%s175] %v508
                %v510 = vld [vmem:[%s182 + $0xa30] sm:%s175]
                %511 = vst [vmem:[%s183 + $0x518] sm:%s175] %v510
                %v512 = vld [vmem:[%s182 + $0xa40] sm:%s175]
                %513 = vst [vmem:[%s183 + $0x520] sm:%s175] %v512
                %v514 = vld [vmem:[%s182 + $0xa50] sm:%s175]
                %515 = vst [vmem:[%s183 + $0x528] sm:%s175] %v514
                %v516 = vld [vmem:[%s182 + $0xa60] sm:%s175]
                %517 = vst [vmem:[%s183 + $0x530] sm:%s175] %v516
                %v518 = vld [vmem:[%s182 + $0xa70] sm:%s175]
                %519 = vst [vmem:[%s183 + $0x538] sm:%s175] %v518
                %v520 = vld [vmem:[%s182 + $0xa80] sm:%s175]
                %521 = vst [vmem:[%s183 + $0x540] sm:%s175] %v520
                %v522 = vld [vmem:[%s182 + $0xa90] sm:%s175]
                %523 = vst [vmem:[%s183 + $0x548] sm:%s175] %v522
                %v524 = vld [vmem:[%s182 + $0xaa0] sm:%s175]
                %525 = vst [vmem:[%s183 + $0x550] sm:%s175] %v524
                %v526 = vld [vmem:[%s182 + $0xab0] sm:%s175]
                %527 = vst [vmem:[%s183 + $0x558] sm:%s175] %v526
                %v528 = vld [vmem:[%s182 + $0xac0] sm:%s175]
                %529 = vst [vmem:[%s183 + $0x560] sm:%s175] %v528
                %v530 = vld [vmem:[%s182 + $0xad0] sm:%s175]
                %531 = vst [vmem:[%s183 + $0x568] sm:%s175] %v530
                %v532 = vld [vmem:[%s182 + $0xae0] sm:%s175]
                %533 = vst [vmem:[%s183 + $0x570] sm:%s175] %v532
                %v534 = vld [vmem:[%s182 + $0xaf0] sm:%s175]
                %535 = vst [vmem:[%s183 + $0x578] sm:%s175] %v534
                %v536 = vld [vmem:[%s182 + $0xb00] sm:%s175]
                %537 = vst [vmem:[%s183 + $0x580] sm:%s175] %v536
                %v538 = vld [vmem:[%s182 + $0xb10] sm:%s175]
                %539 = vst [vmem:[%s183 + $0x588] sm:%s175] %v538
                %v540 = vld [vmem:[%s182 + $0xb20] sm:%s175]
                %541 = vst [vmem:[%s183 + $0x590] sm:%s175] %v540
                %v542 = vld [vmem:[%s182 + $0xb30] sm:%s175]
                %543 = vst [vmem:[%s183 + $0x598] sm:%s175] %v542
                %v544 = vld [vmem:[%s182 + $0xb40] sm:%s175]
                %545 = vst [vmem:[%s183 + $0x5a0] sm:%s175] %v544
                %v546 = vld [vmem:[%s182 + $0xb50] sm:%s175]
                %547 = vst [vmem:[%s183 + $0x5a8] sm:%s175] %v546
                %v548 = vld [vmem:[%s182 + $0xb60] sm:%s175]
                %549 = vst [vmem:[%s183 + $0x5b0] sm:%s175] %v548
                %v550 = vld [vmem:[%s182 + $0xb70] sm:%s175]
                %551 = vst [vmem:[%s183 + $0x5b8] sm:%s175] %v550
                %v552 = vld [vmem:[%s182 + $0xb80] sm:%s175]
                %553 = vst [vmem:[%s183 + $0x5c0] sm:%s175] %v552
                %v554 = vld [vmem:[%s182 + $0xb90] sm:%s175]
                %555 = vst [vmem:[%s183 + $0x5c8] sm:%s175] %v554
                %v556 = vld [vmem:[%s182 + $0xba0] sm:%s175]
                %557 = vst [vmem:[%s183 + $0x5d0] sm:%s175] %v556
                %v558 = vld [vmem:[%s182 + $0xbb0] sm:%s175]
                %559 = vst [vmem:[%s183 + $0x5d8] sm:%s175] %v558
                %v560 = vld [vmem:[%s182 + $0xbc0] sm:%s175]
                %561 = vst [vmem:[%s183 + $0x5e0] sm:%s175] %v560
                %v562 = vld [vmem:[%s182 + $0xbd0] sm:%s175]
                %563 = vst [vmem:[%s183 + $0x5e8] sm:%s175] %v562
                %v564 = vld [vmem:[%s182 + $0xbe0] sm:%s175]
                %565 = vst [vmem:[%s183 + $0x5f0] sm:%s175] %v564
                %v566 = vld [vmem:[%s182 + $0xbf0] sm:%s175]
                %567 = vst [vmem:[%s183 + $0x5f8] sm:%s175] %v566
                %v568 = vld [vmem:[%s182 + $0xc00] sm:%s175]
                %569 = vst [vmem:[%s183 + $0x600] sm:%s175] %v568
                %v570 = vld [vmem:[%s182 + $0xc10] sm:%s175]
                %571 = vst [vmem:[%s183 + $0x608] sm:%s175] %v570
                %v572 = vld [vmem:[%s182 + $0xc20] sm:%s175]
                %573 = vst [vmem:[%s183 + $0x610] sm:%s175] %v572
                %v574 = vld [vmem:[%s182 + $0xc30] sm:%s175]
                %575 = vst [vmem:[%s183 + $0x618] sm:%s175] %v574
                %v576 = vld [vmem:[%s182 + $0xc40] sm:%s175]
                %577 = vst [vmem:[%s183 + $0x620] sm:%s175] %v576
                %v578 = vld [vmem:[%s182 + $0xc50] sm:%s175]
                %579 = vst [vmem:[%s183 + $0x628] sm:%s175] %v578
                %v580 = vld [vmem:[%s182 + $0xc60] sm:%s175]
                %581 = vst [vmem:[%s183 + $0x630] sm:%s175] %v580
                %v582 = vld [vmem:[%s182 + $0xc70] sm:%s175]
                %583 = vst [vmem:[%s183 + $0x638] sm:%s175] %v582
                %v584 = vld [vmem:[%s182 + $0xc80] sm:%s175]
                %585 = vst [vmem:[%s183 + $0x640] sm:%s175] %v584
                %v586 = vld [vmem:[%s182 + $0xc90] sm:%s175]
                %587 = vst [vmem:[%s183 + $0x648] sm:%s175] %v586
                %v588 = vld [vmem:[%s182 + $0xca0] sm:%s175]
                %589 = vst [vmem:[%s183 + $0x650] sm:%s175] %v588
                %v590 = vld [vmem:[%s182 + $0xcb0] sm:%s175]
                %591 = vst [vmem:[%s183 + $0x658] sm:%s175] %v590
                %v592 = vld [vmem:[%s182 + $0xcc0] sm:%s175]
                %593 = vst [vmem:[%s183 + $0x660] sm:%s175] %v592
                %v594 = vld [vmem:[%s182 + $0xcd0] sm:%s175]
                %595 = vst [vmem:[%s183 + $0x668] sm:%s175] %v594
                %v596 = vld [vmem:[%s182 + $0xce0] sm:%s175]
                %597 = vst [vmem:[%s183 + $0x670] sm:%s175] %v596
                %v598 = vld [vmem:[%s182 + $0xcf0] sm:%s175]
                %599 = vst [vmem:[%s183 + $0x678] sm:%s175] %v598
                %v600 = vld [vmem:[%s182 + $0xd00] sm:%s175]
                %601 = vst [vmem:[%s183 + $0x680] sm:%s175] %v600
                %v602 = vld [vmem:[%s182 + $0xd10] sm:%s175]
                %603 = vst [vmem:[%s183 + $0x688] sm:%s175] %v602
                %v604 = vld [vmem:[%s182 + $0xd20] sm:%s175]
                %605 = vst [vmem:[%s183 + $0x690] sm:%s175] %v604
                %v606 = vld [vmem:[%s182 + $0xd30] sm:%s175]
                %607 = vst [vmem:[%s183 + $0x698] sm:%s175] %v606
                %v608 = vld [vmem:[%s182 + $0xd40] sm:%s175]
                %609 = vst [vmem:[%s183 + $0x6a0] sm:%s175] %v608
                %v610 = vld [vmem:[%s182 + $0xd50] sm:%s175]
                %611 = vst [vmem:[%s183 + $0x6a8] sm:%s175] %v610
                %v612 = vld [vmem:[%s182 + $0xd60] sm:%s175]
                %613 = vst [vmem:[%s183 + $0x6b0] sm:%s175] %v612
                %v614 = vld [vmem:[%s182 + $0xd70] sm:%s175]
                %615 = vst [vmem:[%s183 + $0x6b8] sm:%s175] %v614
                %v616 = vld [vmem:[%s182 + $0xd80] sm:%s175]
                %617 = vst [vmem:[%s183 + $0x6c0] sm:%s175] %v616
                %v618 = vld [vmem:[%s182 + $0xd90] sm:%s175]
                %619 = vst [vmem:[%s183 + $0x6c8] sm:%s175] %v618
                %v620 = vld [vmem:[%s182 + $0xda0] sm:%s175]
                %621 = vst [vmem:[%s183 + $0x6d0] sm:%s175] %v620
                %v622 = vld [vmem:[%s182 + $0xdb0] sm:%s175]
                %623 = vst [vmem:[%s183 + $0x6d8] sm:%s175] %v622
                %v624 = vld [vmem:[%s182 + $0xdc0] sm:%s175]
                %625 = vst [vmem:[%s183 + $0x6e0] sm:%s175] %v624
                %v626 = vld [vmem:[%s182 + $0xdd0] sm:%s175]
                %627 = vst [vmem:[%s183 + $0x6e8] sm:%s175] %v626
                %v628 = vld [vmem:[%s182 + $0xde0] sm:%s175]
                %629 = vst [vmem:[%s183 + $0x6f0] sm:%s175] %v628
                %v630 = vld [vmem:[%s182 + $0xdf0] sm:%s175]
                %631 = vst [vmem:[%s183 + $0x6f8] sm:%s175] %v630
                %v632 = vld [vmem:[%s182 + $0xe00] sm:%s175]
                %633 = vst [vmem:[%s183 + $0x700] sm:%s175] %v632
                %v634 = vld [vmem:[%s182 + $0xe10] sm:%s175]
                %635 = vst [vmem:[%s183 + $0x708] sm:%s175] %v634
                %v636 = vld [vmem:[%s182 + $0xe20] sm:%s175]
                %637 = vst [vmem:[%s183 + $0x710] sm:%s175] %v636
                %v638 = vld [vmem:[%s182 + $0xe30] sm:%s175]
                %639 = vst [vmem:[%s183 + $0x718] sm:%s175] %v638
                %v640 = vld [vmem:[%s182 + $0xe40] sm:%s175]
                %641 = vst [vmem:[%s183 + $0x720] sm:%s175] %v640
                %v642 = vld [vmem:[%s182 + $0xe50] sm:%s175]
                %643 = vst [vmem:[%s183 + $0x728] sm:%s175] %v642
                %v644 = vld [vmem:[%s182 + $0xe60] sm:%s175]
                %645 = vst [vmem:[%s183 + $0x730] sm:%s175] %v644
                %v646 = vld [vmem:[%s182 + $0xe70] sm:%s175]
                %647 = vst [vmem:[%s183 + $0x738] sm:%s175] %v646
                %v648 = vld [vmem:[%s182 + $0xe80] sm:%s175]
                %649 = vst [vmem:[%s183 + $0x740] sm:%s175] %v648
                %v650 = vld [vmem:[%s182 + $0xe90] sm:%s175]
                %651 = vst [vmem:[%s183 + $0x748] sm:%s175] %v650
                %v652 = vld [vmem:[%s182 + $0xea0] sm:%s175]
                %653 = vst [vmem:[%s183 + $0x750] sm:%s175] %v652
                %v654 = vld [vmem:[%s182 + $0xeb0] sm:%s175]
                %655 = vst [vmem:[%s183 + $0x758] sm:%s175] %v654
                %v656 = vld [vmem:[%s182 + $0xec0] sm:%s175]
                %657 = vst [vmem:[%s183 + $0x760] sm:%s175] %v656
                %v658 = vld [vmem:[%s182 + $0xed0] sm:%s175]
                %659 = vst [vmem:[%s183 + $0x768] sm:%s175] %v658
                %v660 = vld [vmem:[%s182 + $0xee0] sm:%s175]
                %661 = vst [vmem:[%s183 + $0x770] sm:%s175] %v660
                %v662 = vld [vmem:[%s182 + $0xef0] sm:%s175]
                %663 = vst [vmem:[%s183 + $0x778] sm:%s175] %v662
                %v664 = vld [vmem:[%s182 + $0xf00] sm:%s175]
                %665 = vst [vmem:[%s183 + $0x780] sm:%s175] %v664
                %v666 = vld [vmem:[%s182 + $0xf10] sm:%s175]
                %667 = vst [vmem:[%s183 + $0x788] sm:%s175] %v666
                %v668 = vld [vmem:[%s182 + $0xf20] sm:%s175]
                %669 = vst [vmem:[%s183 + $0x790] sm:%s175] %v668
                %v670 = vld [vmem:[%s182 + $0xf30] sm:%s175]
                %671 = vst [vmem:[%s183 + $0x798] sm:%s175] %v670
                %v672 = vld [vmem:[%s182 + $0xf40] sm:%s175]
                %673 = vst [vmem:[%s183 + $0x7a0] sm:%s175] %v672
                %v674 = vld [vmem:[%s182 + $0xf50] sm:%s175]
                %675 = vst [vmem:[%s183 + $0x7a8] sm:%s175] %v674
                %v676 = vld [vmem:[%s182 + $0xf60] sm:%s175]
                %677 = vst [vmem:[%s183 + $0x7b0] sm:%s175] %v676
                %v678 = vld [vmem:[%s182 + $0xf70] sm:%s175]
                %679 = vst [vmem:[%s183 + $0x7b8] sm:%s175] %v678
                %v680 = vld [vmem:[%s182 + $0xf80] sm:%s175]
                %681 = vst [vmem:[%s183 + $0x7c0] sm:%s175] %v680
                %v682 = vld [vmem:[%s182 + $0xf90] sm:%s175]
                %683 = vst [vmem:[%s183 + $0x7c8] sm:%s175] %v682
                %v684 = vld [vmem:[%s182 + $0xfa0] sm:%s175]
                %685 = vst [vmem:[%s183 + $0x7d0] sm:%s175] %v684
                %v686 = vld [vmem:[%s182 + $0xfb0] sm:%s175]
                %687 = vst [vmem:[%s183 + $0x7d8] sm:%s175] %v686
                %v688 = vld [vmem:[%s182 + $0xfc0] sm:%s175]
                %689 = vst [vmem:[%s183 + $0x7e0] sm:%s175] %v688
                %v690 = vld [vmem:[%s182 + $0xfd0] sm:%s175]
                %691 = vst [vmem:[%s183 + $0x7e8] sm:%s175] %v690
                %v692 = vld [vmem:[%s182 + $0xfe0] sm:%s175]
                %693 = vst [vmem:[%s183 + $0x7f0] sm:%s175] %v692
                %v694 = vld [vmem:[%s182 + $0xff0] sm:%s175]
                %695 = vst [vmem:[%s183 + $0x7f8] sm:%s175] %v694
              $region41: #{siamese_forward.11} parent=35 // loop_footer
                %s181 = sadd.s32 1, %s177
              $region42: #{siamese_forward.11} parent=35 // loop_footer_branch
                %176 = sbr.rel target = $region38
              $region43: #{siamese_forward.11} parent=35 // loop_exit
                _
            $region36: #{siamese_forward.11} parent=27 // pred_fallthru
              _
          $region28: #{siamese_forward.11} parent=23 // pred_fallthru
            _
          %1220 = vnop
        $region24: #{siamese_forward.11} parent=19 // pred_fallthru
          _
        // Predicated region
        $region59: #{siamese_forward.11} parent=19 // pred_check
          %p1221 = pneg %p95
        $region60: #{siamese_forward.11} parent=19 // pred_check_branch
          %1223 = sbr.rel (%p1221) target = $region62
        $region61: #{siamese_forward.11} parent=19 // pred_region
          %s1224 = smul.u32 2, %s16
          %p1225 = scmp.lt.s32.totalorder %s1224, 3
          %s1226 = scalar_select %p1225, %s1224, 3
          %s1227 = scalar_lea.vmem %s2, %s1226
          %s1228 = smul.u32 2, %s16
        $region62: #{siamese_forward.11} parent=19 // pred_fallthru
          _
      $region20: #{siamese_forward.11} parent=5 // pred_fallthru
        _
      %p1229 = scmp.le.s32.totalorder 1, %s9
      %p1230 = scmp.lt.s32.totalorder %s9, 3
      %p1231 = pnand %p1229, %p1230
      %p1232 = pneg %p1231
      // Predicated region
      $region63: #{siamese_forward.11} parent=5 // pred_check
        _
      $region64: #{siamese_forward.11} parent=5 // pred_check_branch
        %1234 = sbr.rel (%p1231) target = $region66
      $region65: #{siamese_forward.11} parent=5 // pred_region
        %s1235 = ssub.s32 %s9, 1
        %s1236 = sand.u32 %s62, 1
        %s1237 = sand.u32 %s62, 1
        %s1238 = smul.addr %s1237, 2048
        %s1239 = scalar_lea.vmem [#allocation3], %s1238
        // Predicated region
        $region67: #{siamese_forward.11} parent=65 // pred_check
          %p1240 = pneg %p75
        $region68: #{siamese_forward.11} parent=65 // pred_check_branch
          %1242 = sbr.rel (%p1240) target = $region70
        $region69: #{siamese_forward.11} parent=65 // pred_region
          _
        $region70: #{siamese_forward.11} parent=65 // pred_fallthru
          _
        %s1243 = smul.u32 16, %s19
        %p1244 = scmp.lt.s32.totalorder %s1243, 15
        %s1245 = scalar_select %p1244, %s1243, 15
        %s1246 = smul.addr %s1245, 2
        %s1247 = scalar_lea.vmem %s0, %s1246
        %p1248 = pneg %p47
        %p1249 = pneg %p44
        %s1250 = sand.u32 %s62, 1
        %s1251 = sand.u32 %s62, 1
        %s1252 = smul.addr %s1251, 2048
        %s1253 = scalar_lea.vmem [#allocation3], %s1252
        %p1254 = pneg %p75
        %p1255 = pneg %p72
        %s1256 = smul.u32 2, %s18
        %p1257 = scmp.lt.s32.totalorder %s1256, 3
        %s1258 = scalar_select %p1257, %s1256, 3
        %s1259 = scalar_lea.vmem %s2, %s1258
        %p1260 = pneg %p101
        %p1261 = pneg %p98
        %p1262 = pneg %p127
        %p1263 = pneg %p124
        %s1264 = smul.u32 2, %s18
        %p1265 = scmp.lt.s32.totalorder %s1264, 3
        %s1266 = scalar_select %p1265, %s1264, 3
        %s1267 = smul.addr %s1266, 4
        %s1268 = scalar_lea.vmem %s3, %s1267
        %s1269 = smul.u32 16, %s19
        %p1270 = scmp.lt.s32.totalorder %s1269, 15
        %s1271 = scalar_select %p1270, %s1269, 15
        %s1272 = smul.addr %s1271, 2
        %s1273 = scalar_lea.vmem %s0, %s1272
        %s1274 = smul.u32 16, %s19
        %s1275 = smul.u32 256, %s19
        %s1276 = smul.u32 2, %s18
        %s1277 = smul.u32 2, %s18
        %p1278 = scmp.lt.s32.totalorder %s1277, 3
        %s1279 = scalar_select %p1278, %s1277, 3
        %s1280 = scalar_lea.vmem %s2, %s1279
        %s1281 = smul.u32 2, %s18
        %s1282 = smul.u32 2, %s18
        %p1283 = scmp.lt.s32.totalorder %s1282, 3
        %s1284 = scalar_select %p1283, %s1282, 3
        %s1285 = smul.addr %s1284, 4
        %s1286 = scalar_lea.vmem %s3, %s1285
        %s1287 = smul.u32 2, %s18
        %p1288 = scmp.eq.s32.totalorder %s19, 0
        // Predicated region
        $region71: #{siamese_forward.11} parent=65 // pred_check
          %p1289 = pneg %p1288
        $region72: #{siamese_forward.11} parent=65 // pred_check_branch
          %1291 = sbr.rel (%p1289) target = $region74
        $region73: #{siamese_forward.11} parent=65 // pred_region
          %1292 = vst [vmem:[#allocation2] sm:$0xff] 0.0
        $region74: #{siamese_forward.11} parent=65 // pred_fallthru
          _
        %v1293 = vld [vmem:[#allocation2] sm:$0xff]
        %v1294 = vld [vmem:[%s1273] sm:$0xff]
        %v1295 = vld [vmem:[%s1273 + $0x8] sm:$0xff]
        %v1296 = vld [vmem:[%s1273 + $0x10] sm:$0xff]
        %v1297 = vld [vmem:[%s1273 + $0x18] sm:$0xff]
        %v1298 = vld [vmem:[%s1239] sm:$0xff]
        %v1299 = vld [vmem:[%s1239 + $0x8] sm:$0xff]
        %v1300 = vld [vmem:[%s1239 + $0x10] sm:$0xff]
        %v1301 = vld [vmem:[%s1239 + $0x18] sm:$0xff]
        %v1302 = vld [vmem:[%s1239 + $0x20] sm:$0xff]
        %v1303 = vld [vmem:[%s1239 + $0x28] sm:$0xff]
        %v1304 = vld [vmem:[%s1239 + $0x30] sm:$0xff]
        %v1305 = vld [vmem:[%s1239 + $0x38] sm:$0xff]
        %v1306 = vld [vmem:[%s1239 + $0x40] sm:$0xff]
        %v1307 = vld [vmem:[%s1239 + $0x48] sm:$0xff]
        %v1308 = vld [vmem:[%s1239 + $0x50] sm:$0xff]
        %v1309 = vld [vmem:[%s1239 + $0x58] sm:$0xff]
        %v1310 = vld [vmem:[%s1239 + $0x60] sm:$0xff]
        %v1311 = vld [vmem:[%s1239 + $0x68] sm:$0xff]
        %v1312 = vld [vmem:[%s1239 + $0x70] sm:$0xff]
        %v1313 = vld [vmem:[%s1239 + $0x78] sm:$0xff]
        %v1314 = vld [vmem:[%s1239 + $0x80] sm:$0xff]
        %v1315 = vld [vmem:[%s1239 + $0x88] sm:$0xff]
        %v1316 = vld [vmem:[%s1239 + $0x90] sm:$0xff]
        %v1317 = vld [vmem:[%s1239 + $0x98] sm:$0xff]
        %v1318 = vld [vmem:[%s1239 + $0xa0] sm:$0xff]
        %v1319 = vld [vmem:[%s1239 + $0xa8] sm:$0xff]
        %v1320 = vld [vmem:[%s1239 + $0xb0] sm:$0xff]
        %v1321 = vld [vmem:[%s1239 + $0xb8] sm:$0xff]
        %v1322 = vld [vmem:[%s1239 + $0xc0] sm:$0xff]
        %v1323 = vld [vmem:[%s1239 + $0xc8] sm:$0xff]
        %v1324 = vld [vmem:[%s1239 + $0xd0] sm:$0xff]
        %v1325 = vld [vmem:[%s1239 + $0xd8] sm:$0xff]
        %v1326 = vld [vmem:[%s1239 + $0xe0] sm:$0xff]
        %v1327 = vld [vmem:[%s1239 + $0xe8] sm:$0xff]
        %v1328 = vld [vmem:[%s1239 + $0xf0] sm:$0xff]
        %v1329 = vld [vmem:[%s1239 + $0xf8] sm:$0xff]
        %v1330 = vld [vmem:[%s1239 + $0x100] sm:$0xff]
        %v1331 = vld [vmem:[%s1239 + $0x108] sm:$0xff]
        %v1332 = vld [vmem:[%s1239 + $0x110] sm:$0xff]
        %v1333 = vld [vmem:[%s1239 + $0x118] sm:$0xff]
        %v1334 = vld [vmem:[%s1239 + $0x120] sm:$0xff]
        %v1335 = vld [vmem:[%s1239 + $0x128] sm:$0xff]
        %v1336 = vld [vmem:[%s1239 + $0x130] sm:$0xff]
        %v1337 = vld [vmem:[%s1239 + $0x138] sm:$0xff]
        %v1338 = vld [vmem:[%s1239 + $0x140] sm:$0xff]
        %v1339 = vld [vmem:[%s1239 + $0x148] sm:$0xff]
        %v1340 = vld [vmem:[%s1239 + $0x150] sm:$0xff]
        %v1341 = vld [vmem:[%s1239 + $0x158] sm:$0xff]
        %v1342 = vld [vmem:[%s1239 + $0x160] sm:$0xff]
        %v1343 = vld [vmem:[%s1239 + $0x168] sm:$0xff]
        %v1344 = vld [vmem:[%s1239 + $0x170] sm:$0xff]
        %v1345 = vld [vmem:[%s1239 + $0x178] sm:$0xff]
        %v1346 = vld [vmem:[%s1239 + $0x180] sm:$0xff]
        %v1347 = vld [vmem:[%s1239 + $0x188] sm:$0xff]
        %v1348 = vld [vmem:[%s1239 + $0x190] sm:$0xff]
        %v1349 = vld [vmem:[%s1239 + $0x198] sm:$0xff]
        %v1350 = vld [vmem:[%s1239 + $0x1a0] sm:$0xff]
        %v1351 = vld [vmem:[%s1239 + $0x1a8] sm:$0xff]
        %v1352 = vld [vmem:[%s1239 + $0x1b0] sm:$0xff]
        %v1353 = vld [vmem:[%s1239 + $0x1b8] sm:$0xff]
        %v1354 = vld [vmem:[%s1239 + $0x1c0] sm:$0xff]
        %v1355 = vld [vmem:[%s1239 + $0x1c8] sm:$0xff]
        %v1356 = vld [vmem:[%s1239 + $0x1d0] sm:$0xff]
        %v1357 = vld [vmem:[%s1239 + $0x1d8] sm:$0xff]
        %v1358 = vld [vmem:[%s1239 + $0x1e0] sm:$0xff]
        %v1359 = vld [vmem:[%s1239 + $0x1e8] sm:$0xff]
        %v1360 = vld [vmem:[%s1239 + $0x1f0] sm:$0xff]
        %v1361 = vld [vmem:[%s1239 + $0x1f8] sm:$0xff]
        %v1362 = vld [vmem:[%s1239 + $0x200] sm:$0xff]
        %v1363 = vld [vmem:[%s1239 + $0x208] sm:$0xff]
        %v1364 = vld [vmem:[%s1239 + $0x210] sm:$0xff]
        %v1365 = vld [vmem:[%s1239 + $0x218] sm:$0xff]
        %v1366 = vld [vmem:[%s1239 + $0x220] sm:$0xff]
        %v1367 = vld [vmem:[%s1239 + $0x228] sm:$0xff]
        %v1368 = vld [vmem:[%s1239 + $0x230] sm:$0xff]
        %v1369 = vld [vmem:[%s1239 + $0x238] sm:$0xff]
        %v1370 = vld [vmem:[%s1239 + $0x240] sm:$0xff]
        %v1371 = vld [vmem:[%s1239 + $0x248] sm:$0xff]
        %v1372 = vld [vmem:[%s1239 + $0x250] sm:$0xff]
        %v1373 = vld [vmem:[%s1239 + $0x258] sm:$0xff]
        %v1374 = vld [vmem:[%s1239 + $0x260] sm:$0xff]
        %v1375 = vld [vmem:[%s1239 + $0x268] sm:$0xff]
        %v1376 = vld [vmem:[%s1239 + $0x270] sm:$0xff]
        %v1377 = vld [vmem:[%s1239 + $0x278] sm:$0xff]
        %v1378 = vld [vmem:[%s1239 + $0x280] sm:$0xff]
        %v1379 = vld [vmem:[%s1239 + $0x288] sm:$0xff]
        %v1380 = vld [vmem:[%s1239 + $0x290] sm:$0xff]
        %v1381 = vld [vmem:[%s1239 + $0x298] sm:$0xff]
        %v1382 = vld [vmem:[%s1239 + $0x2a0] sm:$0xff]
        %v1383 = vld [vmem:[%s1239 + $0x2a8] sm:$0xff]
        %v1384 = vld [vmem:[%s1239 + $0x2b0] sm:$0xff]
        %v1385 = vld [vmem:[%s1239 + $0x2b8] sm:$0xff]
        %v1386 = vld [vmem:[%s1239 + $0x2c0] sm:$0xff]
        %v1387 = vld [vmem:[%s1239 + $0x2c8] sm:$0xff]
        %v1388 = vld [vmem:[%s1239 + $0x2d0] sm:$0xff]
        %v1389 = vld [vmem:[%s1239 + $0x2d8] sm:$0xff]
        %v1390 = vld [vmem:[%s1239 + $0x2e0] sm:$0xff]
        %v1391 = vld [vmem:[%s1239 + $0x2e8] sm:$0xff]
        %v1392 = vld [vmem:[%s1239 + $0x2f0] sm:$0xff]
        %v1393 = vld [vmem:[%s1239 + $0x2f8] sm:$0xff]
        %v1394 = vld [vmem:[%s1239 + $0x300] sm:$0xff]
        %v1395 = vld [vmem:[%s1239 + $0x308] sm:$0xff]
        %v1396 = vld [vmem:[%s1239 + $0x310] sm:$0xff]
        %v1397 = vld [vmem:[%s1239 + $0x318] sm:$0xff]
        %v1398 = vld [vmem:[%s1239 + $0x320] sm:$0xff]
        %v1399 = vld [vmem:[%s1239 + $0x328] sm:$0xff]
        %v1400 = vld [vmem:[%s1239 + $0x330] sm:$0xff]
        %v1401 = vld [vmem:[%s1239 + $0x338] sm:$0xff]
        %v1402 = vld [vmem:[%s1239 + $0x340] sm:$0xff]
        %v1403 = vld [vmem:[%s1239 + $0x348] sm:$0xff]
        %v1404 = vld [vmem:[%s1239 + $0x350] sm:$0xff]
        %v1405 = vld [vmem:[%s1239 + $0x358] sm:$0xff]
        %v1406 = vld [vmem:[%s1239 + $0x360] sm:$0xff]
        %v1407 = vld [vmem:[%s1239 + $0x368] sm:$0xff]
        %v1408 = vld [vmem:[%s1239 + $0x370] sm:$0xff]
        %v1409 = vld [vmem:[%s1239 + $0x378] sm:$0xff]
        %v1410 = vld [vmem:[%s1239 + $0x380] sm:$0xff]
        %v1411 = vld [vmem:[%s1239 + $0x388] sm:$0xff]
        %v1412 = vld [vmem:[%s1239 + $0x390] sm:$0xff]
        %v1413 = vld [vmem:[%s1239 + $0x398] sm:$0xff]
        %v1414 = vld [vmem:[%s1239 + $0x3a0] sm:$0xff]
        %v1415 = vld [vmem:[%s1239 + $0x3a8] sm:$0xff]
        %v1416 = vld [vmem:[%s1239 + $0x3b0] sm:$0xff]
        %v1417 = vld [vmem:[%s1239 + $0x3b8] sm:$0xff]
        %v1418 = vld [vmem:[%s1239 + $0x3c0] sm:$0xff]
        %v1419 = vld [vmem:[%s1239 + $0x3c8] sm:$0xff]
        %v1420 = vld [vmem:[%s1239 + $0x3d0] sm:$0xff]
        %v1421 = vld [vmem:[%s1239 + $0x3d8] sm:$0xff]
        %v1422 = vld [vmem:[%s1239 + $0x3e0] sm:$0xff]
        %v1423 = vld [vmem:[%s1239 + $0x3e8] sm:$0xff]
        %v1424 = vld [vmem:[%s1239 + $0x3f0] sm:$0xff]
        %v1425 = vld [vmem:[%s1239 + $0x3f8] sm:$0xff]
        %v1426 = vld [vmem:[%s1239 + $0x400] sm:$0xff]
        %v1427 = vld [vmem:[%s1239 + $0x408] sm:$0xff]
        %v1428 = vld [vmem:[%s1239 + $0x410] sm:$0xff]
        %v1429 = vld [vmem:[%s1239 + $0x418] sm:$0xff]
        %v1430 = vld [vmem:[%s1239 + $0x420] sm:$0xff]
        %v1431 = vld [vmem:[%s1239 + $0x428] sm:$0xff]
        %v1432 = vld [vmem:[%s1239 + $0x430] sm:$0xff]
        %v1433 = vld [vmem:[%s1239 + $0x438] sm:$0xff]
        %v1434 = vld [vmem:[%s1239 + $0x440] sm:$0xff]
        %v1435 = vld [vmem:[%s1239 + $0x448] sm:$0xff]
        %v1436 = vld [vmem:[%s1239 + $0x450] sm:$0xff]
        %v1437 = vld [vmem:[%s1239 + $0x458] sm:$0xff]
        %v1438 = vld [vmem:[%s1239 + $0x460] sm:$0xff]
        %v1439 = vld [vmem:[%s1239 + $0x468] sm:$0xff]
        %v1440 = vld [vmem:[%s1239 + $0x470] sm:$0xff]
        %v1441 = vld [vmem:[%s1239 + $0x478] sm:$0xff]
        %v1442 = vld [vmem:[%s1239 + $0x480] sm:$0xff]
        %v1443 = vld [vmem:[%s1239 + $0x488] sm:$0xff]
        %v1444 = vld [vmem:[%s1239 + $0x490] sm:$0xff]
        %v1445 = vld [vmem:[%s1239 + $0x498] sm:$0xff]
        %v1446 = vld [vmem:[%s1239 + $0x4a0] sm:$0xff]
        %v1447 = vld [vmem:[%s1239 + $0x4a8] sm:$0xff]
        %v1448 = vld [vmem:[%s1239 + $0x4b0] sm:$0xff]
        %v1449 = vld [vmem:[%s1239 + $0x4b8] sm:$0xff]
        %v1450 = vld [vmem:[%s1239 + $0x4c0] sm:$0xff]
        %v1451 = vld [vmem:[%s1239 + $0x4c8] sm:$0xff]
        %v1452 = vld [vmem:[%s1239 + $0x4d0] sm:$0xff]
        %v1453 = vld [vmem:[%s1239 + $0x4d8] sm:$0xff]
        %v1454 = vld [vmem:[%s1239 + $0x4e0] sm:$0xff]
        %v1455 = vld [vmem:[%s1239 + $0x4e8] sm:$0xff]
        %v1456 = vld [vmem:[%s1239 + $0x4f0] sm:$0xff]
        %v1457 = vld [vmem:[%s1239 + $0x4f8] sm:$0xff]
        %v1458 = vld [vmem:[%s1239 + $0x500] sm:$0xff]
        %v1459 = vld [vmem:[%s1239 + $0x508] sm:$0xff]
        %v1460 = vld [vmem:[%s1239 + $0x510] sm:$0xff]
        %v1461 = vld [vmem:[%s1239 + $0x518] sm:$0xff]
        %v1462 = vld [vmem:[%s1239 + $0x520] sm:$0xff]
        %v1463 = vld [vmem:[%s1239 + $0x528] sm:$0xff]
        %v1464 = vld [vmem:[%s1239 + $0x530] sm:$0xff]
        %v1465 = vld [vmem:[%s1239 + $0x538] sm:$0xff]
        %v1466 = vld [vmem:[%s1239 + $0x540] sm:$0xff]
        %v1467 = vld [vmem:[%s1239 + $0x548] sm:$0xff]
        %v1468 = vld [vmem:[%s1239 + $0x550] sm:$0xff]
        %v1469 = vld [vmem:[%s1239 + $0x558] sm:$0xff]
        %v1470 = vld [vmem:[%s1239 + $0x560] sm:$0xff]
        %v1471 = vld [vmem:[%s1239 + $0x568] sm:$0xff]
        %v1472 = vld [vmem:[%s1239 + $0x570] sm:$0xff]
        %v1473 = vld [vmem:[%s1239 + $0x578] sm:$0xff]
        %v1474 = vld [vmem:[%s1239 + $0x580] sm:$0xff]
        %v1475 = vld [vmem:[%s1239 + $0x588] sm:$0xff]
        %v1476 = vld [vmem:[%s1239 + $0x590] sm:$0xff]
        %v1477 = vld [vmem:[%s1239 + $0x598] sm:$0xff]
        %v1478 = vld [vmem:[%s1239 + $0x5a0] sm:$0xff]
        %v1479 = vld [vmem:[%s1239 + $0x5a8] sm:$0xff]
        %v1480 = vld [vmem:[%s1239 + $0x5b0] sm:$0xff]
        %v1481 = vld [vmem:[%s1239 + $0x5b8] sm:$0xff]
        %v1482 = vld [vmem:[%s1239 + $0x5c0] sm:$0xff]
        %v1483 = vld [vmem:[%s1239 + $0x5c8] sm:$0xff]
        %v1484 = vld [vmem:[%s1239 + $0x5d0] sm:$0xff]
        %v1485 = vld [vmem:[%s1239 + $0x5d8] sm:$0xff]
        %v1486 = vld [vmem:[%s1239 + $0x5e0] sm:$0xff]
        %v1487 = vld [vmem:[%s1239 + $0x5e8] sm:$0xff]
        %v1488 = vld [vmem:[%s1239 + $0x5f0] sm:$0xff]
        %v1489 = vld [vmem:[%s1239 + $0x5f8] sm:$0xff]
        %v1490 = vld [vmem:[%s1239 + $0x600] sm:$0xff]
        %v1491 = vld [vmem:[%s1239 + $0x608] sm:$0xff]
        %v1492 = vld [vmem:[%s1239 + $0x610] sm:$0xff]
        %v1493 = vld [vmem:[%s1239 + $0x618] sm:$0xff]
        %v1494 = vld [vmem:[%s1239 + $0x620] sm:$0xff]
        %v1495 = vld [vmem:[%s1239 + $0x628] sm:$0xff]
        %v1496 = vld [vmem:[%s1239 + $0x630] sm:$0xff]
        %v1497 = vld [vmem:[%s1239 + $0x638] sm:$0xff]
        %v1498 = vld [vmem:[%s1239 + $0x640] sm:$0xff]
        %v1499 = vld [vmem:[%s1239 + $0x648] sm:$0xff]
        %v1500 = vld [vmem:[%s1239 + $0x650] sm:$0xff]
        %v1501 = vld [vmem:[%s1239 + $0x658] sm:$0xff]
        %v1502 = vld [vmem:[%s1239 + $0x660] sm:$0xff]
        %v1503 = vld [vmem:[%s1239 + $0x668] sm:$0xff]
        %v1504 = vld [vmem:[%s1239 + $0x670] sm:$0xff]
        %v1505 = vld [vmem:[%s1239 + $0x678] sm:$0xff]
        %v1506 = vld [vmem:[%s1239 + $0x680] sm:$0xff]
        %v1507 = vld [vmem:[%s1239 + $0x688] sm:$0xff]
        %v1508 = vld [vmem:[%s1239 + $0x690] sm:$0xff]
        %v1509 = vld [vmem:[%s1239 + $0x698] sm:$0xff]
        %v1510 = vld [vmem:[%s1239 + $0x6a0] sm:$0xff]
        %v1511 = vld [vmem:[%s1239 + $0x6a8] sm:$0xff]
        %v1512 = vld [vmem:[%s1239 + $0x6b0] sm:$0xff]
        %v1513 = vld [vmem:[%s1239 + $0x6b8] sm:$0xff]
        %v1514 = vld [vmem:[%s1239 + $0x6c0] sm:$0xff]
        %v1515 = vld [vmem:[%s1239 + $0x6c8] sm:$0xff]
        %v1516 = vld [vmem:[%s1239 + $0x6d0] sm:$0xff]
        %v1517 = vld [vmem:[%s1239 + $0x6d8] sm:$0xff]
        %v1518 = vld [vmem:[%s1239 + $0x6e0] sm:$0xff]
        %v1519 = vld [vmem:[%s1239 + $0x6e8] sm:$0xff]
        %v1520 = vld [vmem:[%s1239 + $0x6f0] sm:$0xff]
        %v1521 = vld [vmem:[%s1239 + $0x6f8] sm:$0xff]
        %v1522 = vld [vmem:[%s1239 + $0x700] sm:$0xff]
        %v1523 = vld [vmem:[%s1239 + $0x708] sm:$0xff]
        %v1524 = vld [vmem:[%s1239 + $0x710] sm:$0xff]
        %v1525 = vld [vmem:[%s1239 + $0x718] sm:$0xff]
        %v1526 = vld [vmem:[%s1239 + $0x720] sm:$0xff]
        %v1527 = vld [vmem:[%s1239 + $0x728] sm:$0xff]
        %v1528 = vld [vmem:[%s1239 + $0x730] sm:$0xff]
        %v1529 = vld [vmem:[%s1239 + $0x738] sm:$0xff]
        %v1530 = vld [vmem:[%s1239 + $0x740] sm:$0xff]
        %v1531 = vld [vmem:[%s1239 + $0x748] sm:$0xff]
        %v1532 = vld [vmem:[%s1239 + $0x750] sm:$0xff]
        %v1533 = vld [vmem:[%s1239 + $0x758] sm:$0xff]
        %v1534 = vld [vmem:[%s1239 + $0x760] sm:$0xff]
        %v1535 = vld [vmem:[%s1239 + $0x768] sm:$0xff]
        %v1536 = vld [vmem:[%s1239 + $0x770] sm:$0xff]
        %v1537 = vld [vmem:[%s1239 + $0x778] sm:$0xff]
        %v1538 = vld [vmem:[%s1239 + $0x780] sm:$0xff]
        %v1539 = vld [vmem:[%s1239 + $0x788] sm:$0xff]
        %v1540 = vld [vmem:[%s1239 + $0x790] sm:$0xff]
        %v1541 = vld [vmem:[%s1239 + $0x798] sm:$0xff]
        %v1542 = vld [vmem:[%s1239 + $0x7a0] sm:$0xff]
        %v1543 = vld [vmem:[%s1239 + $0x7a8] sm:$0xff]
        %v1544 = vld [vmem:[%s1239 + $0x7b0] sm:$0xff]
        %v1545 = vld [vmem:[%s1239 + $0x7b8] sm:$0xff]
        %v1546 = vld [vmem:[%s1239 + $0x7c0] sm:$0xff]
        %v1547 = vld [vmem:[%s1239 + $0x7c8] sm:$0xff]
        %v1548 = vld [vmem:[%s1239 + $0x7d0] sm:$0xff]
        %v1549 = vld [vmem:[%s1239 + $0x7d8] sm:$0xff]
        %v1550 = vld [vmem:[%s1239 + $0x7e0] sm:$0xff]
        %v1551 = vld [vmem:[%s1239 + $0x7e8] sm:$0xff]
        %v1552 = vld [vmem:[%s1239 + $0x7f0] sm:$0xff]
        %v1553 = vld [vmem:[%s1239 + $0x7f8] sm:$0xff]
        %v1558 = vcombine.high %v1294, %v1294
        %v1560 = vunpack.c.l.s4 1983009808
        %v1561 = vunpack.c.0.s8 %v1560
        %v1562 = vlaneseq
        %v1563 = vshrl.u32 %v1562, 7
        %v1564 = vsub.s32 %v1561, %v1563
        %v1565 = vrot.slane %v1294, %v1564
        %v1567 = vunpack.c.l.s4 1983009808
        %v1568 = vunpack.c.0.s8 %v1567
        %v1569 = vlaneseq
        %v1570 = vshrl.u32 %v1569, 7
        %v1571 = vsub.s32 %v1568, %v1570
        %v1572 = vrot.slane %v1558, %v1571
        %v1573 = vcombine.high %v1565, %v1565
        %v1574 = vcombine.high %v1572, %v1572
        %v1575 = vcombine.high %v1295, %v1295
        %v1577 = vunpack.c.l.s4 1983009808
        %v1578 = vunpack.c.0.s8 %v1577
        %v1579 = vlaneseq
        %v1580 = vshrl.u32 %v1579, 7
        %v1581 = vsub.s32 %v1578, %v1580
        %v1582 = vrot.slane %v1295, %v1581
        %v1584 = vunpack.c.l.s4 1983009808
        %v1585 = vunpack.c.0.s8 %v1584
        %v1586 = vlaneseq
        %v1587 = vshrl.u32 %v1586, 7
        %v1588 = vsub.s32 %v1585, %v1587
        %v1589 = vrot.slane %v1575, %v1588
        %v1590 = vcombine.high %v1582, %v1582
        %v1591 = vcombine.high %v1589, %v1589
        %v1592 = vcombine.high %v1296, %v1296
        %v1594 = vunpack.c.l.s4 1983009808
        %v1595 = vunpack.c.0.s8 %v1594
        %v1596 = vlaneseq
        %v1597 = vshrl.u32 %v1596, 7
        %v1598 = vsub.s32 %v1595, %v1597
        %v1599 = vrot.slane %v1296, %v1598
        %v1601 = vunpack.c.l.s4 1983009808
        %v1602 = vunpack.c.0.s8 %v1601
        %v1603 = vlaneseq
        %v1604 = vshrl.u32 %v1603, 7
        %v1605 = vsub.s32 %v1602, %v1604
        %v1606 = vrot.slane %v1592, %v1605
        %v1607 = vcombine.high %v1599, %v1599
        %v1608 = vcombine.high %v1606, %v1606
        %v1609 = vcombine.high %v1297, %v1297
        %v1611 = vunpack.c.l.s4 1983009808
        %v1612 = vunpack.c.0.s8 %v1611
        %v1613 = vlaneseq
        %v1614 = vshrl.u32 %v1613, 7
        %v1615 = vsub.s32 %v1612, %v1614
        %v1616 = vrot.slane %v1297, %v1615
        %v1618 = vunpack.c.l.s4 1983009808
        %v1619 = vunpack.c.0.s8 %v1618
        %v1620 = vlaneseq
        %v1621 = vshrl.u32 %v1620, 7
        %v1622 = vsub.s32 %v1619, %v1621
        %v1623 = vrot.slane %v1609, %v1622
        %v1624 = vcombine.high %v1616, %v1616
        %v1625 = vcombine.high %v1623, %v1623
        %v1898 = vunpack.c.l.b16 %v1298
        %v1899 = vunpack.c.h.b16 %v1298
        %v1900 = vunpack.c.l.b16 %v1299
        %v1901 = vunpack.c.h.b16 %v1299
        %v1902 = vunpack.c.l.b16 %v1300
        %v1903 = vunpack.c.h.b16 %v1300
        %v1904 = vunpack.c.l.b16 %v1301
        %v1905 = vunpack.c.h.b16 %v1301
        %v1906 = vunpack.c.l.b16 %v1302
        %v1907 = vunpack.c.h.b16 %v1302
        %v1908 = vunpack.c.l.b16 %v1303
        %v1909 = vunpack.c.h.b16 %v1303
        %v1910 = vunpack.c.l.b16 %v1304
        %v1911 = vunpack.c.h.b16 %v1304
        %v1912 = vunpack.c.l.b16 %v1305
        %v1913 = vunpack.c.h.b16 %v1305
        %v1914 = vunpack.c.l.b16 %v1306
        %v1915 = vunpack.c.h.b16 %v1306
        %v1916 = vunpack.c.l.b16 %v1307
        %v1917 = vunpack.c.h.b16 %v1307
        %v1918 = vunpack.c.l.b16 %v1308
        %v1919 = vunpack.c.h.b16 %v1308
        %v1920 = vunpack.c.l.b16 %v1309
        %v1921 = vunpack.c.h.b16 %v1309
        %v1922 = vunpack.c.l.b16 %v1310
        %v1923 = vunpack.c.h.b16 %v1310
        %v1924 = vunpack.c.l.b16 %v1311
        %v1925 = vunpack.c.h.b16 %v1311
        %v1926 = vunpack.c.l.b16 %v1312
        %v1927 = vunpack.c.h.b16 %v1312
        %v1928 = vunpack.c.l.b16 %v1313
        %v1929 = vunpack.c.h.b16 %v1313
        %v1930 = vunpack.c.l.b16 %v1314
        %v1931 = vunpack.c.h.b16 %v1314
        %v1932 = vunpack.c.l.b16 %v1315
        %v1933 = vunpack.c.h.b16 %v1315
        %v1934 = vunpack.c.l.b16 %v1316
        %v1935 = vunpack.c.h.b16 %v1316
        %v1936 = vunpack.c.l.b16 %v1317
        %v1937 = vunpack.c.h.b16 %v1317
        %v1938 = vunpack.c.l.b16 %v1318
        %v1939 = vunpack.c.h.b16 %v1318
        %v1940 = vunpack.c.l.b16 %v1319
        %v1941 = vunpack.c.h.b16 %v1319
        %v1942 = vunpack.c.l.b16 %v1320
        %v1943 = vunpack.c.h.b16 %v1320
        %v1944 = vunpack.c.l.b16 %v1321
        %v1945 = vunpack.c.h.b16 %v1321
        %v1946 = vunpack.c.l.b16 %v1322
        %v1947 = vunpack.c.h.b16 %v1322
        %v1948 = vunpack.c.l.b16 %v1323
        %v1949 = vunpack.c.h.b16 %v1323
        %v1950 = vunpack.c.l.b16 %v1324
        %v1951 = vunpack.c.h.b16 %v1324
        %v1952 = vunpack.c.l.b16 %v1325
        %v1953 = vunpack.c.h.b16 %v1325
        %v1954 = vunpack.c.l.b16 %v1326
        %v1955 = vunpack.c.h.b16 %v1326
        %v1956 = vunpack.c.l.b16 %v1327
        %v1957 = vunpack.c.h.b16 %v1327
        %v1958 = vunpack.c.l.b16 %v1328
        %v1959 = vunpack.c.h.b16 %v1328
        %v1960 = vunpack.c.l.b16 %v1329
        %v1961 = vunpack.c.h.b16 %v1329
        %v1962 = vunpack.c.l.b16 %v1330
        %v1963 = vunpack.c.h.b16 %v1330
        %v1964 = vunpack.c.l.b16 %v1331
        %v1965 = vunpack.c.h.b16 %v1331
        %v1966 = vunpack.c.l.b16 %v1332
        %v1967 = vunpack.c.h.b16 %v1332
        %v1968 = vunpack.c.l.b16 %v1333
        %v1969 = vunpack.c.h.b16 %v1333
        %v1970 = vunpack.c.l.b16 %v1334
        %v1971 = vunpack.c.h.b16 %v1334
        %v1972 = vunpack.c.l.b16 %v1335
        %v1973 = vunpack.c.h.b16 %v1335
        %v1974 = vunpack.c.l.b16 %v1336
        %v1975 = vunpack.c.h.b16 %v1336
        %v1976 = vunpack.c.l.b16 %v1337
        %v1977 = vunpack.c.h.b16 %v1337
        %v1978 = vunpack.c.l.b16 %v1338
        %v1979 = vunpack.c.h.b16 %v1338
        %v1980 = vunpack.c.l.b16 %v1339
        %v1981 = vunpack.c.h.b16 %v1339
        %v1982 = vunpack.c.l.b16 %v1340
        %v1983 = vunpack.c.h.b16 %v1340
        %v1984 = vunpack.c.l.b16 %v1341
        %v1985 = vunpack.c.h.b16 %v1341
        %v1986 = vunpack.c.l.b16 %v1342
        %v1987 = vunpack.c.h.b16 %v1342
        %v1988 = vunpack.c.l.b16 %v1343
        %v1989 = vunpack.c.h.b16 %v1343
        %v1990 = vunpack.c.l.b16 %v1344
        %v1991 = vunpack.c.h.b16 %v1344
        %v1992 = vunpack.c.l.b16 %v1345
        %v1993 = vunpack.c.h.b16 %v1345
        %v1994 = vunpack.c.l.b16 %v1346
        %v1995 = vunpack.c.h.b16 %v1346
        %v1996 = vunpack.c.l.b16 %v1347
        %v1997 = vunpack.c.h.b16 %v1347
        %v1998 = vunpack.c.l.b16 %v1348
        %v1999 = vunpack.c.h.b16 %v1348
        %v2000 = vunpack.c.l.b16 %v1349
        %v2001 = vunpack.c.h.b16 %v1349
        %v2002 = vunpack.c.l.b16 %v1350
        %v2003 = vunpack.c.h.b16 %v1350
        %v2004 = vunpack.c.l.b16 %v1351
        %v2005 = vunpack.c.h.b16 %v1351
        %v2006 = vunpack.c.l.b16 %v1352
        %v2007 = vunpack.c.h.b16 %v1352
        %v2008 = vunpack.c.l.b16 %v1353
        %v2009 = vunpack.c.h.b16 %v1353
        %v2010 = vunpack.c.l.b16 %v1354
        %v2011 = vunpack.c.h.b16 %v1354
        %v2012 = vunpack.c.l.b16 %v1355
        %v2013 = vunpack.c.h.b16 %v1355
        %v2014 = vunpack.c.l.b16 %v1356
        %v2015 = vunpack.c.h.b16 %v1356
        %v2016 = vunpack.c.l.b16 %v1357
        %v2017 = vunpack.c.h.b16 %v1357
        %v2018 = vunpack.c.l.b16 %v1358
        %v2019 = vunpack.c.h.b16 %v1358
        %v2020 = vunpack.c.l.b16 %v1359
        %v2021 = vunpack.c.h.b16 %v1359
        %v2022 = vunpack.c.l.b16 %v1360
        %v2023 = vunpack.c.h.b16 %v1360
        %v2024 = vunpack.c.l.b16 %v1361
        %v2025 = vunpack.c.h.b16 %v1361
        %v2026 = vunpack.c.l.b16 %v1362
        %v2027 = vunpack.c.h.b16 %v1362
        %v2028 = vunpack.c.l.b16 %v1363
        %v2029 = vunpack.c.h.b16 %v1363
        %v2030 = vunpack.c.l.b16 %v1364
        %v2031 = vunpack.c.h.b16 %v1364
        %v2032 = vunpack.c.l.b16 %v1365
        %v2033 = vunpack.c.h.b16 %v1365
        %v2034 = vunpack.c.l.b16 %v1366
        %v2035 = vunpack.c.h.b16 %v1366
        %v2036 = vunpack.c.l.b16 %v1367
        %v2037 = vunpack.c.h.b16 %v1367
        %v2038 = vunpack.c.l.b16 %v1368
        %v2039 = vunpack.c.h.b16 %v1368
        %v2040 = vunpack.c.l.b16 %v1369
        %v2041 = vunpack.c.h.b16 %v1369
        %v2042 = vunpack.c.l.b16 %v1370
        %v2043 = vunpack.c.h.b16 %v1370
        %v2044 = vunpack.c.l.b16 %v1371
        %v2045 = vunpack.c.h.b16 %v1371
        %v2046 = vunpack.c.l.b16 %v1372
        %v2047 = vunpack.c.h.b16 %v1372
        %v2048 = vunpack.c.l.b16 %v1373
        %v2049 = vunpack.c.h.b16 %v1373
        %v2050 = vunpack.c.l.b16 %v1374
        %v2051 = vunpack.c.h.b16 %v1374
        %v2052 = vunpack.c.l.b16 %v1375
        %v2053 = vunpack.c.h.b16 %v1375
        %v2054 = vunpack.c.l.b16 %v1376
        %v2055 = vunpack.c.h.b16 %v1376
        %v2056 = vunpack.c.l.b16 %v1377
        %v2057 = vunpack.c.h.b16 %v1377
        %v2058 = vunpack.c.l.b16 %v1378
        %v2059 = vunpack.c.h.b16 %v1378
        %v2060 = vunpack.c.l.b16 %v1379
        %v2061 = vunpack.c.h.b16 %v1379
        %v2062 = vunpack.c.l.b16 %v1380
        %v2063 = vunpack.c.h.b16 %v1380
        %v2064 = vunpack.c.l.b16 %v1381
        %v2065 = vunpack.c.h.b16 %v1381
        %v2066 = vunpack.c.l.b16 %v1382
        %v2067 = vunpack.c.h.b16 %v1382
        %v2068 = vunpack.c.l.b16 %v1383
        %v2069 = vunpack.c.h.b16 %v1383
        %v2070 = vunpack.c.l.b16 %v1384
        %v2071 = vunpack.c.h.b16 %v1384
        %v2072 = vunpack.c.l.b16 %v1385
        %v2073 = vunpack.c.h.b16 %v1385
        %v2074 = vunpack.c.l.b16 %v1386
        %v2075 = vunpack.c.h.b16 %v1386
        %v2076 = vunpack.c.l.b16 %v1387
        %v2077 = vunpack.c.h.b16 %v1387
        %v2078 = vunpack.c.l.b16 %v1388
        %v2079 = vunpack.c.h.b16 %v1388
        %v2080 = vunpack.c.l.b16 %v1389
        %v2081 = vunpack.c.h.b16 %v1389
        %v2082 = vunpack.c.l.b16 %v1390
        %v2083 = vunpack.c.h.b16 %v1390
        %v2084 = vunpack.c.l.b16 %v1391
        %v2085 = vunpack.c.h.b16 %v1391
        %v2086 = vunpack.c.l.b16 %v1392
        %v2087 = vunpack.c.h.b16 %v1392
        %v2088 = vunpack.c.l.b16 %v1393
        %v2089 = vunpack.c.h.b16 %v1393
        %v2090 = vunpack.c.l.b16 %v1394
        %v2091 = vunpack.c.h.b16 %v1394
        %v2092 = vunpack.c.l.b16 %v1395
        %v2093 = vunpack.c.h.b16 %v1395
        %v2094 = vunpack.c.l.b16 %v1396
        %v2095 = vunpack.c.h.b16 %v1396
        %v2096 = vunpack.c.l.b16 %v1397
        %v2097 = vunpack.c.h.b16 %v1397
        %v2098 = vunpack.c.l.b16 %v1398
        %v2099 = vunpack.c.h.b16 %v1398
        %v2100 = vunpack.c.l.b16 %v1399
        %v2101 = vunpack.c.h.b16 %v1399
        %v2102 = vunpack.c.l.b16 %v1400
        %v2103 = vunpack.c.h.b16 %v1400
        %v2104 = vunpack.c.l.b16 %v1401
        %v2105 = vunpack.c.h.b16 %v1401
        %v2106 = vunpack.c.l.b16 %v1402
        %v2107 = vunpack.c.h.b16 %v1402
        %v2108 = vunpack.c.l.b16 %v1403
        %v2109 = vunpack.c.h.b16 %v1403
        %v2110 = vunpack.c.l.b16 %v1404
        %v2111 = vunpack.c.h.b16 %v1404
        %v2112 = vunpack.c.l.b16 %v1405
        %v2113 = vunpack.c.h.b16 %v1405
        %v2114 = vunpack.c.l.b16 %v1406
        %v2115 = vunpack.c.h.b16 %v1406
        %v2116 = vunpack.c.l.b16 %v1407
        %v2117 = vunpack.c.h.b16 %v1407
        %v2118 = vunpack.c.l.b16 %v1408
        %v2119 = vunpack.c.h.b16 %v1408
        %v2120 = vunpack.c.l.b16 %v1409
        %v2121 = vunpack.c.h.b16 %v1409
        %v2122 = vunpack.c.l.b16 %v1410
        %v2123 = vunpack.c.h.b16 %v1410
        %v2124 = vunpack.c.l.b16 %v1411
        %v2125 = vunpack.c.h.b16 %v1411
        %v2126 = vunpack.c.l.b16 %v1412
        %v2127 = vunpack.c.h.b16 %v1412
        %v2128 = vunpack.c.l.b16 %v1413
        %v2129 = vunpack.c.h.b16 %v1413
        %v2130 = vunpack.c.l.b16 %v1414
        %v2131 = vunpack.c.h.b16 %v1414
        %v2132 = vunpack.c.l.b16 %v1415
        %v2133 = vunpack.c.h.b16 %v1415
        %v2134 = vunpack.c.l.b16 %v1416
        %v2135 = vunpack.c.h.b16 %v1416
        %v2136 = vunpack.c.l.b16 %v1417
        %v2137 = vunpack.c.h.b16 %v1417
        %v2138 = vunpack.c.l.b16 %v1418
        %v2139 = vunpack.c.h.b16 %v1418
        %v2140 = vunpack.c.l.b16 %v1419
        %v2141 = vunpack.c.h.b16 %v1419
        %v2142 = vunpack.c.l.b16 %v1420
        %v2143 = vunpack.c.h.b16 %v1420
        %v2144 = vunpack.c.l.b16 %v1421
        %v2145 = vunpack.c.h.b16 %v1421
        %v2146 = vunpack.c.l.b16 %v1422
        %v2147 = vunpack.c.h.b16 %v1422
        %v2148 = vunpack.c.l.b16 %v1423
        %v2149 = vunpack.c.h.b16 %v1423
        %v2150 = vunpack.c.l.b16 %v1424
        %v2151 = vunpack.c.h.b16 %v1424
        %v2152 = vunpack.c.l.b16 %v1425
        %v2153 = vunpack.c.h.b16 %v1425
        %v2154 = vunpack.c.l.b16 %v1426
        %v2155 = vunpack.c.h.b16 %v1426
        %v2156 = vunpack.c.l.b16 %v1427
        %v2157 = vunpack.c.h.b16 %v1427
        %v2158 = vunpack.c.l.b16 %v1428
        %v2159 = vunpack.c.h.b16 %v1428
        %v2160 = vunpack.c.l.b16 %v1429
        %v2161 = vunpack.c.h.b16 %v1429
        %v2162 = vunpack.c.l.b16 %v1430
        %v2163 = vunpack.c.h.b16 %v1430
        %v2164 = vunpack.c.l.b16 %v1431
        %v2165 = vunpack.c.h.b16 %v1431
        %v2166 = vunpack.c.l.b16 %v1432
        %v2167 = vunpack.c.h.b16 %v1432
        %v2168 = vunpack.c.l.b16 %v1433
        %v2169 = vunpack.c.h.b16 %v1433
        %v2170 = vunpack.c.l.b16 %v1434
        %v2171 = vunpack.c.h.b16 %v1434
        %v2172 = vunpack.c.l.b16 %v1435
        %v2173 = vunpack.c.h.b16 %v1435
        %v2174 = vunpack.c.l.b16 %v1436
        %v2175 = vunpack.c.h.b16 %v1436
        %v2176 = vunpack.c.l.b16 %v1437
        %v2177 = vunpack.c.h.b16 %v1437
        %v2178 = vunpack.c.l.b16 %v1438
        %v2179 = vunpack.c.h.b16 %v1438
        %v2180 = vunpack.c.l.b16 %v1439
        %v2181 = vunpack.c.h.b16 %v1439
        %v2182 = vunpack.c.l.b16 %v1440
        %v2183 = vunpack.c.h.b16 %v1440
        %v2184 = vunpack.c.l.b16 %v1441
        %v2185 = vunpack.c.h.b16 %v1441
        %v2186 = vunpack.c.l.b16 %v1442
        %v2187 = vunpack.c.h.b16 %v1442
        %v2188 = vunpack.c.l.b16 %v1443
        %v2189 = vunpack.c.h.b16 %v1443
        %v2190 = vunpack.c.l.b16 %v1444
        %v2191 = vunpack.c.h.b16 %v1444
        %v2192 = vunpack.c.l.b16 %v1445
        %v2193 = vunpack.c.h.b16 %v1445
        %v2194 = vunpack.c.l.b16 %v1446
        %v2195 = vunpack.c.h.b16 %v1446
        %v2196 = vunpack.c.l.b16 %v1447
        %v2197 = vunpack.c.h.b16 %v1447
        %v2198 = vunpack.c.l.b16 %v1448
        %v2199 = vunpack.c.h.b16 %v1448
        %v2200 = vunpack.c.l.b16 %v1449
        %v2201 = vunpack.c.h.b16 %v1449
        %v2202 = vunpack.c.l.b16 %v1450
        %v2203 = vunpack.c.h.b16 %v1450
        %v2204 = vunpack.c.l.b16 %v1451
        %v2205 = vunpack.c.h.b16 %v1451
        %v2206 = vunpack.c.l.b16 %v1452
        %v2207 = vunpack.c.h.b16 %v1452
        %v2208 = vunpack.c.l.b16 %v1453
        %v2209 = vunpack.c.h.b16 %v1453
        %v2210 = vunpack.c.l.b16 %v1454
        %v2211 = vunpack.c.h.b16 %v1454
        %v2212 = vunpack.c.l.b16 %v1455
        %v2213 = vunpack.c.h.b16 %v1455
        %v2214 = vunpack.c.l.b16 %v1456
        %v2215 = vunpack.c.h.b16 %v1456
        %v2216 = vunpack.c.l.b16 %v1457
        %v2217 = vunpack.c.h.b16 %v1457
        %v2218 = vunpack.c.l.b16 %v1458
        %v2219 = vunpack.c.h.b16 %v1458
        %v2220 = vunpack.c.l.b16 %v1459
        %v2221 = vunpack.c.h.b16 %v1459
        %v2222 = vunpack.c.l.b16 %v1460
        %v2223 = vunpack.c.h.b16 %v1460
        %v2224 = vunpack.c.l.b16 %v1461
        %v2225 = vunpack.c.h.b16 %v1461
        %v2226 = vunpack.c.l.b16 %v1462
        %v2227 = vunpack.c.h.b16 %v1462
        %v2228 = vunpack.c.l.b16 %v1463
        %v2229 = vunpack.c.h.b16 %v1463
        %v2230 = vunpack.c.l.b16 %v1464
        %v2231 = vunpack.c.h.b16 %v1464
        %v2232 = vunpack.c.l.b16 %v1465
        %v2233 = vunpack.c.h.b16 %v1465
        %v2234 = vunpack.c.l.b16 %v1466
        %v2235 = vunpack.c.h.b16 %v1466
        %v2236 = vunpack.c.l.b16 %v1467
        %v2237 = vunpack.c.h.b16 %v1467
        %v2238 = vunpack.c.l.b16 %v1468
        %v2239 = vunpack.c.h.b16 %v1468
        %v2240 = vunpack.c.l.b16 %v1469
        %v2241 = vunpack.c.h.b16 %v1469
        %v2242 = vunpack.c.l.b16 %v1470
        %v2243 = vunpack.c.h.b16 %v1470
        %v2244 = vunpack.c.l.b16 %v1471
        %v2245 = vunpack.c.h.b16 %v1471
        %v2246 = vunpack.c.l.b16 %v1472
        %v2247 = vunpack.c.h.b16 %v1472
        %v2248 = vunpack.c.l.b16 %v1473
        %v2249 = vunpack.c.h.b16 %v1473
        %v2250 = vunpack.c.l.b16 %v1474
        %v2251 = vunpack.c.h.b16 %v1474
        %v2252 = vunpack.c.l.b16 %v1475
        %v2253 = vunpack.c.h.b16 %v1475
        %v2254 = vunpack.c.l.b16 %v1476
        %v2255 = vunpack.c.h.b16 %v1476
        %v2256 = vunpack.c.l.b16 %v1477
        %v2257 = vunpack.c.h.b16 %v1477
        %v2258 = vunpack.c.l.b16 %v1478
        %v2259 = vunpack.c.h.b16 %v1478
        %v2260 = vunpack.c.l.b16 %v1479
        %v2261 = vunpack.c.h.b16 %v1479
        %v2262 = vunpack.c.l.b16 %v1480
        %v2263 = vunpack.c.h.b16 %v1480
        %v2264 = vunpack.c.l.b16 %v1481
        %v2265 = vunpack.c.h.b16 %v1481
        %v2266 = vunpack.c.l.b16 %v1482
        %v2267 = vunpack.c.h.b16 %v1482
        %v2268 = vunpack.c.l.b16 %v1483
        %v2269 = vunpack.c.h.b16 %v1483
        %v2270 = vunpack.c.l.b16 %v1484
        %v2271 = vunpack.c.h.b16 %v1484
        %v2272 = vunpack.c.l.b16 %v1485
        %v2273 = vunpack.c.h.b16 %v1485
        %v2274 = vunpack.c.l.b16 %v1486
        %v2275 = vunpack.c.h.b16 %v1486
        %v2276 = vunpack.c.l.b16 %v1487
        %v2277 = vunpack.c.h.b16 %v1487
        %v2278 = vunpack.c.l.b16 %v1488
        %v2279 = vunpack.c.h.b16 %v1488
        %v2280 = vunpack.c.l.b16 %v1489
        %v2281 = vunpack.c.h.b16 %v1489
        %v2282 = vunpack.c.l.b16 %v1490
        %v2283 = vunpack.c.h.b16 %v1490
        %v2284 = vunpack.c.l.b16 %v1491
        %v2285 = vunpack.c.h.b16 %v1491
        %v2286 = vunpack.c.l.b16 %v1492
        %v2287 = vunpack.c.h.b16 %v1492
        %v2288 = vunpack.c.l.b16 %v1493
        %v2289 = vunpack.c.h.b16 %v1493
        %v2290 = vunpack.c.l.b16 %v1494
        %v2291 = vunpack.c.h.b16 %v1494
        %v2292 = vunpack.c.l.b16 %v1495
        %v2293 = vunpack.c.h.b16 %v1495
        %v2294 = vunpack.c.l.b16 %v1496
        %v2295 = vunpack.c.h.b16 %v1496
        %v2296 = vunpack.c.l.b16 %v1497
        %v2297 = vunpack.c.h.b16 %v1497
        %v2298 = vunpack.c.l.b16 %v1498
        %v2299 = vunpack.c.h.b16 %v1498
        %v2300 = vunpack.c.l.b16 %v1499
        %v2301 = vunpack.c.h.b16 %v1499
        %v2302 = vunpack.c.l.b16 %v1500
        %v2303 = vunpack.c.h.b16 %v1500
        %v2304 = vunpack.c.l.b16 %v1501
        %v2305 = vunpack.c.h.b16 %v1501
        %v2306 = vunpack.c.l.b16 %v1502
        %v2307 = vunpack.c.h.b16 %v1502
        %v2308 = vunpack.c.l.b16 %v1503
        %v2309 = vunpack.c.h.b16 %v1503
        %v2310 = vunpack.c.l.b16 %v1504
        %v2311 = vunpack.c.h.b16 %v1504
        %v2312 = vunpack.c.l.b16 %v1505
        %v2313 = vunpack.c.h.b16 %v1505
        %v2314 = vunpack.c.l.b16 %v1506
        %v2315 = vunpack.c.h.b16 %v1506
        %v2316 = vunpack.c.l.b16 %v1507
        %v2317 = vunpack.c.h.b16 %v1507
        %v2318 = vunpack.c.l.b16 %v1508
        %v2319 = vunpack.c.h.b16 %v1508
        %v2320 = vunpack.c.l.b16 %v1509
        %v2321 = vunpack.c.h.b16 %v1509
        %v2322 = vunpack.c.l.b16 %v1510
        %v2323 = vunpack.c.h.b16 %v1510
        %v2324 = vunpack.c.l.b16 %v1511
        %v2325 = vunpack.c.h.b16 %v1511
        %v2326 = vunpack.c.l.b16 %v1512
        %v2327 = vunpack.c.h.b16 %v1512
        %v2328 = vunpack.c.l.b16 %v1513
        %v2329 = vunpack.c.h.b16 %v1513
        %v2330 = vunpack.c.l.b16 %v1514
        %v2331 = vunpack.c.h.b16 %v1514
        %v2332 = vunpack.c.l.b16 %v1515
        %v2333 = vunpack.c.h.b16 %v1515
        %v2334 = vunpack.c.l.b16 %v1516
        %v2335 = vunpack.c.h.b16 %v1516
        %v2336 = vunpack.c.l.b16 %v1517
        %v2337 = vunpack.c.h.b16 %v1517
        %v2338 = vunpack.c.l.b16 %v1518
        %v2339 = vunpack.c.h.b16 %v1518
        %v2340 = vunpack.c.l.b16 %v1519
        %v2341 = vunpack.c.h.b16 %v1519
        %v2342 = vunpack.c.l.b16 %v1520
        %v2343 = vunpack.c.h.b16 %v1520
        %v2344 = vunpack.c.l.b16 %v1521
        %v2345 = vunpack.c.h.b16 %v1521
        %v2346 = vunpack.c.l.b16 %v1522
        %v2347 = vunpack.c.h.b16 %v1522
        %v2348 = vunpack.c.l.b16 %v1523
        %v2349 = vunpack.c.h.b16 %v1523
        %v2350 = vunpack.c.l.b16 %v1524
        %v2351 = vunpack.c.h.b16 %v1524
        %v2352 = vunpack.c.l.b16 %v1525
        %v2353 = vunpack.c.h.b16 %v1525
        %v2354 = vunpack.c.l.b16 %v1526
        %v2355 = vunpack.c.h.b16 %v1526
        %v2356 = vunpack.c.l.b16 %v1527
        %v2357 = vunpack.c.h.b16 %v1527
        %v2358 = vunpack.c.l.b16 %v1528
        %v2359 = vunpack.c.h.b16 %v1528
        %v2360 = vunpack.c.l.b16 %v1529
        %v2361 = vunpack.c.h.b16 %v1529
        %v2362 = vunpack.c.l.b16 %v1530
        %v2363 = vunpack.c.h.b16 %v1530
        %v2364 = vunpack.c.l.b16 %v1531
        %v2365 = vunpack.c.h.b16 %v1531
        %v2366 = vunpack.c.l.b16 %v1532
        %v2367 = vunpack.c.h.b16 %v1532
        %v2368 = vunpack.c.l.b16 %v1533
        %v2369 = vunpack.c.h.b16 %v1533
        %v2370 = vunpack.c.l.b16 %v1534
        %v2371 = vunpack.c.h.b16 %v1534
        %v2372 = vunpack.c.l.b16 %v1535
        %v2373 = vunpack.c.h.b16 %v1535
        %v2374 = vunpack.c.l.b16 %v1536
        %v2375 = vunpack.c.h.b16 %v1536
        %v2376 = vunpack.c.l.b16 %v1537
        %v2377 = vunpack.c.h.b16 %v1537
        %v2378 = vunpack.c.l.b16 %v1538
        %v2379 = vunpack.c.h.b16 %v1538
        %v2380 = vunpack.c.l.b16 %v1539
        %v2381 = vunpack.c.h.b16 %v1539
        %v2382 = vunpack.c.l.b16 %v1540
        %v2383 = vunpack.c.h.b16 %v1540
        %v2384 = vunpack.c.l.b16 %v1541
        %v2385 = vunpack.c.h.b16 %v1541
        %v2386 = vunpack.c.l.b16 %v1542
        %v2387 = vunpack.c.h.b16 %v1542
        %v2388 = vunpack.c.l.b16 %v1543
        %v2389 = vunpack.c.h.b16 %v1543
        %v2390 = vunpack.c.l.b16 %v1544
        %v2391 = vunpack.c.h.b16 %v1544
        %v2392 = vunpack.c.l.b16 %v1545
        %v2393 = vunpack.c.h.b16 %v1545
        %v2394 = vunpack.c.l.b16 %v1546
        %v2395 = vunpack.c.h.b16 %v1546
        %v2396 = vunpack.c.l.b16 %v1547
        %v2397 = vunpack.c.h.b16 %v1547
        %v2398 = vunpack.c.l.b16 %v1548
        %v2399 = vunpack.c.h.b16 %v1548
        %v2400 = vunpack.c.l.b16 %v1549
        %v2401 = vunpack.c.h.b16 %v1549
        %v2402 = vunpack.c.l.b16 %v1550
        %v2403 = vunpack.c.h.b16 %v1550
        %v2404 = vunpack.c.l.b16 %v1551
        %v2405 = vunpack.c.h.b16 %v1551
        %v2406 = vunpack.c.l.b16 %v1552
        %v2407 = vunpack.c.h.b16 %v1552
        %v2408 = vunpack.c.l.b16 %v1553
        %v2409 = vunpack.c.h.b16 %v1553
        %v2410 = vpack.c.b16 %v1900, %v1898
        %v2411 = vpack.c.b16 %v1901, %v1899
        %v2412 = vpack.c.b16 %v1904, %v1902
        %v2413 = vpack.c.b16 %v1905, %v1903
        %v2414 = vpack.c.b16 %v1908, %v1906
        %v2415 = vpack.c.b16 %v1909, %v1907
        %v2416 = vpack.c.b16 %v1912, %v1910
        %v2417 = vpack.c.b16 %v1913, %v1911
        %v2418 = vpack.c.b16 %v1916, %v1914
        %v2419 = vpack.c.b16 %v1917, %v1915
        %v2420 = vpack.c.b16 %v1920, %v1918
        %v2421 = vpack.c.b16 %v1921, %v1919
        %v2422 = vpack.c.b16 %v1924, %v1922
        %v2423 = vpack.c.b16 %v1925, %v1923
        %v2424 = vpack.c.b16 %v1928, %v1926
        %v2425 = vpack.c.b16 %v1929, %v1927
        %v2426 = vpack.c.b16 %v1932, %v1930
        %v2427 = vpack.c.b16 %v1933, %v1931
        %v2428 = vpack.c.b16 %v1936, %v1934
        %v2429 = vpack.c.b16 %v1937, %v1935
        %v2430 = vpack.c.b16 %v1940, %v1938
        %v2431 = vpack.c.b16 %v1941, %v1939
        %v2432 = vpack.c.b16 %v1944, %v1942
        %v2433 = vpack.c.b16 %v1945, %v1943
        %v2434 = vpack.c.b16 %v1948, %v1946
        %v2435 = vpack.c.b16 %v1949, %v1947
        %v2436 = vpack.c.b16 %v1952, %v1950
        %v2437 = vpack.c.b16 %v1953, %v1951
        %v2438 = vpack.c.b16 %v1956, %v1954
        %v2439 = vpack.c.b16 %v1957, %v1955
        %v2440 = vpack.c.b16 %v1960, %v1958
        %v2441 = vpack.c.b16 %v1961, %v1959
        %v2442 = vpack.c.b16 %v1964, %v1962
        %v2443 = vpack.c.b16 %v1965, %v1963
        %v2444 = vpack.c.b16 %v1968, %v1966
        %v2445 = vpack.c.b16 %v1969, %v1967
        %v2446 = vpack.c.b16 %v1972, %v1970
        %v2447 = vpack.c.b16 %v1973, %v1971
        %v2448 = vpack.c.b16 %v1976, %v1974
        %v2449 = vpack.c.b16 %v1977, %v1975
        %v2450 = vpack.c.b16 %v1980, %v1978
        %v2451 = vpack.c.b16 %v1981, %v1979
        %v2452 = vpack.c.b16 %v1984, %v1982
        %v2453 = vpack.c.b16 %v1985, %v1983
        %v2454 = vpack.c.b16 %v1988, %v1986
        %v2455 = vpack.c.b16 %v1989, %v1987
        %v2456 = vpack.c.b16 %v1992, %v1990
        %v2457 = vpack.c.b16 %v1993, %v1991
        %v2458 = vpack.c.b16 %v1996, %v1994
        %v2459 = vpack.c.b16 %v1997, %v1995
        %v2460 = vpack.c.b16 %v2000, %v1998
        %v2461 = vpack.c.b16 %v2001, %v1999
        %v2462 = vpack.c.b16 %v2004, %v2002
        %v2463 = vpack.c.b16 %v2005, %v2003
        %v2464 = vpack.c.b16 %v2008, %v2006
        %v2465 = vpack.c.b16 %v2009, %v2007
        %v2466 = vpack.c.b16 %v2012, %v2010
        %v2467 = vpack.c.b16 %v2013, %v2011
        %v2468 = vpack.c.b16 %v2016, %v2014
        %v2469 = vpack.c.b16 %v2017, %v2015
        %v2470 = vpack.c.b16 %v2020, %v2018
        %v2471 = vpack.c.b16 %v2021, %v2019
        %v2472 = vpack.c.b16 %v2024, %v2022
        %v2473 = vpack.c.b16 %v2025, %v2023
        %v2474 = vpack.c.b16 %v2028, %v2026
        %v2475 = vpack.c.b16 %v2029, %v2027
        %v2476 = vpack.c.b16 %v2032, %v2030
        %v2477 = vpack.c.b16 %v2033, %v2031
        %v2478 = vpack.c.b16 %v2036, %v2034
        %v2479 = vpack.c.b16 %v2037, %v2035
        %v2480 = vpack.c.b16 %v2040, %v2038
        %v2481 = vpack.c.b16 %v2041, %v2039
        %v2482 = vpack.c.b16 %v2044, %v2042
        %v2483 = vpack.c.b16 %v2045, %v2043
        %v2484 = vpack.c.b16 %v2048, %v2046
        %v2485 = vpack.c.b16 %v2049, %v2047
        %v2486 = vpack.c.b16 %v2052, %v2050
        %v2487 = vpack.c.b16 %v2053, %v2051
        %v2488 = vpack.c.b16 %v2056, %v2054
        %v2489 = vpack.c.b16 %v2057, %v2055
        %v2490 = vpack.c.b16 %v2060, %v2058
        %v2491 = vpack.c.b16 %v2061, %v2059
        %v2492 = vpack.c.b16 %v2064, %v2062
        %v2493 = vpack.c.b16 %v2065, %v2063
        %v2494 = vpack.c.b16 %v2068, %v2066
        %v2495 = vpack.c.b16 %v2069, %v2067
        %v2496 = vpack.c.b16 %v2072, %v2070
        %v2497 = vpack.c.b16 %v2073, %v2071
        %v2498 = vpack.c.b16 %v2076, %v2074
        %v2499 = vpack.c.b16 %v2077, %v2075
        %v2500 = vpack.c.b16 %v2080, %v2078
        %v2501 = vpack.c.b16 %v2081, %v2079
        %v2502 = vpack.c.b16 %v2084, %v2082
        %v2503 = vpack.c.b16 %v2085, %v2083
        %v2504 = vpack.c.b16 %v2088, %v2086
        %v2505 = vpack.c.b16 %v2089, %v2087
        %v2506 = vpack.c.b16 %v2092, %v2090
        %v2507 = vpack.c.b16 %v2093, %v2091
        %v2508 = vpack.c.b16 %v2096, %v2094
        %v2509 = vpack.c.b16 %v2097, %v2095
        %v2510 = vpack.c.b16 %v2100, %v2098
        %v2511 = vpack.c.b16 %v2101, %v2099
        %v2512 = vpack.c.b16 %v2104, %v2102
        %v2513 = vpack.c.b16 %v2105, %v2103
        %v2514 = vpack.c.b16 %v2108, %v2106
        %v2515 = vpack.c.b16 %v2109, %v2107
        %v2516 = vpack.c.b16 %v2112, %v2110
        %v2517 = vpack.c.b16 %v2113, %v2111
        %v2518 = vpack.c.b16 %v2116, %v2114
        %v2519 = vpack.c.b16 %v2117, %v2115
        %v2520 = vpack.c.b16 %v2120, %v2118
        %v2521 = vpack.c.b16 %v2121, %v2119
        %v2522 = vpack.c.b16 %v2124, %v2122
        %v2523 = vpack.c.b16 %v2125, %v2123
        %v2524 = vpack.c.b16 %v2128, %v2126
        %v2525 = vpack.c.b16 %v2129, %v2127
        %v2526 = vpack.c.b16 %v2132, %v2130
        %v2527 = vpack.c.b16 %v2133, %v2131
        %v2528 = vpack.c.b16 %v2136, %v2134
        %v2529 = vpack.c.b16 %v2137, %v2135
        %v2530 = vpack.c.b16 %v2140, %v2138
        %v2531 = vpack.c.b16 %v2141, %v2139
        %v2532 = vpack.c.b16 %v2144, %v2142
        %v2533 = vpack.c.b16 %v2145, %v2143
        %v2534 = vpack.c.b16 %v2148, %v2146
        %v2535 = vpack.c.b16 %v2149, %v2147
        %v2536 = vpack.c.b16 %v2152, %v2150
        %v2537 = vpack.c.b16 %v2153, %v2151
        %v2538 = vpack.c.b16 %v2156, %v2154
        %v2539 = vpack.c.b16 %v2157, %v2155
        %v2540 = vpack.c.b16 %v2160, %v2158
        %v2541 = vpack.c.b16 %v2161, %v2159
        %v2542 = vpack.c.b16 %v2164, %v2162
        %v2543 = vpack.c.b16 %v2165, %v2163
        %v2544 = vpack.c.b16 %v2168, %v2166
        %v2545 = vpack.c.b16 %v2169, %v2167
        %v2546 = vpack.c.b16 %v2172, %v2170
        %v2547 = vpack.c.b16 %v2173, %v2171
        %v2548 = vpack.c.b16 %v2176, %v2174
        %v2549 = vpack.c.b16 %v2177, %v2175
        %v2550 = vpack.c.b16 %v2180, %v2178
        %v2551 = vpack.c.b16 %v2181, %v2179
        %v2552 = vpack.c.b16 %v2184, %v2182
        %v2553 = vpack.c.b16 %v2185, %v2183
        %v2554 = vpack.c.b16 %v2188, %v2186
        %v2555 = vpack.c.b16 %v2189, %v2187
        %v2556 = vpack.c.b16 %v2192, %v2190
        %v2557 = vpack.c.b16 %v2193, %v2191
        %v2558 = vpack.c.b16 %v2196, %v2194
        %v2559 = vpack.c.b16 %v2197, %v2195
        %v2560 = vpack.c.b16 %v2200, %v2198
        %v2561 = vpack.c.b16 %v2201, %v2199
        %v2562 = vpack.c.b16 %v2204, %v2202
        %v2563 = vpack.c.b16 %v2205, %v2203
        %v2564 = vpack.c.b16 %v2208, %v2206
        %v2565 = vpack.c.b16 %v2209, %v2207
        %v2566 = vpack.c.b16 %v2212, %v2210
        %v2567 = vpack.c.b16 %v2213, %v2211
        %v2568 = vpack.c.b16 %v2216, %v2214
        %v2569 = vpack.c.b16 %v2217, %v2215
        %v2570 = vpack.c.b16 %v2220, %v2218
        %v2571 = vpack.c.b16 %v2221, %v2219
        %v2572 = vpack.c.b16 %v2224, %v2222
        %v2573 = vpack.c.b16 %v2225, %v2223
        %v2574 = vpack.c.b16 %v2228, %v2226
        %v2575 = vpack.c.b16 %v2229, %v2227
        %v2576 = vpack.c.b16 %v2232, %v2230
        %v2577 = vpack.c.b16 %v2233, %v2231
        %v2578 = vpack.c.b16 %v2236, %v2234
        %v2579 = vpack.c.b16 %v2237, %v2235
        %v2580 = vpack.c.b16 %v2240, %v2238
        %v2581 = vpack.c.b16 %v2241, %v2239
        %v2582 = vpack.c.b16 %v2244, %v2242
        %v2583 = vpack.c.b16 %v2245, %v2243
        %v2584 = vpack.c.b16 %v2248, %v2246
        %v2585 = vpack.c.b16 %v2249, %v2247
        %v2586 = vpack.c.b16 %v2252, %v2250
        %v2587 = vpack.c.b16 %v2253, %v2251
        %v2588 = vpack.c.b16 %v2256, %v2254
        %v2589 = vpack.c.b16 %v2257, %v2255
        %v2590 = vpack.c.b16 %v2260, %v2258
        %v2591 = vpack.c.b16 %v2261, %v2259
        %v2592 = vpack.c.b16 %v2264, %v2262
        %v2593 = vpack.c.b16 %v2265, %v2263
        %v2594 = vpack.c.b16 %v2268, %v2266
        %v2595 = vpack.c.b16 %v2269, %v2267
        %v2596 = vpack.c.b16 %v2272, %v2270
        %v2597 = vpack.c.b16 %v2273, %v2271
        %v2598 = vpack.c.b16 %v2276, %v2274
        %v2599 = vpack.c.b16 %v2277, %v2275
        %v2600 = vpack.c.b16 %v2280, %v2278
        %v2601 = vpack.c.b16 %v2281, %v2279
        %v2602 = vpack.c.b16 %v2284, %v2282
        %v2603 = vpack.c.b16 %v2285, %v2283
        %v2604 = vpack.c.b16 %v2288, %v2286
        %v2605 = vpack.c.b16 %v2289, %v2287
        %v2606 = vpack.c.b16 %v2292, %v2290
        %v2607 = vpack.c.b16 %v2293, %v2291
        %v2608 = vpack.c.b16 %v2296, %v2294
        %v2609 = vpack.c.b16 %v2297, %v2295
        %v2610 = vpack.c.b16 %v2300, %v2298
        %v2611 = vpack.c.b16 %v2301, %v2299
        %v2612 = vpack.c.b16 %v2304, %v2302
        %v2613 = vpack.c.b16 %v2305, %v2303
        %v2614 = vpack.c.b16 %v2308, %v2306
        %v2615 = vpack.c.b16 %v2309, %v2307
        %v2616 = vpack.c.b16 %v2312, %v2310
        %v2617 = vpack.c.b16 %v2313, %v2311
        %v2618 = vpack.c.b16 %v2316, %v2314
        %v2619 = vpack.c.b16 %v2317, %v2315
        %v2620 = vpack.c.b16 %v2320, %v2318
        %v2621 = vpack.c.b16 %v2321, %v2319
        %v2622 = vpack.c.b16 %v2324, %v2322
        %v2623 = vpack.c.b16 %v2325, %v2323
        %v2624 = vpack.c.b16 %v2328, %v2326
        %v2625 = vpack.c.b16 %v2329, %v2327
        %v2626 = vpack.c.b16 %v2332, %v2330
        %v2627 = vpack.c.b16 %v2333, %v2331
        %v2628 = vpack.c.b16 %v2336, %v2334
        %v2629 = vpack.c.b16 %v2337, %v2335
        %v2630 = vpack.c.b16 %v2340, %v2338
        %v2631 = vpack.c.b16 %v2341, %v2339
        %v2632 = vpack.c.b16 %v2344, %v2342
        %v2633 = vpack.c.b16 %v2345, %v2343
        %v2634 = vpack.c.b16 %v2348, %v2346
        %v2635 = vpack.c.b16 %v2349, %v2347
        %v2636 = vpack.c.b16 %v2352, %v2350
        %v2637 = vpack.c.b16 %v2353, %v2351
        %v2638 = vpack.c.b16 %v2356, %v2354
        %v2639 = vpack.c.b16 %v2357, %v2355
        %v2640 = vpack.c.b16 %v2360, %v2358
        %v2641 = vpack.c.b16 %v2361, %v2359
        %v2642 = vpack.c.b16 %v2364, %v2362
        %v2643 = vpack.c.b16 %v2365, %v2363
        %v2644 = vpack.c.b16 %v2368, %v2366
        %v2645 = vpack.c.b16 %v2369, %v2367
        %v2646 = vpack.c.b16 %v2372, %v2370
        %v2647 = vpack.c.b16 %v2373, %v2371
        %v2648 = vpack.c.b16 %v2376, %v2374
        %v2649 = vpack.c.b16 %v2377, %v2375
        %v2650 = vpack.c.b16 %v2380, %v2378
        %v2651 = vpack.c.b16 %v2381, %v2379
        %v2652 = vpack.c.b16 %v2384, %v2382
        %v2653 = vpack.c.b16 %v2385, %v2383
        %v2654 = vpack.c.b16 %v2388, %v2386
        %v2655 = vpack.c.b16 %v2389, %v2387
        %v2656 = vpack.c.b16 %v2392, %v2390
        %v2657 = vpack.c.b16 %v2393, %v2391
        %v2658 = vpack.c.b16 %v2396, %v2394
        %v2659 = vpack.c.b16 %v2397, %v2395
        %v2660 = vpack.c.b16 %v2400, %v2398
        %v2661 = vpack.c.b16 %v2401, %v2399
        %v2662 = vpack.c.b16 %v2404, %v2402
        %v2663 = vpack.c.b16 %v2405, %v2403
        %v2664 = vpack.c.b16 %v2408, %v2406
        %v2665 = vpack.c.b16 %v2409, %v2407
        %2922 = vmatprep.subr.bf16.mxu0 %v2425
        %2923 = vmatpush1.bf16.msra.mxu0 %v2424
        %2924 = vmatprep.subr.bf16.mxu0 %v2423
        %2925 = vmatpush1.bf16.msra.mxu0 %v2422
        %2926 = vmatprep.subr.bf16.mxu0 %v2421
        %2927 = vmatpush1.bf16.msra.mxu0 %v2420
        %2928 = vmatprep.subr.bf16.mxu0 %v2419
        %2929 = vmatpush1.bf16.msra.mxu0 %v2418
        %2930 = vmatprep.subr.bf16.mxu0 %v2417
        %2931 = vmatpush1.bf16.msra.mxu0 %v2416
        %2932 = vmatprep.subr.bf16.mxu0 %v2415
        %2933 = vmatpush1.bf16.msra.mxu0 %v2414
        %2934 = vmatprep.subr.bf16.mxu0 %v2413
        %2935 = vmatpush1.bf16.msra.mxu0 %v2412
        %2936 = vmatprep.subr.bf16.mxu0 %v2411
        %2937 = vmatpush1.bf16.msra.mxu0 %v2410
        %2938 = vmatprep.subr.bf16.mxu0 %v2441
        %2939 = vmatpush2.bf16.msra.mxu0 %v2440
        %2940 = vmatprep.subr.bf16.mxu0 %v2439
        %2941 = vmatpush2.bf16.msra.mxu0 %v2438
        %2942 = vmatprep.subr.bf16.mxu0 %v2437
        %2943 = vmatpush2.bf16.msra.mxu0 %v2436
        %2944 = vmatprep.subr.bf16.mxu0 %v2435
        %2945 = vmatpush2.bf16.msra.mxu0 %v2434
        %2946 = vmatprep.subr.bf16.mxu0 %v2433
        %2947 = vmatpush2.bf16.msra.mxu0 %v2432
        %2948 = vmatprep.subr.bf16.mxu0 %v2431
        %2949 = vmatpush2.bf16.msra.mxu0 %v2430
        %2950 = vmatprep.subr.bf16.mxu0 %v2429
        %2951 = vmatpush2.bf16.msra.mxu0 %v2428
        %2952 = vmatprep.subr.bf16.mxu0 %v2427
        %2953 = vmatpush2.bf16.msra.mxu0 %v2426
        %2954 = vmatprep.mubr.bf16.mxu0 %v1573
        %2955 = vmatmul.mubr.bf16.gmra.mxu0 %v1565
        %v2956 = vpop.f32.mrf.mxu0
        %v2957 = vadd.f32 0.0, %v2956
        %v2958 = vpop.f32.mrf.mxu0
        %v2959 = vadd.f32 0.0, %v2958
        %v2960 = vpop.f32.mrf.mxu0
        %v2961 = vpop.f32.mrf.mxu0
        %2962 = vdwg.mxu0
        %2963 = vmatprep.subr.bf16.mxu0 %v2457
        %2964 = vmatpush1.bf16.msra.mxu0 %v2456
        %2965 = vmatprep.subr.bf16.mxu0 %v2455
        %2966 = vmatpush1.bf16.msra.mxu0 %v2454
        %2967 = vmatprep.subr.bf16.mxu0 %v2453
        %2968 = vmatpush1.bf16.msra.mxu0 %v2452
        %2969 = vmatprep.subr.bf16.mxu0 %v2451
        %2970 = vmatpush1.bf16.msra.mxu0 %v2450
        %2971 = vmatprep.subr.bf16.mxu0 %v2449
        %2972 = vmatpush1.bf16.msra.mxu0 %v2448
        %2973 = vmatprep.subr.bf16.mxu0 %v2447
        %2974 = vmatpush1.bf16.msra.mxu0 %v2446
        %2975 = vmatprep.subr.bf16.mxu0 %v2445
        %2976 = vmatpush1.bf16.msra.mxu0 %v2444
        %2977 = vmatprep.subr.bf16.mxu0 %v2443
        %2978 = vmatpush1.bf16.msra.mxu0 %v2442
        %2979 = vmatprep.subr.bf16.mxu0 %v2473
        %2980 = vmatpush2.bf16.msra.mxu0 %v2472
        %2981 = vmatprep.subr.bf16.mxu0 %v2471
        %2982 = vmatpush2.bf16.msra.mxu0 %v2470
        %2983 = vmatprep.subr.bf16.mxu0 %v2469
        %2984 = vmatpush2.bf16.msra.mxu0 %v2468
        %2985 = vmatprep.subr.bf16.mxu0 %v2467
        %2986 = vmatpush2.bf16.msra.mxu0 %v2466
        %2987 = vmatprep.subr.bf16.mxu0 %v2465
        %2988 = vmatpush2.bf16.msra.mxu0 %v2464
        %2989 = vmatprep.subr.bf16.mxu0 %v2463
        %2990 = vmatpush2.bf16.msra.mxu0 %v2462
        %2991 = vmatprep.subr.bf16.mxu0 %v2461
        %2992 = vmatpush2.bf16.msra.mxu0 %v2460
        %2993 = vmatprep.subr.bf16.mxu0 %v2459
        %2994 = vmatpush2.bf16.msra.mxu0 %v2458
        %2995 = vmatprep.mubr.bf16.mxu0 %v1574
        %2996 = vmatmul.mubr.bf16.gmra.mxu0 %v1572
        %v2997 = vpop.f32.mrf.mxu0
        %v2998 = vadd.f32 %v2957, %v2997
        %v2999 = vpop.f32.mrf.mxu0
        %v3000 = vadd.f32 %v2959, %v2999
        %v3001 = vpop.f32.mrf.mxu0
        %v3002 = vpop.f32.mrf.mxu0
        %3003 = vdwg.mxu0
        %3004 = vmatprep.subr.bf16.mxu0 %v2489
        %3005 = vmatpush1.bf16.msra.mxu0 %v2488
        %3006 = vmatprep.subr.bf16.mxu0 %v2487
        %3007 = vmatpush1.bf16.msra.mxu0 %v2486
        %3008 = vmatprep.subr.bf16.mxu0 %v2485
        %3009 = vmatpush1.bf16.msra.mxu0 %v2484
        %3010 = vmatprep.subr.bf16.mxu0 %v2483
        %3011 = vmatpush1.bf16.msra.mxu0 %v2482
        %3012 = vmatprep.subr.bf16.mxu0 %v2481
        %3013 = vmatpush1.bf16.msra.mxu0 %v2480
        %3014 = vmatprep.subr.bf16.mxu0 %v2479
        %3015 = vmatpush1.bf16.msra.mxu0 %v2478
        %3016 = vmatprep.subr.bf16.mxu0 %v2477
        %3017 = vmatpush1.bf16.msra.mxu0 %v2476
        %3018 = vmatprep.subr.bf16.mxu0 %v2475
        %3019 = vmatpush1.bf16.msra.mxu0 %v2474
        %3020 = vmatprep.subr.bf16.mxu0 %v2505
        %3021 = vmatpush2.bf16.msra.mxu0 %v2504
        %3022 = vmatprep.subr.bf16.mxu0 %v2503
        %3023 = vmatpush2.bf16.msra.mxu0 %v2502
        %3024 = vmatprep.subr.bf16.mxu0 %v2501
        %3025 = vmatpush2.bf16.msra.mxu0 %v2500
        %3026 = vmatprep.subr.bf16.mxu0 %v2499
        %3027 = vmatpush2.bf16.msra.mxu0 %v2498
        %3028 = vmatprep.subr.bf16.mxu0 %v2497
        %3029 = vmatpush2.bf16.msra.mxu0 %v2496
        %3030 = vmatprep.subr.bf16.mxu0 %v2495
        %3031 = vmatpush2.bf16.msra.mxu0 %v2494
        %3032 = vmatprep.subr.bf16.mxu0 %v2493
        %3033 = vmatpush2.bf16.msra.mxu0 %v2492
        %3034 = vmatprep.subr.bf16.mxu0 %v2491
        %3035 = vmatpush2.bf16.msra.mxu0 %v2490
        %3036 = vmatprep.mubr.bf16.mxu0 %v1590
        %3037 = vmatmul.mubr.bf16.gmra.mxu0 %v1582
        %v3038 = vpop.f32.mrf.mxu0
        %v3039 = vadd.f32 %v2998, %v3038
        %v3040 = vpop.f32.mrf.mxu0
        %v3041 = vadd.f32 %v3000, %v3040
        %v3042 = vpop.f32.mrf.mxu0
        %v3043 = vpop.f32.mrf.mxu0
        %3044 = vdwg.mxu0
        %3045 = vmatprep.subr.bf16.mxu0 %v2521
        %3046 = vmatpush1.bf16.msra.mxu0 %v2520
        %3047 = vmatprep.subr.bf16.mxu0 %v2519
        %3048 = vmatpush1.bf16.msra.mxu0 %v2518
        %3049 = vmatprep.subr.bf16.mxu0 %v2517
        %3050 = vmatpush1.bf16.msra.mxu0 %v2516
        %3051 = vmatprep.subr.bf16.mxu0 %v2515
        %3052 = vmatpush1.bf16.msra.mxu0 %v2514
        %3053 = vmatprep.subr.bf16.mxu0 %v2513
        %3054 = vmatpush1.bf16.msra.mxu0 %v2512
        %3055 = vmatprep.subr.bf16.mxu0 %v2511
        %3056 = vmatpush1.bf16.msra.mxu0 %v2510
        %3057 = vmatprep.subr.bf16.mxu0 %v2509
        %3058 = vmatpush1.bf16.msra.mxu0 %v2508
        %3059 = vmatprep.subr.bf16.mxu0 %v2507
        %3060 = vmatpush1.bf16.msra.mxu0 %v2506
        %3061 = vmatprep.subr.bf16.mxu0 %v2537
        %3062 = vmatpush2.bf16.msra.mxu0 %v2536
        %3063 = vmatprep.subr.bf16.mxu0 %v2535
        %3064 = vmatpush2.bf16.msra.mxu0 %v2534
        %3065 = vmatprep.subr.bf16.mxu0 %v2533
        %3066 = vmatpush2.bf16.msra.mxu0 %v2532
        %3067 = vmatprep.subr.bf16.mxu0 %v2531
        %3068 = vmatpush2.bf16.msra.mxu0 %v2530
        %3069 = vmatprep.subr.bf16.mxu0 %v2529
        %3070 = vmatpush2.bf16.msra.mxu0 %v2528
        %3071 = vmatprep.subr.bf16.mxu0 %v2527
        %3072 = vmatpush2.bf16.msra.mxu0 %v2526
        %3073 = vmatprep.subr.bf16.mxu0 %v2525
        %3074 = vmatpush2.bf16.msra.mxu0 %v2524
        %3075 = vmatprep.subr.bf16.mxu0 %v2523
        %3076 = vmatpush2.bf16.msra.mxu0 %v2522
        %3077 = vmatprep.mubr.bf16.mxu0 %v1591
        %3078 = vmatmul.mubr.bf16.gmra.mxu0 %v1589
        %v3079 = vpop.f32.mrf.mxu0
        %v3080 = vadd.f32 %v3039, %v3079
        %v3081 = vpop.f32.mrf.mxu0
        %v3082 = vadd.f32 %v3041, %v3081
        %v3083 = vpop.f32.mrf.mxu0
        %v3084 = vpop.f32.mrf.mxu0
        %3085 = vdwg.mxu0
        %3086 = vmatprep.subr.bf16.mxu0 %v2553
        %3087 = vmatpush1.bf16.msra.mxu0 %v2552
        %3088 = vmatprep.subr.bf16.mxu0 %v2551
        %3089 = vmatpush1.bf16.msra.mxu0 %v2550
        %3090 = vmatprep.subr.bf16.mxu0 %v2549
        %3091 = vmatpush1.bf16.msra.mxu0 %v2548
        %3092 = vmatprep.subr.bf16.mxu0 %v2547
        %3093 = vmatpush1.bf16.msra.mxu0 %v2546
        %3094 = vmatprep.subr.bf16.mxu0 %v2545
        %3095 = vmatpush1.bf16.msra.mxu0 %v2544
        %3096 = vmatprep.subr.bf16.mxu0 %v2543
        %3097 = vmatpush1.bf16.msra.mxu0 %v2542
        %3098 = vmatprep.subr.bf16.mxu0 %v2541
        %3099 = vmatpush1.bf16.msra.mxu0 %v2540
        %3100 = vmatprep.subr.bf16.mxu0 %v2539
        %3101 = vmatpush1.bf16.msra.mxu0 %v2538
        %3102 = vmatprep.subr.bf16.mxu0 %v2569
        %3103 = vmatpush2.bf16.msra.mxu0 %v2568
        %3104 = vmatprep.subr.bf16.mxu0 %v2567
        %3105 = vmatpush2.bf16.msra.mxu0 %v2566
        %3106 = vmatprep.subr.bf16.mxu0 %v2565
        %3107 = vmatpush2.bf16.msra.mxu0 %v2564
        %3108 = vmatprep.subr.bf16.mxu0 %v2563
        %3109 = vmatpush2.bf16.msra.mxu0 %v2562
        %3110 = vmatprep.subr.bf16.mxu0 %v2561
        %3111 = vmatpush2.bf16.msra.mxu0 %v2560
        %3112 = vmatprep.subr.bf16.mxu0 %v2559
        %3113 = vmatpush2.bf16.msra.mxu0 %v2558
        %3114 = vmatprep.subr.bf16.mxu0 %v2557
        %3115 = vmatpush2.bf16.msra.mxu0 %v2556
        %3116 = vmatprep.subr.bf16.mxu0 %v2555
        %3117 = vmatpush2.bf16.msra.mxu0 %v2554
        %3118 = vmatprep.mubr.bf16.mxu0 %v1607
        %3119 = vmatmul.mubr.bf16.gmra.mxu0 %v1599
        %v3120 = vpop.f32.mrf.mxu0
        %v3121 = vadd.f32 %v3080, %v3120
        %v3122 = vpop.f32.mrf.mxu0
        %v3123 = vadd.f32 %v3082, %v3122
        %v3124 = vpop.f32.mrf.mxu0
        %v3125 = vpop.f32.mrf.mxu0
        %3126 = vdwg.mxu0
        %3127 = vmatprep.subr.bf16.mxu0 %v2585
        %3128 = vmatpush1.bf16.msra.mxu0 %v2584
        %3129 = vmatprep.subr.bf16.mxu0 %v2583
        %3130 = vmatpush1.bf16.msra.mxu0 %v2582
        %3131 = vmatprep.subr.bf16.mxu0 %v2581
        %3132 = vmatpush1.bf16.msra.mxu0 %v2580
        %3133 = vmatprep.subr.bf16.mxu0 %v2579
        %3134 = vmatpush1.bf16.msra.mxu0 %v2578
        %3135 = vmatprep.subr.bf16.mxu0 %v2577
        %3136 = vmatpush1.bf16.msra.mxu0 %v2576
        %3137 = vmatprep.subr.bf16.mxu0 %v2575
        %3138 = vmatpush1.bf16.msra.mxu0 %v2574
        %3139 = vmatprep.subr.bf16.mxu0 %v2573
        %3140 = vmatpush1.bf16.msra.mxu0 %v2572
        %3141 = vmatprep.subr.bf16.mxu0 %v2571
        %3142 = vmatpush1.bf16.msra.mxu0 %v2570
        %3143 = vmatprep.subr.bf16.mxu0 %v2601
        %3144 = vmatpush2.bf16.msra.mxu0 %v2600
        %3145 = vmatprep.subr.bf16.mxu0 %v2599
        %3146 = vmatpush2.bf16.msra.mxu0 %v2598
        %3147 = vmatprep.subr.bf16.mxu0 %v2597
        %3148 = vmatpush2.bf16.msra.mxu0 %v2596
        %3149 = vmatprep.subr.bf16.mxu0 %v2595
        %3150 = vmatpush2.bf16.msra.mxu0 %v2594
        %3151 = vmatprep.subr.bf16.mxu0 %v2593
        %3152 = vmatpush2.bf16.msra.mxu0 %v2592
        %3153 = vmatprep.subr.bf16.mxu0 %v2591
        %3154 = vmatpush2.bf16.msra.mxu0 %v2590
        %3155 = vmatprep.subr.bf16.mxu0 %v2589
        %3156 = vmatpush2.bf16.msra.mxu0 %v2588
        %3157 = vmatprep.subr.bf16.mxu0 %v2587
        %3158 = vmatpush2.bf16.msra.mxu0 %v2586
        %3159 = vmatprep.mubr.bf16.mxu0 %v1608
        %3160 = vmatmul.mubr.bf16.gmra.mxu0 %v1606
        %v3161 = vpop.f32.mrf.mxu0
        %v3162 = vadd.f32 %v3121, %v3161
        %v3163 = vpop.f32.mrf.mxu0
        %v3164 = vadd.f32 %v3123, %v3163
        %v3165 = vpop.f32.mrf.mxu0
        %v3166 = vpop.f32.mrf.mxu0
        %3167 = vdwg.mxu0
        %3168 = vmatprep.subr.bf16.mxu0 %v2617
        %3169 = vmatpush1.bf16.msra.mxu0 %v2616
        %3170 = vmatprep.subr.bf16.mxu0 %v2615
        %3171 = vmatpush1.bf16.msra.mxu0 %v2614
        %3172 = vmatprep.subr.bf16.mxu0 %v2613
        %3173 = vmatpush1.bf16.msra.mxu0 %v2612
        %3174 = vmatprep.subr.bf16.mxu0 %v2611
        %3175 = vmatpush1.bf16.msra.mxu0 %v2610
        %3176 = vmatprep.subr.bf16.mxu0 %v2609
        %3177 = vmatpush1.bf16.msra.mxu0 %v2608
        %3178 = vmatprep.subr.bf16.mxu0 %v2607
        %3179 = vmatpush1.bf16.msra.mxu0 %v2606
        %3180 = vmatprep.subr.bf16.mxu0 %v2605
        %3181 = vmatpush1.bf16.msra.mxu0 %v2604
        %3182 = vmatprep.subr.bf16.mxu0 %v2603
        %3183 = vmatpush1.bf16.msra.mxu0 %v2602
        %3184 = vmatprep.subr.bf16.mxu0 %v2633
        %3185 = vmatpush2.bf16.msra.mxu0 %v2632
        %3186 = vmatprep.subr.bf16.mxu0 %v2631
        %3187 = vmatpush2.bf16.msra.mxu0 %v2630
        %3188 = vmatprep.subr.bf16.mxu0 %v2629
        %3189 = vmatpush2.bf16.msra.mxu0 %v2628
        %3190 = vmatprep.subr.bf16.mxu0 %v2627
        %3191 = vmatpush2.bf16.msra.mxu0 %v2626
        %3192 = vmatprep.subr.bf16.mxu0 %v2625
        %3193 = vmatpush2.bf16.msra.mxu0 %v2624
        %3194 = vmatprep.subr.bf16.mxu0 %v2623
        %3195 = vmatpush2.bf16.msra.mxu0 %v2622
        %3196 = vmatprep.subr.bf16.mxu0 %v2621
        %3197 = vmatpush2.bf16.msra.mxu0 %v2620
        %3198 = vmatprep.subr.bf16.mxu0 %v2619
        %3199 = vmatpush2.bf16.msra.mxu0 %v2618
        %3200 = vmatprep.mubr.bf16.mxu0 %v1624
        %3201 = vmatmul.mubr.bf16.gmra.mxu0 %v1616
        %v3202 = vpop.f32.mrf.mxu0
        %v3203 = vadd.f32 %v3162, %v3202
        %v3204 = vpop.f32.mrf.mxu0
        %v3205 = vadd.f32 %v3164, %v3204
        %v3206 = vpop.f32.mrf.mxu0
        %v3207 = vpop.f32.mrf.mxu0
        %3208 = vdwg.mxu0
        %3209 = vmatprep.subr.bf16.mxu0 %v2649
        %3210 = vmatpush1.bf16.msra.mxu0 %v2648
        %3211 = vmatprep.subr.bf16.mxu0 %v2647
        %3212 = vmatpush1.bf16.msra.mxu0 %v2646
        %3213 = vmatprep.subr.bf16.mxu0 %v2645
        %3214 = vmatpush1.bf16.msra.mxu0 %v2644
        %3215 = vmatprep.subr.bf16.mxu0 %v2643
        %3216 = vmatpush1.bf16.msra.mxu0 %v2642
        %3217 = vmatprep.subr.bf16.mxu0 %v2641
        %3218 = vmatpush1.bf16.msra.mxu0 %v2640
        %3219 = vmatprep.subr.bf16.mxu0 %v2639
        %3220 = vmatpush1.bf16.msra.mxu0 %v2638
        %3221 = vmatprep.subr.bf16.mxu0 %v2637
        %3222 = vmatpush1.bf16.msra.mxu0 %v2636
        %3223 = vmatprep.subr.bf16.mxu0 %v2635
        %3224 = vmatpush1.bf16.msra.mxu0 %v2634
        %3225 = vmatprep.subr.bf16.mxu0 %v2665
        %3226 = vmatpush2.bf16.msra.mxu0 %v2664
        %3227 = vmatprep.subr.bf16.mxu0 %v2663
        %3228 = vmatpush2.bf16.msra.mxu0 %v2662
        %3229 = vmatprep.subr.bf16.mxu0 %v2661
        %3230 = vmatpush2.bf16.msra.mxu0 %v2660
        %3231 = vmatprep.subr.bf16.mxu0 %v2659
        %3232 = vmatpush2.bf16.msra.mxu0 %v2658
        %3233 = vmatprep.subr.bf16.mxu0 %v2657
        %3234 = vmatpush2.bf16.msra.mxu0 %v2656
        %3235 = vmatprep.subr.bf16.mxu0 %v2655
        %3236 = vmatpush2.bf16.msra.mxu0 %v2654
        %3237 = vmatprep.subr.bf16.mxu0 %v2653
        %3238 = vmatpush2.bf16.msra.mxu0 %v2652
        %3239 = vmatprep.subr.bf16.mxu0 %v2651
        %3240 = vmatpush2.bf16.msra.mxu0 %v2650
        %3241 = vmatprep.mubr.bf16.mxu0 %v1625
        %3242 = vmatmul.mubr.bf16.gmra.mxu0 %v1623
        %v3243 = vpop.f32.mrf.mxu0
        %v3244 = vadd.f32 %v3203, %v3243
        %v3245 = vpop.f32.mrf.mxu0
        %v3246 = vadd.f32 %v3205, %v3245
        %v3247 = vpop.f32.mrf.mxu0
        %v3248 = vpop.f32.mrf.mxu0
        %3249 = vdwg.mxu0
        %v3252 = vcombine.low %v3244, %v3246
        %v3254 = vadd.f32 %v1293, %v3252
        %3255 = vst [vmem:[#allocation2] sm:$0xff] %v3254
        // Predicated region
        $region75: #{siamese_forward.11} parent=65 // pred_check
          %p3256 = pneg %p1288
        $region76: #{siamese_forward.11} parent=65 // pred_check_branch
          %3258 = sbr.rel (%p3256) target = $region78
        $region77: #{siamese_forward.11} parent=65 // pred_region
          %v3259 = vld [vmem:[#allocation2] sm:$0xff]
          %v3260 = vld [vmem:[%s1280] sm:$0x3]
          %v3262 = vlaneseq
          %v3263 = vshrl.u32 %v3262, 7
          %v3264 = vsub.s32 0, %v3263
          %v3265 = vrot.slane %v3260, %v3264
          %v3266 = vlaneseq
          %v3267 = vshrl.u32 %v3266, 7
          %v3268 = vsub.s32 1, %v3267
          %v3269 = vrot.slane %v3260, %v3268
          %v3270 = vcombine.low %v3265, %v3269
          %v3272 = vadd.f32 %v3259, %v3270
          %v3273 = vmax.f32 %v3272, 0.0
          %3274 = vst [vmem:[%s1286] sm:$0xff] %v3273
        $region78: #{siamese_forward.11} parent=65 // pred_fallthru
          _
        %s3275 = smul.u32 2, %s18
        %p3276 = scmp.lt.s32.totalorder %s3275, 3
        %s3277 = scalar_select %p3276, %s3275, 3
        %s3278 = smul.addr %s3277, 4
        %s3279 = scalar_lea.vmem %s3, %s3278
        // Predicated region
        $region79: #{siamese_forward.11} parent=65 // pred_check
          %p3280 = pneg %p124
        $region80: #{siamese_forward.11} parent=65 // pred_check_branch
          %3282 = sbr.rel (%p3280) target = $region82
        $region81: #{siamese_forward.11} parent=65 // pred_region
          %s3283 = smul.u32 2, %s18
        $region82: #{siamese_forward.11} parent=65 // pred_fallthru
          _
      $region66: #{siamese_forward.11} parent=5 // pred_fallthru
        _
      %p3284 = scmp.le.s32.totalorder 2, %s9
      // Predicated region
      $region83: #{siamese_forward.11} parent=5 // pred_check
        %p3285 = pneg %p3284
      $region84: #{siamese_forward.11} parent=5 // pred_check_branch
        %3287 = sbr.rel (%p3285) target = $region86
      $region85: #{siamese_forward.11} parent=5 // pred_region
        %s3288 = ssub.s32 %s9, 2
        // Predicated region
        $region87: #{siamese_forward.11} parent=85 // pred_check
          %p3289 = pneg %p130
        $region88: #{siamese_forward.11} parent=85 // pred_check_branch
          %3291 = sbr.rel (%p3289) target = $region90
        $region89: #{siamese_forward.11} parent=85 // pred_region
          %s3292 = smul.u32 2, %s20
          %p3293 = scmp.lt.s32.totalorder %s3292, 3
          %s3294 = scalar_select %p3293, %s3292, 3
          %s3295 = smul.addr %s3294, 4
          %s3296 = scalar_lea.vmem %s3, %s3295
        $region90: #{siamese_forward.11} parent=85 // pred_fallthru
          _
      $region86: #{siamese_forward.11} parent=5 // pred_fallthru
        _
    $region6: #{siamese_forward.11} parent=1 // loop_footer
      %s13 = sadd.s32 1, %s9
    $region7: #{siamese_forward.11} parent=1 // loop_footer_branch
      %8 = sbr.rel target = $region3
    $region8: #{siamese_forward.11} parent=1 // loop_exit
      _

// kernel: siamese_forward.13
$region0: #{siamese_forward.13}
  #allocation0 [shape = 'u32[]', space=smem, size = 0x4, offset = 0x4, fixed_abs, tag = 'smem constant byte address 0x4 - core index']
  #allocation1 [shape = 'u32[144,128]{1,0:T(1,128)}', space=vmem, size = 0x12000, scoped, tag = 'internal scratch']
  #allocation2 [shape = 'f32[4,5]{1,0:T(4,128)}', space=vmem, size = 0x800, scoped, tag = 'scratch operand']
  %s0 = inlined_call_operand.vmem [shape: bf16[4,500], index: 0, kind: input, shape index: {}]
  %s1 = inlined_call_operand.vmem [shape: bf16[500,5], index: 1, kind: input, shape index: {}]
  %s2 = inlined_call_operand.vmem [shape: f32[1,5], index: 2, kind: input, shape index: {}]
  %s3 = inlined_call_operand.vmem [shape: f32[4,5], index: 3, kind: output, shape index: {}]
  %s4 = sld [smem:[#allocation0]]
  $region30: #{siamese_forward.13} parent=0
    _
  %s6 = ssub.s32 1, %s4
  %s7 = scalar_select 0, %s6, %s4
  // Predicated region
  $region2: #{siamese_forward.13} parent=0 // pred_check
    _
  $region3: #{siamese_forward.13} parent=0 // pred_check_branch
    %9 = sbr.rel (0) target = $region5
  $region4: #{siamese_forward.13} parent=0 // pred_region
    _
  $region5: #{siamese_forward.13} parent=0 // pred_fallthru
    _
  // Predicated region
  $region6: #{siamese_forward.13} parent=0 // pred_check
    _
  $region7: #{siamese_forward.13} parent=0 // pred_check_branch
    %11 = sbr.rel (0) target = $region9
  $region8: #{siamese_forward.13} parent=0 // pred_region
    _
  $region9: #{siamese_forward.13} parent=0 // pred_fallthru
    _
  // Predicated region
  $region10: #{siamese_forward.13} parent=0 // pred_check
    _
  $region11: #{siamese_forward.13} parent=0 // pred_check_branch
    %13 = sbr.rel (0) target = $region13
  $region12: #{siamese_forward.13} parent=0 // pred_region
    _
  $region13: #{siamese_forward.13} parent=0 // pred_fallthru
    _
  %p15 = scmp.eq.s32.totalorder 0, 0
  // Predicated region
  $region14: #{siamese_forward.13} parent=0 // pred_check
    %p16 = pneg %p15
  $region15: #{siamese_forward.13} parent=0 // pred_check_branch
    %18 = sbr.rel (%p16) target = $region17
  $region16: #{siamese_forward.13} parent=0 // pred_region
    %vm19 = vcmask 35840
    %20 = vst.msk [vmem:[#allocation2] sm:$0xf] %vm19, 0.0
  $region17: #{siamese_forward.13} parent=0 // pred_fallthru
    _
  %v21 = vld [vmem:[#allocation2] sm:$0xf]
  %v22 = vld [vmem:[%s0] sm:$0xff]
  %v23 = vld [vmem:[%s1] sm:$0xf]
  %v24 = vld [vmem:[%s1 + $0x4] sm:$0xf]
  %v25 = vld [vmem:[%s1 + $0x8] sm:$0xf]
  %v26 = vld [vmem:[%s1 + $0xc] sm:$0xf]
  %v27 = vld [vmem:[%s1 + $0x10] sm:$0xf]
  %v28 = vld [vmem:[%s1 + $0x14] sm:$0xf]
  %v29 = vld [vmem:[%s1 + $0x18] sm:$0xf]
  %v30 = vld [vmem:[%s1 + $0x1c] sm:$0xf]
  %v31 = vld [vmem:[%s1 + $0x20] sm:$0xf]
  %v32 = vld [vmem:[%s1 + $0x24] sm:$0xf]
  %v33 = vld [vmem:[%s1 + $0x28] sm:$0xf]
  %v34 = vld [vmem:[%s1 + $0x2c] sm:$0xf]
  %v35 = vld [vmem:[%s1 + $0x30] sm:$0xf]
  %v36 = vld [vmem:[%s1 + $0x34] sm:$0xf]
  %v37 = vld [vmem:[%s1 + $0x38] sm:$0xf]
  %v38 = vld [vmem:[%s1 + $0x3c] sm:$0xf]
  %v39 = vld [vmem:[%s1 + $0x40] sm:$0xf]
  %v40 = vld [vmem:[%s1 + $0x44] sm:$0xf]
  %v41 = vld [vmem:[%s1 + $0x48] sm:$0xf]
  %v42 = vld [vmem:[%s1 + $0x4c] sm:$0xf]
  %v43 = vld [vmem:[%s1 + $0x50] sm:$0xf]
  %v44 = vld [vmem:[%s1 + $0x54] sm:$0xf]
  %v45 = vld [vmem:[%s1 + $0x58] sm:$0xf]
  %v46 = vld [vmem:[%s1 + $0x5c] sm:$0xf]
  %v47 = vld [vmem:[%s1 + $0x60] sm:$0xf]
  %v48 = vld [vmem:[%s1 + $0x64] sm:$0xf]
  %v49 = vld [vmem:[%s1 + $0x68] sm:$0xf]
  %v50 = vld [vmem:[%s1 + $0x6c] sm:$0xf]
  %v51 = vld [vmem:[%s1 + $0x70] sm:$0xf]
  %v52 = vld [vmem:[%s1 + $0x74] sm:$0xf]
  %v53 = vld [vmem:[%s1 + $0x78] sm:$0xf]
  %v54 = vld [vmem:[%s1 + $0x7c] sm:$0xf]
  %v55 = vld [vmem:[%s1 + $0x80] sm:$0xf]
  %v56 = vld [vmem:[%s1 + $0x84] sm:$0xf]
  %v57 = vld [vmem:[%s1 + $0x88] sm:$0xf]
  %v58 = vld [vmem:[%s1 + $0x8c] sm:$0xf]
  %v59 = vld [vmem:[%s1 + $0x90] sm:$0xf]
  %v60 = vld [vmem:[%s1 + $0x94] sm:$0xf]
  %v61 = vld [vmem:[%s1 + $0x98] sm:$0xf]
  %v62 = vld [vmem:[%s1 + $0x9c] sm:$0xf]
  %v63 = vld [vmem:[%s1 + $0xa0] sm:$0xf]
  %v64 = vld [vmem:[%s1 + $0xa4] sm:$0xf]
  %v65 = vld [vmem:[%s1 + $0xa8] sm:$0xf]
  %v66 = vld [vmem:[%s1 + $0xac] sm:$0xf]
  %v67 = vld [vmem:[%s1 + $0xb0] sm:$0xf]
  %v68 = vld [vmem:[%s1 + $0xb4] sm:$0xf]
  %v69 = vld [vmem:[%s1 + $0xb8] sm:$0xf]
  %v70 = vld [vmem:[%s1 + $0xbc] sm:$0xf]
  %v71 = vld [vmem:[%s1 + $0xc0] sm:$0xf]
  %v72 = vld [vmem:[%s1 + $0xc4] sm:$0xf]
  %v73 = vld [vmem:[%s1 + $0xc8] sm:$0xf]
  %v74 = vld [vmem:[%s1 + $0xcc] sm:$0xf]
  %v75 = vld [vmem:[%s1 + $0xd0] sm:$0xf]
  %v76 = vld [vmem:[%s1 + $0xd4] sm:$0xf]
  %v77 = vld [vmem:[%s1 + $0xd8] sm:$0xf]
  %v78 = vld [vmem:[%s1 + $0xdc] sm:$0xf]
  %v79 = vld [vmem:[%s1 + $0xe0] sm:$0xf]
  %v80 = vld [vmem:[%s1 + $0xe4] sm:$0xf]
  %v81 = vld [vmem:[%s1 + $0xe8] sm:$0xf]
  %v82 = vld [vmem:[%s1 + $0xec] sm:$0xf]
  %v83 = vld [vmem:[%s1 + $0xf0] sm:$0xf]
  %v84 = vld [vmem:[%s1 + $0xf4] sm:$0xf]
  %v85 = vld [vmem:[%s1 + $0xf8] sm:$0x3]
  %v87 = vcombine.high %v22, %v22
  %v89 = vunpack.c.l.s4 1983009808
  %v90 = vunpack.c.0.s8 %v89
  %v91 = vlaneseq
  %v92 = vshrl.u32 %v91, 7
  %v93 = vsub.s32 %v90, %v92
  %v94 = vrot.slane %v22, %v93
  %v96 = vunpack.c.l.s4 1983009808
  %v97 = vunpack.c.0.s8 %v96
  %v98 = vlaneseq
  %v99 = vshrl.u32 %v98, 7
  %v100 = vsub.s32 %v97, %v99
  %v101 = vrot.slane %v87, %v100
  %v102 = vcombine.high %v94, %v94
  %v103 = vcombine.high %v101, %v101
  %v170 = vunpack.c.l.b16 %v23
  %v171 = vunpack.c.l.b16 %v24
  %v172 = vunpack.c.l.b16 %v25
  %v173 = vunpack.c.l.b16 %v26
  %v174 = vunpack.c.l.b16 %v27
  %v175 = vunpack.c.l.b16 %v28
  %v176 = vunpack.c.l.b16 %v29
  %v177 = vunpack.c.l.b16 %v30
  %v178 = vunpack.c.l.b16 %v31
  %v179 = vunpack.c.l.b16 %v32
  %v180 = vunpack.c.l.b16 %v33
  %v181 = vunpack.c.l.b16 %v34
  %v182 = vunpack.c.l.b16 %v35
  %v183 = vunpack.c.l.b16 %v36
  %v184 = vunpack.c.l.b16 %v37
  %v185 = vunpack.c.l.b16 %v38
  %v186 = vunpack.c.l.b16 %v39
  %v187 = vunpack.c.l.b16 %v40
  %v188 = vunpack.c.l.b16 %v41
  %v189 = vunpack.c.l.b16 %v42
  %v190 = vunpack.c.l.b16 %v43
  %v191 = vunpack.c.l.b16 %v44
  %v192 = vunpack.c.l.b16 %v45
  %v193 = vunpack.c.l.b16 %v46
  %v194 = vunpack.c.l.b16 %v47
  %v195 = vunpack.c.l.b16 %v48
  %v196 = vunpack.c.l.b16 %v49
  %v197 = vunpack.c.l.b16 %v50
  %v198 = vunpack.c.l.b16 %v51
  %v199 = vunpack.c.l.b16 %v52
  %v200 = vunpack.c.l.b16 %v53
  %v201 = vunpack.c.l.b16 %v54
  %v202 = vunpack.c.l.b16 %v55
  %v203 = vunpack.c.l.b16 %v56
  %v204 = vunpack.c.l.b16 %v57
  %v205 = vunpack.c.l.b16 %v58
  %v206 = vunpack.c.l.b16 %v59
  %v207 = vunpack.c.l.b16 %v60
  %v208 = vunpack.c.l.b16 %v61
  %v209 = vunpack.c.l.b16 %v62
  %v210 = vunpack.c.l.b16 %v63
  %v211 = vunpack.c.l.b16 %v64
  %v212 = vunpack.c.l.b16 %v65
  %v213 = vunpack.c.l.b16 %v66
  %v214 = vunpack.c.l.b16 %v67
  %v215 = vunpack.c.l.b16 %v68
  %v216 = vunpack.c.l.b16 %v69
  %v217 = vunpack.c.l.b16 %v70
  %v218 = vunpack.c.l.b16 %v71
  %v219 = vunpack.c.l.b16 %v72
  %v220 = vunpack.c.l.b16 %v73
  %v221 = vunpack.c.l.b16 %v74
  %v222 = vunpack.c.l.b16 %v75
  %v223 = vunpack.c.l.b16 %v76
  %v224 = vunpack.c.l.b16 %v77
  %v225 = vunpack.c.l.b16 %v78
  %v226 = vunpack.c.l.b16 %v79
  %v227 = vunpack.c.l.b16 %v80
  %v228 = vunpack.c.l.b16 %v81
  %v229 = vunpack.c.l.b16 %v82
  %v230 = vunpack.c.l.b16 %v83
  %v231 = vunpack.c.l.b16 %v84
  %v232 = vunpack.c.l.b16 %v85
  %v233 = vpack.c.b16 %v171, %v170
  %v234 = vpack.c.b16 %v173, %v172
  %v235 = vpack.c.b16 %v175, %v174
  %v236 = vpack.c.b16 %v177, %v176
  %v237 = vpack.c.b16 %v179, %v178
  %v238 = vpack.c.b16 %v181, %v180
  %v239 = vpack.c.b16 %v183, %v182
  %v240 = vpack.c.b16 %v185, %v184
  %v241 = vpack.c.b16 %v187, %v186
  %v242 = vpack.c.b16 %v189, %v188
  %v243 = vpack.c.b16 %v191, %v190
  %v244 = vpack.c.b16 %v193, %v192
  %v245 = vpack.c.b16 %v195, %v194
  %v246 = vpack.c.b16 %v197, %v196
  %v247 = vpack.c.b16 %v199, %v198
  %v248 = vpack.c.b16 %v201, %v200
  %v249 = vpack.c.b16 %v203, %v202
  %v250 = vpack.c.b16 %v205, %v204
  %v251 = vpack.c.b16 %v207, %v206
  %v252 = vpack.c.b16 %v209, %v208
  %v253 = vpack.c.b16 %v211, %v210
  %v254 = vpack.c.b16 %v213, %v212
  %v255 = vpack.c.b16 %v215, %v214
  %v256 = vpack.c.b16 %v217, %v216
  %v257 = vpack.c.b16 %v219, %v218
  %v258 = vpack.c.b16 %v221, %v220
  %v259 = vpack.c.b16 %v223, %v222
  %v260 = vpack.c.b16 %v225, %v224
  %v261 = vpack.c.b16 %v227, %v226
  %v262 = vpack.c.b16 %v229, %v228
  %v263 = vpack.c.b16 %v231, %v230
  %v264 = vpack.c.b16 %v232, %v232
  %vm296 = vcmask 949248
  %v298 = vsel %vm296, %v103, 0
  %vm300 = vcmask 1041408
  %v302 = vsel %vm300, %v264, 0
  %304 = vmatprep.subr.bf16.mxu0 0
  %305 = vmatpush1.bf16.msra.mxu0 %v240
  %306 = vmatprep.subr.bf16.mxu0 0
  %307 = vmatpush1.bf16.msra.mxu0 %v239
  %308 = vmatprep.subr.bf16.mxu0 0
  %309 = vmatpush1.bf16.msra.mxu0 %v238
  %310 = vmatprep.subr.bf16.mxu0 0
  %311 = vmatpush1.bf16.msra.mxu0 %v237
  %312 = vmatprep.subr.bf16.mxu0 0
  %313 = vmatpush1.bf16.msra.mxu0 %v236
  %314 = vmatprep.subr.bf16.mxu0 0
  %315 = vmatpush1.bf16.msra.mxu0 %v235
  %316 = vmatprep.subr.bf16.mxu0 0
  %317 = vmatpush1.bf16.msra.mxu0 %v234
  %318 = vmatprep.subr.bf16.mxu0 0
  %319 = vmatpush1.bf16.msra.mxu0 %v233
  %320 = vmatprep.subr.bf16.mxu0 0
  %321 = vmatpush2.bf16.msra.mxu0 %v248
  %322 = vmatprep.subr.bf16.mxu0 0
  %323 = vmatpush2.bf16.msra.mxu0 %v247
  %324 = vmatprep.subr.bf16.mxu0 0
  %325 = vmatpush2.bf16.msra.mxu0 %v246
  %326 = vmatprep.subr.bf16.mxu0 0
  %327 = vmatpush2.bf16.msra.mxu0 %v245
  %328 = vmatprep.subr.bf16.mxu0 0
  %329 = vmatpush2.bf16.msra.mxu0 %v244
  %330 = vmatprep.subr.bf16.mxu0 0
  %331 = vmatpush2.bf16.msra.mxu0 %v243
  %332 = vmatprep.subr.bf16.mxu0 0
  %333 = vmatpush2.bf16.msra.mxu0 %v242
  %334 = vmatprep.subr.bf16.mxu0 0
  %335 = vmatpush2.bf16.msra.mxu0 %v241
  %336 = vmatprep.mubr.bf16.mxu0 %v102
  %337 = vmatmul.mubr.bf16.gmra.mxu0 %v94
  %v338 = vpop.f32.mrf.mxu0
  %v339 = vadd.f32 0.0, %v338
  %v340 = vpop.f32.mrf.mxu0
  %v341 = vpop.f32.mrf.mxu0
  %v342 = vpop.f32.mrf.mxu0
  %343 = vdwg.mxu0
  %344 = vmatprep.subr.bf16.mxu0 0
  %345 = vmatpush1.bf16.msra.mxu0 %v256
  %346 = vmatprep.subr.bf16.mxu0 0
  %347 = vmatpush1.bf16.msra.mxu0 %v255
  %348 = vmatprep.subr.bf16.mxu0 0
  %349 = vmatpush1.bf16.msra.mxu0 %v254
  %350 = vmatprep.subr.bf16.mxu0 0
  %351 = vmatpush1.bf16.msra.mxu0 %v253
  %352 = vmatprep.subr.bf16.mxu0 0
  %353 = vmatpush1.bf16.msra.mxu0 %v252
  %354 = vmatprep.subr.bf16.mxu0 0
  %355 = vmatpush1.bf16.msra.mxu0 %v251
  %356 = vmatprep.subr.bf16.mxu0 0
  %357 = vmatpush1.bf16.msra.mxu0 %v250
  %358 = vmatprep.subr.bf16.mxu0 0
  %359 = vmatpush1.bf16.msra.mxu0 %v249
  %360 = vmatprep.subr.bf16.mxu0 0
  %361 = vmatpush2.bf16.msra.mxu0 %v302
  %362 = vmatprep.subr.bf16.mxu0 0
  %363 = vmatpush2.bf16.msra.mxu0 %v263
  %364 = vmatprep.subr.bf16.mxu0 0
  %365 = vmatpush2.bf16.msra.mxu0 %v262
  %366 = vmatprep.subr.bf16.mxu0 0
  %367 = vmatpush2.bf16.msra.mxu0 %v261
  %368 = vmatprep.subr.bf16.mxu0 0
  %369 = vmatpush2.bf16.msra.mxu0 %v260
  %370 = vmatprep.subr.bf16.mxu0 0
  %371 = vmatpush2.bf16.msra.mxu0 %v259
  %372 = vmatprep.subr.bf16.mxu0 0
  %373 = vmatpush2.bf16.msra.mxu0 %v258
  %374 = vmatprep.subr.bf16.mxu0 0
  %375 = vmatpush2.bf16.msra.mxu0 %v257
  %376 = vmatprep.mubr.bf16.mxu0 %v298
  %377 = vmatmul.mubr.bf16.gmra.mxu0 %v101
  %v378 = vpop.f32.mrf.mxu0
  %v379 = vadd.f32 %v339, %v378
  %v380 = vpop.f32.mrf.mxu0
  %v381 = vpop.f32.mrf.mxu0
  %v382 = vpop.f32.mrf.mxu0
  %383 = vdwg.mxu0
  %v384 = vadd.f32 %v21, %v379
  %vm385 = vcmask 35840
  %386 = vst.msk [vmem:[#allocation2] sm:$0xf] %vm385, %v384
  // Predicated region
  $region18: #{siamese_forward.13} parent=0 // pred_check
    %p387 = pneg %p15
  $region19: #{siamese_forward.13} parent=0 // pred_check_branch
    %389 = sbr.rel (%p387) target = $region21
  $region20: #{siamese_forward.13} parent=0 // pred_region
    %v390 = vld [vmem:[#allocation2] sm:$0xf]
    %v391 = vld [vmem:[%s2] sm:$0x1]
    %v393 = vlaneseq
    %v394 = vshrl.u32 %v393, 7
    %v395 = vsub.s32 0, %v394
    %v396 = vrot.slane %v391, %v395
    %v398 = vadd.f32 %v390, %v396
    %399 = vst.msk [vmem:[%s3] sm:$0xf] %vm385, %v398
  $region21: #{siamese_forward.13} parent=0 // pred_fallthru
    _
  // Predicated region
  $region22: #{siamese_forward.13} parent=0 // pred_check
    _
  $region23: #{siamese_forward.13} parent=0 // pred_check_branch
    %401 = sbr.rel (0) target = $region25
  $region24: #{siamese_forward.13} parent=0 // pred_region
    _
  $region25: #{siamese_forward.13} parent=0 // pred_fallthru
    _
  // Predicated region
  $region26: #{siamese_forward.13} parent=0 // pred_check
    _
  $region27: #{siamese_forward.13} parent=0 // pred_check_branch
    %403 = sbr.rel (0) target = $region29
  $region28: #{siamese_forward.13} parent=0 // pred_region
    _
  $region29: #{siamese_forward.13} parent=0 // pred_fallthru
    _

// kernel: siamese_forward.12
$region0: #{siamese_forward.12}
  #allocation0 [shape = 'u32[]', space=smem, size = 0x4, offset = 0x4, fixed_abs, tag = 'smem constant byte address 0x4 - core index']
  #allocation1 [shape = 'u32[144,128]{1,0:T(1,128)}', space=vmem, size = 0x12000, scoped, tag = 'internal scratch']
  #allocation2 [shape = 'f32[4,256]{1,0:T(4,128)}', space=vmem, size = 0x1000, scoped, tag = 'scratch operand']
  %s0 = inlined_call_operand.vmem [shape: bf16[4,500], index: 0, kind: input, shape index: {}]
  %s1 = inlined_call_operand.vmem [shape: bf16[500,512], index: 1, kind: input, shape index: {}]
  %s2 = inlined_call_operand.vmem [shape: f32[1,512], index: 2, kind: input, shape index: {}]
  %s3 = inlined_call_operand.vmem [shape: f32[4,512], index: 3, kind: output, shape index: {}]
  %s4 = sld [smem:[#allocation0]]
  $region91: #{siamese_forward.12} parent=0
    _
  %s6 = ssub.s32 1, %s4
  %s7 = scalar_select 0, %s6, %s4
  $region1: #{siamese_forward.12} parent=0
    #allocation3 [shape = 'u8[516096]{0}', space=vmem, size = 0x7e000, scoped, tag = 'input window, operand 1']
    loop: start=0, step=1, limit=4
    $region2: #{siamese_forward.12} parent=1 // loop_pre_header
      _
    $region3: #{siamese_forward.12} parent=1 // loop_header
      %s9 = sphi 0, %s13
      %p10 = scmp.ge.s32.totalorder %s9, 4
      %s16 = sphi 0, %s28
      %s17 = sphi 0, %s24
      %s18 = sphi 0, %s16
      %s19 = sphi 0, %s17
      %s20 = sphi 0, %s18
      %s21 = sphi 0, %s19
      %s31 = sphi 0, %s33
      %s34 = sphi 0, %s31
      %s35 = sphi 0, %s34
      %s51 = sphi 0, %s35
      %s59 = sphi 0, %s61
      %s62 = sphi 0, %s59
      %s63 = sphi 0, %s62
      %s79 = sphi 0, %s63
      %s85 = sphi 0, %s87
      %s88 = sphi 0, %s85
      %s89 = sphi 0, %s88
      %s105 = sphi 0, %s89
      %s111 = sphi 0, %s113
      %s114 = sphi 0, %s111
      %s115 = sphi 0, %s114
      %s131 = sphi 0, %s115
    $region4: #{siamese_forward.12} parent=1 // loop_header_branch
      %12 = sbr.rel (%p10) target = $region8
    $region5: #{siamese_forward.12} parent=1 // loop_body
      %s14 = ssub.s32 %s9, 1
      %s15 = ssub.s32 %s9, 2
      %s22 = sadd.s32 1, %s17
      %p23 = scmp.ge.s32.totalorder %s22, 1
      %s24 = scalar_select %p23, 0, %s22
      %s25 = sadd.s32 1, %s16
      %s26 = scalar_select %p23, %s25, %s16
      %p27 = scmp.ge.s32.totalorder %s26, 2
      %s28 = scalar_select %p27, 0, %s26
      %s29 = ssub.s32 %s17, %s24
      %p30 = scmp.eq.s32.totalorder %s29, 0
      %s32 = sadd.s32 %s31, 1
      %s33 = scalar_select %p30, %s31, %s32
      %p36 = pneg %p30
      %p37 = scmp.eq.s32.totalorder %s9, 1
      %p38 = por %p36, %p37
      %p39 = scmp.ne.s32.totalorder %s31, %s34
      %p40 = scmp.eq.s32.totalorder %s9, 0
      %p41 = por %p39, %p40
      %p42 = scmp.ne.s32.totalorder %s31, %s34
      %p43 = scmp.eq.s32.totalorder %s14, 1
      %p44 = por %p42, %p43
      %p45 = scmp.ne.s32.totalorder %s34, %s35
      %p46 = scmp.eq.s32.totalorder %s14, 0
      %p47 = por %p45, %p46
      %p48 = scmp.ne.s32.totalorder %s34, %s35
      %p49 = scmp.eq.s32.totalorder %s15, 1
      %p50 = por %p48, %p49
      %p52 = scmp.ne.s32.totalorder %s35, %s51
      %p53 = scmp.eq.s32.totalorder %s15, 0
      %p54 = por %p52, %p53
      %s55 = ssub.s32 %s17, %s24
      %s56 = ssub.s32 %s16, %s28
      %s57 = sor.u32 %s55, %s56
      %p58 = scmp.eq.s32.totalorder %s57, 0
      %s60 = sadd.s32 %s59, 1
      %s61 = scalar_select %p58, %s59, %s60
      %p64 = pneg %p58
      %p65 = scmp.eq.s32.totalorder %s9, 1
      %p66 = por %p64, %p65
      %p67 = scmp.ne.s32.totalorder %s59, %s62
      %p68 = scmp.eq.s32.totalorder %s9, 0
      %p69 = por %p67, %p68
      %p70 = scmp.ne.s32.totalorder %s59, %s62
      %p71 = scmp.eq.s32.totalorder %s14, 1
      %p72 = por %p70, %p71
      %p73 = scmp.ne.s32.totalorder %s62, %s63
      %p74 = scmp.eq.s32.totalorder %s14, 0
      %p75 = por %p73, %p74
      %p76 = scmp.ne.s32.totalorder %s62, %s63
      %p77 = scmp.eq.s32.totalorder %s15, 1
      %p78 = por %p76, %p77
      %p80 = scmp.ne.s32.totalorder %s63, %s79
      %p81 = scmp.eq.s32.totalorder %s15, 0
      %p82 = por %p80, %p81
      %s83 = ssub.s32 %s16, %s28
      %p84 = scmp.eq.s32.totalorder %s83, 0
      %s86 = sadd.s32 %s85, 1
      %s87 = scalar_select %p84, %s85, %s86
      %p90 = pneg %p84
      %p91 = scmp.eq.s32.totalorder %s9, 1
      %p92 = por %p90, %p91
      %p93 = scmp.ne.s32.totalorder %s85, %s88
      %p94 = scmp.eq.s32.totalorder %s9, 0
      %p95 = por %p93, %p94
      %p96 = scmp.ne.s32.totalorder %s85, %s88
      %p97 = scmp.eq.s32.totalorder %s14, 1
      %p98 = por %p96, %p97
      %p99 = scmp.ne.s32.totalorder %s88, %s89
      %p100 = scmp.eq.s32.totalorder %s14, 0
      %p101 = por %p99, %p100
      %p102 = scmp.ne.s32.totalorder %s88, %s89
      %p103 = scmp.eq.s32.totalorder %s15, 1
      %p104 = por %p102, %p103
      %p106 = scmp.ne.s32.totalorder %s89, %s105
      %p107 = scmp.eq.s32.totalorder %s15, 0
      %p108 = por %p106, %p107
      %s109 = ssub.s32 %s16, %s28
      %p110 = scmp.eq.s32.totalorder %s109, 0
      %s112 = sadd.s32 %s111, 1
      %s113 = scalar_select %p110, %s111, %s112
      %p116 = pneg %p110
      %p117 = scmp.eq.s32.totalorder %s9, 1
      %p118 = por %p116, %p117
      %p119 = scmp.ne.s32.totalorder %s111, %s114
      %p120 = scmp.eq.s32.totalorder %s9, 0
      %p121 = por %p119, %p120
      %p122 = scmp.ne.s32.totalorder %s111, %s114
      %p123 = scmp.eq.s32.totalorder %s14, 1
      %p124 = por %p122, %p123
      %p125 = scmp.ne.s32.totalorder %s114, %s115
      %p126 = scmp.eq.s32.totalorder %s14, 0
      %p127 = por %p125, %p126
      %p128 = scmp.ne.s32.totalorder %s114, %s115
      %p129 = scmp.eq.s32.totalorder %s15, 1
      %p130 = por %p128, %p129
      %p132 = scmp.ne.s32.totalorder %s115, %s131
      %p133 = scmp.eq.s32.totalorder %s15, 0
      %p134 = por %p132, %p133
      %p135 = scmp.le.s32.totalorder 1, %s9
      %p136 = scmp.lt.s32.totalorder %s9, 3
      %p137 = pnand %p135, %p136
      %p138 = pneg %p137
      // Predicated region
      $region9: #{siamese_forward.12} parent=5 // pred_check
        _
      $region10: #{siamese_forward.12} parent=5 // pred_check_branch
        %140 = sbr.rel (%p137) target = $region12
      $region11: #{siamese_forward.12} parent=5 // pred_region
        %s141 = ssub.s32 %s9, 1
        // Predicated region
        $region13: #{siamese_forward.12} parent=11 // pred_check
          %p142 = pneg %p47
        $region14: #{siamese_forward.12} parent=11 // pred_check_branch
          %144 = sbr.rel (%p142) target = $region16
        $region15: #{siamese_forward.12} parent=11 // pred_region
          %s145 = smul.u32 4, %s19
          %p146 = scmp.lt.s32.totalorder %s145, 3
          %s147 = scalar_select %p146, %s145, 3
          %s148 = smul.addr %s147, 2
          %s149 = scalar_lea.vmem %s0, %s148
          %s150 = smul.u32 4, %s19
        $region16: #{siamese_forward.12} parent=11 // pred_fallthru
          _
      $region12: #{siamese_forward.12} parent=5 // pred_fallthru
        _
      %p151 = scmp.lt.s32.totalorder %s9, 2
      // Predicated region
      $region17: #{siamese_forward.12} parent=5 // pred_check
        %p152 = pneg %p151
      $region18: #{siamese_forward.12} parent=5 // pred_check_branch
        %154 = sbr.rel (%p152) target = $region20
      $region19: #{siamese_forward.12} parent=5 // pred_region
        // Predicated region
        $region21: #{siamese_forward.12} parent=19 // pred_check
          %p155 = pneg %p69
        $region22: #{siamese_forward.12} parent=19 // pred_check_branch
          %157 = sbr.rel (%p155) target = $region24
        $region23: #{siamese_forward.12} parent=19 // pred_region
          %s158 = sand.u32 %s59, 1
          %s159 = sand.u32 %s59, 1
          %s160 = smul.addr %s159, 504
          %s161 = scalar_lea.vmem [#allocation3], %s160
          %s162 = smul.u32 63, %s17
          %s163 = smul.u32 2, %s16
          %s164 = smul.addr %s162, 4
          %s165 = sadd.s32 %s163, %s164
          %s166 = smul.addr %s165, 4
          %s167 = scalar_lea.vmem %s1, %s166
          // Predicated region
          $region25: #{siamese_forward.12} parent=23 // pred_check
            _
          $region26: #{siamese_forward.12} parent=23 // pred_check_branch
            %169 = sbr.rel (0) target = $region28
          $region27: #{siamese_forward.12} parent=23 // pred_region
            // Predicated region
            $region29: #{siamese_forward.12} parent=27 // pred_check
              _
            $region30: #{siamese_forward.12} parent=27 // pred_check_branch
              %171 = sbr.rel (0) target = $region32
            $region31: #{siamese_forward.12} parent=27 // pred_region
              // Predicated region
              $region44: #{siamese_forward.12} parent=31 // pred_check
                _
              $region45: #{siamese_forward.12} parent=31 // pred_check_branch
                %311 = sbr.rel (0) target = $region47
              $region46: #{siamese_forward.12} parent=31 // pred_region
                loop: start=0, step=1, limit=1
                $region48: #{siamese_forward.12} parent=46 // loop_pre_header
                  _
                $region49: #{siamese_forward.12} parent=46 // loop_header
                  %s313 = sphi 0, %s317
                  %p314 = scmp.ge.s32.totalorder %s313, 1
                  %s318 = sphi %s167, %s167
                  %s319 = sphi %s161, %s161
                $region50: #{siamese_forward.12} parent=46 // loop_header_branch
                  %316 = sbr.rel (%p314) target = $region54
                $region51: #{siamese_forward.12} parent=46 // loop_body
                  %v320 = vld [vmem:[%s318] sm:$0xff]
                  %321 = vst [vmem:[%s319] sm:$0xff] %v320
                  %v322 = vld [vmem:[%s318 + $0x10] sm:$0xff]
                  %323 = vst [vmem:[%s319 + $0x8] sm:$0xff] %v322
                  %v324 = vld [vmem:[%s318 + $0x20] sm:$0xff]
                  %325 = vst [vmem:[%s319 + $0x10] sm:$0xff] %v324
                  %v326 = vld [vmem:[%s318 + $0x30] sm:$0xff]
                  %327 = vst [vmem:[%s319 + $0x18] sm:$0xff] %v326
                  %v328 = vld [vmem:[%s318 + $0x40] sm:$0xff]
                  %329 = vst [vmem:[%s319 + $0x20] sm:$0xff] %v328
                  %v330 = vld [vmem:[%s318 + $0x50] sm:$0xff]
                  %331 = vst [vmem:[%s319 + $0x28] sm:$0xff] %v330
                  %v332 = vld [vmem:[%s318 + $0x60] sm:$0xff]
                  %333 = vst [vmem:[%s319 + $0x30] sm:$0xff] %v332
                  %v334 = vld [vmem:[%s318 + $0x70] sm:$0xff]
                  %335 = vst [vmem:[%s319 + $0x38] sm:$0xff] %v334
                  %v336 = vld [vmem:[%s318 + $0x80] sm:$0xff]
                  %337 = vst [vmem:[%s319 + $0x40] sm:$0xff] %v336
                  %v338 = vld [vmem:[%s318 + $0x90] sm:$0xff]
                  %339 = vst [vmem:[%s319 + $0x48] sm:$0xff] %v338
                  %v340 = vld [vmem:[%s318 + $0xa0] sm:$0xff]
                  %341 = vst [vmem:[%s319 + $0x50] sm:$0xff] %v340
                  %v342 = vld [vmem:[%s318 + $0xb0] sm:$0xff]
                  %343 = vst [vmem:[%s319 + $0x58] sm:$0xff] %v342
                  %v344 = vld [vmem:[%s318 + $0xc0] sm:$0xff]
                  %345 = vst [vmem:[%s319 + $0x60] sm:$0xff] %v344
                  %v346 = vld [vmem:[%s318 + $0xd0] sm:$0xff]
                  %347 = vst [vmem:[%s319 + $0x68] sm:$0xff] %v346
                  %v348 = vld [vmem:[%s318 + $0xe0] sm:$0xff]
                  %349 = vst [vmem:[%s319 + $0x70] sm:$0xff] %v348
                  %v350 = vld [vmem:[%s318 + $0xf0] sm:$0xff]
                  %351 = vst [vmem:[%s319 + $0x78] sm:$0xff] %v350
                  %v352 = vld [vmem:[%s318 + $0x100] sm:$0xff]
                  %353 = vst [vmem:[%s319 + $0x80] sm:$0xff] %v352
                  %v354 = vld [vmem:[%s318 + $0x110] sm:$0xff]
                  %355 = vst [vmem:[%s319 + $0x88] sm:$0xff] %v354
                  %v356 = vld [vmem:[%s318 + $0x120] sm:$0xff]
                  %357 = vst [vmem:[%s319 + $0x90] sm:$0xff] %v356
                  %v358 = vld [vmem:[%s318 + $0x130] sm:$0xff]
                  %359 = vst [vmem:[%s319 + $0x98] sm:$0xff] %v358
                  %v360 = vld [vmem:[%s318 + $0x140] sm:$0xff]
                  %361 = vst [vmem:[%s319 + $0xa0] sm:$0xff] %v360
                  %v362 = vld [vmem:[%s318 + $0x150] sm:$0xff]
                  %363 = vst [vmem:[%s319 + $0xa8] sm:$0xff] %v362
                  %v364 = vld [vmem:[%s318 + $0x160] sm:$0xff]
                  %365 = vst [vmem:[%s319 + $0xb0] sm:$0xff] %v364
                  %v366 = vld [vmem:[%s318 + $0x170] sm:$0xff]
                  %367 = vst [vmem:[%s319 + $0xb8] sm:$0xff] %v366
                  %v368 = vld [vmem:[%s318 + $0x180] sm:$0xff]
                  %369 = vst [vmem:[%s319 + $0xc0] sm:$0xff] %v368
                  %v370 = vld [vmem:[%s318 + $0x190] sm:$0xff]
                  %371 = vst [vmem:[%s319 + $0xc8] sm:$0xff] %v370
                  %v372 = vld [vmem:[%s318 + $0x1a0] sm:$0xff]
                  %373 = vst [vmem:[%s319 + $0xd0] sm:$0xff] %v372
                  %v374 = vld [vmem:[%s318 + $0x1b0] sm:$0xff]
                  %375 = vst [vmem:[%s319 + $0xd8] sm:$0xff] %v374
                  %v376 = vld [vmem:[%s318 + $0x1c0] sm:$0xff]
                  %377 = vst [vmem:[%s319 + $0xe0] sm:$0xff] %v376
                  %v378 = vld [vmem:[%s318 + $0x1d0] sm:$0xff]
                  %379 = vst [vmem:[%s319 + $0xe8] sm:$0xff] %v378
                  %v380 = vld [vmem:[%s318 + $0x1e0] sm:$0xff]
                  %381 = vst [vmem:[%s319 + $0xf0] sm:$0xff] %v380
                  %v382 = vld [vmem:[%s318 + $0x1f0] sm:$0xff]
                  %383 = vst [vmem:[%s319 + $0xf8] sm:$0xff] %v382
                  %v384 = vld [vmem:[%s318 + $0x200] sm:$0xff]
                  %385 = vst [vmem:[%s319 + $0x100] sm:$0xff] %v384
                  %v386 = vld [vmem:[%s318 + $0x210] sm:$0xff]
                  %387 = vst [vmem:[%s319 + $0x108] sm:$0xff] %v386
                  %v388 = vld [vmem:[%s318 + $0x220] sm:$0xff]
                  %389 = vst [vmem:[%s319 + $0x110] sm:$0xff] %v388
                  %v390 = vld [vmem:[%s318 + $0x230] sm:$0xff]
                  %391 = vst [vmem:[%s319 + $0x118] sm:$0xff] %v390
                  %v392 = vld [vmem:[%s318 + $0x240] sm:$0xff]
                  %393 = vst [vmem:[%s319 + $0x120] sm:$0xff] %v392
                  %v394 = vld [vmem:[%s318 + $0x250] sm:$0xff]
                  %395 = vst [vmem:[%s319 + $0x128] sm:$0xff] %v394
                  %v396 = vld [vmem:[%s318 + $0x260] sm:$0xff]
                  %397 = vst [vmem:[%s319 + $0x130] sm:$0xff] %v396
                  %v398 = vld [vmem:[%s318 + $0x270] sm:$0xff]
                  %399 = vst [vmem:[%s319 + $0x138] sm:$0xff] %v398
                  %v400 = vld [vmem:[%s318 + $0x280] sm:$0xff]
                  %401 = vst [vmem:[%s319 + $0x140] sm:$0xff] %v400
                  %v402 = vld [vmem:[%s318 + $0x290] sm:$0xff]
                  %403 = vst [vmem:[%s319 + $0x148] sm:$0xff] %v402
                  %v404 = vld [vmem:[%s318 + $0x2a0] sm:$0xff]
                  %405 = vst [vmem:[%s319 + $0x150] sm:$0xff] %v404
                  %v406 = vld [vmem:[%s318 + $0x2b0] sm:$0xff]
                  %407 = vst [vmem:[%s319 + $0x158] sm:$0xff] %v406
                  %v408 = vld [vmem:[%s318 + $0x2c0] sm:$0xff]
                  %409 = vst [vmem:[%s319 + $0x160] sm:$0xff] %v408
                  %v410 = vld [vmem:[%s318 + $0x2d0] sm:$0xff]
                  %411 = vst [vmem:[%s319 + $0x168] sm:$0xff] %v410
                  %v412 = vld [vmem:[%s318 + $0x2e0] sm:$0xff]
                  %413 = vst [vmem:[%s319 + $0x170] sm:$0xff] %v412
                  %v414 = vld [vmem:[%s318 + $0x2f0] sm:$0xff]
                  %415 = vst [vmem:[%s319 + $0x178] sm:$0xff] %v414
                  %v416 = vld [vmem:[%s318 + $0x300] sm:$0xff]
                  %417 = vst [vmem:[%s319 + $0x180] sm:$0xff] %v416
                  %v418 = vld [vmem:[%s318 + $0x310] sm:$0xff]
                  %419 = vst [vmem:[%s319 + $0x188] sm:$0xff] %v418
                  %v420 = vld [vmem:[%s318 + $0x320] sm:$0xff]
                  %421 = vst [vmem:[%s319 + $0x190] sm:$0xff] %v420
                  %v422 = vld [vmem:[%s318 + $0x330] sm:$0xff]
                  %423 = vst [vmem:[%s319 + $0x198] sm:$0xff] %v422
                  %v424 = vld [vmem:[%s318 + $0x340] sm:$0xff]
                  %425 = vst [vmem:[%s319 + $0x1a0] sm:$0xff] %v424
                  %v426 = vld [vmem:[%s318 + $0x350] sm:$0xff]
                  %427 = vst [vmem:[%s319 + $0x1a8] sm:$0xff] %v426
                  %v428 = vld [vmem:[%s318 + $0x360] sm:$0xff]
                  %429 = vst [vmem:[%s319 + $0x1b0] sm:$0xff] %v428
                  %v430 = vld [vmem:[%s318 + $0x370] sm:$0xff]
                  %431 = vst [vmem:[%s319 + $0x1b8] sm:$0xff] %v430
                  %v432 = vld [vmem:[%s318 + $0x380] sm:$0xff]
                  %433 = vst [vmem:[%s319 + $0x1c0] sm:$0xff] %v432
                  %v434 = vld [vmem:[%s318 + $0x390] sm:$0xff]
                  %435 = vst [vmem:[%s319 + $0x1c8] sm:$0xff] %v434
                  %v436 = vld [vmem:[%s318 + $0x3a0] sm:$0xff]
                  %437 = vst [vmem:[%s319 + $0x1d0] sm:$0xff] %v436
                  %v438 = vld [vmem:[%s318 + $0x3b0] sm:$0xff]
                  %439 = vst [vmem:[%s319 + $0x1d8] sm:$0xff] %v438
                  %v440 = vld [vmem:[%s318 + $0x3c0] sm:$0xff]
                  %441 = vst [vmem:[%s319 + $0x1e0] sm:$0xff] %v440
                  %v442 = vld [vmem:[%s318 + $0x3d0] sm:$0xff]
                  %443 = vst [vmem:[%s319 + $0x1e8] sm:$0xff] %v442
                  %v444 = vld [vmem:[%s318 + $0x3e0] sm:$0xff]
                  %445 = vst [vmem:[%s319 + $0x1f0] sm:$0xff] %v444
                $region52: #{siamese_forward.12} parent=46 // loop_footer
                  %s317 = sadd.s32 1, %s313
                $region53: #{siamese_forward.12} parent=46 // loop_footer_branch
                  %312 = sbr.rel target = $region49
                $region54: #{siamese_forward.12} parent=46 // loop_exit
                  _
              $region47: #{siamese_forward.12} parent=31 // pred_fallthru
                _
              // Predicated region
              $region55: #{siamese_forward.12} parent=31 // pred_check
                _
              $region56: #{siamese_forward.12} parent=31 // pred_check_branch
                %447 = sbr.rel target = $region58
              $region57: #{siamese_forward.12} parent=31 // pred_region
                _
              $region58: #{siamese_forward.12} parent=31 // pred_fallthru
                _
            $region32: #{siamese_forward.12} parent=27 // pred_fallthru
              _
            // Predicated region
            $region33: #{siamese_forward.12} parent=27 // pred_check
              _
            $region34: #{siamese_forward.12} parent=27 // pred_check_branch
              %173 = sbr.rel target = $region36
            $region35: #{siamese_forward.12} parent=27 // pred_region
              %s175 = ssub.s32 256, 1
              loop: start=0, step=1, limit=1
              $region37: #{siamese_forward.12} parent=35 // loop_pre_header
                _
              $region38: #{siamese_forward.12} parent=35 // loop_header
                %s177 = sphi 0, %s181
                %p178 = scmp.ge.s32.totalorder %s177, 1
                %s182 = sphi %s167, %s167
                %s183 = sphi %s161, %s161
              $region39: #{siamese_forward.12} parent=35 // loop_header_branch
                %180 = sbr.rel (%p178) target = $region43
              $region40: #{siamese_forward.12} parent=35 // loop_body
                %v184 = vld [vmem:[%s182] sm:%s175]
                %185 = vst [vmem:[%s183] sm:%s175] %v184
                %v186 = vld [vmem:[%s182 + $0x10] sm:%s175]
                %187 = vst [vmem:[%s183 + $0x8] sm:%s175] %v186
                %v188 = vld [vmem:[%s182 + $0x20] sm:%s175]
                %189 = vst [vmem:[%s183 + $0x10] sm:%s175] %v188
                %v190 = vld [vmem:[%s182 + $0x30] sm:%s175]
                %191 = vst [vmem:[%s183 + $0x18] sm:%s175] %v190
                %v192 = vld [vmem:[%s182 + $0x40] sm:%s175]
                %193 = vst [vmem:[%s183 + $0x20] sm:%s175] %v192
                %v194 = vld [vmem:[%s182 + $0x50] sm:%s175]
                %195 = vst [vmem:[%s183 + $0x28] sm:%s175] %v194
                %v196 = vld [vmem:[%s182 + $0x60] sm:%s175]
                %197 = vst [vmem:[%s183 + $0x30] sm:%s175] %v196
                %v198 = vld [vmem:[%s182 + $0x70] sm:%s175]
                %199 = vst [vmem:[%s183 + $0x38] sm:%s175] %v198
                %v200 = vld [vmem:[%s182 + $0x80] sm:%s175]
                %201 = vst [vmem:[%s183 + $0x40] sm:%s175] %v200
                %v202 = vld [vmem:[%s182 + $0x90] sm:%s175]
                %203 = vst [vmem:[%s183 + $0x48] sm:%s175] %v202
                %v204 = vld [vmem:[%s182 + $0xa0] sm:%s175]
                %205 = vst [vmem:[%s183 + $0x50] sm:%s175] %v204
                %v206 = vld [vmem:[%s182 + $0xb0] sm:%s175]
                %207 = vst [vmem:[%s183 + $0x58] sm:%s175] %v206
                %v208 = vld [vmem:[%s182 + $0xc0] sm:%s175]
                %209 = vst [vmem:[%s183 + $0x60] sm:%s175] %v208
                %v210 = vld [vmem:[%s182 + $0xd0] sm:%s175]
                %211 = vst [vmem:[%s183 + $0x68] sm:%s175] %v210
                %v212 = vld [vmem:[%s182 + $0xe0] sm:%s175]
                %213 = vst [vmem:[%s183 + $0x70] sm:%s175] %v212
                %v214 = vld [vmem:[%s182 + $0xf0] sm:%s175]
                %215 = vst [vmem:[%s183 + $0x78] sm:%s175] %v214
                %v216 = vld [vmem:[%s182 + $0x100] sm:%s175]
                %217 = vst [vmem:[%s183 + $0x80] sm:%s175] %v216
                %v218 = vld [vmem:[%s182 + $0x110] sm:%s175]
                %219 = vst [vmem:[%s183 + $0x88] sm:%s175] %v218
                %v220 = vld [vmem:[%s182 + $0x120] sm:%s175]
                %221 = vst [vmem:[%s183 + $0x90] sm:%s175] %v220
                %v222 = vld [vmem:[%s182 + $0x130] sm:%s175]
                %223 = vst [vmem:[%s183 + $0x98] sm:%s175] %v222
                %v224 = vld [vmem:[%s182 + $0x140] sm:%s175]
                %225 = vst [vmem:[%s183 + $0xa0] sm:%s175] %v224
                %v226 = vld [vmem:[%s182 + $0x150] sm:%s175]
                %227 = vst [vmem:[%s183 + $0xa8] sm:%s175] %v226
                %v228 = vld [vmem:[%s182 + $0x160] sm:%s175]
                %229 = vst [vmem:[%s183 + $0xb0] sm:%s175] %v228
                %v230 = vld [vmem:[%s182 + $0x170] sm:%s175]
                %231 = vst [vmem:[%s183 + $0xb8] sm:%s175] %v230
                %v232 = vld [vmem:[%s182 + $0x180] sm:%s175]
                %233 = vst [vmem:[%s183 + $0xc0] sm:%s175] %v232
                %v234 = vld [vmem:[%s182 + $0x190] sm:%s175]
                %235 = vst [vmem:[%s183 + $0xc8] sm:%s175] %v234
                %v236 = vld [vmem:[%s182 + $0x1a0] sm:%s175]
                %237 = vst [vmem:[%s183 + $0xd0] sm:%s175] %v236
                %v238 = vld [vmem:[%s182 + $0x1b0] sm:%s175]
                %239 = vst [vmem:[%s183 + $0xd8] sm:%s175] %v238
                %v240 = vld [vmem:[%s182 + $0x1c0] sm:%s175]
                %241 = vst [vmem:[%s183 + $0xe0] sm:%s175] %v240
                %v242 = vld [vmem:[%s182 + $0x1d0] sm:%s175]
                %243 = vst [vmem:[%s183 + $0xe8] sm:%s175] %v242
                %v244 = vld [vmem:[%s182 + $0x1e0] sm:%s175]
                %245 = vst [vmem:[%s183 + $0xf0] sm:%s175] %v244
                %v246 = vld [vmem:[%s182 + $0x1f0] sm:%s175]
                %247 = vst [vmem:[%s183 + $0xf8] sm:%s175] %v246
                %v248 = vld [vmem:[%s182 + $0x200] sm:%s175]
                %249 = vst [vmem:[%s183 + $0x100] sm:%s175] %v248
                %v250 = vld [vmem:[%s182 + $0x210] sm:%s175]
                %251 = vst [vmem:[%s183 + $0x108] sm:%s175] %v250
                %v252 = vld [vmem:[%s182 + $0x220] sm:%s175]
                %253 = vst [vmem:[%s183 + $0x110] sm:%s175] %v252
                %v254 = vld [vmem:[%s182 + $0x230] sm:%s175]
                %255 = vst [vmem:[%s183 + $0x118] sm:%s175] %v254
                %v256 = vld [vmem:[%s182 + $0x240] sm:%s175]
                %257 = vst [vmem:[%s183 + $0x120] sm:%s175] %v256
                %v258 = vld [vmem:[%s182 + $0x250] sm:%s175]
                %259 = vst [vmem:[%s183 + $0x128] sm:%s175] %v258
                %v260 = vld [vmem:[%s182 + $0x260] sm:%s175]
                %261 = vst [vmem:[%s183 + $0x130] sm:%s175] %v260
                %v262 = vld [vmem:[%s182 + $0x270] sm:%s175]
                %263 = vst [vmem:[%s183 + $0x138] sm:%s175] %v262
                %v264 = vld [vmem:[%s182 + $0x280] sm:%s175]
                %265 = vst [vmem:[%s183 + $0x140] sm:%s175] %v264
                %v266 = vld [vmem:[%s182 + $0x290] sm:%s175]
                %267 = vst [vmem:[%s183 + $0x148] sm:%s175] %v266
                %v268 = vld [vmem:[%s182 + $0x2a0] sm:%s175]
                %269 = vst [vmem:[%s183 + $0x150] sm:%s175] %v268
                %v270 = vld [vmem:[%s182 + $0x2b0] sm:%s175]
                %271 = vst [vmem:[%s183 + $0x158] sm:%s175] %v270
                %v272 = vld [vmem:[%s182 + $0x2c0] sm:%s175]
                %273 = vst [vmem:[%s183 + $0x160] sm:%s175] %v272
                %v274 = vld [vmem:[%s182 + $0x2d0] sm:%s175]
                %275 = vst [vmem:[%s183 + $0x168] sm:%s175] %v274
                %v276 = vld [vmem:[%s182 + $0x2e0] sm:%s175]
                %277 = vst [vmem:[%s183 + $0x170] sm:%s175] %v276
                %v278 = vld [vmem:[%s182 + $0x2f0] sm:%s175]
                %279 = vst [vmem:[%s183 + $0x178] sm:%s175] %v278
                %v280 = vld [vmem:[%s182 + $0x300] sm:%s175]
                %281 = vst [vmem:[%s183 + $0x180] sm:%s175] %v280
                %v282 = vld [vmem:[%s182 + $0x310] sm:%s175]
                %283 = vst [vmem:[%s183 + $0x188] sm:%s175] %v282
                %v284 = vld [vmem:[%s182 + $0x320] sm:%s175]
                %285 = vst [vmem:[%s183 + $0x190] sm:%s175] %v284
                %v286 = vld [vmem:[%s182 + $0x330] sm:%s175]
                %287 = vst [vmem:[%s183 + $0x198] sm:%s175] %v286
                %v288 = vld [vmem:[%s182 + $0x340] sm:%s175]
                %289 = vst [vmem:[%s183 + $0x1a0] sm:%s175] %v288
                %v290 = vld [vmem:[%s182 + $0x350] sm:%s175]
                %291 = vst [vmem:[%s183 + $0x1a8] sm:%s175] %v290
                %v292 = vld [vmem:[%s182 + $0x360] sm:%s175]
                %293 = vst [vmem:[%s183 + $0x1b0] sm:%s175] %v292
                %v294 = vld [vmem:[%s182 + $0x370] sm:%s175]
                %295 = vst [vmem:[%s183 + $0x1b8] sm:%s175] %v294
                %v296 = vld [vmem:[%s182 + $0x380] sm:%s175]
                %297 = vst [vmem:[%s183 + $0x1c0] sm:%s175] %v296
                %v298 = vld [vmem:[%s182 + $0x390] sm:%s175]
                %299 = vst [vmem:[%s183 + $0x1c8] sm:%s175] %v298
                %v300 = vld [vmem:[%s182 + $0x3a0] sm:%s175]
                %301 = vst [vmem:[%s183 + $0x1d0] sm:%s175] %v300
                %v302 = vld [vmem:[%s182 + $0x3b0] sm:%s175]
                %303 = vst [vmem:[%s183 + $0x1d8] sm:%s175] %v302
                %v304 = vld [vmem:[%s182 + $0x3c0] sm:%s175]
                %305 = vst [vmem:[%s183 + $0x1e0] sm:%s175] %v304
                %v306 = vld [vmem:[%s182 + $0x3d0] sm:%s175]
                %307 = vst [vmem:[%s183 + $0x1e8] sm:%s175] %v306
                %v308 = vld [vmem:[%s182 + $0x3e0] sm:%s175]
                %309 = vst [vmem:[%s183 + $0x1f0] sm:%s175] %v308
              $region41: #{siamese_forward.12} parent=35 // loop_footer
                %s181 = sadd.s32 1, %s177
              $region42: #{siamese_forward.12} parent=35 // loop_footer_branch
                %176 = sbr.rel target = $region38
              $region43: #{siamese_forward.12} parent=35 // loop_exit
                _
            $region36: #{siamese_forward.12} parent=27 // pred_fallthru
              _
          $region28: #{siamese_forward.12} parent=23 // pred_fallthru
            _
          %448 = vnop
        $region24: #{siamese_forward.12} parent=19 // pred_fallthru
          _
        // Predicated region
        $region59: #{siamese_forward.12} parent=19 // pred_check
          %p449 = pneg %p95
        $region60: #{siamese_forward.12} parent=19 // pred_check_branch
          %451 = sbr.rel (%p449) target = $region62
        $region61: #{siamese_forward.12} parent=19 // pred_region
          %s452 = smul.u32 2, %s16
          %p453 = scmp.lt.s32.totalorder %s452, 3
          %s454 = scalar_select %p453, %s452, 3
          %s455 = scalar_lea.vmem %s2, %s454
          %s456 = smul.u32 2, %s16
        $region62: #{siamese_forward.12} parent=19 // pred_fallthru
          _
      $region20: #{siamese_forward.12} parent=5 // pred_fallthru
        _
      %p457 = scmp.le.s32.totalorder 1, %s9
      %p458 = scmp.lt.s32.totalorder %s9, 3
      %p459 = pnand %p457, %p458
      %p460 = pneg %p459
      // Predicated region
      $region63: #{siamese_forward.12} parent=5 // pred_check
        _
      $region64: #{siamese_forward.12} parent=5 // pred_check_branch
        %462 = sbr.rel (%p459) target = $region66
      $region65: #{siamese_forward.12} parent=5 // pred_region
        %s463 = ssub.s32 %s9, 1
        %s464 = sand.u32 %s62, 1
        %s465 = sand.u32 %s62, 1
        %s466 = smul.addr %s465, 504
        %s467 = scalar_lea.vmem [#allocation3], %s466
        // Predicated region
        $region67: #{siamese_forward.12} parent=65 // pred_check
          %p468 = pneg %p75
        $region68: #{siamese_forward.12} parent=65 // pred_check_branch
          %470 = sbr.rel (%p468) target = $region70
        $region69: #{siamese_forward.12} parent=65 // pred_region
          _
        $region70: #{siamese_forward.12} parent=65 // pred_fallthru
          _
        %s471 = smul.u32 4, %s19
        %p472 = scmp.lt.s32.totalorder %s471, 3
        %s473 = scalar_select %p472, %s471, 3
        %s474 = smul.addr %s473, 2
        %s475 = scalar_lea.vmem %s0, %s474
        %p476 = pneg %p47
        %p477 = pneg %p44
        %s478 = sand.u32 %s62, 1
        %s479 = sand.u32 %s62, 1
        %s480 = smul.addr %s479, 504
        %s481 = scalar_lea.vmem [#allocation3], %s480
        %p482 = pneg %p75
        %p483 = pneg %p72
        %s484 = smul.u32 2, %s18
        %p485 = scmp.lt.s32.totalorder %s484, 3
        %s486 = scalar_select %p485, %s484, 3
        %s487 = scalar_lea.vmem %s2, %s486
        %p488 = pneg %p101
        %p489 = pneg %p98
        %p490 = pneg %p127
        %p491 = pneg %p124
        %s492 = smul.u32 2, %s18
        %p493 = scmp.lt.s32.totalorder %s492, 3
        %s494 = scalar_select %p493, %s492, 3
        %s495 = smul.addr %s494, 4
        %s496 = scalar_lea.vmem %s3, %s495
        %s497 = smul.u32 4, %s19
        %p498 = scmp.lt.s32.totalorder %s497, 3
        %s499 = scalar_select %p498, %s497, 3
        %s500 = smul.addr %s499, 2
        %s501 = scalar_lea.vmem %s0, %s500
        %s502 = smul.u32 4, %s19
        %s503 = smul.u32 63, %s19
        %s504 = smul.u32 2, %s18
        %s505 = smul.u32 2, %s18
        %p506 = scmp.lt.s32.totalorder %s505, 3
        %s507 = scalar_select %p506, %s505, 3
        %s508 = scalar_lea.vmem %s2, %s507
        %s509 = smul.u32 2, %s18
        %s510 = smul.u32 2, %s18
        %p511 = scmp.lt.s32.totalorder %s510, 3
        %s512 = scalar_select %p511, %s510, 3
        %s513 = smul.addr %s512, 4
        %s514 = scalar_lea.vmem %s3, %s513
        %s515 = smul.u32 2, %s18
        %p516 = scmp.eq.s32.totalorder %s19, 0
        // Predicated region
        $region71: #{siamese_forward.12} parent=65 // pred_check
          %p517 = pneg %p516
        $region72: #{siamese_forward.12} parent=65 // pred_check_branch
          %519 = sbr.rel (%p517) target = $region74
        $region73: #{siamese_forward.12} parent=65 // pred_region
          %520 = vst [vmem:[#allocation2] sm:$0xff] 0.0
        $region74: #{siamese_forward.12} parent=65 // pred_fallthru
          _
        %v521 = vld [vmem:[#allocation2] sm:$0xff]
        %v522 = vld [vmem:[%s501] sm:$0xff]
        %v523 = vld [vmem:[%s467] sm:$0xff]
        %v524 = vld [vmem:[%s467 + $0x8] sm:$0xff]
        %v525 = vld [vmem:[%s467 + $0x10] sm:$0xff]
        %v526 = vld [vmem:[%s467 + $0x18] sm:$0xff]
        %v527 = vld [vmem:[%s467 + $0x20] sm:$0xff]
        %v528 = vld [vmem:[%s467 + $0x28] sm:$0xff]
        %v529 = vld [vmem:[%s467 + $0x30] sm:$0xff]
        %v530 = vld [vmem:[%s467 + $0x38] sm:$0xff]
        %v531 = vld [vmem:[%s467 + $0x40] sm:$0xff]
        %v532 = vld [vmem:[%s467 + $0x48] sm:$0xff]
        %v533 = vld [vmem:[%s467 + $0x50] sm:$0xff]
        %v534 = vld [vmem:[%s467 + $0x58] sm:$0xff]
        %v535 = vld [vmem:[%s467 + $0x60] sm:$0xff]
        %v536 = vld [vmem:[%s467 + $0x68] sm:$0xff]
        %v537 = vld [vmem:[%s467 + $0x70] sm:$0xff]
        %v538 = vld [vmem:[%s467 + $0x78] sm:$0xff]
        %v539 = vld [vmem:[%s467 + $0x80] sm:$0xff]
        %v540 = vld [vmem:[%s467 + $0x88] sm:$0xff]
        %v541 = vld [vmem:[%s467 + $0x90] sm:$0xff]
        %v542 = vld [vmem:[%s467 + $0x98] sm:$0xff]
        %v543 = vld [vmem:[%s467 + $0xa0] sm:$0xff]
        %v544 = vld [vmem:[%s467 + $0xa8] sm:$0xff]
        %v545 = vld [vmem:[%s467 + $0xb0] sm:$0xff]
        %v546 = vld [vmem:[%s467 + $0xb8] sm:$0xff]
        %v547 = vld [vmem:[%s467 + $0xc0] sm:$0xff]
        %v548 = vld [vmem:[%s467 + $0xc8] sm:$0xff]
        %v549 = vld [vmem:[%s467 + $0xd0] sm:$0xff]
        %v550 = vld [vmem:[%s467 + $0xd8] sm:$0xff]
        %v551 = vld [vmem:[%s467 + $0xe0] sm:$0xff]
        %v552 = vld [vmem:[%s467 + $0xe8] sm:$0xff]
        %v553 = vld [vmem:[%s467 + $0xf0] sm:$0xff]
        %v554 = vld [vmem:[%s467 + $0xf8] sm:$0xff]
        %v555 = vld [vmem:[%s467 + $0x100] sm:$0xff]
        %v556 = vld [vmem:[%s467 + $0x108] sm:$0xff]
        %v557 = vld [vmem:[%s467 + $0x110] sm:$0xff]
        %v558 = vld [vmem:[%s467 + $0x118] sm:$0xff]
        %v559 = vld [vmem:[%s467 + $0x120] sm:$0xff]
        %v560 = vld [vmem:[%s467 + $0x128] sm:$0xff]
        %v561 = vld [vmem:[%s467 + $0x130] sm:$0xff]
        %v562 = vld [vmem:[%s467 + $0x138] sm:$0xff]
        %v563 = vld [vmem:[%s467 + $0x140] sm:$0xff]
        %v564 = vld [vmem:[%s467 + $0x148] sm:$0xff]
        %v565 = vld [vmem:[%s467 + $0x150] sm:$0xff]
        %v566 = vld [vmem:[%s467 + $0x158] sm:$0xff]
        %v567 = vld [vmem:[%s467 + $0x160] sm:$0xff]
        %v568 = vld [vmem:[%s467 + $0x168] sm:$0xff]
        %v569 = vld [vmem:[%s467 + $0x170] sm:$0xff]
        %v570 = vld [vmem:[%s467 + $0x178] sm:$0xff]
        %v571 = vld [vmem:[%s467 + $0x180] sm:$0xff]
        %v572 = vld [vmem:[%s467 + $0x188] sm:$0xff]
        %v573 = vld [vmem:[%s467 + $0x190] sm:$0xff]
        %v574 = vld [vmem:[%s467 + $0x198] sm:$0xff]
        %v575 = vld [vmem:[%s467 + $0x1a0] sm:$0xff]
        %v576 = vld [vmem:[%s467 + $0x1a8] sm:$0xff]
        %v577 = vld [vmem:[%s467 + $0x1b0] sm:$0xff]
        %v578 = vld [vmem:[%s467 + $0x1b8] sm:$0xff]
        %v579 = vld [vmem:[%s467 + $0x1c0] sm:$0xff]
        %v580 = vld [vmem:[%s467 + $0x1c8] sm:$0xff]
        %v581 = vld [vmem:[%s467 + $0x1d0] sm:$0xff]
        %v582 = vld [vmem:[%s467 + $0x1d8] sm:$0xff]
        %v583 = vld [vmem:[%s467 + $0x1e0] sm:$0xff]
        %v584 = vld [vmem:[%s467 + $0x1e8] sm:$0xff]
        %v585 = vld [vmem:[%s467 + $0x1f0] sm:$0x33]
        %v587 = vcombine.high %v522, %v522
        %v589 = vunpack.c.l.s4 1983009808
        %v590 = vunpack.c.0.s8 %v589
        %v591 = vlaneseq
        %v592 = vshrl.u32 %v591, 7
        %v593 = vsub.s32 %v590, %v592
        %v594 = vrot.slane %v522, %v593
        %v596 = vunpack.c.l.s4 1983009808
        %v597 = vunpack.c.0.s8 %v596
        %v598 = vlaneseq
        %v599 = vshrl.u32 %v598, 7
        %v600 = vsub.s32 %v597, %v599
        %v601 = vrot.slane %v587, %v600
        %v602 = vcombine.high %v594, %v594
        %v603 = vcombine.high %v601, %v601
        %v670 = vunpack.c.l.b16 %v523
        %v671 = vunpack.c.h.b16 %v523
        %v672 = vunpack.c.l.b16 %v524
        %v673 = vunpack.c.h.b16 %v524
        %v674 = vunpack.c.l.b16 %v525
        %v675 = vunpack.c.h.b16 %v525
        %v676 = vunpack.c.l.b16 %v526
        %v677 = vunpack.c.h.b16 %v526
        %v678 = vunpack.c.l.b16 %v527
        %v679 = vunpack.c.h.b16 %v527
        %v680 = vunpack.c.l.b16 %v528
        %v681 = vunpack.c.h.b16 %v528
        %v682 = vunpack.c.l.b16 %v529
        %v683 = vunpack.c.h.b16 %v529
        %v684 = vunpack.c.l.b16 %v530
        %v685 = vunpack.c.h.b16 %v530
        %v686 = vunpack.c.l.b16 %v531
        %v687 = vunpack.c.h.b16 %v531
        %v688 = vunpack.c.l.b16 %v532
        %v689 = vunpack.c.h.b16 %v532
        %v690 = vunpack.c.l.b16 %v533
        %v691 = vunpack.c.h.b16 %v533
        %v692 = vunpack.c.l.b16 %v534
        %v693 = vunpack.c.h.b16 %v534
        %v694 = vunpack.c.l.b16 %v535
        %v695 = vunpack.c.h.b16 %v535
        %v696 = vunpack.c.l.b16 %v536
        %v697 = vunpack.c.h.b16 %v536
        %v698 = vunpack.c.l.b16 %v537
        %v699 = vunpack.c.h.b16 %v537
        %v700 = vunpack.c.l.b16 %v538
        %v701 = vunpack.c.h.b16 %v538
        %v702 = vunpack.c.l.b16 %v539
        %v703 = vunpack.c.h.b16 %v539
        %v704 = vunpack.c.l.b16 %v540
        %v705 = vunpack.c.h.b16 %v540
        %v706 = vunpack.c.l.b16 %v541
        %v707 = vunpack.c.h.b16 %v541
        %v708 = vunpack.c.l.b16 %v542
        %v709 = vunpack.c.h.b16 %v542
        %v710 = vunpack.c.l.b16 %v543
        %v711 = vunpack.c.h.b16 %v543
        %v712 = vunpack.c.l.b16 %v544
        %v713 = vunpack.c.h.b16 %v544
        %v714 = vunpack.c.l.b16 %v545
        %v715 = vunpack.c.h.b16 %v545
        %v716 = vunpack.c.l.b16 %v546
        %v717 = vunpack.c.h.b16 %v546
        %v718 = vunpack.c.l.b16 %v547
        %v719 = vunpack.c.h.b16 %v547
        %v720 = vunpack.c.l.b16 %v548
        %v721 = vunpack.c.h.b16 %v548
        %v722 = vunpack.c.l.b16 %v549
        %v723 = vunpack.c.h.b16 %v549
        %v724 = vunpack.c.l.b16 %v550
        %v725 = vunpack.c.h.b16 %v550
        %v726 = vunpack.c.l.b16 %v551
        %v727 = vunpack.c.h.b16 %v551
        %v728 = vunpack.c.l.b16 %v552
        %v729 = vunpack.c.h.b16 %v552
        %v730 = vunpack.c.l.b16 %v553
        %v731 = vunpack.c.h.b16 %v553
        %v732 = vunpack.c.l.b16 %v554
        %v733 = vunpack.c.h.b16 %v554
        %v734 = vunpack.c.l.b16 %v555
        %v735 = vunpack.c.h.b16 %v555
        %v736 = vunpack.c.l.b16 %v556
        %v737 = vunpack.c.h.b16 %v556
        %v738 = vunpack.c.l.b16 %v557
        %v739 = vunpack.c.h.b16 %v557
        %v740 = vunpack.c.l.b16 %v558
        %v741 = vunpack.c.h.b16 %v558
        %v742 = vunpack.c.l.b16 %v559
        %v743 = vunpack.c.h.b16 %v559
        %v744 = vunpack.c.l.b16 %v560
        %v745 = vunpack.c.h.b16 %v560
        %v746 = vunpack.c.l.b16 %v561
        %v747 = vunpack.c.h.b16 %v561
        %v748 = vunpack.c.l.b16 %v562
        %v749 = vunpack.c.h.b16 %v562
        %v750 = vunpack.c.l.b16 %v563
        %v751 = vunpack.c.h.b16 %v563
        %v752 = vunpack.c.l.b16 %v564
        %v753 = vunpack.c.h.b16 %v564
        %v754 = vunpack.c.l.b16 %v565
        %v755 = vunpack.c.h.b16 %v565
        %v756 = vunpack.c.l.b16 %v566
        %v757 = vunpack.c.h.b16 %v566
        %v758 = vunpack.c.l.b16 %v567
        %v759 = vunpack.c.h.b16 %v567
        %v760 = vunpack.c.l.b16 %v568
        %v761 = vunpack.c.h.b16 %v568
        %v762 = vunpack.c.l.b16 %v569
        %v763 = vunpack.c.h.b16 %v569
        %v764 = vunpack.c.l.b16 %v570
        %v765 = vunpack.c.h.b16 %v570
        %v766 = vunpack.c.l.b16 %v571
        %v767 = vunpack.c.h.b16 %v571
        %v768 = vunpack.c.l.b16 %v572
        %v769 = vunpack.c.h.b16 %v572
        %v770 = vunpack.c.l.b16 %v573
        %v771 = vunpack.c.h.b16 %v573
        %v772 = vunpack.c.l.b16 %v574
        %v773 = vunpack.c.h.b16 %v574
        %v774 = vunpack.c.l.b16 %v575
        %v775 = vunpack.c.h.b16 %v575
        %v776 = vunpack.c.l.b16 %v576
        %v777 = vunpack.c.h.b16 %v576
        %v778 = vunpack.c.l.b16 %v577
        %v779 = vunpack.c.h.b16 %v577
        %v780 = vunpack.c.l.b16 %v578
        %v781 = vunpack.c.h.b16 %v578
        %v782 = vunpack.c.l.b16 %v579
        %v783 = vunpack.c.h.b16 %v579
        %v784 = vunpack.c.l.b16 %v580
        %v785 = vunpack.c.h.b16 %v580
        %v786 = vunpack.c.l.b16 %v581
        %v787 = vunpack.c.h.b16 %v581
        %v788 = vunpack.c.l.b16 %v582
        %v789 = vunpack.c.h.b16 %v582
        %v790 = vunpack.c.l.b16 %v583
        %v791 = vunpack.c.h.b16 %v583
        %v792 = vunpack.c.l.b16 %v584
        %v793 = vunpack.c.h.b16 %v584
        %v794 = vunpack.c.l.b16 %v585
        %v795 = vunpack.c.h.b16 %v585
        %v796 = vpack.c.b16 %v672, %v670
        %v797 = vpack.c.b16 %v673, %v671
        %v798 = vpack.c.b16 %v676, %v674
        %v799 = vpack.c.b16 %v677, %v675
        %v800 = vpack.c.b16 %v680, %v678
        %v801 = vpack.c.b16 %v681, %v679
        %v802 = vpack.c.b16 %v684, %v682
        %v803 = vpack.c.b16 %v685, %v683
        %v804 = vpack.c.b16 %v688, %v686
        %v805 = vpack.c.b16 %v689, %v687
        %v806 = vpack.c.b16 %v692, %v690
        %v807 = vpack.c.b16 %v693, %v691
        %v808 = vpack.c.b16 %v696, %v694
        %v809 = vpack.c.b16 %v697, %v695
        %v810 = vpack.c.b16 %v700, %v698
        %v811 = vpack.c.b16 %v701, %v699
        %v812 = vpack.c.b16 %v704, %v702
        %v813 = vpack.c.b16 %v705, %v703
        %v814 = vpack.c.b16 %v708, %v706
        %v815 = vpack.c.b16 %v709, %v707
        %v816 = vpack.c.b16 %v712, %v710
        %v817 = vpack.c.b16 %v713, %v711
        %v818 = vpack.c.b16 %v716, %v714
        %v819 = vpack.c.b16 %v717, %v715
        %v820 = vpack.c.b16 %v720, %v718
        %v821 = vpack.c.b16 %v721, %v719
        %v822 = vpack.c.b16 %v724, %v722
        %v823 = vpack.c.b16 %v725, %v723
        %v824 = vpack.c.b16 %v728, %v726
        %v825 = vpack.c.b16 %v729, %v727
        %v826 = vpack.c.b16 %v732, %v730
        %v827 = vpack.c.b16 %v733, %v731
        %v828 = vpack.c.b16 %v736, %v734
        %v829 = vpack.c.b16 %v737, %v735
        %v830 = vpack.c.b16 %v740, %v738
        %v831 = vpack.c.b16 %v741, %v739
        %v832 = vpack.c.b16 %v744, %v742
        %v833 = vpack.c.b16 %v745, %v743
        %v834 = vpack.c.b16 %v748, %v746
        %v835 = vpack.c.b16 %v749, %v747
        %v836 = vpack.c.b16 %v752, %v750
        %v837 = vpack.c.b16 %v753, %v751
        %v838 = vpack.c.b16 %v756, %v754
        %v839 = vpack.c.b16 %v757, %v755
        %v840 = vpack.c.b16 %v760, %v758
        %v841 = vpack.c.b16 %v761, %v759
        %v842 = vpack.c.b16 %v764, %v762
        %v843 = vpack.c.b16 %v765, %v763
        %v844 = vpack.c.b16 %v768, %v766
        %v845 = vpack.c.b16 %v769, %v767
        %v846 = vpack.c.b16 %v772, %v770
        %v847 = vpack.c.b16 %v773, %v771
        %v848 = vpack.c.b16 %v776, %v774
        %v849 = vpack.c.b16 %v777, %v775
        %v850 = vpack.c.b16 %v780, %v778
        %v851 = vpack.c.b16 %v781, %v779
        %v852 = vpack.c.b16 %v784, %v782
        %v853 = vpack.c.b16 %v785, %v783
        %v854 = vpack.c.b16 %v788, %v786
        %v855 = vpack.c.b16 %v789, %v787
        %v856 = vpack.c.b16 %v792, %v790
        %v857 = vpack.c.b16 %v793, %v791
        %v858 = vpack.c.b16 %v794, %v794
        %v859 = vpack.c.b16 %v795, %v795
        %vm922 = vcmask 949248
        %v924 = vsel %vm922, %v603, 0
        %vm926 = vcmask 1041408
        %v928 = vsel %vm926, %v858, 0
        %v931 = vsel %vm926, %v859, 0
        %933 = vmatprep.subr.bf16.mxu0 %v811
        %934 = vmatpush1.bf16.msra.mxu0 %v810
        %935 = vmatprep.subr.bf16.mxu0 %v809
        %936 = vmatpush1.bf16.msra.mxu0 %v808
        %937 = vmatprep.subr.bf16.mxu0 %v807
        %938 = vmatpush1.bf16.msra.mxu0 %v806
        %939 = vmatprep.subr.bf16.mxu0 %v805
        %940 = vmatpush1.bf16.msra.mxu0 %v804
        %941 = vmatprep.subr.bf16.mxu0 %v803
        %942 = vmatpush1.bf16.msra.mxu0 %v802
        %943 = vmatprep.subr.bf16.mxu0 %v801
        %944 = vmatpush1.bf16.msra.mxu0 %v800
        %945 = vmatprep.subr.bf16.mxu0 %v799
        %946 = vmatpush1.bf16.msra.mxu0 %v798
        %947 = vmatprep.subr.bf16.mxu0 %v797
        %948 = vmatpush1.bf16.msra.mxu0 %v796
        %949 = vmatprep.subr.bf16.mxu0 %v827
        %950 = vmatpush2.bf16.msra.mxu0 %v826
        %951 = vmatprep.subr.bf16.mxu0 %v825
        %952 = vmatpush2.bf16.msra.mxu0 %v824
        %953 = vmatprep.subr.bf16.mxu0 %v823
        %954 = vmatpush2.bf16.msra.mxu0 %v822
        %955 = vmatprep.subr.bf16.mxu0 %v821
        %956 = vmatpush2.bf16.msra.mxu0 %v820
        %957 = vmatprep.subr.bf16.mxu0 %v819
        %958 = vmatpush2.bf16.msra.mxu0 %v818
        %959 = vmatprep.subr.bf16.mxu0 %v817
        %960 = vmatpush2.bf16.msra.mxu0 %v816
        %961 = vmatprep.subr.bf16.mxu0 %v815
        %962 = vmatpush2.bf16.msra.mxu0 %v814
        %963 = vmatprep.subr.bf16.mxu0 %v813
        %964 = vmatpush2.bf16.msra.mxu0 %v812
        %965 = vmatprep.mubr.bf16.mxu0 %v602
        %966 = vmatmul.mubr.bf16.gmra.mxu0 %v594
        %v967 = vpop.f32.mrf.mxu0
        %v968 = vadd.f32 0.0, %v967
        %v969 = vpop.f32.mrf.mxu0
        %v970 = vadd.f32 0.0, %v969
        %v971 = vpop.f32.mrf.mxu0
        %v972 = vpop.f32.mrf.mxu0
        %973 = vdwg.mxu0
        %974 = vmatprep.subr.bf16.mxu0 %v843
        %975 = vmatpush1.bf16.msra.mxu0 %v842
        %976 = vmatprep.subr.bf16.mxu0 %v841
        %977 = vmatpush1.bf16.msra.mxu0 %v840
        %978 = vmatprep.subr.bf16.mxu0 %v839
        %979 = vmatpush1.bf16.msra.mxu0 %v838
        %980 = vmatprep.subr.bf16.mxu0 %v837
        %981 = vmatpush1.bf16.msra.mxu0 %v836
        %982 = vmatprep.subr.bf16.mxu0 %v835
        %983 = vmatpush1.bf16.msra.mxu0 %v834
        %984 = vmatprep.subr.bf16.mxu0 %v833
        %985 = vmatpush1.bf16.msra.mxu0 %v832
        %986 = vmatprep.subr.bf16.mxu0 %v831
        %987 = vmatpush1.bf16.msra.mxu0 %v830
        %988 = vmatprep.subr.bf16.mxu0 %v829
        %989 = vmatpush1.bf16.msra.mxu0 %v828
        %990 = vmatprep.subr.bf16.mxu0 %v931
        %991 = vmatpush2.bf16.msra.mxu0 %v928
        %992 = vmatprep.subr.bf16.mxu0 %v857
        %993 = vmatpush2.bf16.msra.mxu0 %v856
        %994 = vmatprep.subr.bf16.mxu0 %v855
        %995 = vmatpush2.bf16.msra.mxu0 %v854
        %996 = vmatprep.subr.bf16.mxu0 %v853
        %997 = vmatpush2.bf16.msra.mxu0 %v852
        %998 = vmatprep.subr.bf16.mxu0 %v851
        %999 = vmatpush2.bf16.msra.mxu0 %v850
        %1000 = vmatprep.subr.bf16.mxu0 %v849
        %1001 = vmatpush2.bf16.msra.mxu0 %v848
        %1002 = vmatprep.subr.bf16.mxu0 %v847
        %1003 = vmatpush2.bf16.msra.mxu0 %v846
        %1004 = vmatprep.subr.bf16.mxu0 %v845
        %1005 = vmatpush2.bf16.msra.mxu0 %v844
        %1006 = vmatprep.mubr.bf16.mxu0 %v924
        %1007 = vmatmul.mubr.bf16.gmra.mxu0 %v601
        %v1008 = vpop.f32.mrf.mxu0
        %v1009 = vadd.f32 %v968, %v1008
        %v1010 = vpop.f32.mrf.mxu0
        %v1011 = vadd.f32 %v970, %v1010
        %v1012 = vpop.f32.mrf.mxu0
        %v1013 = vpop.f32.mrf.mxu0
        %1014 = vdwg.mxu0
        %v1017 = vcombine.low %v1009, %v1011
        %v1019 = vadd.f32 %v521, %v1017
        %1020 = vst [vmem:[#allocation2] sm:$0xff] %v1019
        // Predicated region
        $region75: #{siamese_forward.12} parent=65 // pred_check
          %p1021 = pneg %p516
        $region76: #{siamese_forward.12} parent=65 // pred_check_branch
          %1023 = sbr.rel (%p1021) target = $region78
        $region77: #{siamese_forward.12} parent=65 // pred_region
          %v1024 = vld [vmem:[#allocation2] sm:$0xff]
          %v1025 = vld [vmem:[%s508] sm:$0x3]
          %v1027 = vlaneseq
          %v1028 = vshrl.u32 %v1027, 7
          %v1029 = vsub.s32 0, %v1028
          %v1030 = vrot.slane %v1025, %v1029
          %v1031 = vlaneseq
          %v1032 = vshrl.u32 %v1031, 7
          %v1033 = vsub.s32 1, %v1032
          %v1034 = vrot.slane %v1025, %v1033
          %v1035 = vcombine.low %v1030, %v1034
          %v1037 = vadd.f32 %v1024, %v1035
          %v1038 = vmax.f32 %v1037, 0.0
          %1039 = vst [vmem:[%s514] sm:$0xff] %v1038
        $region78: #{siamese_forward.12} parent=65 // pred_fallthru
          _
        %s1040 = smul.u32 2, %s18
        %p1041 = scmp.lt.s32.totalorder %s1040, 3
        %s1042 = scalar_select %p1041, %s1040, 3
        %s1043 = smul.addr %s1042, 4
        %s1044 = scalar_lea.vmem %s3, %s1043
        // Predicated region
        $region79: #{siamese_forward.12} parent=65 // pred_check
          %p1045 = pneg %p124
        $region80: #{siamese_forward.12} parent=65 // pred_check_branch
          %1047 = sbr.rel (%p1045) target = $region82
        $region81: #{siamese_forward.12} parent=65 // pred_region
          %s1048 = smul.u32 2, %s18
        $region82: #{siamese_forward.12} parent=65 // pred_fallthru
          _
      $region66: #{siamese_forward.12} parent=5 // pred_fallthru
        _
      %p1049 = scmp.le.s32.totalorder 2, %s9
      // Predicated region
      $region83: #{siamese_forward.12} parent=5 // pred_check
        %p1050 = pneg %p1049
      $region84: #{siamese_forward.12} parent=5 // pred_check_branch
        %1052 = sbr.rel (%p1050) target = $region86
      $region85: #{siamese_forward.12} parent=5 // pred_region
        %s1053 = ssub.s32 %s9, 2
        // Predicated region
        $region87: #{siamese_forward.12} parent=85 // pred_check
          %p1054 = pneg %p130
        $region88: #{siamese_forward.12} parent=85 // pred_check_branch
          %1056 = sbr.rel (%p1054) target = $region90
        $region89: #{siamese_forward.12} parent=85 // pred_region
          %s1057 = smul.u32 2, %s20
          %p1058 = scmp.lt.s32.totalorder %s1057, 3
          %s1059 = scalar_select %p1058, %s1057, 3
          %s1060 = smul.addr %s1059, 4
          %s1061 = scalar_lea.vmem %s3, %s1060
        $region90: #{siamese_forward.12} parent=85 // pred_fallthru
          _
      $region86: #{siamese_forward.12} parent=5 // pred_fallthru
        _
    $region6: #{siamese_forward.12} parent=1 // loop_footer
      %s13 = sadd.s32 1, %s9
    $region7: #{siamese_forward.12} parent=1 // loop_footer_branch
      %8 = sbr.rel target = $region3
    $region8: #{siamese_forward.12} parent=1 // loop_exit
      _

</llo_original>
